<compile_context>
chip_gen: v6e
topology: v6e:2x2x1
jax: 0.10.0
libtpu: 0.0.40
codegen_flags: <defaults>
</compile_context>

<pallas_src>
import functools

import jax
import jax.numpy as jnp
from jax.experimental import pallas as pl
from jax.experimental.pallas import tpu as pltpu

BOTTLENECK = 300
H_LAYER = 600
DROPOUT_P = 0.5
LANE = 128


def _round_up(n, m):
    return ((n + m - 1) // m) * m


PB = _round_up(BOTTLENECK, LANE)   # 384 : padded bottleneck (3 * 128 lanes)
PH = _round_up(H_LAYER, LANE)      # 640 : padded hidden    (5 * 128 lanes)

_KEEP_PROB = 1.0 - DROPOUT_P
_DROPOUT_SCALE = 1.0 / (1.0 - DROPOUT_P)


def _x_geometry(x_layer, block_x=1024):
    """X-chunk size (multiple of 128) and padded X so chunks tile it exactly."""
    block_x = max(LANE, _round_up(block_x, LANE))
    tx = min(block_x, _round_up(x_layer, LANE))
    xp = _round_up(x_layer, tx)
    return tx, xp


def _keep_mask(seed, row0, col0, shape):
    """Stateless Bernoulli(keep_prob) mask keyed on (seed, global row, global col).

    Pure jnp integer ops (murmur-style fmix32) so it lowers on Mosaic *and* the
    CPU interpreter — unlike pltpu.prng_* which is TPU-only.
    """
    rows = (jax.lax.broadcasted_iota(jnp.int32, shape, 0) + row0).astype(jnp.uint32)
    cols = (jax.lax.broadcasted_iota(jnp.int32, shape, 1) + col0).astype(jnp.uint32)
    s = jnp.asarray(seed, jnp.int32).astype(jnp.uint32)

    h = rows * jnp.uint32(0x9E3779B1)
    h = h ^ (cols * jnp.uint32(0x85EBCA77))
    h = h ^ (s * jnp.uint32(0xC2B2AE3D))
    h = h ^ jnp.right_shift(h, jnp.uint32(16))
    h = h * jnp.uint32(0x7FEB352D)
    h = h ^ jnp.right_shift(h, jnp.uint32(15))
    h = h * jnp.uint32(0x846CA68B)
    h = h ^ jnp.right_shift(h, jnp.uint32(16))

    # top-ish 24 bits -> uniform in [0, 1)
    u24 = jnp.right_shift(h, jnp.uint32(8)).astype(jnp.int32)
    u = u24.astype(jnp.float32) * jnp.float32(1.0 / 16777216.0)
    return u < jnp.float32(_KEEP_PROB)


def _resident_spec(shape, index_map):
    """Single-buffered BlockSpec for grid-invariant weights (halves VMEM)."""
    try:
        return pl.BlockSpec(shape, index_map, pipeline_mode=pl.Buffered(1))
    except (TypeError, AttributeError):   # older jax without pipeline_mode
        return pl.BlockSpec(shape, index_map)


# --------------------------------------------------------------------------
# Kernel A: normalize + dropout + encoder + reparameterize + decoder hidden.
#   grid = (batch tiles [parallel], X chunks [arbitrary K-reduction])
# --------------------------------------------------------------------------
def encoder_kernel(seed_ref,                                  # scalar prefetch
                   x_ref, eps_ref,                            # streamed tiles
                   w1e_ref, b1e_ref, wml_ref, bml_ref,        # weights
                   w1d_ref, b1d_ref,
                   hd_ref, mu_ref, lv_ref,                    # outputs
                   acc_ref, ss_ref):                          # scratch
    i = pl.program_id(0)
    k = pl.program_id(1)
    nk = pl.num_programs(1)
    tb, tx = x_ref.shape
    pb = mu_ref.shape[-1]

    @pl.when(k == 0)
    def _init():
        acc_ref[...] = jnp.zeros_like(acc_ref)
        ss_ref[...] = jnp.zeros_like(ss_ref)

    x = x_ref[...].astype(jnp.float32)
    # Partial row sum-of-squares for F.normalize.
    ss_ref[...] += jnp.sum(x * x, axis=-1, keepdims=True)

    # Dropout(p=0.5, train).  The per-row L2 normalization scale commutes with
    # the matmul, so we accumulate (mask * 2 * x) @ W and scale afterwards.
    keep = _keep_mask(seed_ref[0], i * tb, k * tx, x.shape)
    xd = jnp.where(keep, x * _DROPOUT_SCALE, 0.0).astype(jnp.bfloat16)
    acc_ref[...] += jnp.dot(xd, w1e_ref[...], preferred_element_type=jnp.float32)

    @pl.when(k == nk - 1)
    def _finalize():
        # F.normalize: x / max(||x||, 1e-12) == x * rsqrt(max(sum x^2, 1e-24))
        inv_norm = jax.lax.rsqrt(jnp.maximum(ss_ref[...], 1e-24))
        h = jnp.tanh(acc_ref[...] * inv_norm + b1e_ref[...]).astype(jnp.bfloat16)

        # Fused mu|logvar projection, split on a 128-lane boundary.
        ml = jnp.dot(h, wml_ref[...], preferred_element_type=jnp.float32) + bml_ref[...]
        mu = ml[:, :pb]
        logvar = ml[:, pb:]

        # Reparameterization: z = mu + eps * exp(0.5 * logvar)
        z = (mu + eps_ref[...] * jnp.exp(0.5 * logvar)).astype(jnp.bfloat16)

        hd = jnp.tanh(jnp.dot(z, w1d_ref[...], preferred_element_type=jnp.float32)
                      + b1d_ref[...])
        hd_ref[...] = hd.astype(hd_ref.dtype)
        mu_ref[...] = mu
        lv_ref[...] = logvar


# --------------------------------------------------------------------------
# Kernel B: decoder output  recon[:, chunk] = hd @ w2d[:, chunk] + b2d[chunk]
#   grid = (batch tiles [parallel], X chunks [parallel])
# --------------------------------------------------------------------------
def decoder_out_kernel(hd_ref, w2d_ref, b2d_ref, out_ref):
    y = jnp.dot(hd_ref[...], w2d_ref[...], preferred_element_type=jnp.float32)
    out_ref[...] = (y + b2d_ref[...]).astype(out_ref.dtype)


def _vmem_limit(working_set_bytes):
    # Generous margin for layout padding / compiler internal scratch; never go
    # below the v6e default (32 MiB) so small problems are unaffected.
    return int(min(max(32 << 20, int(working_set_bytes * 1.5) + (4 << 20)),
                   112 << 20))


@functools.partial(jax.jit, static_argnames=("block_b", "block_x", "out_dtype"))
def cvae_forward(x, eps, seed, params, *, block_b=256, block_x=1024,
                 out_dtype=jnp.float32):
    """Runs the CVAE forward pass.  Returns (reconstruction, mu, logvar)."""
    B, X = x.shape
    tx, Xp = _x_geometry(X, block_x)
    nkx = Xp // tx

    assert params["w1e"].shape == (Xp, PH), (
        "params were built for a different X padding; pass the same block_x "
        "to init_params and cvae_forward")

    # Batch tile: multiple of 8 sublanes, at least two tiles so the 'parallel'
    # batch axis can shard across v7x's two TensorCores.
    tb = min(block_b, max(8, _round_up((B + 1) // 2, 8)))
    nb = -(-B // tb)
    Bp = nb * tb

    # Only pad when actually needed (the aligned path is zero-copy).
    x_p = x if (Bp == B and Xp == X) else jnp.pad(x, ((0, Bp - B), (0, Xp - X)))
    eps_p = (eps.astype(jnp.float32) if eps.shape == (Bp, PB)
             else jnp.pad(eps.astype(jnp.float32),
                          ((0, Bp - B), (0, PB - eps.shape[1]))))
    seed_arr = jnp.asarray(seed, jnp.int32).reshape((1,))

    x_item = jnp.dtype(x_p.dtype).itemsize
    out_item = jnp.dtype(out_dtype).itemsize

    # ---------------- encoder / reparam / decoder-hidden call ----------------
    resident_bytes = (PH * 4 + PH * 2 * PB * 2 + 2 * PB * 4 + PB * PH * 2 + PH * 4)
    ws_a = (2 * tb * tx * x_item          # x tiles (double buffered)
            + 2 * tb * PB * 4             # eps tiles
            + 2 * tx * PH * 2             # streamed w1e chunk (bf16)
            + resident_bytes              # single-buffered resident weights
            + 2 * tb * PH * 2             # hd output tiles (bf16)
            + 4 * tb * PB * 4             # mu + logvar output tiles
            + tb * PH * 4 + tb * 128 * 4)  # scratch acc + ss

    w_a_bytes = sum(int(params[n].size) * jnp.dtype(params[n].dtype).itemsize
                    for n in ("w1e", "b1e", "wml", "bml", "w1d", "b1d"))
    cost_a = pl.CostEstimate(
        flops=2 * Bp * (Xp * PH + PH * 2 * PB + PB * PH),
        transcendentals=Bp * (2 * PH + PB),
        bytes_accessed=int(Bp * Xp * x_item + Bp * PB * 4 + w_a_bytes
                           + Bp * PH * 2 + 2 * Bp * PB * 4))

    grid_spec_a = pltpu.PrefetchScalarGridSpec(
        num_scalar_prefetch=1,
        grid=(nb, nkx),
        in_specs=[
            pl.BlockSpec((tb, tx), lambda i, k, s: (i, k)),        # x chunk
            pl.BlockSpec((tb, PB), lambda i, k, s: (i, 0)),        # eps
            pl.BlockSpec((tx, PH), lambda i, k, s: (k, 0)),        # w1e chunk
            _resident_spec((1, PH), lambda i, k, s: (0, 0)),       # b1e
            _resident_spec((PH, 2 * PB), lambda i, k, s: (0, 0)),  # wml
            _resident_spec((1, 2 * PB), lambda i, k, s: (0, 0)),   # bml
            _resident_spec((PB, PH), lambda i, k, s: (0, 0)),      # w1d
            _resident_spec((1, PH), lambda i, k, s: (0, 0)),       # b1d
        ],
        out_specs=(
            pl.BlockSpec((tb, PH), lambda i, k, s: (i, 0)),        # hd (bf16)
            pl.BlockSpec((tb, PB), lambda i, k, s: (i, 0)),        # mu
            pl.BlockSpec((tb, PB), lambda i, k, s: (i, 0)),        # logvar
        ),
        scratch_shapes=[pltpu.VMEM((tb, PH), jnp.float32),
                        pltpu.VMEM((tb, 1), jnp.float32)],
    )

    hd, mu, logvar = pl.pallas_call(
        encoder_kernel,
        out_shape=(jax.ShapeDtypeStruct((Bp, PH), jnp.bfloat16),
                   jax.ShapeDtypeStruct((Bp, PB), jnp.float32),
                   jax.ShapeDtypeStruct((Bp, PB), jnp.float32)),
        grid_spec=grid_spec_a,
        compiler_params=pltpu.CompilerParams(
            dimension_semantics=("parallel", "arbitrary"),
            vmem_limit_bytes=_vmem_limit(ws_a)),
        cost_estimate=cost_a,
    )(seed_arr, x_p, eps_p,
      params["w1e"], params["b1e"], params["wml"], params["bml"],
      params["w1d"], params["b1d"])

    # ------------------------- decoder output call ---------------------------
    ws_b = (2 * tb * PH * 2 + 2 * PH * tx * 2 + 2 * 8 * tx * 4
            + 2 * tb * tx * out_item)
    w_b_bytes = sum(int(params[n].size) * jnp.dtype(params[n].dtype).itemsize
                    for n in ("w2d", "b2d"))
    cost_b = pl.CostEstimate(
        flops=2 * Bp * PH * Xp,
        transcendentals=0,
        bytes_accessed=int(Bp * PH * 2 + w_b_bytes + Bp * Xp * out_item))

    grid_spec_b = pltpu.PrefetchScalarGridSpec(
        num_scalar_prefetch=0,
        grid=(nb, nkx),
        in_specs=[
            pl.BlockSpec((tb, PH), lambda i, j: (i, 0)),   # hd
            pl.BlockSpec((PH, tx), lambda i, j: (0, j)),   # w2d chunk
            pl.BlockSpec((1, tx), lambda i, j: (0, j)),    # b2d chunk
        ],
        out_specs=pl.BlockSpec((tb, tx), lambda i, j: (i, j)),
    )

    recon = pl.pallas_call(
        decoder_out_kernel,
        out_shape=jax.ShapeDtypeStruct((Bp, Xp), out_dtype),
        grid_spec=grid_spec_b,
        compiler_params=pltpu.CompilerParams(
            dimension_semantics=("parallel", "parallel"),
            vmem_limit_bytes=_vmem_limit(ws_b)),
        cost_estimate=cost_b,
    )(hd, params["w2d"], params["b2d"])

    return (recon[:B, :X], mu[:B, :BOTTLENECK], logvar[:B, :BOTTLENECK])


def init_params(key, x_layer, block_x=1024):
    """nn.Linear-style U(-1/sqrt(fan_in), 1/sqrt(fan_in)) init, zero-padded to
    lane/chunk multiples; weights stored bf16 (MXU inputs), biases f32."""
    _, xp = _x_geometry(x_layer, block_x)

    def linear(k, fan_in, fan_out, pad_in, pad_out):
        kw, kb = jax.random.split(k)
        bound = float(fan_in) ** -0.5
        w = jax.random.uniform(kw, (fan_in, fan_out), jnp.float32, -bound, bound)
        b = jax.random.uniform(kb, (1, fan_out), jnp.float32, -bound, bound)
        w = jnp.pad(w, ((0, pad_in - fan_in), (0, pad_out - fan_out)))
        b = jnp.pad(b, ((0, 0), (0, pad_out - fan_out)))
        return w.astype(jnp.bfloat16), b

    keys = jax.random.split(key, 5)
    w1e, b1e = linear(keys[0], x_layer, H_LAYER, xp, PH)
    wmu, bmu = linear(keys[1], H_LAYER, BOTTLENECK, PH, PB)
    wlv, blv = linear(keys[2], H_LAYER, BOTTLENECK, PH, PB)
    w1d, b1d = linear(keys[3], BOTTLENECK, H_LAYER, PB, PH)
    w2d, b2d = linear(keys[4], H_LAYER, x_layer, PH, xp)

    # Fuse mu / logvar projections into a single matmul (split in-kernel).
    wml = jnp.concatenate([wmu, wlv], axis=1)
    bml = jnp.concatenate([bmu, blv], axis=1)

    return dict(w1e=w1e, b1e=b1e, wml=wml, bml=bml,
                w1d=w1d, b1d=b1d, w2d=w2d, b2d=b2d)


def _reference_forward(x, eps, seed, params):
    """Pure-JAX reference in the torch op order, using the same dropout mask."""
    B, X = x.shape
    Xp = params["w1e"].shape[0]
    w1e = params["w1e"].astype(jnp.float32)[:X, :H_LAYER]
    b1e = params["b1e"][:, :H_LAYER]
    wml = params["wml"].astype(jnp.float32)[:H_LAYER]
    bml = params["bml"]
    wmu, bmu = wml[:, :BOTTLENECK], bml[:, :BOTTLENECK]
    wlv, blv = wml[:, PB:PB + BOTTLENECK], bml[:, PB:PB + BOTTLENECK]
    w1d = params["w1d"].astype(jnp.float32)[:BOTTLENECK, :H_LAYER]
    b1d = params["b1d"][:, :H_LAYER]
    w2d = params["w2d"].astype(jnp.float32)[:H_LAYER, :X]
    b2d = params["b2d"][:, :X]

    xn = x / jnp.maximum(jnp.linalg.norm(x, axis=-1, keepdims=True), 1e-12)
    keep = _keep_mask(jnp.int32(seed), 0, 0, (B, Xp))[:, :X]
    xd = jnp.where(keep, xn * _DROPOUT_SCALE, 0.0)
    h = jnp.tanh(xd @ w1e + b1e)
    mu = h @ wmu + bmu
    logvar = h @ wlv + blv
    z = mu + eps * jnp.exp(0.5 * logvar)
    hd = jnp.tanh(z @ w1d + b1d)
    recon = hd @ w2d + b2d
    return recon, mu, logvar


if __name__ == "__main__":
    key = jax.random.PRNGKey(0)
    k_x, k_eps, k_params = jax.random.split(key, 3)

    B = 64           # batch; tiled so the parallel axis has >= 2 tiles
    X_LAYER = 512    # number of items (input/output feature dim)

    x = jax.random.uniform(k_x, (B, X_LAYER), jnp.float32)        # implicit feedback
    eps = jax.random.normal(k_eps, (B, BOTTLENECK), jnp.float32)  # randn_like(std)
    params = init_params(k_params, X_LAYER)

    recon, mu, logvar = cvae_forward(x, eps, 0, params)
    jax.block_until_ready((recon, mu, logvar))

    assert recon.shape == (B, X_LAYER)
    assert mu.shape == (B, BOTTLENECK)
    assert logvar.shape == (B, BOTTLENECK)
    assert bool(jnp.all(jnp.isfinite(recon)))
    assert bool(jnp.all(jnp.isfinite(mu)))
    assert bool(jnp.all(jnp.isfinite(logvar)))

    # Validate against a pure-JAX reference that uses the identical dropout
    # mask (loose tolerance covers the bf16 activation/weight casts).
    ref_recon, ref_mu, ref_lv = _reference_forward(x, eps, 0, params)
    assert bool(jnp.allclose(mu, ref_mu, atol=5e-2, rtol=5e-2))
    assert bool(jnp.allclose(logvar, ref_lv, atol=5e-2, rtol=5e-2))
    assert bool(jnp.allclose(recon, ref_recon, atol=5e-2, rtol=5e-2))

    print("KERNEL_OK")
</pallas_src>

<mosaic_0001>
module attributes {stable_mosaic.version = 11 : i64} {
  func.func @decoder_out_kernel(%arg0: i32, %arg1: i32, %arg2: memref<32x640xbf16, #tpu.memory_space<vmem>>, %arg3: memref<640x512xbf16, #tpu.memory_space<vmem>>, %arg4: memref<1x512xf32, #tpu.memory_space<vmem>>, %arg5: memref<32x512xf32, #tpu.memory_space<vmem>>) attributes {dimension_semantics = [#tpu.dimension_semantics<parallel>, #tpu.dimension_semantics<parallel>], iteration_bounds = array<i64: 2, 1>, scalar_prefetch = 0 : i64, scratch_operands = 0 : i64, tpu.core_type = #tpu.core_type<tc>, window_params = [{transform_indices = @transform_0, window_bounds = array<i64: 32, 640>}, {transform_indices = @transform_1, window_bounds = array<i64: 640, 512>}, {transform_indices = @transform_2, window_bounds = array<i64: 1, 512>}, {transform_indices = @transform_3, window_bounds = array<i64: 32, 512>}]} {
    %c0 = arith.constant 0 : index
    %c0_0 = arith.constant 0 : index
    %0 = vector.load %arg2[%c0, %c0_0] : memref<32x640xbf16, #tpu.memory_space<vmem>>, vector<32x640xbf16>
    %c0_1 = arith.constant 0 : index
    %c0_2 = arith.constant 0 : index
    %1 = vector.load %arg3[%c0_1, %c0_2] : memref<640x512xbf16, #tpu.memory_space<vmem>>, vector<640x512xbf16>
    %cst = arith.constant dense<0.000000e+00> : vector<32x512xf32>
    %2 = tpu.matmul %0, %1, %cst {dimension_numbers = #tpu.dot_dimension_numbers<[1], [0], [0], [1], [0, 0, 1, 1], [], []>} : vector<32x640xbf16>, vector<640x512xbf16>, vector<32x512xf32> -> vector<32x512xf32>
    %c0_3 = arith.constant 0 : index
    %c0_4 = arith.constant 0 : index
    %3 = vector.load %arg4[%c0_3, %c0_4] : memref<1x512xf32, #tpu.memory_space<vmem>>, vector<1x512xf32>
    %4 = vector.broadcast %3 : vector<1x512xf32> to vector<32x512xf32>
    %5 = arith.addf %2, %4 : vector<32x512xf32>
    %c0_5 = arith.constant 0 : index
    %c0_6 = arith.constant 0 : index
    %6 = vector.load %arg5[%c0_5, %c0_6] : memref<32x512xf32, #tpu.memory_space<vmem>>, vector<32x512xf32>
    tpu.vector_store %arg5[%c0_5, %c0_6], %5 {strides = array<i32>} : memref<32x512xf32, #tpu.memory_space<vmem>>, vector<32x512xf32>,
    return
  }
  func.func @transform_0(%arg0: i32, %arg1: i32) -> (i32, i32) {
    %c0_i32 = arith.constant 0 : i32
    %c0_i32_0 = arith.constant 0 : i32
    return %arg0, %c0_i32 : i32, i32
  }
  func.func @transform_1(%arg0: i32, %arg1: i32) -> (i32, i32) {
    %c0_i32 = arith.constant 0 : i32
    %c0_i32_0 = arith.constant 0 : i32
    return %c0_i32, %arg1 : i32, i32
  }
  func.func @transform_2(%arg0: i32, %arg1: i32) -> (i32, i32) {
    %c0_i32 = arith.constant 0 : i32
    %c0_i32_0 = arith.constant 0 : i32
    return %c0_i32, %arg1 : i32, i32
  }
  func.func @transform_3(%arg0: i32, %arg1: i32) -> (i32, i32) {
    %c0_i32 = arith.constant 0 : i32
    return %arg0, %arg1 : i32, i32
  }
}

module attributes {stable_mosaic.version = 11 : i64} {
  func.func @encoder_kernel(%arg0: i32, %arg1: i32, %arg2: memref<1xi32, #tpu.memory_space<smem>>, %arg3: memref<32x512xf32, #tpu.memory_space<vmem>>, %arg4: memref<32x384xf32, #tpu.memory_space<vmem>>, %arg5: memref<512x640xbf16, #tpu.memory_space<vmem>>, %arg6: memref<1x640xf32, #tpu.memory_space<vmem>>, %arg7: memref<640x768xbf16, #tpu.memory_space<vmem>>, %arg8: memref<1x768xf32, #tpu.memory_space<vmem>>, %arg9: memref<384x640xbf16, #tpu.memory_space<vmem>>, %arg10: memref<1x640xf32, #tpu.memory_space<vmem>>, %arg11: memref<32x640xbf16, #tpu.memory_space<vmem>>, %arg12: memref<32x384xf32, #tpu.memory_space<vmem>>, %arg13: memref<32x384xf32, #tpu.memory_space<vmem>>, %arg14: memref<32x640xf32, #tpu.memory_space<vmem>>, %arg15: memref<32x1xf32, #tpu.memory_space<vmem>>) attributes {dimension_semantics = [#tpu.dimension_semantics<parallel>, #tpu.dimension_semantics<arbitrary>], iteration_bounds = array<i64: 2, 1>, scalar_prefetch = 1 : i64, scratch_operands = 2 : i64, tpu.core_type = #tpu.core_type<tc>, window_params = [{transform_indices = @transform_0, window_bounds = array<i64: 32, 512>}, {transform_indices = @transform_1, window_bounds = array<i64: 32, 384>}, {transform_indices = @transform_2, window_bounds = array<i64: 512, 640>}, {pipeline_mode = #tpu.pipeline_mode<synchronous>, transform_indices = @transform_3, window_bounds = array<i64: 1, 640>}, {pipeline_mode = #tpu.pipeline_mode<synchronous>, transform_indices = @transform_4, window_bounds = array<i64: 640, 768>}, {pipeline_mode = #tpu.pipeline_mode<synchronous>, transform_indices = @transform_5, window_bounds = array<i64: 1, 768>}, {pipeline_mode = #tpu.pipeline_mode<synchronous>, transform_indices = @transform_6, window_bounds = array<i64: 384, 640>}, {pipeline_mode = #tpu.pipeline_mode<synchronous>, transform_indices = @transform_7, window_bounds = array<i64: 1, 640>}, {transform_indices = @transform_8, window_bounds = array<i64: 32, 640>}, {transform_indices = @transform_9, window_bounds = array<i64: 32, 384>}, {transform_indices = @transform_10, window_bounds = array<i64: 32, 384>}]} {
    %c0_i32 = arith.constant 0 : i32
    %0 = arith.cmpi eq, %arg1, %c0_i32 : i32
    %1 = arith.extui %0 : i1 to i32
    %c0_i32_0 = arith.constant 0 : i32
    %2 = arith.cmpi ne, %1, %c0_i32_0 : i32
    scf.if %2 {
      %cst_21 = arith.constant 0.000000e+00 : f32
      %60 = vector.broadcast %cst_21 : f32 to vector<32x640xf32>
      %c0_22 = arith.constant 0 : index
      %c0_23 = arith.constant 0 : index
      %61 = vector.load %arg14[%c0_22, %c0_23] : memref<32x640xf32, #tpu.memory_space<vmem>>, vector<32x640xf32>
      tpu.vector_store %arg14[%c0_22, %c0_23], %60 {strides = array<i32>} : memref<32x640xf32, #tpu.memory_space<vmem>>, vector<32x640xf32>,
      %cst_24 = arith.constant 0.000000e+00 : f32
      %62 = vector.broadcast %cst_24 : f32 to vector<32x1xf32>
      %c0_25 = arith.constant 0 : index
      %c0_26 = arith.constant 0 : index
      %63 = vector.load %arg15[%c0_25, %c0_26] : memref<32x1xf32, #tpu.memory_space<vmem>>, vector<32x1xf32>
      tpu.vector_store %arg15[%c0_25, %c0_26], %62 {strides = array<i32>} : memref<32x1xf32, #tpu.memory_space<vmem>>, vector<32x1xf32>,
    } else {
    }
    %c0 = arith.constant 0 : index
    %c0_1 = arith.constant 0 : index
    %3 = vector.load %arg3[%c0, %c0_1] : memref<32x512xf32, #tpu.memory_space<vmem>>, vector<32x512xf32>
    %c0_2 = arith.constant 0 : index
    %c0_3 = arith.constant 0 : index
    %4 = vector.load %arg15[%c0_2, %c0_3] : memref<32x1xf32, #tpu.memory_space<vmem>>, vector<32x1xf32>
    %5 = arith.mulf %3, %3 : vector<32x512xf32>
    %cst = arith.constant dense<0.000000e+00> : vector<32xf32>
    %6 = vector.multi_reduction <add>, %5, %cst [1] : vector<32x512xf32> to vector<32xf32>
    %7 = vector.shape_cast %6 : vector<32xf32> to vector<32x1xf32>
    %8 = arith.addf %4, %7 : vector<32x1xf32>
    %c0_4 = arith.constant 0 : index
    %c0_5 = arith.constant 0 : index
    %9 = vector.load %arg15[%c0_4, %c0_5] : memref<32x1xf32, #tpu.memory_space<vmem>>, vector<32x1xf32>
    tpu.vector_store %arg15[%c0_4, %c0_5], %8 {strides = array<i32>} : memref<32x1xf32, #tpu.memory_space<vmem>>, vector<32x1xf32>,
    %c0_6 = arith.constant 0 : index
    %10 = memref.load %arg2[%c0_6] : memref<1xi32, #tpu.memory_space<smem>>
    %c32_i32 = arith.constant 32 : i32
    %11 = arith.muli %arg0, %c32_i32 : i32
    %c512_i32 = arith.constant 512 : i32
    %12 = arith.muli %arg1, %c512_i32 : i32
    %13 = tpu.iota {dimensions = array<i32: 0>} : vector<32x512xi32>
    %14 = vector.broadcast %11 : i32 to vector<32x512xi32>
    %15 = arith.addi %13, %14 : vector<32x512xi32>
    %16 = tpu.iota {dimensions = array<i32: 1>} : vector<32x512xi32>
    %17 = vector.broadcast %12 : i32 to vector<32x512xi32>
    %18 = arith.addi %16, %17 : vector<32x512xi32>
    %c-1640531535_i32 = arith.constant -1640531535 : i32
    %19 = vector.broadcast %c-1640531535_i32 : i32 to vector<32x512xi32>
    %20 = arith.muli %15, %19 : vector<32x512xi32>
    %c-2048144777_i32 = arith.constant -2048144777 : i32
    %21 = vector.broadcast %c-2048144777_i32 : i32 to vector<32x512xi32>
    %22 = arith.muli %18, %21 : vector<32x512xi32>
    %23 = arith.xori %20, %22 : vector<32x512xi32>
    %c-1028477379_i32 = arith.constant -1028477379 : i32
    %24 = arith.muli %10, %c-1028477379_i32 : i32
    %25 = vector.broadcast %24 : i32 to vector<32x512xi32>
    %26 = arith.xori %23, %25 : vector<32x512xi32>
    %c16_i32 = arith.constant 16 : i32
    %27 = vector.broadcast %c16_i32 : i32 to vector<32x512xi32>
    %28 = arith.shrui %26, %27 : vector<32x512xi32>
    %29 = arith.xori %26, %28 : vector<32x512xi32>
    %c2146121005_i32 = arith.constant 2146121005 : i32
    %30 = vector.broadcast %c2146121005_i32 : i32 to vector<32x512xi32>
    %31 = arith.muli %29, %30 : vector<32x512xi32>
    %c15_i32 = arith.constant 15 : i32
    %32 = vector.broadcast %c15_i32 : i32 to vector<32x512xi32>
    %33 = arith.shrui %31, %32 : vector<32x512xi32>
    %34 = arith.xori %31, %33 : vector<32x512xi32>
    %c-2073254261_i32 = arith.constant -2073254261 : i32
    %35 = vector.broadcast %c-2073254261_i32 : i32 to vector<32x512xi32>
    %36 = arith.muli %34, %35 : vector<32x512xi32>
    %c16_i32_7 = arith.constant 16 : i32
    %37 = vector.broadcast %c16_i32_7 : i32 to vector<32x512xi32>
    %38 = arith.shrui %36, %37 : vector<32x512xi32>
    %39 = arith.xori %36, %38 : vector<32x512xi32>
    %c8_i32 = arith.constant 8 : i32
    %40 = vector.broadcast %c8_i32 : i32 to vector<32x512xi32>
    %41 = arith.shrui %39, %40 : vector<32x512xi32>
    %42 = arith.sitofp %41 : vector<32x512xi32> to vector<32x512xf32>
    %cst_8 = arith.constant 5.96046448E-8 : f32
    %43 = vector.broadcast %cst_8 : f32 to vector<32x512xf32>
    %44 = arith.mulf %42, %43 : vector<32x512xf32>
    %cst_9 = arith.constant 5.000000e-01 : f32
    %45 = vector.broadcast %cst_9 : f32 to vector<32x512xf32>
    %46 = arith.cmpf olt, %44, %45 : vector<32x512xf32>
    %cst_10 = arith.constant 2.000000e+00 : f32
    %47 = vector.broadcast %cst_10 : f32 to vector<32x512xf32>
    %48 = arith.mulf %3, %47 : vector<32x512xf32>
    %cst_11 = arith.constant 0.000000e+00 : f32
    %49 = vector.broadcast %cst_11 : f32 to vector<32x512xf32>
    %50 = arith.select %46, %48, %49 : vector<32x512xi1>, vector<32x512xf32>
    %51 = arith.truncf %50 : vector<32x512xf32> to vector<32x512xbf16>
    %c0_12 = arith.constant 0 : index
    %c0_13 = arith.constant 0 : index
    %52 = vector.load %arg14[%c0_12, %c0_13] : memref<32x640xf32, #tpu.memory_space<vmem>>, vector<32x640xf32>
    %c0_14 = arith.constant 0 : index
    %c0_15 = arith.constant 0 : index
    %53 = vector.load %arg5[%c0_14, %c0_15] : memref<512x640xbf16, #tpu.memory_space<vmem>>, vector<512x640xbf16>
    %cst_16 = arith.constant dense<0.000000e+00> : vector<32x640xf32>
    %54 = tpu.matmul %51, %53, %cst_16 {dimension_numbers = #tpu.dot_dimension_numbers<[1], [0], [0], [1], [0, 0, 1, 1], [], []>} : vector<32x512xbf16>, vector<512x640xbf16>, vector<32x640xf32> -> vector<32x640xf32>
    %55 = arith.addf %52, %54 : vector<32x640xf32>
    %c0_17 = arith.constant 0 : index
    %c0_18 = arith.constant 0 : index
    %56 = vector.load %arg14[%c0_17, %c0_18] : memref<32x640xf32, #tpu.memory_space<vmem>>, vector<32x640xf32>
    tpu.vector_store %arg14[%c0_17, %c0_18], %55 {strides = array<i32>} : memref<32x640xf32, #tpu.memory_space<vmem>>, vector<32x640xf32>,
    %c0_i32_19 = arith.constant 0 : i32
    %57 = arith.cmpi eq, %arg1, %c0_i32_19 : i32
    %58 = arith.extui %57 : i1 to i32
    %c0_i32_20 = arith.constant 0 : i32
    %59 = arith.cmpi ne, %58, %c0_i32_20 : i32
    scf.if %59 {
      %c0_21 = arith.constant 0 : index
      %c0_22 = arith.constant 0 : index
      %60 = vector.load %arg15[%c0_21, %c0_22] : memref<32x1xf32, #tpu.memory_space<vmem>>, vector<32x1xf32>
      %cst_23 = arith.constant 1.000000e-24 : f32
      %61 = vector.broadcast %cst_23 : f32 to vector<32x1xf32>
      %62 = arith.maximumf %60, %61 : vector<32x1xf32>
      %63 = math.rsqrt %62 : vector<32x1xf32>
      %c0_24 = arith.constant 0 : index
      %c0_25 = arith.constant 0 : index
      %64 = vector.load %arg14[%c0_24, %c0_25] : memref<32x640xf32, #tpu.memory_space<vmem>>, vector<32x640xf32>
      %65 = vector.broadcast %63 : vector<32x1xf32> to vector<32x640xf32>
      %66 = arith.mulf %64, %65 : vector<32x640xf32>
      %c0_26 = arith.constant 0 : index
      %c0_27 = arith.constant 0 : index
      %67 = vector.load %arg6[%c0_26, %c0_27] : memref<1x640xf32, #tpu.memory_space<vmem>>, vector<1x640xf32>
      %68 = vector.broadcast %67 : vector<1x640xf32> to vector<32x640xf32>
      %69 = arith.addf %66, %68 : vector<32x640xf32>
      %70 = math.tanh %69 : vector<32x640xf32>
      %71 = arith.truncf %70 : vector<32x640xf32> to vector<32x640xbf16>
      %c0_28 = arith.constant 0 : index
      %c0_29 = arith.constant 0 : index
      %72 = vector.load %arg7[%c0_28, %c0_29] : memref<640x768xbf16, #tpu.memory_space<vmem>>, vector<640x768xbf16>
      %cst_30 = arith.constant dense<0.000000e+00> : vector<32x768xf32>
      %73 = tpu.matmul %71, %72, %cst_30 {dimension_numbers = #tpu.dot_dimension_numbers<[1], [0], [0], [1], [0, 0, 1, 1], [], []>} : vector<32x640xbf16>, vector<640x768xbf16>, vector<32x768xf32> -> vector<32x768xf32>
      %c0_31 = arith.constant 0 : index
      %c0_32 = arith.constant 0 : index
      %74 = vector.load %arg8[%c0_31, %c0_32] : memref<1x768xf32, #tpu.memory_space<vmem>>, vector<1x768xf32>
      %75 = vector.broadcast %74 : vector<1x768xf32> to vector<32x768xf32>
      %76 = arith.addf %73, %75 : vector<32x768xf32>
      %77 = vector.extract_strided_slice %76 {offsets = [0, 0], sizes = [32, 384], strides = [1, 1]} : vector<32x768xf32> to vector<32x384xf32>
      %78 = vector.extract_strided_slice %76 {offsets = [0, 384], sizes = [32, 384], strides = [1, 1]} : vector<32x768xf32> to vector<32x384xf32>
      %c0_33 = arith.constant 0 : index
      %c0_34 = arith.constant 0 : index
      %79 = vector.load %arg4[%c0_33, %c0_34] : memref<32x384xf32, #tpu.memory_space<vmem>>, vector<32x384xf32>
      %cst_35 = arith.constant 5.000000e-01 : f32
      %80 = vector.broadcast %cst_35 : f32 to vector<32x384xf32>
      %81 = arith.mulf %80, %78 : vector<32x384xf32>
      %82 = math.exp %81 : vector<32x384xf32>
      %83 = arith.mulf %79, %82 : vector<32x384xf32>
      %84 = arith.addf %77, %83 : vector<32x384xf32>
      %85 = arith.truncf %84 : vector<32x384xf32> to vector<32x384xbf16>
      %c0_36 = arith.constant 0 : index
      %c0_37 = arith.constant 0 : index
      %86 = vector.load %arg9[%c0_36, %c0_37] : memref<384x640xbf16, #tpu.memory_space<vmem>>, vector<384x640xbf16>
      %cst_38 = arith.constant dense<0.000000e+00> : vector<32x640xf32>
      %87 = tpu.matmul %85, %86, %cst_38 {dimension_numbers = #tpu.dot_dimension_numbers<[1], [0], [0], [1], [0, 0, 1, 1], [], []>} : vector<32x384xbf16>, vector<384x640xbf16>, vector<32x640xf32> -> vector<32x640xf32>
      %c0_39 = arith.constant 0 : index
      %c0_40 = arith.constant 0 : index
      %88 = vector.load %arg10[%c0_39, %c0_40] : memref<1x640xf32, #tpu.memory_space<vmem>>, vector<1x640xf32>
      %89 = vector.broadcast %88 : vector<1x640xf32> to vector<32x640xf32>
      %90 = arith.addf %87, %89 : vector<32x640xf32>
      %91 = math.tanh %90 : vector<32x640xf32>
      %92 = arith.truncf %91 : vector<32x640xf32> to vector<32x640xbf16>
      %c0_41 = arith.constant 0 : index
      %c0_42 = arith.constant 0 : index
      %93 = vector.load %arg11[%c0_41, %c0_42] : memref<32x640xbf16, #tpu.memory_space<vmem>>, vector<32x640xbf16>
      tpu.vector_store %arg11[%c0_41, %c0_42], %92 {strides = array<i32>} : memref<32x640xbf16, #tpu.memory_space<vmem>>, vector<32x640xbf16>,
      %c0_43 = arith.constant 0 : index
      %c0_44 = arith.constant 0 : index
      %94 = vector.load %arg12[%c0_43, %c0_44] : memref<32x384xf32, #tpu.memory_space<vmem>>, vector<32x384xf32>
      tpu.vector_store %arg12[%c0_43, %c0_44], %77 {strides = array<i32>} : memref<32x384xf32, #tpu.memory_space<vmem>>, vector<32x384xf32>,
      %c0_45 = arith.constant 0 : index
      %c0_46 = arith.constant 0 : index
      %95 = vector.load %arg13[%c0_45, %c0_46] : memref<32x384xf32, #tpu.memory_space<vmem>>, vector<32x384xf32>
      tpu.vector_store %arg13[%c0_45, %c0_46], %78 {strides = array<i32>} : memref<32x384xf32, #tpu.memory_space<vmem>>, vector<32x384xf32>,
    } else {
    }
    return
  }
  func.func @transform_0(%arg0: i32, %arg1: i32, %arg2: memref<1xi32, #tpu.memory_space<smem>>) -> (i32, i32) {
    %c0_i32 = arith.constant 0 : i32
    return %arg0, %arg1 : i32, i32
  }
  func.func @transform_1(%arg0: i32, %arg1: i32, %arg2: memref<1xi32, #tpu.memory_space<smem>>) -> (i32, i32) {
    %c0_i32 = arith.constant 0 : i32
    %c0_i32_0 = arith.constant 0 : i32
    return %arg0, %c0_i32 : i32, i32
  }
  func.func @transform_2(%arg0: i32, %arg1: i32, %arg2: memref<1xi32, #tpu.memory_space<smem>>) -> (i32, i32) {
    %c0_i32 = arith.constant 0 : i32
    %c0_i32_0 = arith.constant 0 : i32
    return %arg1, %c0_i32 : i32, i32
  }
  func.func @transform_3(%arg0: i32, %arg1: i32, %arg2: memref<1xi32, #tpu.memory_space<smem>>) -> (i32, i32) {
    %c0_i32 = arith.constant 0 : i32
    %c0_i32_0 = arith.constant 0 : i32
    %c0_i32_1 = arith.constant 0 : i32
    return %c0_i32, %c0_i32_0 : i32, i32
  }
  func.func @transform_4(%arg0: i32, %arg1: i32, %arg2: memref<1xi32, #tpu.memory_space<smem>>) -> (i32, i32) {
    %c0_i32 = arith.constant 0 : i32
    %c0_i32_0 = arith.constant 0 : i32
    %c0_i32_1 = arith.constant 0 : i32
    return %c0_i32, %c0_i32_0 : i32, i32
  }
  func.func @transform_5(%arg0: i32, %arg1: i32, %arg2: memref<1xi32, #tpu.memory_space<smem>>) -> (i32, i32) {
    %c0_i32 = arith.constant 0 : i32
    %c0_i32_0 = arith.constant 0 : i32
    %c0_i32_1 = arith.constant 0 : i32
    return %c0_i32, %c0_i32_0 : i32, i32
  }
  func.func @transform_6(%arg0: i32, %arg1: i32, %arg2: memref<1xi32, #tpu.memory_space<smem>>) -> (i32, i32) {
    %c0_i32 = arith.constant 0 : i32
    %c0_i32_0 = arith.constant 0 : i32
    %c0_i32_1 = arith.constant 0 : i32
    return %c0_i32, %c0_i32_0 : i32, i32
  }
  func.func @transform_7(%arg0: i32, %arg1: i32, %arg2: memref<1xi32, #tpu.memory_space<smem>>) -> (i32, i32) {
    %c0_i32 = arith.constant 0 : i32
    %c0_i32_0 = arith.constant 0 : i32
    %c0_i32_1 = arith.constant 0 : i32
    return %c0_i32, %c0_i32_0 : i32, i32
  }
  func.func @transform_8(%arg0: i32, %arg1: i32, %arg2: memref<1xi32, #tpu.memory_space<smem>>) -> (i32, i32) {
    %c0_i32 = arith.constant 0 : i32
    %c0_i32_0 = arith.constant 0 : i32
    return %arg0, %c0_i32 : i32, i32
  }
  func.func @transform_9(%arg0: i32, %arg1: i32, %arg2: memref<1xi32, #tpu.memory_space<smem>>) -> (i32, i32) {
    %c0_i32 = arith.constant 0 : i32
    %c0_i32_0 = arith.constant 0 : i32
    return %arg0, %c0_i32 : i32, i32
  }
  func.func @transform_10(%arg0: i32, %arg1: i32, %arg2: memref<1xi32, #tpu.memory_space<smem>>) -> (i32, i32) {
    %c0_i32 = arith.constant 0 : i32
    %c0_i32_0 = arith.constant 0 : i32
    return %arg0, %c0_i32 : i32, i32
  }
}

</mosaic_0001>

<llo_original>
// kernel: cvae_forward.3
$region0: #{cvae_forward.3}
  #allocation0 [shape = 'u32[]', space=smem, size = 0x4, offset = 0x4, fixed_abs, tag = 'smem constant byte address 0x4 - core index']
  #allocation1 [shape = 'u32[144,128]{1,0:T(1,128)}', space=vmem, size = 0x12000, scoped, tag = 'internal scratch']
  %s0 = inlined_call_operand.vmem [shape: bf16[64,640], index: 0, kind: input, shape index: {}]
  %s1 = inlined_call_operand.vmem [shape: bf16[640,512], index: 1, kind: input, shape index: {}]
  %s2 = inlined_call_operand.vmem [shape: f32[1,512], index: 2, kind: input, shape index: {}]
  %s3 = inlined_call_operand.hbm [shape: f32[64,512], index: 3, kind: output, shape index: {}]
  %s4 = sld [smem:[#allocation0]]
  $region45: #{cvae_forward.3} parent=0
    _
  %s6 = ssub.s32 1, %s4
  %s7 = scalar_select 0, %s6, %s4
  $region1: #{cvae_forward.3} parent=0
    #allocation2 [shape = 'u8[131072]{0}', space=vmem, size = 0x20000, scoped, tag = 'output window, operand 0']
    #allocation3 [shape = 's32[2]{0}', space=sflag, size = 0x8, scoped, tag = 'scoped memory for cvae_forward.3']
    %8 = vsyncpa [#allocation3], 0
    %s9 = scalar_lea.sflag [#allocation3], 1
    %10 = vsyncpa %s9, 0
    loop: start=0, step=1, limit=4
    $region2: #{cvae_forward.3} parent=1 // loop_pre_header
      _
    $region3: #{cvae_forward.3} parent=1 // loop_header
      %s12 = sphi 0, %s16
      %p13 = scmp.ge.s32.totalorder %s12, 4
      %s19 = sphi 0, %s31
      %s20 = sphi 0, %s27
      %s21 = sphi 0, %s19
      %s22 = sphi 0, %s20
      %s23 = sphi 0, %s21
      %s24 = sphi 0, %s22
      %s34 = sphi 0, %s36
      %s37 = sphi 0, %s34
      %s38 = sphi 0, %s37
      %s54 = sphi 0, %s38
      %s60 = sphi 0, %s62
      %s63 = sphi 0, %s60
      %s64 = sphi 0, %s63
      %s80 = sphi 0, %s64
      %s86 = sphi 0, %s88
      %s89 = sphi 0, %s86
      %s90 = sphi 0, %s89
      %s106 = sphi 0, %s90
      %s114 = sphi 0, %s116
      %s117 = sphi 0, %s114
      %s118 = sphi 0, %s117
      %s134 = sphi 0, %s118
    $region4: #{cvae_forward.3} parent=1 // loop_header_branch
      %15 = sbr.rel (%p13) target = $region8
    $region5: #{cvae_forward.3} parent=1 // loop_body
      %s17 = ssub.s32 %s12, 1
      %s18 = ssub.s32 %s12, 2
      %s25 = sadd.s32 1, %s20
      %p26 = scmp.ge.s32.totalorder %s25, 1
      %s27 = scalar_select %p26, 0, %s25
      %s28 = sadd.s32 1, %s19
      %s29 = scalar_select %p26, %s28, %s19
      %p30 = scmp.ge.s32.totalorder %s29, 2
      %s31 = scalar_select %p30, 0, %s29
      %s32 = ssub.s32 %s19, %s31
      %p33 = scmp.eq.s32.totalorder %s32, 0
      %s35 = sadd.s32 %s34, 1
      %s36 = scalar_select %p33, %s34, %s35
      %p39 = pneg %p33
      %p40 = scmp.eq.s32.totalorder %s12, 1
      %p41 = por %p39, %p40
      %p42 = scmp.ne.s32.totalorder %s34, %s37
      %p43 = scmp.eq.s32.totalorder %s12, 0
      %p44 = por %p42, %p43
      %p45 = scmp.ne.s32.totalorder %s34, %s37
      %p46 = scmp.eq.s32.totalorder %s17, 1
      %p47 = por %p45, %p46
      %p48 = scmp.ne.s32.totalorder %s37, %s38
      %p49 = scmp.eq.s32.totalorder %s17, 0
      %p50 = por %p48, %p49
      %p51 = scmp.ne.s32.totalorder %s37, %s38
      %p52 = scmp.eq.s32.totalorder %s18, 1
      %p53 = por %p51, %p52
      %p55 = scmp.ne.s32.totalorder %s38, %s54
      %p56 = scmp.eq.s32.totalorder %s18, 0
      %p57 = por %p55, %p56
      %s58 = ssub.s32 %s20, %s27
      %p59 = scmp.eq.s32.totalorder %s58, 0
      %s61 = sadd.s32 %s60, 1
      %s62 = scalar_select %p59, %s60, %s61
      %p65 = pneg %p59
      %p66 = scmp.eq.s32.totalorder %s12, 1
      %p67 = por %p65, %p66
      %p68 = scmp.ne.s32.totalorder %s60, %s63
      %p69 = scmp.eq.s32.totalorder %s12, 0
      %p70 = por %p68, %p69
      %p71 = scmp.ne.s32.totalorder %s60, %s63
      %p72 = scmp.eq.s32.totalorder %s17, 1
      %p73 = por %p71, %p72
      %p74 = scmp.ne.s32.totalorder %s63, %s64
      %p75 = scmp.eq.s32.totalorder %s17, 0
      %p76 = por %p74, %p75
      %p77 = scmp.ne.s32.totalorder %s63, %s64
      %p78 = scmp.eq.s32.totalorder %s18, 1
      %p79 = por %p77, %p78
      %p81 = scmp.ne.s32.totalorder %s64, %s80
      %p82 = scmp.eq.s32.totalorder %s18, 0
      %p83 = por %p81, %p82
      %s84 = ssub.s32 %s20, %s27
      %p85 = scmp.eq.s32.totalorder %s84, 0
      %s87 = sadd.s32 %s86, 1
      %s88 = scalar_select %p85, %s86, %s87
      %p91 = pneg %p85
      %p92 = scmp.eq.s32.totalorder %s12, 1
      %p93 = por %p91, %p92
      %p94 = scmp.ne.s32.totalorder %s86, %s89
      %p95 = scmp.eq.s32.totalorder %s12, 0
      %p96 = por %p94, %p95
      %p97 = scmp.ne.s32.totalorder %s86, %s89
      %p98 = scmp.eq.s32.totalorder %s17, 1
      %p99 = por %p97, %p98
      %p100 = scmp.ne.s32.totalorder %s89, %s90
      %p101 = scmp.eq.s32.totalorder %s17, 0
      %p102 = por %p100, %p101
      %p103 = scmp.ne.s32.totalorder %s89, %s90
      %p104 = scmp.eq.s32.totalorder %s18, 1
      %p105 = por %p103, %p104
      %p107 = scmp.ne.s32.totalorder %s90, %s106
      %p108 = scmp.eq.s32.totalorder %s18, 0
      %p109 = por %p107, %p108
      %s110 = ssub.s32 %s19, %s31
      %s111 = ssub.s32 %s20, %s27
      %s112 = sor.u32 %s110, %s111
      %p113 = scmp.eq.s32.totalorder %s112, 0
      %s115 = sadd.s32 %s114, 1
      %s116 = scalar_select %p113, %s114, %s115
      %p119 = pneg %p113
      %p120 = scmp.eq.s32.totalorder %s12, 1
      %p121 = por %p119, %p120
      %p122 = scmp.ne.s32.totalorder %s114, %s117
      %p123 = scmp.eq.s32.totalorder %s12, 0
      %p124 = por %p122, %p123
      %p125 = scmp.ne.s32.totalorder %s114, %s117
      %p126 = scmp.eq.s32.totalorder %s17, 1
      %p127 = por %p125, %p126
      %p128 = scmp.ne.s32.totalorder %s117, %s118
      %p129 = scmp.eq.s32.totalorder %s17, 0
      %p130 = por %p128, %p129
      %p131 = scmp.ne.s32.totalorder %s117, %s118
      %p132 = scmp.eq.s32.totalorder %s18, 1
      %p133 = por %p131, %p132
      %p135 = scmp.ne.s32.totalorder %s118, %s134
      %p136 = scmp.eq.s32.totalorder %s18, 0
      %p137 = por %p135, %p136
      %p138 = scmp.le.s32.totalorder 1, %s12
      %p139 = scmp.lt.s32.totalorder %s12, 3
      %p140 = pnand %p138, %p139
      %p141 = pneg %p140
      // Predicated region
      $region9: #{cvae_forward.3} parent=5 // pred_check
        _
      $region10: #{cvae_forward.3} parent=5 // pred_check_branch
        %143 = sbr.rel (%p140) target = $region12
      $region11: #{cvae_forward.3} parent=5 // pred_region
        %s144 = ssub.s32 %s12, 1
        // Predicated region
        $region13: #{cvae_forward.3} parent=11 // pred_check
          %p145 = pneg %p76
        $region14: #{cvae_forward.3} parent=11 // pred_check_branch
          %147 = sbr.rel (%p145) target = $region16
        $region15: #{cvae_forward.3} parent=11 // pred_region
          %s148 = smul.u32 4, %s22
          %p149 = scmp.lt.s32.totalorder %s148, 3
          %s150 = scalar_select %p149, %s148, 3
          %s151 = smul.addr %s150, 4
          %s152 = scalar_lea.vmem %s1, %s151
          %s153 = smul.u32 4, %s22
        $region16: #{cvae_forward.3} parent=11 // pred_fallthru
          _
        // Predicated region
        $region17: #{cvae_forward.3} parent=11 // pred_check
          %p154 = pneg %p102
        $region18: #{cvae_forward.3} parent=11 // pred_check_branch
          %156 = sbr.rel (%p154) target = $region20
        $region19: #{cvae_forward.3} parent=11 // pred_region
          %s157 = smul.u32 4, %s22
          %p158 = scmp.lt.s32.totalorder %s157, 3
          %s159 = scalar_select %p158, %s157, 3
          %s160 = scalar_lea.vmem %s2, %s159
          %s161 = smul.u32 4, %s22
        $region20: #{cvae_forward.3} parent=11 // pred_fallthru
          _
      $region12: #{cvae_forward.3} parent=5 // pred_fallthru
        _
      %p162 = scmp.lt.s32.totalorder %s12, 2
      // Predicated region
      $region21: #{cvae_forward.3} parent=5 // pred_check
        %p163 = pneg %p162
      $region22: #{cvae_forward.3} parent=5 // pred_check_branch
        %165 = sbr.rel (%p163) target = $region24
      $region23: #{cvae_forward.3} parent=5 // pred_region
        // Predicated region
        $region25: #{cvae_forward.3} parent=23 // pred_check
          %p166 = pneg %p44
        $region26: #{cvae_forward.3} parent=23 // pred_check_branch
          %168 = sbr.rel (%p166) target = $region28
        $region27: #{cvae_forward.3} parent=23 // pred_region
          %s169 = smul.u32 4, %s19
          %p170 = scmp.lt.s32.totalorder %s169, 7
          %s171 = scalar_select %p170, %s169, 7
          %s172 = smul.addr %s171, 5
          %s173 = smul.addr %s172, 4
          %s174 = scalar_lea.vmem %s0, %s173
          %s175 = smul.u32 4, %s19
        $region28: #{cvae_forward.3} parent=23 // pred_fallthru
          _
      $region24: #{cvae_forward.3} parent=5 // pred_fallthru
        _
      %p176 = scmp.le.s32.totalorder 1, %s12
      %p177 = scmp.lt.s32.totalorder %s12, 3
      %p178 = pnand %p176, %p177
      %p179 = pneg %p178
      // Predicated region
      $region29: #{cvae_forward.3} parent=5 // pred_check
        _
      $region30: #{cvae_forward.3} parent=5 // pred_check_branch
        %181 = sbr.rel (%p178) target = $region32
      $region31: #{cvae_forward.3} parent=5 // pred_region
        %s182 = ssub.s32 %s12, 1
        %s183 = smul.u32 4, %s21
        %p184 = scmp.lt.s32.totalorder %s183, 7
        %s185 = scalar_select %p184, %s183, 7
        %s186 = smul.addr %s185, 5
        %s187 = smul.addr %s186, 4
        %s188 = scalar_lea.vmem %s0, %s187
        %p189 = pneg %p50
        %p190 = pneg %p47
        %s191 = smul.u32 4, %s22
        %p192 = scmp.lt.s32.totalorder %s191, 3
        %s193 = scalar_select %p192, %s191, 3
        %s194 = smul.addr %s193, 4
        %s195 = scalar_lea.vmem %s1, %s194
        %p196 = pneg %p76
        %p197 = pneg %p73
        %s198 = smul.u32 4, %s22
        %p199 = scmp.lt.s32.totalorder %s198, 3
        %s200 = scalar_select %p199, %s198, 3
        %s201 = scalar_lea.vmem %s2, %s200
        %p202 = pneg %p102
        %p203 = pneg %p99
        %p204 = pneg %p130
        %p205 = pneg %p127
        %s206 = sand.u32 %s117, 1
        %s207 = scalar_lea.sflag [#allocation3], %s206
        %s208 = sand.u32 %s117, 1
        %s209 = smul.addr %s208, 128
        %s210 = scalar_lea.vmem [#allocation2], %s209
        %s211 = smul.u32 4, %s21
        %p212 = scmp.lt.s32.totalorder %s211, 7
        %s213 = scalar_select %p212, %s211, 7
        %s214 = smul.addr %s213, 5
        %s215 = smul.addr %s214, 4
        %s216 = scalar_lea.vmem %s0, %s215
        %s217 = smul.u32 4, %s21
        %s218 = smul.u32 4, %s22
        %p219 = scmp.lt.s32.totalorder %s218, 3
        %s220 = scalar_select %p219, %s218, 3
        %s221 = smul.addr %s220, 4
        %s222 = scalar_lea.vmem %s1, %s221
        %s223 = smul.u32 4, %s22
        %s224 = smul.u32 4, %s22
        %p225 = scmp.lt.s32.totalorder %s224, 3
        %s226 = scalar_select %p225, %s224, 3
        %s227 = scalar_lea.vmem %s2, %s226
        %s228 = smul.u32 4, %s22
        %s229 = smul.u32 4, %s21
        %s230 = smul.u32 4, %s22
        %v232 = vld [vmem:[%s216] sm:$0xff]
        %v233 = vld [vmem:[%s216 + $0x8] sm:$0xff]
        %v234 = vld [vmem:[%s216 + $0x10] sm:$0xf]
        %v235 = vld [vmem:[%s216 + $0x14] sm:$0xff]
        %v236 = vld [vmem:[%s216 + $0x1c] sm:$0xff]
        %v237 = vld [vmem:[%s216 + $0x24] sm:$0xf]
        %v238 = vld [vmem:[%s216 + $0x28] sm:$0xff]
        %v239 = vld [vmem:[%s216 + $0x30] sm:$0xff]
        %v240 = vld [vmem:[%s216 + $0x38] sm:$0xf]
        %v241 = vld [vmem:[%s216 + $0x3c] sm:$0xff]
        %v242 = vld [vmem:[%s216 + $0x44] sm:$0xff]
        %v243 = vld [vmem:[%s216 + $0x4c] sm:$0xf]
        %v244 = vld [vmem:[%s222] sm:$0xff]
        %v245 = vld [vmem:[%s222 + $0x8] sm:$0xff]
        %v246 = vld [vmem:[%s222 + $0x10] sm:$0xff]
        %v247 = vld [vmem:[%s222 + $0x18] sm:$0xff]
        %v248 = vld [vmem:[%s222 + $0x20] sm:$0xff]
        %v249 = vld [vmem:[%s222 + $0x28] sm:$0xff]
        %v250 = vld [vmem:[%s222 + $0x30] sm:$0xff]
        %v251 = vld [vmem:[%s222 + $0x38] sm:$0xff]
        %v252 = vld [vmem:[%s222 + $0x40] sm:$0xff]
        %v253 = vld [vmem:[%s222 + $0x48] sm:$0xff]
        %v254 = vld [vmem:[%s222 + $0x50] sm:$0xff]
        %v255 = vld [vmem:[%s222 + $0x58] sm:$0xff]
        %v256 = vld [vmem:[%s222 + $0x60] sm:$0xff]
        %v257 = vld [vmem:[%s222 + $0x68] sm:$0xff]
        %v258 = vld [vmem:[%s222 + $0x70] sm:$0xff]
        %v259 = vld [vmem:[%s222 + $0x78] sm:$0xff]
        %v260 = vld [vmem:[%s222 + $0x80] sm:$0xff]
        %v261 = vld [vmem:[%s222 + $0x88] sm:$0xff]
        %v262 = vld [vmem:[%s222 + $0x90] sm:$0xff]
        %v263 = vld [vmem:[%s222 + $0x98] sm:$0xff]
        %v264 = vld [vmem:[%s222 + $0xa0] sm:$0xff]
        %v265 = vld [vmem:[%s222 + $0xa8] sm:$0xff]
        %v266 = vld [vmem:[%s222 + $0xb0] sm:$0xff]
        %v267 = vld [vmem:[%s222 + $0xb8] sm:$0xff]
        %v268 = vld [vmem:[%s222 + $0xc0] sm:$0xff]
        %v269 = vld [vmem:[%s222 + $0xc8] sm:$0xff]
        %v270 = vld [vmem:[%s222 + $0xd0] sm:$0xff]
        %v271 = vld [vmem:[%s222 + $0xd8] sm:$0xff]
        %v272 = vld [vmem:[%s222 + $0xe0] sm:$0xff]
        %v273 = vld [vmem:[%s222 + $0xe8] sm:$0xff]
        %v274 = vld [vmem:[%s222 + $0xf0] sm:$0xff]
        %v275 = vld [vmem:[%s222 + $0xf8] sm:$0xff]
        %v276 = vld [vmem:[%s222 + $0x100] sm:$0xff]
        %v277 = vld [vmem:[%s222 + $0x108] sm:$0xff]
        %v278 = vld [vmem:[%s222 + $0x110] sm:$0xff]
        %v279 = vld [vmem:[%s222 + $0x118] sm:$0xff]
        %v280 = vld [vmem:[%s222 + $0x120] sm:$0xff]
        %v281 = vld [vmem:[%s222 + $0x128] sm:$0xff]
        %v282 = vld [vmem:[%s222 + $0x130] sm:$0xff]
        %v283 = vld [vmem:[%s222 + $0x138] sm:$0xff]
        %v284 = vld [vmem:[%s222 + $0x140] sm:$0xff]
        %v285 = vld [vmem:[%s222 + $0x148] sm:$0xff]
        %v286 = vld [vmem:[%s222 + $0x150] sm:$0xff]
        %v287 = vld [vmem:[%s222 + $0x158] sm:$0xff]
        %v288 = vld [vmem:[%s222 + $0x160] sm:$0xff]
        %v289 = vld [vmem:[%s222 + $0x168] sm:$0xff]
        %v290 = vld [vmem:[%s222 + $0x170] sm:$0xff]
        %v291 = vld [vmem:[%s222 + $0x178] sm:$0xff]
        %v292 = vld [vmem:[%s222 + $0x180] sm:$0xff]
        %v293 = vld [vmem:[%s222 + $0x188] sm:$0xff]
        %v294 = vld [vmem:[%s222 + $0x190] sm:$0xff]
        %v295 = vld [vmem:[%s222 + $0x198] sm:$0xff]
        %v296 = vld [vmem:[%s222 + $0x1a0] sm:$0xff]
        %v297 = vld [vmem:[%s222 + $0x1a8] sm:$0xff]
        %v298 = vld [vmem:[%s222 + $0x1b0] sm:$0xff]
        %v299 = vld [vmem:[%s222 + $0x1b8] sm:$0xff]
        %v300 = vld [vmem:[%s222 + $0x1c0] sm:$0xff]
        %v301 = vld [vmem:[%s222 + $0x1c8] sm:$0xff]
        %v302 = vld [vmem:[%s222 + $0x1d0] sm:$0xff]
        %v303 = vld [vmem:[%s222 + $0x1d8] sm:$0xff]
        %v304 = vld [vmem:[%s222 + $0x1e0] sm:$0xff]
        %v305 = vld [vmem:[%s222 + $0x1e8] sm:$0xff]
        %v306 = vld [vmem:[%s222 + $0x1f0] sm:$0xff]
        %v307 = vld [vmem:[%s222 + $0x1f8] sm:$0xff]
        %v308 = vld [vmem:[%s222 + $0x200] sm:$0xff]
        %v309 = vld [vmem:[%s222 + $0x208] sm:$0xff]
        %v310 = vld [vmem:[%s222 + $0x210] sm:$0xff]
        %v311 = vld [vmem:[%s222 + $0x218] sm:$0xff]
        %v312 = vld [vmem:[%s222 + $0x220] sm:$0xff]
        %v313 = vld [vmem:[%s222 + $0x228] sm:$0xff]
        %v314 = vld [vmem:[%s222 + $0x230] sm:$0xff]
        %v315 = vld [vmem:[%s222 + $0x238] sm:$0xff]
        %v316 = vld [vmem:[%s222 + $0x240] sm:$0xff]
        %v317 = vld [vmem:[%s222 + $0x248] sm:$0xff]
        %v318 = vld [vmem:[%s222 + $0x250] sm:$0xff]
        %v319 = vld [vmem:[%s222 + $0x258] sm:$0xff]
        %v320 = vld [vmem:[%s222 + $0x260] sm:$0xff]
        %v321 = vld [vmem:[%s222 + $0x268] sm:$0xff]
        %v322 = vld [vmem:[%s222 + $0x270] sm:$0xff]
        %v323 = vld [vmem:[%s222 + $0x278] sm:$0xff]
        %v324 = vld [vmem:[%s222 + $0x280] sm:$0xff]
        %v325 = vld [vmem:[%s222 + $0x288] sm:$0xff]
        %v326 = vld [vmem:[%s222 + $0x290] sm:$0xff]
        %v327 = vld [vmem:[%s222 + $0x298] sm:$0xff]
        %v328 = vld [vmem:[%s222 + $0x2a0] sm:$0xff]
        %v329 = vld [vmem:[%s222 + $0x2a8] sm:$0xff]
        %v330 = vld [vmem:[%s222 + $0x2b0] sm:$0xff]
        %v331 = vld [vmem:[%s222 + $0x2b8] sm:$0xff]
        %v332 = vld [vmem:[%s222 + $0x2c0] sm:$0xff]
        %v333 = vld [vmem:[%s222 + $0x2c8] sm:$0xff]
        %v334 = vld [vmem:[%s222 + $0x2d0] sm:$0xff]
        %v335 = vld [vmem:[%s222 + $0x2d8] sm:$0xff]
        %v336 = vld [vmem:[%s222 + $0x2e0] sm:$0xff]
        %v337 = vld [vmem:[%s222 + $0x2e8] sm:$0xff]
        %v338 = vld [vmem:[%s222 + $0x2f0] sm:$0xff]
        %v339 = vld [vmem:[%s222 + $0x2f8] sm:$0xff]
        %v340 = vld [vmem:[%s222 + $0x300] sm:$0xff]
        %v341 = vld [vmem:[%s222 + $0x308] sm:$0xff]
        %v342 = vld [vmem:[%s222 + $0x310] sm:$0xff]
        %v343 = vld [vmem:[%s222 + $0x318] sm:$0xff]
        %v344 = vld [vmem:[%s222 + $0x320] sm:$0xff]
        %v345 = vld [vmem:[%s222 + $0x328] sm:$0xff]
        %v346 = vld [vmem:[%s222 + $0x330] sm:$0xff]
        %v347 = vld [vmem:[%s222 + $0x338] sm:$0xff]
        %v348 = vld [vmem:[%s222 + $0x340] sm:$0xff]
        %v349 = vld [vmem:[%s222 + $0x348] sm:$0xff]
        %v350 = vld [vmem:[%s222 + $0x350] sm:$0xff]
        %v351 = vld [vmem:[%s222 + $0x358] sm:$0xff]
        %v352 = vld [vmem:[%s222 + $0x360] sm:$0xff]
        %v353 = vld [vmem:[%s222 + $0x368] sm:$0xff]
        %v354 = vld [vmem:[%s222 + $0x370] sm:$0xff]
        %v355 = vld [vmem:[%s222 + $0x378] sm:$0xff]
        %v356 = vld [vmem:[%s222 + $0x380] sm:$0xff]
        %v357 = vld [vmem:[%s222 + $0x388] sm:$0xff]
        %v358 = vld [vmem:[%s222 + $0x390] sm:$0xff]
        %v359 = vld [vmem:[%s222 + $0x398] sm:$0xff]
        %v360 = vld [vmem:[%s222 + $0x3a0] sm:$0xff]
        %v361 = vld [vmem:[%s222 + $0x3a8] sm:$0xff]
        %v362 = vld [vmem:[%s222 + $0x3b0] sm:$0xff]
        %v363 = vld [vmem:[%s222 + $0x3b8] sm:$0xff]
        %v364 = vld [vmem:[%s222 + $0x3c0] sm:$0xff]
        %v365 = vld [vmem:[%s222 + $0x3c8] sm:$0xff]
        %v366 = vld [vmem:[%s222 + $0x3d0] sm:$0xff]
        %v367 = vld [vmem:[%s222 + $0x3d8] sm:$0xff]
        %v368 = vld [vmem:[%s222 + $0x3e0] sm:$0xff]
        %v369 = vld [vmem:[%s222 + $0x3e8] sm:$0xff]
        %v370 = vld [vmem:[%s222 + $0x3f0] sm:$0xff]
        %v371 = vld [vmem:[%s222 + $0x3f8] sm:$0xff]
        %v372 = vld [vmem:[%s222 + $0x400] sm:$0xff]
        %v373 = vld [vmem:[%s222 + $0x408] sm:$0xff]
        %v374 = vld [vmem:[%s222 + $0x410] sm:$0xff]
        %v375 = vld [vmem:[%s222 + $0x418] sm:$0xff]
        %v376 = vld [vmem:[%s222 + $0x420] sm:$0xff]
        %v377 = vld [vmem:[%s222 + $0x428] sm:$0xff]
        %v378 = vld [vmem:[%s222 + $0x430] sm:$0xff]
        %v379 = vld [vmem:[%s222 + $0x438] sm:$0xff]
        %v380 = vld [vmem:[%s222 + $0x440] sm:$0xff]
        %v381 = vld [vmem:[%s222 + $0x448] sm:$0xff]
        %v382 = vld [vmem:[%s222 + $0x450] sm:$0xff]
        %v383 = vld [vmem:[%s222 + $0x458] sm:$0xff]
        %v384 = vld [vmem:[%s222 + $0x460] sm:$0xff]
        %v385 = vld [vmem:[%s222 + $0x468] sm:$0xff]
        %v386 = vld [vmem:[%s222 + $0x470] sm:$0xff]
        %v387 = vld [vmem:[%s222 + $0x478] sm:$0xff]
        %v388 = vld [vmem:[%s222 + $0x480] sm:$0xff]
        %v389 = vld [vmem:[%s222 + $0x488] sm:$0xff]
        %v390 = vld [vmem:[%s222 + $0x490] sm:$0xff]
        %v391 = vld [vmem:[%s222 + $0x498] sm:$0xff]
        %v392 = vld [vmem:[%s222 + $0x4a0] sm:$0xff]
        %v393 = vld [vmem:[%s222 + $0x4a8] sm:$0xff]
        %v394 = vld [vmem:[%s222 + $0x4b0] sm:$0xff]
        %v395 = vld [vmem:[%s222 + $0x4b8] sm:$0xff]
        %v396 = vld [vmem:[%s222 + $0x4c0] sm:$0xff]
        %v397 = vld [vmem:[%s222 + $0x4c8] sm:$0xff]
        %v398 = vld [vmem:[%s222 + $0x4d0] sm:$0xff]
        %v399 = vld [vmem:[%s222 + $0x4d8] sm:$0xff]
        %v400 = vld [vmem:[%s222 + $0x4e0] sm:$0xff]
        %v401 = vld [vmem:[%s222 + $0x4e8] sm:$0xff]
        %v402 = vld [vmem:[%s222 + $0x4f0] sm:$0xff]
        %v403 = vld [vmem:[%s222 + $0x4f8] sm:$0xff]
        %v404 = vld [vmem:[%s227] sm:$0xf]
        %v406 = vlaneseq
        %v407 = vshrl.u32 %v406, 7
        %v408 = vsub.s32 0, %v407
        %v409 = vrot.slane %v404, %v408
        %v410 = vlaneseq
        %v411 = vshrl.u32 %v410, 7
        %v412 = vsub.s32 1, %v411
        %v413 = vrot.slane %v404, %v412
        %v414 = vlaneseq
        %v415 = vshrl.u32 %v414, 7
        %v416 = vsub.s32 2, %v415
        %v417 = vrot.slane %v404, %v416
        %v418 = vlaneseq
        %v419 = vshrl.u32 %v418, 7
        %v420 = vsub.s32 3, %v419
        %v421 = vrot.slane %v404, %v420
        %v438 = vunpack.c.l.b16 %v232
        %v439 = vunpack.c.h.b16 %v232
        %v440 = vunpack.c.l.b16 %v233
        %v441 = vunpack.c.h.b16 %v233
        %v442 = vunpack.c.l.b16 %v234
        %v443 = vunpack.c.l.b16 %v235
        %v444 = vunpack.c.h.b16 %v235
        %v445 = vunpack.c.l.b16 %v236
        %v446 = vunpack.c.h.b16 %v236
        %v447 = vunpack.c.l.b16 %v237
        %v448 = vunpack.c.l.b16 %v238
        %v449 = vunpack.c.h.b16 %v238
        %v450 = vunpack.c.l.b16 %v239
        %v451 = vunpack.c.h.b16 %v239
        %v452 = vunpack.c.l.b16 %v240
        %v453 = vunpack.c.l.b16 %v241
        %v454 = vunpack.c.h.b16 %v241
        %v455 = vunpack.c.l.b16 %v242
        %v456 = vunpack.c.h.b16 %v242
        %v457 = vunpack.c.l.b16 %v243
        %v458 = vpack.c.b16 %v443, %v438
        %v459 = vpack.c.b16 %v444, %v439
        %v460 = vpack.c.b16 %v445, %v440
        %v461 = vpack.c.b16 %v446, %v441
        %v462 = vpack.c.b16 %v447, %v442
        %v463 = vpack.c.b16 %v453, %v448
        %v464 = vpack.c.b16 %v454, %v449
        %v465 = vpack.c.b16 %v455, %v450
        %v466 = vpack.c.b16 %v456, %v451
        %v467 = vpack.c.b16 %v457, %v452
        %v638 = vunpack.c.l.b16 %v244
        %v639 = vunpack.c.h.b16 %v244
        %v640 = vunpack.c.l.b16 %v245
        %v641 = vunpack.c.h.b16 %v245
        %v642 = vunpack.c.l.b16 %v246
        %v643 = vunpack.c.h.b16 %v246
        %v644 = vunpack.c.l.b16 %v247
        %v645 = vunpack.c.h.b16 %v247
        %v646 = vunpack.c.l.b16 %v248
        %v647 = vunpack.c.h.b16 %v248
        %v648 = vunpack.c.l.b16 %v249
        %v649 = vunpack.c.h.b16 %v249
        %v650 = vunpack.c.l.b16 %v250
        %v651 = vunpack.c.h.b16 %v250
        %v652 = vunpack.c.l.b16 %v251
        %v653 = vunpack.c.h.b16 %v251
        %v654 = vunpack.c.l.b16 %v252
        %v655 = vunpack.c.h.b16 %v252
        %v656 = vunpack.c.l.b16 %v253
        %v657 = vunpack.c.h.b16 %v253
        %v658 = vunpack.c.l.b16 %v254
        %v659 = vunpack.c.h.b16 %v254
        %v660 = vunpack.c.l.b16 %v255
        %v661 = vunpack.c.h.b16 %v255
        %v662 = vunpack.c.l.b16 %v256
        %v663 = vunpack.c.h.b16 %v256
        %v664 = vunpack.c.l.b16 %v257
        %v665 = vunpack.c.h.b16 %v257
        %v666 = vunpack.c.l.b16 %v258
        %v667 = vunpack.c.h.b16 %v258
        %v668 = vunpack.c.l.b16 %v259
        %v669 = vunpack.c.h.b16 %v259
        %v670 = vunpack.c.l.b16 %v260
        %v671 = vunpack.c.h.b16 %v260
        %v672 = vunpack.c.l.b16 %v261
        %v673 = vunpack.c.h.b16 %v261
        %v674 = vunpack.c.l.b16 %v262
        %v675 = vunpack.c.h.b16 %v262
        %v676 = vunpack.c.l.b16 %v263
        %v677 = vunpack.c.h.b16 %v263
        %v678 = vunpack.c.l.b16 %v264
        %v679 = vunpack.c.h.b16 %v264
        %v680 = vunpack.c.l.b16 %v265
        %v681 = vunpack.c.h.b16 %v265
        %v682 = vunpack.c.l.b16 %v266
        %v683 = vunpack.c.h.b16 %v266
        %v684 = vunpack.c.l.b16 %v267
        %v685 = vunpack.c.h.b16 %v267
        %v686 = vunpack.c.l.b16 %v268
        %v687 = vunpack.c.h.b16 %v268
        %v688 = vunpack.c.l.b16 %v269
        %v689 = vunpack.c.h.b16 %v269
        %v690 = vunpack.c.l.b16 %v270
        %v691 = vunpack.c.h.b16 %v270
        %v692 = vunpack.c.l.b16 %v271
        %v693 = vunpack.c.h.b16 %v271
        %v694 = vunpack.c.l.b16 %v272
        %v695 = vunpack.c.h.b16 %v272
        %v696 = vunpack.c.l.b16 %v273
        %v697 = vunpack.c.h.b16 %v273
        %v698 = vunpack.c.l.b16 %v274
        %v699 = vunpack.c.h.b16 %v274
        %v700 = vunpack.c.l.b16 %v275
        %v701 = vunpack.c.h.b16 %v275
        %v702 = vunpack.c.l.b16 %v276
        %v703 = vunpack.c.h.b16 %v276
        %v704 = vunpack.c.l.b16 %v277
        %v705 = vunpack.c.h.b16 %v277
        %v706 = vunpack.c.l.b16 %v278
        %v707 = vunpack.c.h.b16 %v278
        %v708 = vunpack.c.l.b16 %v279
        %v709 = vunpack.c.h.b16 %v279
        %v710 = vunpack.c.l.b16 %v280
        %v711 = vunpack.c.h.b16 %v280
        %v712 = vunpack.c.l.b16 %v281
        %v713 = vunpack.c.h.b16 %v281
        %v714 = vunpack.c.l.b16 %v282
        %v715 = vunpack.c.h.b16 %v282
        %v716 = vunpack.c.l.b16 %v283
        %v717 = vunpack.c.h.b16 %v283
        %v718 = vunpack.c.l.b16 %v284
        %v719 = vunpack.c.h.b16 %v284
        %v720 = vunpack.c.l.b16 %v285
        %v721 = vunpack.c.h.b16 %v285
        %v722 = vunpack.c.l.b16 %v286
        %v723 = vunpack.c.h.b16 %v286
        %v724 = vunpack.c.l.b16 %v287
        %v725 = vunpack.c.h.b16 %v287
        %v726 = vunpack.c.l.b16 %v288
        %v727 = vunpack.c.h.b16 %v288
        %v728 = vunpack.c.l.b16 %v289
        %v729 = vunpack.c.h.b16 %v289
        %v730 = vunpack.c.l.b16 %v290
        %v731 = vunpack.c.h.b16 %v290
        %v732 = vunpack.c.l.b16 %v291
        %v733 = vunpack.c.h.b16 %v291
        %v734 = vunpack.c.l.b16 %v292
        %v735 = vunpack.c.h.b16 %v292
        %v736 = vunpack.c.l.b16 %v293
        %v737 = vunpack.c.h.b16 %v293
        %v738 = vunpack.c.l.b16 %v294
        %v739 = vunpack.c.h.b16 %v294
        %v740 = vunpack.c.l.b16 %v295
        %v741 = vunpack.c.h.b16 %v295
        %v742 = vunpack.c.l.b16 %v296
        %v743 = vunpack.c.h.b16 %v296
        %v744 = vunpack.c.l.b16 %v297
        %v745 = vunpack.c.h.b16 %v297
        %v746 = vunpack.c.l.b16 %v298
        %v747 = vunpack.c.h.b16 %v298
        %v748 = vunpack.c.l.b16 %v299
        %v749 = vunpack.c.h.b16 %v299
        %v750 = vunpack.c.l.b16 %v300
        %v751 = vunpack.c.h.b16 %v300
        %v752 = vunpack.c.l.b16 %v301
        %v753 = vunpack.c.h.b16 %v301
        %v754 = vunpack.c.l.b16 %v302
        %v755 = vunpack.c.h.b16 %v302
        %v756 = vunpack.c.l.b16 %v303
        %v757 = vunpack.c.h.b16 %v303
        %v758 = vunpack.c.l.b16 %v304
        %v759 = vunpack.c.h.b16 %v304
        %v760 = vunpack.c.l.b16 %v305
        %v761 = vunpack.c.h.b16 %v305
        %v762 = vunpack.c.l.b16 %v306
        %v763 = vunpack.c.h.b16 %v306
        %v764 = vunpack.c.l.b16 %v307
        %v765 = vunpack.c.h.b16 %v307
        %v766 = vunpack.c.l.b16 %v308
        %v767 = vunpack.c.h.b16 %v308
        %v768 = vunpack.c.l.b16 %v309
        %v769 = vunpack.c.h.b16 %v309
        %v770 = vunpack.c.l.b16 %v310
        %v771 = vunpack.c.h.b16 %v310
        %v772 = vunpack.c.l.b16 %v311
        %v773 = vunpack.c.h.b16 %v311
        %v774 = vunpack.c.l.b16 %v312
        %v775 = vunpack.c.h.b16 %v312
        %v776 = vunpack.c.l.b16 %v313
        %v777 = vunpack.c.h.b16 %v313
        %v778 = vunpack.c.l.b16 %v314
        %v779 = vunpack.c.h.b16 %v314
        %v780 = vunpack.c.l.b16 %v315
        %v781 = vunpack.c.h.b16 %v315
        %v782 = vunpack.c.l.b16 %v316
        %v783 = vunpack.c.h.b16 %v316
        %v784 = vunpack.c.l.b16 %v317
        %v785 = vunpack.c.h.b16 %v317
        %v786 = vunpack.c.l.b16 %v318
        %v787 = vunpack.c.h.b16 %v318
        %v788 = vunpack.c.l.b16 %v319
        %v789 = vunpack.c.h.b16 %v319
        %v790 = vunpack.c.l.b16 %v320
        %v791 = vunpack.c.h.b16 %v320
        %v792 = vunpack.c.l.b16 %v321
        %v793 = vunpack.c.h.b16 %v321
        %v794 = vunpack.c.l.b16 %v322
        %v795 = vunpack.c.h.b16 %v322
        %v796 = vunpack.c.l.b16 %v323
        %v797 = vunpack.c.h.b16 %v323
        %v798 = vunpack.c.l.b16 %v324
        %v799 = vunpack.c.h.b16 %v324
        %v800 = vunpack.c.l.b16 %v325
        %v801 = vunpack.c.h.b16 %v325
        %v802 = vunpack.c.l.b16 %v326
        %v803 = vunpack.c.h.b16 %v326
        %v804 = vunpack.c.l.b16 %v327
        %v805 = vunpack.c.h.b16 %v327
        %v806 = vunpack.c.l.b16 %v328
        %v807 = vunpack.c.h.b16 %v328
        %v808 = vunpack.c.l.b16 %v329
        %v809 = vunpack.c.h.b16 %v329
        %v810 = vunpack.c.l.b16 %v330
        %v811 = vunpack.c.h.b16 %v330
        %v812 = vunpack.c.l.b16 %v331
        %v813 = vunpack.c.h.b16 %v331
        %v814 = vunpack.c.l.b16 %v332
        %v815 = vunpack.c.h.b16 %v332
        %v816 = vunpack.c.l.b16 %v333
        %v817 = vunpack.c.h.b16 %v333
        %v818 = vunpack.c.l.b16 %v334
        %v819 = vunpack.c.h.b16 %v334
        %v820 = vunpack.c.l.b16 %v335
        %v821 = vunpack.c.h.b16 %v335
        %v822 = vunpack.c.l.b16 %v336
        %v823 = vunpack.c.h.b16 %v336
        %v824 = vunpack.c.l.b16 %v337
        %v825 = vunpack.c.h.b16 %v337
        %v826 = vunpack.c.l.b16 %v338
        %v827 = vunpack.c.h.b16 %v338
        %v828 = vunpack.c.l.b16 %v339
        %v829 = vunpack.c.h.b16 %v339
        %v830 = vunpack.c.l.b16 %v340
        %v831 = vunpack.c.h.b16 %v340
        %v832 = vunpack.c.l.b16 %v341
        %v833 = vunpack.c.h.b16 %v341
        %v834 = vunpack.c.l.b16 %v342
        %v835 = vunpack.c.h.b16 %v342
        %v836 = vunpack.c.l.b16 %v343
        %v837 = vunpack.c.h.b16 %v343
        %v838 = vunpack.c.l.b16 %v344
        %v839 = vunpack.c.h.b16 %v344
        %v840 = vunpack.c.l.b16 %v345
        %v841 = vunpack.c.h.b16 %v345
        %v842 = vunpack.c.l.b16 %v346
        %v843 = vunpack.c.h.b16 %v346
        %v844 = vunpack.c.l.b16 %v347
        %v845 = vunpack.c.h.b16 %v347
        %v846 = vunpack.c.l.b16 %v348
        %v847 = vunpack.c.h.b16 %v348
        %v848 = vunpack.c.l.b16 %v349
        %v849 = vunpack.c.h.b16 %v349
        %v850 = vunpack.c.l.b16 %v350
        %v851 = vunpack.c.h.b16 %v350
        %v852 = vunpack.c.l.b16 %v351
        %v853 = vunpack.c.h.b16 %v351
        %v854 = vunpack.c.l.b16 %v352
        %v855 = vunpack.c.h.b16 %v352
        %v856 = vunpack.c.l.b16 %v353
        %v857 = vunpack.c.h.b16 %v353
        %v858 = vunpack.c.l.b16 %v354
        %v859 = vunpack.c.h.b16 %v354
        %v860 = vunpack.c.l.b16 %v355
        %v861 = vunpack.c.h.b16 %v355
        %v862 = vunpack.c.l.b16 %v356
        %v863 = vunpack.c.h.b16 %v356
        %v864 = vunpack.c.l.b16 %v357
        %v865 = vunpack.c.h.b16 %v357
        %v866 = vunpack.c.l.b16 %v358
        %v867 = vunpack.c.h.b16 %v358
        %v868 = vunpack.c.l.b16 %v359
        %v869 = vunpack.c.h.b16 %v359
        %v870 = vunpack.c.l.b16 %v360
        %v871 = vunpack.c.h.b16 %v360
        %v872 = vunpack.c.l.b16 %v361
        %v873 = vunpack.c.h.b16 %v361
        %v874 = vunpack.c.l.b16 %v362
        %v875 = vunpack.c.h.b16 %v362
        %v876 = vunpack.c.l.b16 %v363
        %v877 = vunpack.c.h.b16 %v363
        %v878 = vunpack.c.l.b16 %v364
        %v879 = vunpack.c.h.b16 %v364
        %v880 = vunpack.c.l.b16 %v365
        %v881 = vunpack.c.h.b16 %v365
        %v882 = vunpack.c.l.b16 %v366
        %v883 = vunpack.c.h.b16 %v366
        %v884 = vunpack.c.l.b16 %v367
        %v885 = vunpack.c.h.b16 %v367
        %v886 = vunpack.c.l.b16 %v368
        %v887 = vunpack.c.h.b16 %v368
        %v888 = vunpack.c.l.b16 %v369
        %v889 = vunpack.c.h.b16 %v369
        %v890 = vunpack.c.l.b16 %v370
        %v891 = vunpack.c.h.b16 %v370
        %v892 = vunpack.c.l.b16 %v371
        %v893 = vunpack.c.h.b16 %v371
        %v894 = vunpack.c.l.b16 %v372
        %v895 = vunpack.c.h.b16 %v372
        %v896 = vunpack.c.l.b16 %v373
        %v897 = vunpack.c.h.b16 %v373
        %v898 = vunpack.c.l.b16 %v374
        %v899 = vunpack.c.h.b16 %v374
        %v900 = vunpack.c.l.b16 %v375
        %v901 = vunpack.c.h.b16 %v375
        %v902 = vunpack.c.l.b16 %v376
        %v903 = vunpack.c.h.b16 %v376
        %v904 = vunpack.c.l.b16 %v377
        %v905 = vunpack.c.h.b16 %v377
        %v906 = vunpack.c.l.b16 %v378
        %v907 = vunpack.c.h.b16 %v378
        %v908 = vunpack.c.l.b16 %v379
        %v909 = vunpack.c.h.b16 %v379
        %v910 = vunpack.c.l.b16 %v380
        %v911 = vunpack.c.h.b16 %v380
        %v912 = vunpack.c.l.b16 %v381
        %v913 = vunpack.c.h.b16 %v381
        %v914 = vunpack.c.l.b16 %v382
        %v915 = vunpack.c.h.b16 %v382
        %v916 = vunpack.c.l.b16 %v383
        %v917 = vunpack.c.h.b16 %v383
        %v918 = vunpack.c.l.b16 %v384
        %v919 = vunpack.c.h.b16 %v384
        %v920 = vunpack.c.l.b16 %v385
        %v921 = vunpack.c.h.b16 %v385
        %v922 = vunpack.c.l.b16 %v386
        %v923 = vunpack.c.h.b16 %v386
        %v924 = vunpack.c.l.b16 %v387
        %v925 = vunpack.c.h.b16 %v387
        %v926 = vunpack.c.l.b16 %v388
        %v927 = vunpack.c.h.b16 %v388
        %v928 = vunpack.c.l.b16 %v389
        %v929 = vunpack.c.h.b16 %v389
        %v930 = vunpack.c.l.b16 %v390
        %v931 = vunpack.c.h.b16 %v390
        %v932 = vunpack.c.l.b16 %v391
        %v933 = vunpack.c.h.b16 %v391
        %v934 = vunpack.c.l.b16 %v392
        %v935 = vunpack.c.h.b16 %v392
        %v936 = vunpack.c.l.b16 %v393
        %v937 = vunpack.c.h.b16 %v393
        %v938 = vunpack.c.l.b16 %v394
        %v939 = vunpack.c.h.b16 %v394
        %v940 = vunpack.c.l.b16 %v395
        %v941 = vunpack.c.h.b16 %v395
        %v942 = vunpack.c.l.b16 %v396
        %v943 = vunpack.c.h.b16 %v396
        %v944 = vunpack.c.l.b16 %v397
        %v945 = vunpack.c.h.b16 %v397
        %v946 = vunpack.c.l.b16 %v398
        %v947 = vunpack.c.h.b16 %v398
        %v948 = vunpack.c.l.b16 %v399
        %v949 = vunpack.c.h.b16 %v399
        %v950 = vunpack.c.l.b16 %v400
        %v951 = vunpack.c.h.b16 %v400
        %v952 = vunpack.c.l.b16 %v401
        %v953 = vunpack.c.h.b16 %v401
        %v954 = vunpack.c.l.b16 %v402
        %v955 = vunpack.c.h.b16 %v402
        %v956 = vunpack.c.l.b16 %v403
        %v957 = vunpack.c.h.b16 %v403
        %v958 = vpack.c.b16 %v642, %v638
        %v959 = vpack.c.b16 %v643, %v639
        %v960 = vpack.c.b16 %v644, %v640
        %v961 = vpack.c.b16 %v645, %v641
        %v962 = vpack.c.b16 %v650, %v646
        %v963 = vpack.c.b16 %v651, %v647
        %v964 = vpack.c.b16 %v652, %v648
        %v965 = vpack.c.b16 %v653, %v649
        %v966 = vpack.c.b16 %v658, %v654
        %v967 = vpack.c.b16 %v659, %v655
        %v968 = vpack.c.b16 %v660, %v656
        %v969 = vpack.c.b16 %v661, %v657
        %v970 = vpack.c.b16 %v666, %v662
        %v971 = vpack.c.b16 %v667, %v663
        %v972 = vpack.c.b16 %v668, %v664
        %v973 = vpack.c.b16 %v669, %v665
        %v974 = vpack.c.b16 %v674, %v670
        %v975 = vpack.c.b16 %v675, %v671
        %v976 = vpack.c.b16 %v676, %v672
        %v977 = vpack.c.b16 %v677, %v673
        %v978 = vpack.c.b16 %v682, %v678
        %v979 = vpack.c.b16 %v683, %v679
        %v980 = vpack.c.b16 %v684, %v680
        %v981 = vpack.c.b16 %v685, %v681
        %v982 = vpack.c.b16 %v690, %v686
        %v983 = vpack.c.b16 %v691, %v687
        %v984 = vpack.c.b16 %v692, %v688
        %v985 = vpack.c.b16 %v693, %v689
        %v986 = vpack.c.b16 %v698, %v694
        %v987 = vpack.c.b16 %v699, %v695
        %v988 = vpack.c.b16 %v700, %v696
        %v989 = vpack.c.b16 %v701, %v697
        %v990 = vpack.c.b16 %v706, %v702
        %v991 = vpack.c.b16 %v707, %v703
        %v992 = vpack.c.b16 %v708, %v704
        %v993 = vpack.c.b16 %v709, %v705
        %v994 = vpack.c.b16 %v714, %v710
        %v995 = vpack.c.b16 %v715, %v711
        %v996 = vpack.c.b16 %v716, %v712
        %v997 = vpack.c.b16 %v717, %v713
        %v998 = vpack.c.b16 %v722, %v718
        %v999 = vpack.c.b16 %v723, %v719
        %v1000 = vpack.c.b16 %v724, %v720
        %v1001 = vpack.c.b16 %v725, %v721
        %v1002 = vpack.c.b16 %v730, %v726
        %v1003 = vpack.c.b16 %v731, %v727
        %v1004 = vpack.c.b16 %v732, %v728
        %v1005 = vpack.c.b16 %v733, %v729
        %v1006 = vpack.c.b16 %v738, %v734
        %v1007 = vpack.c.b16 %v739, %v735
        %v1008 = vpack.c.b16 %v740, %v736
        %v1009 = vpack.c.b16 %v741, %v737
        %v1010 = vpack.c.b16 %v746, %v742
        %v1011 = vpack.c.b16 %v747, %v743
        %v1012 = vpack.c.b16 %v748, %v744
        %v1013 = vpack.c.b16 %v749, %v745
        %v1014 = vpack.c.b16 %v754, %v750
        %v1015 = vpack.c.b16 %v755, %v751
        %v1016 = vpack.c.b16 %v756, %v752
        %v1017 = vpack.c.b16 %v757, %v753
        %v1018 = vpack.c.b16 %v762, %v758
        %v1019 = vpack.c.b16 %v763, %v759
        %v1020 = vpack.c.b16 %v764, %v760
        %v1021 = vpack.c.b16 %v765, %v761
        %v1022 = vpack.c.b16 %v770, %v766
        %v1023 = vpack.c.b16 %v771, %v767
        %v1024 = vpack.c.b16 %v772, %v768
        %v1025 = vpack.c.b16 %v773, %v769
        %v1026 = vpack.c.b16 %v778, %v774
        %v1027 = vpack.c.b16 %v779, %v775
        %v1028 = vpack.c.b16 %v780, %v776
        %v1029 = vpack.c.b16 %v781, %v777
        %v1030 = vpack.c.b16 %v786, %v782
        %v1031 = vpack.c.b16 %v787, %v783
        %v1032 = vpack.c.b16 %v788, %v784
        %v1033 = vpack.c.b16 %v789, %v785
        %v1034 = vpack.c.b16 %v794, %v790
        %v1035 = vpack.c.b16 %v795, %v791
        %v1036 = vpack.c.b16 %v796, %v792
        %v1037 = vpack.c.b16 %v797, %v793
        %v1038 = vpack.c.b16 %v802, %v798
        %v1039 = vpack.c.b16 %v803, %v799
        %v1040 = vpack.c.b16 %v804, %v800
        %v1041 = vpack.c.b16 %v805, %v801
        %v1042 = vpack.c.b16 %v810, %v806
        %v1043 = vpack.c.b16 %v811, %v807
        %v1044 = vpack.c.b16 %v812, %v808
        %v1045 = vpack.c.b16 %v813, %v809
        %v1046 = vpack.c.b16 %v818, %v814
        %v1047 = vpack.c.b16 %v819, %v815
        %v1048 = vpack.c.b16 %v820, %v816
        %v1049 = vpack.c.b16 %v821, %v817
        %v1050 = vpack.c.b16 %v826, %v822
        %v1051 = vpack.c.b16 %v827, %v823
        %v1052 = vpack.c.b16 %v828, %v824
        %v1053 = vpack.c.b16 %v829, %v825
        %v1054 = vpack.c.b16 %v834, %v830
        %v1055 = vpack.c.b16 %v835, %v831
        %v1056 = vpack.c.b16 %v836, %v832
        %v1057 = vpack.c.b16 %v837, %v833
        %v1058 = vpack.c.b16 %v842, %v838
        %v1059 = vpack.c.b16 %v843, %v839
        %v1060 = vpack.c.b16 %v844, %v840
        %v1061 = vpack.c.b16 %v845, %v841
        %v1062 = vpack.c.b16 %v850, %v846
        %v1063 = vpack.c.b16 %v851, %v847
        %v1064 = vpack.c.b16 %v852, %v848
        %v1065 = vpack.c.b16 %v853, %v849
        %v1066 = vpack.c.b16 %v858, %v854
        %v1067 = vpack.c.b16 %v859, %v855
        %v1068 = vpack.c.b16 %v860, %v856
        %v1069 = vpack.c.b16 %v861, %v857
        %v1070 = vpack.c.b16 %v866, %v862
        %v1071 = vpack.c.b16 %v867, %v863
        %v1072 = vpack.c.b16 %v868, %v864
        %v1073 = vpack.c.b16 %v869, %v865
        %v1074 = vpack.c.b16 %v874, %v870
        %v1075 = vpack.c.b16 %v875, %v871
        %v1076 = vpack.c.b16 %v876, %v872
        %v1077 = vpack.c.b16 %v877, %v873
        %v1078 = vpack.c.b16 %v882, %v878
        %v1079 = vpack.c.b16 %v883, %v879
        %v1080 = vpack.c.b16 %v884, %v880
        %v1081 = vpack.c.b16 %v885, %v881
        %v1082 = vpack.c.b16 %v890, %v886
        %v1083 = vpack.c.b16 %v891, %v887
        %v1084 = vpack.c.b16 %v892, %v888
        %v1085 = vpack.c.b16 %v893, %v889
        %v1086 = vpack.c.b16 %v898, %v894
        %v1087 = vpack.c.b16 %v899, %v895
        %v1088 = vpack.c.b16 %v900, %v896
        %v1089 = vpack.c.b16 %v901, %v897
        %v1090 = vpack.c.b16 %v906, %v902
        %v1091 = vpack.c.b16 %v907, %v903
        %v1092 = vpack.c.b16 %v908, %v904
        %v1093 = vpack.c.b16 %v909, %v905
        %v1094 = vpack.c.b16 %v914, %v910
        %v1095 = vpack.c.b16 %v915, %v911
        %v1096 = vpack.c.b16 %v916, %v912
        %v1097 = vpack.c.b16 %v917, %v913
        %v1098 = vpack.c.b16 %v922, %v918
        %v1099 = vpack.c.b16 %v923, %v919
        %v1100 = vpack.c.b16 %v924, %v920
        %v1101 = vpack.c.b16 %v925, %v921
        %v1102 = vpack.c.b16 %v930, %v926
        %v1103 = vpack.c.b16 %v931, %v927
        %v1104 = vpack.c.b16 %v932, %v928
        %v1105 = vpack.c.b16 %v933, %v929
        %v1106 = vpack.c.b16 %v938, %v934
        %v1107 = vpack.c.b16 %v939, %v935
        %v1108 = vpack.c.b16 %v940, %v936
        %v1109 = vpack.c.b16 %v941, %v937
        %v1110 = vpack.c.b16 %v946, %v942
        %v1111 = vpack.c.b16 %v947, %v943
        %v1112 = vpack.c.b16 %v948, %v944
        %v1113 = vpack.c.b16 %v949, %v945
        %v1114 = vpack.c.b16 %v954, %v950
        %v1115 = vpack.c.b16 %v955, %v951
        %v1116 = vpack.c.b16 %v956, %v952
        %v1117 = vpack.c.b16 %v957, %v953
        %1278 = vmatprep.subr.bf16.mxu0 %v987
        %1279 = vmatpush1.bf16.msra.mxu0 %v986
        %1280 = vmatprep.subr.bf16.mxu0 %v983
        %1281 = vmatpush1.bf16.msra.mxu0 %v982
        %1282 = vmatprep.subr.bf16.mxu0 %v979
        %1283 = vmatpush1.bf16.msra.mxu0 %v978
        %1284 = vmatprep.subr.bf16.mxu0 %v975
        %1285 = vmatpush1.bf16.msra.mxu0 %v974
        %1286 = vmatprep.subr.bf16.mxu0 %v971
        %1287 = vmatpush1.bf16.msra.mxu0 %v970
        %1288 = vmatprep.subr.bf16.mxu0 %v967
        %1289 = vmatpush1.bf16.msra.mxu0 %v966
        %1290 = vmatprep.subr.bf16.mxu0 %v963
        %1291 = vmatpush1.bf16.msra.mxu0 %v962
        %1292 = vmatprep.subr.bf16.mxu0 %v959
        %1293 = vmatpush1.bf16.msra.mxu0 %v958
        %1294 = vmatprep.subr.bf16.mxu0 %v1019
        %1295 = vmatpush2.bf16.msra.mxu0 %v1018
        %1296 = vmatprep.subr.bf16.mxu0 %v1015
        %1297 = vmatpush2.bf16.msra.mxu0 %v1014
        %1298 = vmatprep.subr.bf16.mxu0 %v1011
        %1299 = vmatpush2.bf16.msra.mxu0 %v1010
        %1300 = vmatprep.subr.bf16.mxu0 %v1007
        %1301 = vmatpush2.bf16.msra.mxu0 %v1006
        %1302 = vmatprep.subr.bf16.mxu0 %v1003
        %1303 = vmatpush2.bf16.msra.mxu0 %v1002
        %1304 = vmatprep.subr.bf16.mxu0 %v999
        %1305 = vmatpush2.bf16.msra.mxu0 %v998
        %1306 = vmatprep.subr.bf16.mxu0 %v995
        %1307 = vmatpush2.bf16.msra.mxu0 %v994
        %1308 = vmatprep.subr.bf16.mxu0 %v991
        %1309 = vmatpush2.bf16.msra.mxu0 %v990
        %1310 = vmatprep.mubr.bf16.mxu0 %v459
        %1311 = vmatmul.mubr.bf16.gmra.mxu0 %v458
        %v1312 = vpop.f32.mrf.mxu0
        %v1313 = vadd.f32 %v409, %v1312
        %v1314 = vpop.f32.mrf.mxu0
        %v1315 = vadd.f32 %v413, %v1314
        %v1316 = vpop.f32.mrf.mxu0
        %v1317 = vadd.f32 %v409, %v1316
        %v1318 = vpop.f32.mrf.mxu0
        %v1319 = vadd.f32 %v413, %v1318
        %1320 = vmatprep.mubr.bf16.mxu0 %v464
        %1321 = vmatmul.mubr.bf16.gmra.mxu0 %v463
        %v1322 = vpop.f32.mrf.mxu0
        %v1323 = vadd.f32 %v409, %v1322
        %v1324 = vpop.f32.mrf.mxu0
        %v1325 = vadd.f32 %v413, %v1324
        %v1326 = vpop.f32.mrf.mxu0
        %v1327 = vadd.f32 %v409, %v1326
        %v1328 = vpop.f32.mrf.mxu0
        %v1329 = vadd.f32 %v413, %v1328
        %1330 = vdwg.mxu0
        %1331 = vmatprep.subr.bf16.mxu0 %v1051
        %1332 = vmatpush1.bf16.msra.mxu0 %v1050
        %1333 = vmatprep.subr.bf16.mxu0 %v1047
        %1334 = vmatpush1.bf16.msra.mxu0 %v1046
        %1335 = vmatprep.subr.bf16.mxu0 %v1043
        %1336 = vmatpush1.bf16.msra.mxu0 %v1042
        %1337 = vmatprep.subr.bf16.mxu0 %v1039
        %1338 = vmatpush1.bf16.msra.mxu0 %v1038
        %1339 = vmatprep.subr.bf16.mxu0 %v1035
        %1340 = vmatpush1.bf16.msra.mxu0 %v1034
        %1341 = vmatprep.subr.bf16.mxu0 %v1031
        %1342 = vmatpush1.bf16.msra.mxu0 %v1030
        %1343 = vmatprep.subr.bf16.mxu0 %v1027
        %1344 = vmatpush1.bf16.msra.mxu0 %v1026
        %1345 = vmatprep.subr.bf16.mxu0 %v1023
        %1346 = vmatpush1.bf16.msra.mxu0 %v1022
        %1347 = vmatprep.subr.bf16.mxu0 %v1083
        %1348 = vmatpush2.bf16.msra.mxu0 %v1082
        %1349 = vmatprep.subr.bf16.mxu0 %v1079
        %1350 = vmatpush2.bf16.msra.mxu0 %v1078
        %1351 = vmatprep.subr.bf16.mxu0 %v1075
        %1352 = vmatpush2.bf16.msra.mxu0 %v1074
        %1353 = vmatprep.subr.bf16.mxu0 %v1071
        %1354 = vmatpush2.bf16.msra.mxu0 %v1070
        %1355 = vmatprep.subr.bf16.mxu0 %v1067
        %1356 = vmatpush2.bf16.msra.mxu0 %v1066
        %1357 = vmatprep.subr.bf16.mxu0 %v1063
        %1358 = vmatpush2.bf16.msra.mxu0 %v1062
        %1359 = vmatprep.subr.bf16.mxu0 %v1059
        %1360 = vmatpush2.bf16.msra.mxu0 %v1058
        %1361 = vmatprep.subr.bf16.mxu0 %v1055
        %1362 = vmatpush2.bf16.msra.mxu0 %v1054
        %1363 = vmatprep.mubr.bf16.mxu0 %v461
        %1364 = vmatmul.mubr.bf16.gmra.mxu0 %v460
        %v1365 = vpop.f32.mrf.mxu0
        %v1366 = vadd.f32 %v1313, %v1365
        %v1367 = vpop.f32.mrf.mxu0
        %v1368 = vadd.f32 %v1315, %v1367
        %v1369 = vpop.f32.mrf.mxu0
        %v1370 = vadd.f32 %v1317, %v1369
        %v1371 = vpop.f32.mrf.mxu0
        %v1372 = vadd.f32 %v1319, %v1371
        %1373 = vmatprep.mubr.bf16.mxu0 %v466
        %1374 = vmatmul.mubr.bf16.gmra.mxu0 %v465
        %v1375 = vpop.f32.mrf.mxu0
        %v1376 = vadd.f32 %v1323, %v1375
        %v1377 = vpop.f32.mrf.mxu0
        %v1378 = vadd.f32 %v1325, %v1377
        %v1379 = vpop.f32.mrf.mxu0
        %v1380 = vadd.f32 %v1327, %v1379
        %v1381 = vpop.f32.mrf.mxu0
        %v1382 = vadd.f32 %v1329, %v1381
        %1383 = vdwg.mxu0
        %1384 = vmatprep.subr.bf16.mxu0 %v1115
        %1385 = vmatpush1.bf16.msra.mxu0 %v1114
        %1386 = vmatprep.subr.bf16.mxu0 %v1111
        %1387 = vmatpush1.bf16.msra.mxu0 %v1110
        %1388 = vmatprep.subr.bf16.mxu0 %v1107
        %1389 = vmatpush1.bf16.msra.mxu0 %v1106
        %1390 = vmatprep.subr.bf16.mxu0 %v1103
        %1391 = vmatpush1.bf16.msra.mxu0 %v1102
        %1392 = vmatprep.subr.bf16.mxu0 %v1099
        %1393 = vmatpush1.bf16.msra.mxu0 %v1098
        %1394 = vmatprep.subr.bf16.mxu0 %v1095
        %1395 = vmatpush1.bf16.msra.mxu0 %v1094
        %1396 = vmatprep.subr.bf16.mxu0 %v1091
        %1397 = vmatpush1.bf16.msra.mxu0 %v1090
        %1398 = vmatprep.subr.bf16.mxu0 %v1087
        %1399 = vmatpush1.bf16.msra.mxu0 %v1086
        %1400 = vmatprep.subr.bf16.mxu0 0
        %1401 = vmatpush2.bf16.msra.mxu0 0
        %1402 = vmatprep.subr.bf16.mxu0 0
        %1403 = vmatpush2.bf16.msra.mxu0 0
        %1404 = vmatprep.subr.bf16.mxu0 0
        %1405 = vmatpush2.bf16.msra.mxu0 0
        %1406 = vmatprep.subr.bf16.mxu0 0
        %1407 = vmatpush2.bf16.msra.mxu0 0
        %1408 = vmatprep.subr.bf16.mxu0 0
        %1409 = vmatpush2.bf16.msra.mxu0 0
        %1410 = vmatprep.subr.bf16.mxu0 0
        %1411 = vmatpush2.bf16.msra.mxu0 0
        %1412 = vmatprep.subr.bf16.mxu0 0
        %1413 = vmatpush2.bf16.msra.mxu0 0
        %1414 = vmatprep.subr.bf16.mxu0 0
        %1415 = vmatpush2.bf16.msra.mxu0 0
        %1416 = vmatprep.mubr.bf16.mxu0 0
        %1417 = vmatmul.mubr.bf16.gmra.mxu0 %v462
        %v1418 = vpop.f32.mrf.mxu0
        %v1419 = vadd.f32 %v1366, %v1418
        %v1420 = vpop.f32.mrf.mxu0
        %v1421 = vadd.f32 %v1368, %v1420
        %v1422 = vpop.f32.mrf.mxu0
        %v1423 = vadd.f32 %v1370, %v1422
        %v1424 = vpop.f32.mrf.mxu0
        %v1425 = vadd.f32 %v1372, %v1424
        %1426 = vmatprep.mubr.bf16.mxu0 0
        %1427 = vmatmul.mubr.bf16.gmra.mxu0 %v467
        %v1428 = vpop.f32.mrf.mxu0
        %v1429 = vadd.f32 %v1376, %v1428
        %v1430 = vpop.f32.mrf.mxu0
        %v1431 = vadd.f32 %v1378, %v1430
        %v1432 = vpop.f32.mrf.mxu0
        %v1433 = vadd.f32 %v1380, %v1432
        %v1434 = vpop.f32.mrf.mxu0
        %v1435 = vadd.f32 %v1382, %v1434
        %1436 = vdwg.mxu0
        %1437 = vmatprep.subr.bf16.mxu0 %v989
        %1438 = vmatpush1.bf16.msra.mxu0 %v988
        %1439 = vmatprep.subr.bf16.mxu0 %v985
        %1440 = vmatpush1.bf16.msra.mxu0 %v984
        %1441 = vmatprep.subr.bf16.mxu0 %v981
        %1442 = vmatpush1.bf16.msra.mxu0 %v980
        %1443 = vmatprep.subr.bf16.mxu0 %v977
        %1444 = vmatpush1.bf16.msra.mxu0 %v976
        %1445 = vmatprep.subr.bf16.mxu0 %v973
        %1446 = vmatpush1.bf16.msra.mxu0 %v972
        %1447 = vmatprep.subr.bf16.mxu0 %v969
        %1448 = vmatpush1.bf16.msra.mxu0 %v968
        %1449 = vmatprep.subr.bf16.mxu0 %v965
        %1450 = vmatpush1.bf16.msra.mxu0 %v964
        %1451 = vmatprep.subr.bf16.mxu0 %v961
        %1452 = vmatpush1.bf16.msra.mxu0 %v960
        %1453 = vmatprep.subr.bf16.mxu0 %v1021
        %1454 = vmatpush2.bf16.msra.mxu0 %v1020
        %1455 = vmatprep.subr.bf16.mxu0 %v1017
        %1456 = vmatpush2.bf16.msra.mxu0 %v1016
        %1457 = vmatprep.subr.bf16.mxu0 %v1013
        %1458 = vmatpush2.bf16.msra.mxu0 %v1012
        %1459 = vmatprep.subr.bf16.mxu0 %v1009
        %1460 = vmatpush2.bf16.msra.mxu0 %v1008
        %1461 = vmatprep.subr.bf16.mxu0 %v1005
        %1462 = vmatpush2.bf16.msra.mxu0 %v1004
        %1463 = vmatprep.subr.bf16.mxu0 %v1001
        %1464 = vmatpush2.bf16.msra.mxu0 %v1000
        %1465 = vmatprep.subr.bf16.mxu0 %v997
        %1466 = vmatpush2.bf16.msra.mxu0 %v996
        %1467 = vmatprep.subr.bf16.mxu0 %v993
        %1468 = vmatpush2.bf16.msra.mxu0 %v992
        %1469 = vmatprep.mubr.bf16.mxu0 %v459
        %1470 = vmatmul.mubr.bf16.gmra.mxu0 %v458
        %v1471 = vpop.f32.mrf.mxu0
        %v1472 = vadd.f32 %v417, %v1471
        %v1473 = vpop.f32.mrf.mxu0
        %v1474 = vadd.f32 %v421, %v1473
        %v1475 = vpop.f32.mrf.mxu0
        %v1476 = vadd.f32 %v417, %v1475
        %v1477 = vpop.f32.mrf.mxu0
        %v1478 = vadd.f32 %v421, %v1477
        %1479 = vmatprep.mubr.bf16.mxu0 %v464
        %1480 = vmatmul.mubr.bf16.gmra.mxu0 %v463
        %v1481 = vpop.f32.mrf.mxu0
        %v1482 = vadd.f32 %v417, %v1481
        %v1483 = vpop.f32.mrf.mxu0
        %v1484 = vadd.f32 %v421, %v1483
        %v1485 = vpop.f32.mrf.mxu0
        %v1486 = vadd.f32 %v417, %v1485
        %v1487 = vpop.f32.mrf.mxu0
        %v1488 = vadd.f32 %v421, %v1487
        %1489 = vdwg.mxu0
        %1490 = vmatprep.subr.bf16.mxu0 %v1053
        %1491 = vmatpush1.bf16.msra.mxu0 %v1052
        %1492 = vmatprep.subr.bf16.mxu0 %v1049
        %1493 = vmatpush1.bf16.msra.mxu0 %v1048
        %1494 = vmatprep.subr.bf16.mxu0 %v1045
        %1495 = vmatpush1.bf16.msra.mxu0 %v1044
        %1496 = vmatprep.subr.bf16.mxu0 %v1041
        %1497 = vmatpush1.bf16.msra.mxu0 %v1040
        %1498 = vmatprep.subr.bf16.mxu0 %v1037
        %1499 = vmatpush1.bf16.msra.mxu0 %v1036
        %1500 = vmatprep.subr.bf16.mxu0 %v1033
        %1501 = vmatpush1.bf16.msra.mxu0 %v1032
        %1502 = vmatprep.subr.bf16.mxu0 %v1029
        %1503 = vmatpush1.bf16.msra.mxu0 %v1028
        %1504 = vmatprep.subr.bf16.mxu0 %v1025
        %1505 = vmatpush1.bf16.msra.mxu0 %v1024
        %1506 = vmatprep.subr.bf16.mxu0 %v1085
        %1507 = vmatpush2.bf16.msra.mxu0 %v1084
        %1508 = vmatprep.subr.bf16.mxu0 %v1081
        %1509 = vmatpush2.bf16.msra.mxu0 %v1080
        %1510 = vmatprep.subr.bf16.mxu0 %v1077
        %1511 = vmatpush2.bf16.msra.mxu0 %v1076
        %1512 = vmatprep.subr.bf16.mxu0 %v1073
        %1513 = vmatpush2.bf16.msra.mxu0 %v1072
        %1514 = vmatprep.subr.bf16.mxu0 %v1069
        %1515 = vmatpush2.bf16.msra.mxu0 %v1068
        %1516 = vmatprep.subr.bf16.mxu0 %v1065
        %1517 = vmatpush2.bf16.msra.mxu0 %v1064
        %1518 = vmatprep.subr.bf16.mxu0 %v1061
        %1519 = vmatpush2.bf16.msra.mxu0 %v1060
        %1520 = vmatprep.subr.bf16.mxu0 %v1057
        %1521 = vmatpush2.bf16.msra.mxu0 %v1056
        %1522 = vmatprep.mubr.bf16.mxu0 %v461
        %1523 = vmatmul.mubr.bf16.gmra.mxu0 %v460
        %v1524 = vpop.f32.mrf.mxu0
        %v1525 = vadd.f32 %v1472, %v1524
        %v1526 = vpop.f32.mrf.mxu0
        %v1527 = vadd.f32 %v1474, %v1526
        %v1528 = vpop.f32.mrf.mxu0
        %v1529 = vadd.f32 %v1476, %v1528
        %v1530 = vpop.f32.mrf.mxu0
        %v1531 = vadd.f32 %v1478, %v1530
        %1532 = vmatprep.mubr.bf16.mxu0 %v466
        %1533 = vmatmul.mubr.bf16.gmra.mxu0 %v465
        %v1534 = vpop.f32.mrf.mxu0
        %v1535 = vadd.f32 %v1482, %v1534
        %v1536 = vpop.f32.mrf.mxu0
        %v1537 = vadd.f32 %v1484, %v1536
        %v1538 = vpop.f32.mrf.mxu0
        %v1539 = vadd.f32 %v1486, %v1538
        %v1540 = vpop.f32.mrf.mxu0
        %v1541 = vadd.f32 %v1488, %v1540
        %1542 = vdwg.mxu0
        %1543 = vmatprep.subr.bf16.mxu0 %v1117
        %1544 = vmatpush1.bf16.msra.mxu0 %v1116
        %1545 = vmatprep.subr.bf16.mxu0 %v1113
        %1546 = vmatpush1.bf16.msra.mxu0 %v1112
        %1547 = vmatprep.subr.bf16.mxu0 %v1109
        %1548 = vmatpush1.bf16.msra.mxu0 %v1108
        %1549 = vmatprep.subr.bf16.mxu0 %v1105
        %1550 = vmatpush1.bf16.msra.mxu0 %v1104
        %1551 = vmatprep.subr.bf16.mxu0 %v1101
        %1552 = vmatpush1.bf16.msra.mxu0 %v1100
        %1553 = vmatprep.subr.bf16.mxu0 %v1097
        %1554 = vmatpush1.bf16.msra.mxu0 %v1096
        %1555 = vmatprep.subr.bf16.mxu0 %v1093
        %1556 = vmatpush1.bf16.msra.mxu0 %v1092
        %1557 = vmatprep.subr.bf16.mxu0 %v1089
        %1558 = vmatpush1.bf16.msra.mxu0 %v1088
        %1559 = vmatprep.subr.bf16.mxu0 0
        %1560 = vmatpush2.bf16.msra.mxu0 0
        %1561 = vmatprep.subr.bf16.mxu0 0
        %1562 = vmatpush2.bf16.msra.mxu0 0
        %1563 = vmatprep.subr.bf16.mxu0 0
        %1564 = vmatpush2.bf16.msra.mxu0 0
        %1565 = vmatprep.subr.bf16.mxu0 0
        %1566 = vmatpush2.bf16.msra.mxu0 0
        %1567 = vmatprep.subr.bf16.mxu0 0
        %1568 = vmatpush2.bf16.msra.mxu0 0
        %1569 = vmatprep.subr.bf16.mxu0 0
        %1570 = vmatpush2.bf16.msra.mxu0 0
        %1571 = vmatprep.subr.bf16.mxu0 0
        %1572 = vmatpush2.bf16.msra.mxu0 0
        %1573 = vmatprep.subr.bf16.mxu0 0
        %1574 = vmatpush2.bf16.msra.mxu0 0
        %1575 = vmatprep.mubr.bf16.mxu0 0
        %1576 = vmatmul.mubr.bf16.gmra.mxu0 %v462
        %v1577 = vpop.f32.mrf.mxu0
        %v1578 = vadd.f32 %v1525, %v1577
        %v1579 = vpop.f32.mrf.mxu0
        %v1580 = vadd.f32 %v1527, %v1579
        %v1581 = vpop.f32.mrf.mxu0
        %v1582 = vadd.f32 %v1529, %v1581
        %v1583 = vpop.f32.mrf.mxu0
        %v1584 = vadd.f32 %v1531, %v1583
        %1585 = vmatprep.mubr.bf16.mxu0 0
        %1586 = vmatmul.mubr.bf16.gmra.mxu0 %v467
        %v1587 = vpop.f32.mrf.mxu0
        %v1588 = vadd.f32 %v1535, %v1587
        %v1589 = vpop.f32.mrf.mxu0
        %v1590 = vadd.f32 %v1537, %v1589
        %v1591 = vpop.f32.mrf.mxu0
        %v1592 = vadd.f32 %v1539, %v1591
        %v1593 = vpop.f32.mrf.mxu0
        %v1594 = vadd.f32 %v1541, %v1593
        %1595 = vdwg.mxu0
        %1596 = vst [vmem:[%s210] sm:$0xff] %v1419
        %1597 = vst [vmem:[%s210 + $0x8] sm:$0xff] %v1421
        %1598 = vst [vmem:[%s210 + $0x10] sm:$0xff] %v1578
        %1599 = vst [vmem:[%s210 + $0x18] sm:$0xff] %v1580
        %1600 = vst [vmem:[%s210 + $0x20] sm:$0xff] %v1423
        %1601 = vst [vmem:[%s210 + $0x28] sm:$0xff] %v1425
        %1602 = vst [vmem:[%s210 + $0x30] sm:$0xff] %v1582
        %1603 = vst [vmem:[%s210 + $0x38] sm:$0xff] %v1584
        %1604 = vst [vmem:[%s210 + $0x40] sm:$0xff] %v1429
        %1605 = vst [vmem:[%s210 + $0x48] sm:$0xff] %v1431
        %1606 = vst [vmem:[%s210 + $0x50] sm:$0xff] %v1588
        %1607 = vst [vmem:[%s210 + $0x58] sm:$0xff] %v1590
        %1608 = vst [vmem:[%s210 + $0x60] sm:$0xff] %v1433
        %1609 = vst [vmem:[%s210 + $0x68] sm:$0xff] %v1435
        %1610 = vst [vmem:[%s210 + $0x70] sm:$0xff] %v1592
        %1611 = vst [vmem:[%s210 + $0x78] sm:$0xff] %v1594
        %s1612 = sand.u32 %s117, 1
        %s1613 = scalar_lea.sflag [#allocation3], %s1612
        %s1614 = sand.u32 %s117, 1
        %s1615 = smul.addr %s1614, 128
        %s1616 = scalar_lea.vmem [#allocation2], %s1615
        // Predicated region
        $region33: #{cvae_forward.3} parent=31 // pred_check
          %p1617 = pneg %p127
        $region34: #{cvae_forward.3} parent=31 // pred_check_branch
          %1619 = sbr.rel (%p1617) target = $region36
        $region35: #{cvae_forward.3} parent=31 // pred_region
          %s1620 = smul.u32 4, %s21
          %s1621 = smul.u32 4, %s22
          %s1623 = ssub.s32 2048, 2048
          %1624 = vsyncadd %s1613, %s1623
          %s1625 = smul.addr %s1620, 4
          %s1626 = sadd.s32 %s1621, %s1625
          %s1627 = smul.addr %s1626, 128
          %s1628 = scalar_lea.hbm %s3, %s1627
          %s1629 = sshll.u32 %s1616, 4
          %s1630 = int_to_ptr.vmem [resolvable:$true] %s1629
          %1635 = dma.vmem_to_hbm [thread:$0]  %s1630, 2048, %s1628, %s1613, 512, 512, 32
        $region36: #{cvae_forward.3} parent=31 // pred_fallthru
          _
      $region32: #{cvae_forward.3} parent=5 // pred_fallthru
        _
      %p1636 = scmp.le.s32.totalorder 2, %s12
      // Predicated region
      $region37: #{cvae_forward.3} parent=5 // pred_check
        %p1637 = pneg %p1636
      $region38: #{cvae_forward.3} parent=5 // pred_check_branch
        %1639 = sbr.rel (%p1637) target = $region40
      $region39: #{cvae_forward.3} parent=5 // pred_region
        %s1640 = ssub.s32 %s12, 2
        // Predicated region
        $region41: #{cvae_forward.3} parent=39 // pred_check
          %p1641 = pneg %p133
        $region42: #{cvae_forward.3} parent=39 // pred_check_branch
          %1643 = sbr.rel (%p1641) target = $region44
        $region43: #{cvae_forward.3} parent=39 // pred_region
          %s1644 = sand.u32 %s118, 1
          %s1645 = scalar_lea.sflag [#allocation3], %s1644
          %s1646 = sand.u32 %s118, 1
          %s1647 = smul.addr %s1646, 128
          %s1648 = scalar_lea.vmem [#allocation2], %s1647
          %1649 = dma.done %s1645, 2048
        $region44: #{cvae_forward.3} parent=39 // pred_fallthru
          _
      $region40: #{cvae_forward.3} parent=5 // pred_fallthru
        _
    $region6: #{cvae_forward.3} parent=1 // loop_footer
      %s16 = sadd.s32 1, %s12
    $region7: #{cvae_forward.3} parent=1 // loop_footer_branch
      %11 = sbr.rel target = $region3
    $region8: #{cvae_forward.3} parent=1 // loop_exit
      _
    %1650 = vsyncpa [#allocation3], 1
    %s1651 = scalar_lea.sflag [#allocation3], 1
    %1652 = vsyncpa %s1651, 1

// kernel: cvae_forward.2
$region0: #{cvae_forward.2}
  #allocation0 [shape = 'u32[]', space=smem, size = 0x4, offset = 0x4, fixed_abs, tag = 'smem constant byte address 0x4 - core index']
  #allocation1 [shape = 'u32[144,128]{1,0:T(1,128)}', space=vmem, size = 0x12000, scoped, tag = 'internal scratch']
  #allocation2 [shape = 'f32[32,640]{1,0:T(8,128)}', space=vmem, size = 0x14000, scoped, tag = 'scratch operand']
  #allocation3 [shape = 'f32[32,1]{1,0:T(8,128)}', space=vmem, size = 0x4000, scoped, tag = 'scratch operand']
  #allocation4 [shape = 's32[1]{0}', space=sflag, size = 0x4, scoped, tag = 'scoped memory for cvae_forward.2']
  #allocation5 [shape = 's32[1]{0:T(128)S(6)}', space=smem, size = 0x200, scoped, tag = 'prefetched SMEM operand 0']
  %s0 = inlined_call_operand.<no memory space> [shape: s32[1], index: 0, kind: input, shape index: {}]
  %s1 = inlined_call_operand.vmem [shape: f32[64,512], index: 1, kind: input, shape index: {}]
  %s2 = inlined_call_operand.vmem [shape: f32[64,384], index: 2, kind: input, shape index: {}]
  %s3 = inlined_call_operand.hbm [shape: bf16[512,640], index: 3, kind: input, shape index: {}]
  %s4 = inlined_call_operand.vmem [shape: f32[1,640], index: 4, kind: input, shape index: {}]
  %s5 = inlined_call_operand.hbm [shape: bf16[640,768], index: 5, kind: input, shape index: {}]
  %s6 = inlined_call_operand.vmem [shape: f32[1,768], index: 6, kind: input, shape index: {}]
  %s7 = inlined_call_operand.hbm [shape: bf16[384,640], index: 7, kind: input, shape index: {}]
  %s8 = inlined_call_operand.vmem [shape: f32[1,640], index: 8, kind: input, shape index: {}]
  %s9 = inlined_call_operand.vmem [shape: bf16[64,640], index: 9, kind: output, shape index: {0}]
  %s10 = inlined_call_operand.hbm [shape: f32[64,384], index: 10, kind: output, shape index: {1}]
  %s11 = inlined_call_operand.hbm [shape: f32[64,384], index: 11, kind: output, shape index: {2}]
  %12 = xla_tuple %s9, %s10, %s11
  %s13 = sld [smem:[#allocation0]]
  $region101: #{cvae_forward.2} parent=0
    _
  %s15 = ssub.s32 1, %s13
  %s16 = scalar_select 0, %s15, %s13
  %17 = sst [smem:[#allocation5]] %s0
  $region1: #{cvae_forward.2} parent=0
    #allocation6 [shape = 'u8[655360]{0}', space=vmem, size = 0xa0000, scoped, tag = 'input window, operand 3, single buffered']
    #allocation7 [shape = 's32[2]{0}', space=sflag, size = 0x8, scoped, tag = 'scoped memory for cvae_forward.2']
    #allocation8 [shape = 's32[2]{0}', space=sflag, size = 0x8, scoped, tag = 'scoped memory for cvae_forward.2']
    #allocation9 [shape = 'u8[983040]{0}', space=vmem, size = 0xf0000, scoped, tag = 'input window, operand 5, single buffered']
    #allocation10 [shape = 's32[1]{0}', space=sflag, size = 0x4, scoped, tag = 'scoped memory for cvae_forward.2']
    #allocation11 [shape = 'u8[491520]{0}', space=vmem, size = 0x78000, scoped, tag = 'input window, operand 7, single buffered']
    #allocation12 [shape = 'u8[98304]{0}', space=vmem, size = 0x18000, scoped, tag = 'output window, operand 1']
    #allocation13 [shape = 'u8[98304]{0}', space=vmem, size = 0x18000, scoped, tag = 'output window, operand 2']
    #allocation14 [shape = 's32[2]{0}', space=sflag, size = 0x8, scoped, tag = 'scoped memory for cvae_forward.2']
    %18 = vsyncpa [#allocation7], 0
    %19 = vsyncpa [#allocation10], 0
    %20 = vsyncpa [#allocation8], 0
    %s21 = scalar_lea.sflag [#allocation8], 1
    %22 = vsyncpa %s21, 0
    %23 = vsyncpa [#allocation14], 0
    %s24 = scalar_lea.sflag [#allocation14], 1
    %25 = vsyncpa %s24, 0
    loop: start=0, step=1, limit=4
    $region2: #{cvae_forward.2} parent=1 // loop_pre_header
      _
    $region3: #{cvae_forward.2} parent=1 // loop_header
      %s27 = sphi 0, %s31
      %p28 = scmp.ge.s32.totalorder %s27, 4
      %s34 = sphi 0, %s46
      %s35 = sphi 0, %s42
      %s36 = sphi 0, %s34
      %s37 = sphi 0, %s35
      %s38 = sphi 0, %s36
      %s39 = sphi 0, %s37
      %s51 = sphi 0, %s53
      %s54 = sphi 0, %s51
      %s55 = sphi 0, %s54
      %s71 = sphi 0, %s55
      %s77 = sphi 0, %s79
      %s80 = sphi 0, %s77
      %s81 = sphi 0, %s80
      %s97 = sphi 0, %s81
      %s103 = sphi 0, %s105
      %s106 = sphi 0, %s103
      %s107 = sphi 0, %s106
      %s123 = sphi 0, %s107
      %s127 = sphi 0, %s127
      %s129 = sphi 0, %s127
      %s130 = sphi 0, %s129
      %s144 = sphi 0, %s130
      %s148 = sphi 0, %s148
      %s150 = sphi 0, %s148
      %s151 = sphi 0, %s150
      %s165 = sphi 0, %s151
      %s169 = sphi 0, %s169
      %s171 = sphi 0, %s169
      %s172 = sphi 0, %s171
      %s186 = sphi 0, %s172
      %s190 = sphi 0, %s190
      %s192 = sphi 0, %s190
      %s193 = sphi 0, %s192
      %s207 = sphi 0, %s193
      %s211 = sphi 0, %s211
      %s213 = sphi 0, %s211
      %s214 = sphi 0, %s213
      %s228 = sphi 0, %s214
      %s234 = sphi 0, %s236
      %s237 = sphi 0, %s234
      %s238 = sphi 0, %s237
      %s254 = sphi 0, %s238
      %s260 = sphi 0, %s262
      %s263 = sphi 0, %s260
      %s264 = sphi 0, %s263
      %s280 = sphi 0, %s264
      %s286 = sphi 0, %s288
      %s289 = sphi 0, %s286
      %s290 = sphi 0, %s289
      %s306 = sphi 0, %s290
    $region4: #{cvae_forward.2} parent=1 // loop_header_branch
      %30 = sbr.rel (%p28) target = $region8
    $region5: #{cvae_forward.2} parent=1 // loop_body
      %s32 = ssub.s32 %s27, 1
      %s33 = ssub.s32 %s27, 2
      %s40 = sadd.s32 1, %s35
      %p41 = scmp.ge.s32.totalorder %s40, 1
      %s42 = scalar_select %p41, 0, %s40
      %s43 = sadd.s32 1, %s34
      %s44 = scalar_select %p41, %s43, %s34
      %p45 = scmp.ge.s32.totalorder %s44, 2
      %s46 = scalar_select %p45, 0, %s44
      %s47 = ssub.s32 %s34, %s46
      %s48 = ssub.s32 %s35, %s42
      %s49 = sor.u32 %s47, %s48
      %p50 = scmp.eq.s32.totalorder %s49, 0
      %s52 = sadd.s32 %s51, 1
      %s53 = scalar_select %p50, %s51, %s52
      %p56 = pneg %p50
      %p57 = scmp.eq.s32.totalorder %s27, 1
      %p58 = por %p56, %p57
      %p59 = scmp.ne.s32.totalorder %s51, %s54
      %p60 = scmp.eq.s32.totalorder %s27, 0
      %p61 = por %p59, %p60
      %p62 = scmp.ne.s32.totalorder %s51, %s54
      %p63 = scmp.eq.s32.totalorder %s32, 1
      %p64 = por %p62, %p63
      %p65 = scmp.ne.s32.totalorder %s54, %s55
      %p66 = scmp.eq.s32.totalorder %s32, 0
      %p67 = por %p65, %p66
      %p68 = scmp.ne.s32.totalorder %s54, %s55
      %p69 = scmp.eq.s32.totalorder %s33, 1
      %p70 = por %p68, %p69
      %p72 = scmp.ne.s32.totalorder %s55, %s71
      %p73 = scmp.eq.s32.totalorder %s33, 0
      %p74 = por %p72, %p73
      %s75 = ssub.s32 %s34, %s46
      %p76 = scmp.eq.s32.totalorder %s75, 0
      %s78 = sadd.s32 %s77, 1
      %s79 = scalar_select %p76, %s77, %s78
      %p82 = pneg %p76
      %p83 = scmp.eq.s32.totalorder %s27, 1
      %p84 = por %p82, %p83
      %p85 = scmp.ne.s32.totalorder %s77, %s80
      %p86 = scmp.eq.s32.totalorder %s27, 0
      %p87 = por %p85, %p86
      %p88 = scmp.ne.s32.totalorder %s77, %s80
      %p89 = scmp.eq.s32.totalorder %s32, 1
      %p90 = por %p88, %p89
      %p91 = scmp.ne.s32.totalorder %s80, %s81
      %p92 = scmp.eq.s32.totalorder %s32, 0
      %p93 = por %p91, %p92
      %p94 = scmp.ne.s32.totalorder %s80, %s81
      %p95 = scmp.eq.s32.totalorder %s33, 1
      %p96 = por %p94, %p95
      %p98 = scmp.ne.s32.totalorder %s81, %s97
      %p99 = scmp.eq.s32.totalorder %s33, 0
      %p100 = por %p98, %p99
      %s101 = ssub.s32 %s35, %s42
      %p102 = scmp.eq.s32.totalorder %s101, 0
      %s104 = sadd.s32 %s103, 1
      %s105 = scalar_select %p102, %s103, %s104
      %p108 = pneg %p102
      %p109 = scmp.eq.s32.totalorder %s27, 1
      %p110 = por %p108, %p109
      %p111 = scmp.ne.s32.totalorder %s103, %s106
      %p112 = scmp.eq.s32.totalorder %s27, 0
      %p113 = por %p111, %p112
      %p114 = scmp.ne.s32.totalorder %s103, %s106
      %p115 = scmp.eq.s32.totalorder %s32, 1
      %p116 = por %p114, %p115
      %p117 = scmp.ne.s32.totalorder %s106, %s107
      %p118 = scmp.eq.s32.totalorder %s32, 0
      %p119 = por %p117, %p118
      %p120 = scmp.ne.s32.totalorder %s106, %s107
      %p121 = scmp.eq.s32.totalorder %s33, 1
      %p122 = por %p120, %p121
      %p124 = scmp.ne.s32.totalorder %s107, %s123
      %p125 = scmp.eq.s32.totalorder %s33, 0
      %p126 = por %p124, %p125
      %s128 = sadd.s32 %s127, 1
      %p131 = scmp.eq.s32.totalorder %s27, 1
      %p132 = scmp.ne.s32.totalorder %s127, %s129
      %p133 = scmp.eq.s32.totalorder %s27, 0
      %p134 = por %p132, %p133
      %p135 = scmp.ne.s32.totalorder %s127, %s129
      %p136 = scmp.eq.s32.totalorder %s32, 1
      %p137 = por %p135, %p136
      %p138 = scmp.ne.s32.totalorder %s129, %s130
      %p139 = scmp.eq.s32.totalorder %s32, 0
      %p140 = por %p138, %p139
      %p141 = scmp.ne.s32.totalorder %s129, %s130
      %p142 = scmp.eq.s32.totalorder %s33, 1
      %p143 = por %p141, %p142
      %p145 = scmp.ne.s32.totalorder %s130, %s144
      %p146 = scmp.eq.s32.totalorder %s33, 0
      %p147 = por %p145, %p146
      %s149 = sadd.s32 %s148, 1
      %p152 = scmp.eq.s32.totalorder %s27, 1
      %p153 = scmp.ne.s32.totalorder %s148, %s150
      %p154 = scmp.eq.s32.totalorder %s27, 0
      %p155 = por %p153, %p154
      %p156 = scmp.ne.s32.totalorder %s148, %s150
      %p157 = scmp.eq.s32.totalorder %s32, 1
      %p158 = por %p156, %p157
      %p159 = scmp.ne.s32.totalorder %s150, %s151
      %p160 = scmp.eq.s32.totalorder %s32, 0
      %p161 = por %p159, %p160
      %p162 = scmp.ne.s32.totalorder %s150, %s151
      %p163 = scmp.eq.s32.totalorder %s33, 1
      %p164 = por %p162, %p163
      %p166 = scmp.ne.s32.totalorder %s151, %s165
      %p167 = scmp.eq.s32.totalorder %s33, 0
      %p168 = por %p166, %p167
      %s170 = sadd.s32 %s169, 1
      %p173 = scmp.eq.s32.totalorder %s27, 1
      %p174 = scmp.ne.s32.totalorder %s169, %s171
      %p175 = scmp.eq.s32.totalorder %s27, 0
      %p176 = por %p174, %p175
      %p177 = scmp.ne.s32.totalorder %s169, %s171
      %p178 = scmp.eq.s32.totalorder %s32, 1
      %p179 = por %p177, %p178
      %p180 = scmp.ne.s32.totalorder %s171, %s172
      %p181 = scmp.eq.s32.totalorder %s32, 0
      %p182 = por %p180, %p181
      %p183 = scmp.ne.s32.totalorder %s171, %s172
      %p184 = scmp.eq.s32.totalorder %s33, 1
      %p185 = por %p183, %p184
      %p187 = scmp.ne.s32.totalorder %s172, %s186
      %p188 = scmp.eq.s32.totalorder %s33, 0
      %p189 = por %p187, %p188
      %s191 = sadd.s32 %s190, 1
      %p194 = scmp.eq.s32.totalorder %s27, 1
      %p195 = scmp.ne.s32.totalorder %s190, %s192
      %p196 = scmp.eq.s32.totalorder %s27, 0
      %p197 = por %p195, %p196
      %p198 = scmp.ne.s32.totalorder %s190, %s192
      %p199 = scmp.eq.s32.totalorder %s32, 1
      %p200 = por %p198, %p199
      %p201 = scmp.ne.s32.totalorder %s192, %s193
      %p202 = scmp.eq.s32.totalorder %s32, 0
      %p203 = por %p201, %p202
      %p204 = scmp.ne.s32.totalorder %s192, %s193
      %p205 = scmp.eq.s32.totalorder %s33, 1
      %p206 = por %p204, %p205
      %p208 = scmp.ne.s32.totalorder %s193, %s207
      %p209 = scmp.eq.s32.totalorder %s33, 0
      %p210 = por %p208, %p209
      %s212 = sadd.s32 %s211, 1
      %p215 = scmp.eq.s32.totalorder %s27, 1
      %p216 = scmp.ne.s32.totalorder %s211, %s213
      %p217 = scmp.eq.s32.totalorder %s27, 0
      %p218 = por %p216, %p217
      %p219 = scmp.ne.s32.totalorder %s211, %s213
      %p220 = scmp.eq.s32.totalorder %s32, 1
      %p221 = por %p219, %p220
      %p222 = scmp.ne.s32.totalorder %s213, %s214
      %p223 = scmp.eq.s32.totalorder %s32, 0
      %p224 = por %p222, %p223
      %p225 = scmp.ne.s32.totalorder %s213, %s214
      %p226 = scmp.eq.s32.totalorder %s33, 1
      %p227 = por %p225, %p226
      %p229 = scmp.ne.s32.totalorder %s214, %s228
      %p230 = scmp.eq.s32.totalorder %s33, 0
      %p231 = por %p229, %p230
      %s232 = ssub.s32 %s34, %s46
      %p233 = scmp.eq.s32.totalorder %s232, 0
      %s235 = sadd.s32 %s234, 1
      %s236 = scalar_select %p233, %s234, %s235
      %p239 = pneg %p233
      %p240 = scmp.eq.s32.totalorder %s27, 1
      %p241 = por %p239, %p240
      %p242 = scmp.ne.s32.totalorder %s234, %s237
      %p243 = scmp.eq.s32.totalorder %s27, 0
      %p244 = por %p242, %p243
      %p245 = scmp.ne.s32.totalorder %s234, %s237
      %p246 = scmp.eq.s32.totalorder %s32, 1
      %p247 = por %p245, %p246
      %p248 = scmp.ne.s32.totalorder %s237, %s238
      %p249 = scmp.eq.s32.totalorder %s32, 0
      %p250 = por %p248, %p249
      %p251 = scmp.ne.s32.totalorder %s237, %s238
      %p252 = scmp.eq.s32.totalorder %s33, 1
      %p253 = por %p251, %p252
      %p255 = scmp.ne.s32.totalorder %s238, %s254
      %p256 = scmp.eq.s32.totalorder %s33, 0
      %p257 = por %p255, %p256
      %s258 = ssub.s32 %s34, %s46
      %p259 = scmp.eq.s32.totalorder %s258, 0
      %s261 = sadd.s32 %s260, 1
      %s262 = scalar_select %p259, %s260, %s261
      %p265 = pneg %p259
      %p266 = scmp.eq.s32.totalorder %s27, 1
      %p267 = por %p265, %p266
      %p268 = scmp.ne.s32.totalorder %s260, %s263
      %p269 = scmp.eq.s32.totalorder %s27, 0
      %p270 = por %p268, %p269
      %p271 = scmp.ne.s32.totalorder %s260, %s263
      %p272 = scmp.eq.s32.totalorder %s32, 1
      %p273 = por %p271, %p272
      %p274 = scmp.ne.s32.totalorder %s263, %s264
      %p275 = scmp.eq.s32.totalorder %s32, 0
      %p276 = por %p274, %p275
      %p277 = scmp.ne.s32.totalorder %s263, %s264
      %p278 = scmp.eq.s32.totalorder %s33, 1
      %p279 = por %p277, %p278
      %p281 = scmp.ne.s32.totalorder %s264, %s280
      %p282 = scmp.eq.s32.totalorder %s33, 0
      %p283 = por %p281, %p282
      %s284 = ssub.s32 %s34, %s46
      %p285 = scmp.eq.s32.totalorder %s284, 0
      %s287 = sadd.s32 %s286, 1
      %s288 = scalar_select %p285, %s286, %s287
      %p291 = pneg %p285
      %p292 = scmp.eq.s32.totalorder %s27, 1
      %p293 = por %p291, %p292
      %p294 = scmp.ne.s32.totalorder %s286, %s289
      %p295 = scmp.eq.s32.totalorder %s27, 0
      %p296 = por %p294, %p295
      %p297 = scmp.ne.s32.totalorder %s286, %s289
      %p298 = scmp.eq.s32.totalorder %s32, 1
      %p299 = por %p297, %p298
      %p300 = scmp.ne.s32.totalorder %s289, %s290
      %p301 = scmp.eq.s32.totalorder %s32, 0
      %p302 = por %p300, %p301
      %p303 = scmp.ne.s32.totalorder %s289, %s290
      %p304 = scmp.eq.s32.totalorder %s33, 1
      %p305 = por %p303, %p304
      %p307 = scmp.ne.s32.totalorder %s290, %s306
      %p308 = scmp.eq.s32.totalorder %s33, 0
      %p309 = por %p307, %p308
      %p310 = scmp.le.s32.totalorder 1, %s27
      %p311 = scmp.lt.s32.totalorder %s27, 3
      %p312 = pnand %p310, %p311
      %p313 = pneg %p312
      // Predicated region
      $region9: #{cvae_forward.2} parent=5 // pred_check
        _
      $region10: #{cvae_forward.2} parent=5 // pred_check_branch
        %315 = sbr.rel (%p312) target = $region12
      $region11: #{cvae_forward.2} parent=5 // pred_region
        %s316 = ssub.s32 %s27, 1
        // Predicated region
        $region13: #{cvae_forward.2} parent=11 // pred_check
          %p317 = pneg %p119
        $region14: #{cvae_forward.2} parent=11 // pred_check_branch
          %319 = sbr.rel (%p317) target = $region16
        $region15: #{cvae_forward.2} parent=11 // pred_region
          %s320 = smul.u32 64, %s37
          %s322 = ssub.s32 20480, 20480
          %323 = vsyncadd [#allocation7], %s322
          %s324 = smul.addr %s320, 5
          %s325 = smul.addr %s324, 64
          %s326 = scalar_lea.hbm %s3, %s325
          %s327 = sshll.u32 [#allocation6], 4
          %s328 = int_to_ptr.vmem [resolvable:$true] %s327
          %333 = dma.hbm_to_vmem [thread:$0]  %s326, 20480, %s328, [#allocation7], 320, 320, 20
        $region16: #{cvae_forward.2} parent=11 // pred_fallthru
          _
        // Predicated region
        $region17: #{cvae_forward.2} parent=11 // pred_check
          %p334 = pneg %p140
        $region18: #{cvae_forward.2} parent=11 // pred_check_branch
          %336 = sbr.rel (%p334) target = $region20
        $region19: #{cvae_forward.2} parent=11 // pred_region
          _
        $region20: #{cvae_forward.2} parent=11 // pred_fallthru
          _
        // Predicated region
        $region21: #{cvae_forward.2} parent=11 // pred_check
          %p337 = pneg %p161
        $region22: #{cvae_forward.2} parent=11 // pred_check_branch
          %339 = sbr.rel (%p337) target = $region24
        $region23: #{cvae_forward.2} parent=11 // pred_region
          %s341 = ssub.s32 30720, 30720
          %342 = vsyncadd [#allocation10], %s341
          %s343 = sshll.u32 [#allocation9], 4
          %s344 = int_to_ptr.vmem [resolvable:$true] %s343
          %349 = dma.hbm_to_vmem [thread:$0]  %s5, 30720, %s344, [#allocation10], 384, 384, 24
        $region24: #{cvae_forward.2} parent=11 // pred_fallthru
          _
        // Predicated region
        $region25: #{cvae_forward.2} parent=11 // pred_check
          %p350 = pneg %p182
        $region26: #{cvae_forward.2} parent=11 // pred_check_branch
          %352 = sbr.rel (%p350) target = $region28
        $region27: #{cvae_forward.2} parent=11 // pred_region
          _
        $region28: #{cvae_forward.2} parent=11 // pred_fallthru
          _
        // Predicated region
        $region29: #{cvae_forward.2} parent=11 // pred_check
          %p353 = pneg %p203
        $region30: #{cvae_forward.2} parent=11 // pred_check_branch
          %355 = sbr.rel (%p353) target = $region32
        $region31: #{cvae_forward.2} parent=11 // pred_region
          %s357 = ssub.s32 15360, 15360
          %358 = vsyncadd [#allocation10], %s357
          %s359 = sshll.u32 [#allocation11], 4
          %s360 = int_to_ptr.vmem [resolvable:$true] %s359
          %365 = dma.hbm_to_vmem [thread:$0]  %s7, 15360, %s360, [#allocation10], 320, 320, 20
        $region32: #{cvae_forward.2} parent=11 // pred_fallthru
          _
        // Predicated region
        $region33: #{cvae_forward.2} parent=11 // pred_check
          %p366 = pneg %p224
        $region34: #{cvae_forward.2} parent=11 // pred_check_branch
          %368 = sbr.rel (%p366) target = $region36
        $region35: #{cvae_forward.2} parent=11 // pred_region
          _
        $region36: #{cvae_forward.2} parent=11 // pred_fallthru
          _
      $region12: #{cvae_forward.2} parent=5 // pred_fallthru
        _
      %p369 = scmp.lt.s32.totalorder %s27, 2
      // Predicated region
      $region37: #{cvae_forward.2} parent=5 // pred_check
        %p370 = pneg %p369
      $region38: #{cvae_forward.2} parent=5 // pred_check_branch
        %372 = sbr.rel (%p370) target = $region40
      $region39: #{cvae_forward.2} parent=5 // pred_region
        // Predicated region
        $region41: #{cvae_forward.2} parent=39 // pred_check
          %p373 = pneg %p61
        $region42: #{cvae_forward.2} parent=39 // pred_check_branch
          %375 = sbr.rel (%p373) target = $region44
        $region43: #{cvae_forward.2} parent=39 // pred_region
          %s376 = smul.u32 4, %s34
          %s377 = smul.u32 4, %s35
          %p378 = scmp.lt.s32.totalorder %s376, 7
          %s379 = scalar_select %p378, %s376, 7
          %p380 = scmp.lt.s32.totalorder %s377, 3
          %s381 = scalar_select %p380, %s377, 3
          %s382 = smul.addr %s379, 4
          %s383 = sadd.s32 %s381, %s382
          %s384 = smul.addr %s383, 8
          %s385 = scalar_lea.vmem %s1, %s384
          %s386 = smul.u32 4, %s34
          %s387 = smul.u32 4, %s35
        $region44: #{cvae_forward.2} parent=39 // pred_fallthru
          _
        // Predicated region
        $region45: #{cvae_forward.2} parent=39 // pred_check
          %p388 = pneg %p87
        $region46: #{cvae_forward.2} parent=39 // pred_check_branch
          %390 = sbr.rel (%p388) target = $region48
        $region47: #{cvae_forward.2} parent=39 // pred_region
          %s391 = smul.u32 4, %s34
          %p392 = scmp.lt.s32.totalorder %s391, 7
          %s393 = scalar_select %p392, %s391, 7
          %s394 = smul.addr %s393, 3
          %s395 = smul.addr %s394, 8
          %s396 = scalar_lea.vmem %s2, %s395
          %s397 = smul.u32 4, %s34
        $region48: #{cvae_forward.2} parent=39 // pred_fallthru
          _
      $region40: #{cvae_forward.2} parent=5 // pred_fallthru
        _
      %p398 = scmp.le.s32.totalorder 1, %s27
      %p399 = scmp.lt.s32.totalorder %s27, 3
      %p400 = pnand %p398, %p399
      %p401 = pneg %p400
      // Predicated region
      $region49: #{cvae_forward.2} parent=5 // pred_check
        _
      $region50: #{cvae_forward.2} parent=5 // pred_check_branch
        %403 = sbr.rel (%p400) target = $region52
      $region51: #{cvae_forward.2} parent=5 // pred_region
        %s404 = ssub.s32 %s27, 1
        // Predicated region
        $region53: #{cvae_forward.2} parent=51 // pred_check
          %p405 = pneg %p119
        $region54: #{cvae_forward.2} parent=51 // pred_check_branch
          %407 = sbr.rel (%p405) target = $region56
        $region55: #{cvae_forward.2} parent=51 // pred_region
          %408 = dma.done [#allocation7], 20480
        $region56: #{cvae_forward.2} parent=51 // pred_fallthru
          _
        // Predicated region
        $region57: #{cvae_forward.2} parent=51 // pred_check
          %p409 = pneg %p161
        $region58: #{cvae_forward.2} parent=51 // pred_check_branch
          %411 = sbr.rel (%p409) target = $region60
        $region59: #{cvae_forward.2} parent=51 // pred_region
          %412 = dma.done [#allocation10], 30720
        $region60: #{cvae_forward.2} parent=51 // pred_fallthru
          _
        // Predicated region
        $region61: #{cvae_forward.2} parent=51 // pred_check
          %p413 = pneg %p203
        $region62: #{cvae_forward.2} parent=51 // pred_check_branch
          %415 = sbr.rel (%p413) target = $region64
        $region63: #{cvae_forward.2} parent=51 // pred_region
          %416 = dma.done [#allocation10], 15360
        $region64: #{cvae_forward.2} parent=51 // pred_fallthru
          _
        %s417 = smul.u32 4, %s36
        %s418 = smul.u32 4, %s37
        %p419 = scmp.lt.s32.totalorder %s417, 7
        %s420 = scalar_select %p419, %s417, 7
        %p421 = scmp.lt.s32.totalorder %s418, 3
        %s422 = scalar_select %p421, %s418, 3
        %s423 = smul.addr %s420, 4
        %s424 = sadd.s32 %s422, %s423
        %s425 = smul.addr %s424, 8
        %s426 = scalar_lea.vmem %s1, %s425
        %p427 = pneg %p67
        %p428 = pneg %p64
        %s429 = smul.u32 4, %s36
        %p430 = scmp.lt.s32.totalorder %s429, 7
        %s431 = scalar_select %p430, %s429, 7
        %s432 = smul.addr %s431, 3
        %s433 = smul.addr %s432, 8
        %s434 = scalar_lea.vmem %s2, %s433
        %p435 = pneg %p93
        %p436 = pneg %p90
        %p437 = pneg %p119
        %p438 = pneg %p116
        %p439 = pneg %p140
        %p440 = pneg %p137
        %p441 = pneg %p161
        %p442 = pneg %p158
        %p443 = pneg %p182
        %p444 = pneg %p179
        %p445 = pneg %p203
        %p446 = pneg %p200
        %p447 = pneg %p224
        %p448 = pneg %p221
        %p449 = pneg %p250
        %p450 = pneg %p247
        %s451 = smul.u32 4, %s36
        %p452 = scmp.lt.s32.totalorder %s451, 7
        %s453 = scalar_select %p452, %s451, 7
        %s454 = smul.addr %s453, 5
        %s455 = smul.addr %s454, 4
        %s456 = scalar_lea.vmem %s9, %s455
        %p457 = pneg %p276
        %p458 = pneg %p273
        %s459 = sand.u32 %s263, 1
        %s460 = scalar_lea.sflag [#allocation8], %s459
        %s461 = sand.u32 %s263, 1
        %s462 = smul.addr %s461, 96
        %s463 = scalar_lea.vmem [#allocation12], %s462
        %p464 = pneg %p302
        %p465 = pneg %p299
        %s466 = sand.u32 %s289, 1
        %s467 = scalar_lea.sflag [#allocation14], %s466
        %s468 = sand.u32 %s289, 1
        %s469 = smul.addr %s468, 96
        %s470 = scalar_lea.vmem [#allocation13], %s469
        %s471 = smul.u32 4, %s36
        %s472 = smul.u32 4, %s37
        %p473 = scmp.lt.s32.totalorder %s471, 7
        %s474 = scalar_select %p473, %s471, 7
        %p475 = scmp.lt.s32.totalorder %s472, 3
        %s476 = scalar_select %p475, %s472, 3
        %s477 = smul.addr %s474, 4
        %s478 = sadd.s32 %s476, %s477
        %s479 = smul.addr %s478, 8
        %s480 = scalar_lea.vmem %s1, %s479
        %s481 = smul.u32 4, %s36
        %s482 = smul.u32 4, %s37
        %s483 = smul.u32 4, %s36
        %p484 = scmp.lt.s32.totalorder %s483, 7
        %s485 = scalar_select %p484, %s483, 7
        %s486 = smul.addr %s485, 3
        %s487 = smul.addr %s486, 8
        %s488 = scalar_lea.vmem %s2, %s487
        %s489 = smul.u32 4, %s36
        %s490 = smul.u32 64, %s37
        %s491 = smul.u32 4, %s36
        %p492 = scmp.lt.s32.totalorder %s491, 7
        %s493 = scalar_select %p492, %s491, 7
        %s494 = smul.addr %s493, 5
        %s495 = smul.addr %s494, 4
        %s496 = scalar_lea.vmem %s9, %s495
        %s497 = smul.u32 4, %s36
        %s498 = smul.u32 4, %s36
        %s499 = smul.u32 4, %s36
        %p501 = scmp.eq.s32.totalorder %s37, 0
        // Predicated region
        $region65: #{cvae_forward.2} parent=51 // pred_check
          %p502 = pneg %p501
        $region66: #{cvae_forward.2} parent=51 // pred_check_branch
          %504 = sbr.rel (%p502) target = $region68
        $region67: #{cvae_forward.2} parent=51 // pred_region
          %505 = vst [vmem:[#allocation2] sm:$0xff] 0.0
          %506 = vst [vmem:[#allocation2 + $0x8] sm:$0xff] 0.0
          %507 = vst [vmem:[#allocation2 + $0x10] sm:$0xff] 0.0
          %508 = vst [vmem:[#allocation2 + $0x18] sm:$0xff] 0.0
          %509 = vst [vmem:[#allocation2 + $0x20] sm:$0xff] 0.0
          %510 = vst [vmem:[#allocation2 + $0x28] sm:$0xff] 0.0
          %511 = vst [vmem:[#allocation2 + $0x30] sm:$0xff] 0.0
          %512 = vst [vmem:[#allocation2 + $0x38] sm:$0xff] 0.0
          %513 = vst [vmem:[#allocation2 + $0x40] sm:$0xff] 0.0
          %514 = vst [vmem:[#allocation2 + $0x48] sm:$0xff] 0.0
          %515 = vst [vmem:[#allocation2 + $0x50] sm:$0xff] 0.0
          %516 = vst [vmem:[#allocation2 + $0x58] sm:$0xff] 0.0
          %517 = vst [vmem:[#allocation2 + $0x60] sm:$0xff] 0.0
          %518 = vst [vmem:[#allocation2 + $0x68] sm:$0xff] 0.0
          %519 = vst [vmem:[#allocation2 + $0x70] sm:$0xff] 0.0
          %520 = vst [vmem:[#allocation2 + $0x78] sm:$0xff] 0.0
          %521 = vst [vmem:[#allocation2 + $0x80] sm:$0xff] 0.0
          %522 = vst [vmem:[#allocation2 + $0x88] sm:$0xff] 0.0
          %523 = vst [vmem:[#allocation2 + $0x90] sm:$0xff] 0.0
          %524 = vst [vmem:[#allocation2 + $0x98] sm:$0xff] 0.0
          %vm525 = vcmask 7168
          %526 = vst.msk [vmem:[#allocation3] sm:$0xff] %vm525, 0.0
          %527 = vst.msk [vmem:[#allocation3 + $0x8] sm:$0xff] %vm525, 0.0
          %528 = vst.msk [vmem:[#allocation3 + $0x10] sm:$0xff] %vm525, 0.0
          %529 = vst.msk [vmem:[#allocation3 + $0x18] sm:$0xff] %vm525, 0.0
        $region68: #{cvae_forward.2} parent=51 // pred_fallthru
          _
        %v530 = vld [vmem:[%s480] sm:$0xff]
        %v531 = vld [vmem:[%s480 + $0x8] sm:$0xff]
        %v532 = vld [vmem:[%s480 + $0x10] sm:$0xff]
        %v533 = vld [vmem:[%s480 + $0x18] sm:$0xff]
        %v534 = vld [vmem:[%s480 + $0x20] sm:$0xff]
        %v535 = vld [vmem:[%s480 + $0x28] sm:$0xff]
        %v536 = vld [vmem:[%s480 + $0x30] sm:$0xff]
        %v537 = vld [vmem:[%s480 + $0x38] sm:$0xff]
        %v538 = vld [vmem:[%s480 + $0x40] sm:$0xff]
        %v539 = vld [vmem:[%s480 + $0x48] sm:$0xff]
        %v540 = vld [vmem:[%s480 + $0x50] sm:$0xff]
        %v541 = vld [vmem:[%s480 + $0x58] sm:$0xff]
        %v542 = vld [vmem:[%s480 + $0x60] sm:$0xff]
        %v543 = vld [vmem:[%s480 + $0x68] sm:$0xff]
        %v544 = vld [vmem:[%s480 + $0x70] sm:$0xff]
        %v545 = vld [vmem:[%s480 + $0x78] sm:$0xff]
        %v546 = vld [vmem:[#allocation3] sm:$0xff]
        %v547 = vld [vmem:[#allocation3 + $0x8] sm:$0xff]
        %v548 = vld [vmem:[#allocation3 + $0x10] sm:$0xff]
        %v549 = vld [vmem:[#allocation3 + $0x18] sm:$0xff]
        %v550 = vmul.f32 %v530, %v530
        %v551 = vmul.f32 %v531, %v531
        %v552 = vmul.f32 %v532, %v532
        %v553 = vmul.f32 %v533, %v533
        %v554 = vmul.f32 %v534, %v534
        %v555 = vmul.f32 %v535, %v535
        %v556 = vmul.f32 %v536, %v536
        %v557 = vmul.f32 %v537, %v537
        %v558 = vmul.f32 %v538, %v538
        %v559 = vmul.f32 %v539, %v539
        %v560 = vmul.f32 %v540, %v540
        %v561 = vmul.f32 %v541, %v541
        %v562 = vmul.f32 %v542, %v542
        %v563 = vmul.f32 %v543, %v543
        %v564 = vmul.f32 %v544, %v544
        %v565 = vmul.f32 %v545, %v545
        %v566 = vadd.f32 %v550, %v551
        %v567 = vadd.f32 %v566, %v552
        %v568 = vadd.f32 %v567, %v553
        %569 = vadd.xlane.f32.xlu0 %v568
        %v570 = vpop.xlane.xlu0 %569
        %v571 = vadd.f32 %v554, %v555
        %v572 = vadd.f32 %v571, %v556
        %v573 = vadd.f32 %v572, %v557
        %574 = vadd.xlane.f32.xlu0 %v573
        %v575 = vpop.xlane.xlu0 %574
        %v576 = vadd.f32 %v558, %v559
        %v577 = vadd.f32 %v576, %v560
        %v578 = vadd.f32 %v577, %v561
        %579 = vadd.xlane.f32.xlu0 %v578
        %v580 = vpop.xlane.xlu0 %579
        %v581 = vadd.f32 %v562, %v563
        %v582 = vadd.f32 %v581, %v564
        %v583 = vadd.f32 %v582, %v565
        %584 = vadd.xlane.f32.xlu0 %v583
        %v585 = vpop.xlane.xlu0 %584
        %v586 = vadd.f32 %v546, %v570
        %v587 = vadd.f32 %v547, %v575
        %v588 = vadd.f32 %v548, %v580
        %v589 = vadd.f32 %v549, %v585
        %vm590 = vcmask 7168
        %591 = vst.msk [vmem:[#allocation3] sm:$0xff] %vm590, %v586
        %592 = vst.msk [vmem:[#allocation3 + $0x8] sm:$0xff] %vm590, %v587
        %593 = vst.msk [vmem:[#allocation3 + $0x10] sm:$0xff] %vm590, %v588
        %594 = vst.msk [vmem:[#allocation3 + $0x18] sm:$0xff] %vm590, %v589
        %s595 = sld [smem:[#allocation5]]
        %s596 = smul.u32 %s36, 32
        %s597 = smul.u32 %s37, 512
        %v598 = vlaneseq
        %v599 = vshrl.u32 %v598, 7
        %v600 = vadd.s32 %v599, 8
        %v601 = vadd.s32 %v599, 16
        %v602 = vadd.s32 %v599, 24
        %v603 = vstv %s596
        %v604 = vadd.s32 %v599, %v603
        %v605 = vadd.s32 %v600, %v603
        %v606 = vadd.s32 %v601, %v603
        %v607 = vadd.s32 %v602, %v603
        %v608 = vlaneseq
        %v609 = vand.u32 %v608, 127
        %v610 = vadd.s32 %v609, 128
        %v611 = vadd.s32 %v609, 256
        %v612 = vadd.s32 %v609, 384
        %v613 = vstv %s597
        %v614 = vadd.s32 %v609, %v613
        %v615 = vadd.s32 %v610, %v613
        %v616 = vadd.s32 %v611, %v613
        %v617 = vadd.s32 %v612, %v613
        %v618 = vmul.u32 %v604, 2654435761
        %v619 = vmul.u32 %v605, 2654435761
        %v620 = vmul.u32 %v606, 2654435761
        %v621 = vmul.u32 %v607, 2654435761
        %v622 = vmul.u32 %v614, 2246822519
        %v623 = vmul.u32 %v615, 2246822519
        %v624 = vmul.u32 %v616, 2246822519
        %v625 = vmul.u32 %v617, 2246822519
        %v626 = vxor.u32 %v618, %v622
        %v627 = vxor.u32 %v618, %v623
        %v628 = vxor.u32 %v618, %v624
        %v629 = vxor.u32 %v618, %v625
        %v630 = vxor.u32 %v619, %v622
        %v631 = vxor.u32 %v619, %v623
        %v632 = vxor.u32 %v619, %v624
        %v633 = vxor.u32 %v619, %v625
        %v634 = vxor.u32 %v620, %v622
        %v635 = vxor.u32 %v620, %v623
        %v636 = vxor.u32 %v620, %v624
        %v637 = vxor.u32 %v620, %v625
        %v638 = vxor.u32 %v621, %v622
        %v639 = vxor.u32 %v621, %v623
        %v640 = vxor.u32 %v621, %v624
        %v641 = vxor.u32 %v621, %v625
        %s642 = smul.u32 %s595, 3266489917
        %v643 = vstv %s642
        %v644 = vxor.u32 %v626, %v643
        %v645 = vxor.u32 %v627, %v643
        %v646 = vxor.u32 %v628, %v643
        %v647 = vxor.u32 %v629, %v643
        %v648 = vxor.u32 %v630, %v643
        %v649 = vxor.u32 %v631, %v643
        %v650 = vxor.u32 %v632, %v643
        %v651 = vxor.u32 %v633, %v643
        %v652 = vxor.u32 %v634, %v643
        %v653 = vxor.u32 %v635, %v643
        %v654 = vxor.u32 %v636, %v643
        %v655 = vxor.u32 %v637, %v643
        %v656 = vxor.u32 %v638, %v643
        %v657 = vxor.u32 %v639, %v643
        %v658 = vxor.u32 %v640, %v643
        %v659 = vxor.u32 %v641, %v643
        %v660 = vshrl.u32 %v644, 16
        %v661 = vshrl.u32 %v645, 16
        %v662 = vshrl.u32 %v646, 16
        %v663 = vshrl.u32 %v647, 16
        %v664 = vshrl.u32 %v648, 16
        %v665 = vshrl.u32 %v649, 16
        %v666 = vshrl.u32 %v650, 16
        %v667 = vshrl.u32 %v651, 16
        %v668 = vshrl.u32 %v652, 16
        %v669 = vshrl.u32 %v653, 16
        %v670 = vshrl.u32 %v654, 16
        %v671 = vshrl.u32 %v655, 16
        %v672 = vshrl.u32 %v656, 16
        %v673 = vshrl.u32 %v657, 16
        %v674 = vshrl.u32 %v658, 16
        %v675 = vshrl.u32 %v659, 16
        %v676 = vxor.u32 %v644, %v660
        %v677 = vxor.u32 %v645, %v661
        %v678 = vxor.u32 %v646, %v662
        %v679 = vxor.u32 %v647, %v663
        %v680 = vxor.u32 %v648, %v664
        %v681 = vxor.u32 %v649, %v665
        %v682 = vxor.u32 %v650, %v666
        %v683 = vxor.u32 %v651, %v667
        %v684 = vxor.u32 %v652, %v668
        %v685 = vxor.u32 %v653, %v669
        %v686 = vxor.u32 %v654, %v670
        %v687 = vxor.u32 %v655, %v671
        %v688 = vxor.u32 %v656, %v672
        %v689 = vxor.u32 %v657, %v673
        %v690 = vxor.u32 %v658, %v674
        %v691 = vxor.u32 %v659, %v675
        %v692 = vmul.u32 %v676, 2146121005
        %v693 = vmul.u32 %v677, 2146121005
        %v694 = vmul.u32 %v678, 2146121005
        %v695 = vmul.u32 %v679, 2146121005
        %v696 = vmul.u32 %v680, 2146121005
        %v697 = vmul.u32 %v681, 2146121005
        %v698 = vmul.u32 %v682, 2146121005
        %v699 = vmul.u32 %v683, 2146121005
        %v700 = vmul.u32 %v684, 2146121005
        %v701 = vmul.u32 %v685, 2146121005
        %v702 = vmul.u32 %v686, 2146121005
        %v703 = vmul.u32 %v687, 2146121005
        %v704 = vmul.u32 %v688, 2146121005
        %v705 = vmul.u32 %v689, 2146121005
        %v706 = vmul.u32 %v690, 2146121005
        %v707 = vmul.u32 %v691, 2146121005
        %v708 = vshrl.u32 %v692, 15
        %v709 = vshrl.u32 %v693, 15
        %v710 = vshrl.u32 %v694, 15
        %v711 = vshrl.u32 %v695, 15
        %v712 = vshrl.u32 %v696, 15
        %v713 = vshrl.u32 %v697, 15
        %v714 = vshrl.u32 %v698, 15
        %v715 = vshrl.u32 %v699, 15
        %v716 = vshrl.u32 %v700, 15
        %v717 = vshrl.u32 %v701, 15
        %v718 = vshrl.u32 %v702, 15
        %v719 = vshrl.u32 %v703, 15
        %v720 = vshrl.u32 %v704, 15
        %v721 = vshrl.u32 %v705, 15
        %v722 = vshrl.u32 %v706, 15
        %v723 = vshrl.u32 %v707, 15
        %v724 = vxor.u32 %v692, %v708
        %v725 = vxor.u32 %v693, %v709
        %v726 = vxor.u32 %v694, %v710
        %v727 = vxor.u32 %v695, %v711
        %v728 = vxor.u32 %v696, %v712
        %v729 = vxor.u32 %v697, %v713
        %v730 = vxor.u32 %v698, %v714
        %v731 = vxor.u32 %v699, %v715
        %v732 = vxor.u32 %v700, %v716
        %v733 = vxor.u32 %v701, %v717
        %v734 = vxor.u32 %v702, %v718
        %v735 = vxor.u32 %v703, %v719
        %v736 = vxor.u32 %v704, %v720
        %v737 = vxor.u32 %v705, %v721
        %v738 = vxor.u32 %v706, %v722
        %v739 = vxor.u32 %v707, %v723
        %v740 = vmul.u32 %v724, 2221713035
        %v741 = vmul.u32 %v725, 2221713035
        %v742 = vmul.u32 %v726, 2221713035
        %v743 = vmul.u32 %v727, 2221713035
        %v744 = vmul.u32 %v728, 2221713035
        %v745 = vmul.u32 %v729, 2221713035
        %v746 = vmul.u32 %v730, 2221713035
        %v747 = vmul.u32 %v731, 2221713035
        %v748 = vmul.u32 %v732, 2221713035
        %v749 = vmul.u32 %v733, 2221713035
        %v750 = vmul.u32 %v734, 2221713035
        %v751 = vmul.u32 %v735, 2221713035
        %v752 = vmul.u32 %v736, 2221713035
        %v753 = vmul.u32 %v737, 2221713035
        %v754 = vmul.u32 %v738, 2221713035
        %v755 = vmul.u32 %v739, 2221713035
        %v756 = vshrl.u32 %v740, 16
        %v757 = vshrl.u32 %v741, 16
        %v758 = vshrl.u32 %v742, 16
        %v759 = vshrl.u32 %v743, 16
        %v760 = vshrl.u32 %v744, 16
        %v761 = vshrl.u32 %v745, 16
        %v762 = vshrl.u32 %v746, 16
        %v763 = vshrl.u32 %v747, 16
        %v764 = vshrl.u32 %v748, 16
        %v765 = vshrl.u32 %v749, 16
        %v766 = vshrl.u32 %v750, 16
        %v767 = vshrl.u32 %v751, 16
        %v768 = vshrl.u32 %v752, 16
        %v769 = vshrl.u32 %v753, 16
        %v770 = vshrl.u32 %v754, 16
        %v771 = vshrl.u32 %v755, 16
        %v772 = vxor.u32 %v740, %v756
        %v773 = vxor.u32 %v741, %v757
        %v774 = vxor.u32 %v742, %v758
        %v775 = vxor.u32 %v743, %v759
        %v776 = vxor.u32 %v744, %v760
        %v777 = vxor.u32 %v745, %v761
        %v778 = vxor.u32 %v746, %v762
        %v779 = vxor.u32 %v747, %v763
        %v780 = vxor.u32 %v748, %v764
        %v781 = vxor.u32 %v749, %v765
        %v782 = vxor.u32 %v750, %v766
        %v783 = vxor.u32 %v751, %v767
        %v784 = vxor.u32 %v752, %v768
        %v785 = vxor.u32 %v753, %v769
        %v786 = vxor.u32 %v754, %v770
        %v787 = vxor.u32 %v755, %v771
        %v788 = vshrl.u32 %v772, 8
        %v789 = vshrl.u32 %v773, 8
        %v790 = vshrl.u32 %v774, 8
        %v791 = vshrl.u32 %v775, 8
        %v792 = vshrl.u32 %v776, 8
        %v793 = vshrl.u32 %v777, 8
        %v794 = vshrl.u32 %v778, 8
        %v795 = vshrl.u32 %v779, 8
        %v796 = vshrl.u32 %v780, 8
        %v797 = vshrl.u32 %v781, 8
        %v798 = vshrl.u32 %v782, 8
        %v799 = vshrl.u32 %v783, 8
        %v800 = vshrl.u32 %v784, 8
        %v801 = vshrl.u32 %v785, 8
        %v802 = vshrl.u32 %v786, 8
        %v803 = vshrl.u32 %v787, 8
        %v804 = vcvt.s32.f32 %v788
        %v805 = vcvt.s32.f32 %v789
        %v806 = vcvt.s32.f32 %v790
        %v807 = vcvt.s32.f32 %v791
        %v808 = vcvt.s32.f32 %v792
        %v809 = vcvt.s32.f32 %v793
        %v810 = vcvt.s32.f32 %v794
        %v811 = vcvt.s32.f32 %v795
        %v812 = vcvt.s32.f32 %v796
        %v813 = vcvt.s32.f32 %v797
        %v814 = vcvt.s32.f32 %v798
        %v815 = vcvt.s32.f32 %v799
        %v816 = vcvt.s32.f32 %v800
        %v817 = vcvt.s32.f32 %v801
        %v818 = vcvt.s32.f32 %v802
        %v819 = vcvt.s32.f32 %v803
        %v820 = vmul.f32 %v804, 5.9604645e-08
        %v821 = vmul.f32 %v805, 5.9604645e-08
        %v822 = vmul.f32 %v806, 5.9604645e-08
        %v823 = vmul.f32 %v807, 5.9604645e-08
        %v824 = vmul.f32 %v808, 5.9604645e-08
        %v825 = vmul.f32 %v809, 5.9604645e-08
        %v826 = vmul.f32 %v810, 5.9604645e-08
        %v827 = vmul.f32 %v811, 5.9604645e-08
        %v828 = vmul.f32 %v812, 5.9604645e-08
        %v829 = vmul.f32 %v813, 5.9604645e-08
        %v830 = vmul.f32 %v814, 5.9604645e-08
        %v831 = vmul.f32 %v815, 5.9604645e-08
        %v832 = vmul.f32 %v816, 5.9604645e-08
        %v833 = vmul.f32 %v817, 5.9604645e-08
        %v834 = vmul.f32 %v818, 5.9604645e-08
        %v835 = vmul.f32 %v819, 5.9604645e-08
        %vm836 = vcmp.lt.f32.partialorder %v820, 0.5
        %vm837 = vcmp.lt.f32.partialorder %v821, 0.5
        %vm838 = vcmp.lt.f32.partialorder %v822, 0.5
        %vm839 = vcmp.lt.f32.partialorder %v823, 0.5
        %vm840 = vcmp.lt.f32.partialorder %v824, 0.5
        %vm841 = vcmp.lt.f32.partialorder %v825, 0.5
        %vm842 = vcmp.lt.f32.partialorder %v826, 0.5
        %vm843 = vcmp.lt.f32.partialorder %v827, 0.5
        %vm844 = vcmp.lt.f32.partialorder %v828, 0.5
        %vm845 = vcmp.lt.f32.partialorder %v829, 0.5
        %vm846 = vcmp.lt.f32.partialorder %v830, 0.5
        %vm847 = vcmp.lt.f32.partialorder %v831, 0.5
        %vm848 = vcmp.lt.f32.partialorder %v832, 0.5
        %vm849 = vcmp.lt.f32.partialorder %v833, 0.5
        %vm850 = vcmp.lt.f32.partialorder %v834, 0.5
        %vm851 = vcmp.lt.f32.partialorder %v835, 0.5
        %v852 = vmul.f32 %v530, 2.0
        %v853 = vmul.f32 %v531, 2.0
        %v854 = vmul.f32 %v532, 2.0
        %v855 = vmul.f32 %v533, 2.0
        %v856 = vmul.f32 %v534, 2.0
        %v857 = vmul.f32 %v535, 2.0
        %v858 = vmul.f32 %v536, 2.0
        %v859 = vmul.f32 %v537, 2.0
        %v860 = vmul.f32 %v538, 2.0
        %v861 = vmul.f32 %v539, 2.0
        %v862 = vmul.f32 %v540, 2.0
        %v863 = vmul.f32 %v541, 2.0
        %v864 = vmul.f32 %v542, 2.0
        %v865 = vmul.f32 %v543, 2.0
        %v866 = vmul.f32 %v544, 2.0
        %v867 = vmul.f32 %v545, 2.0
        %v868 = vsel %vm836, %v852, 0.0
        %v869 = vsel %vm837, %v853, 0.0
        %v870 = vsel %vm838, %v854, 0.0
        %v871 = vsel %vm839, %v855, 0.0
        %v872 = vsel %vm840, %v856, 0.0
        %v873 = vsel %vm841, %v857, 0.0
        %v874 = vsel %vm842, %v858, 0.0
        %v875 = vsel %vm843, %v859, 0.0
        %v876 = vsel %vm844, %v860, 0.0
        %v877 = vsel %vm845, %v861, 0.0
        %v878 = vsel %vm846, %v862, 0.0
        %v879 = vsel %vm847, %v863, 0.0
        %v880 = vsel %vm848, %v864, 0.0
        %v881 = vsel %vm849, %v865, 0.0
        %v882 = vsel %vm850, %v866, 0.0
        %v883 = vsel %vm851, %v867, 0.0
        %v884 = vpack.c.bf16 %v872, %v868
        %v885 = vpack.c.bf16 %v873, %v869
        %v886 = vpack.c.bf16 %v874, %v870
        %v887 = vpack.c.bf16 %v875, %v871
        %v888 = vpack.c.bf16 %v880, %v876
        %v889 = vpack.c.bf16 %v881, %v877
        %v890 = vpack.c.bf16 %v882, %v878
        %v891 = vpack.c.bf16 %v883, %v879
        %v892 = vld [vmem:[#allocation2] sm:$0xff]
        %v893 = vld [vmem:[#allocation2 + $0x8] sm:$0xff]
        %v894 = vld [vmem:[#allocation2 + $0x10] sm:$0xff]
        %v895 = vld [vmem:[#allocation2 + $0x18] sm:$0xff]
        %v896 = vld [vmem:[#allocation2 + $0x20] sm:$0xff]
        %v897 = vld [vmem:[#allocation2 + $0x28] sm:$0xff]
        %v898 = vld [vmem:[#allocation2 + $0x30] sm:$0xff]
        %v899 = vld [vmem:[#allocation2 + $0x38] sm:$0xff]
        %v900 = vld [vmem:[#allocation2 + $0x40] sm:$0xff]
        %v901 = vld [vmem:[#allocation2 + $0x48] sm:$0xff]
        %v902 = vld [vmem:[#allocation2 + $0x50] sm:$0xff]
        %v903 = vld [vmem:[#allocation2 + $0x58] sm:$0xff]
        %v904 = vld [vmem:[#allocation2 + $0x60] sm:$0xff]
        %v905 = vld [vmem:[#allocation2 + $0x68] sm:$0xff]
        %v906 = vld [vmem:[#allocation2 + $0x70] sm:$0xff]
        %v907 = vld [vmem:[#allocation2 + $0x78] sm:$0xff]
        %v908 = vld [vmem:[#allocation2 + $0x80] sm:$0xff]
        %v909 = vld [vmem:[#allocation2 + $0x88] sm:$0xff]
        %v910 = vld [vmem:[#allocation2 + $0x90] sm:$0xff]
        %v911 = vld [vmem:[#allocation2 + $0x98] sm:$0xff]
        %v912 = vld [vmem:[#allocation6] sm:$0xff]
        %v913 = vld [vmem:[#allocation6 + $0x8] sm:$0xff]
        %v914 = vld [vmem:[#allocation6 + $0x10] sm:$0xf]
        %v915 = vld [vmem:[#allocation6 + $0x14] sm:$0xff]
        %v916 = vld [vmem:[#allocation6 + $0x1c] sm:$0xff]
        %v917 = vld [vmem:[#allocation6 + $0x24] sm:$0xf]
        %v918 = vld [vmem:[#allocation6 + $0x28] sm:$0xff]
        %v919 = vld [vmem:[#allocation6 + $0x30] sm:$0xff]
        %v920 = vld [vmem:[#allocation6 + $0x38] sm:$0xf]
        %v921 = vld [vmem:[#allocation6 + $0x3c] sm:$0xff]
        %v922 = vld [vmem:[#allocation6 + $0x44] sm:$0xff]
        %v923 = vld [vmem:[#allocation6 + $0x4c] sm:$0xf]
        %v924 = vld [vmem:[#allocation6 + $0x50] sm:$0xff]
        %v925 = vld [vmem:[#allocation6 + $0x58] sm:$0xff]
        %v926 = vld [vmem:[#allocation6 + $0x60] sm:$0xf]
        %v927 = vld [vmem:[#allocation6 + $0x64] sm:$0xff]
        %v928 = vld [vmem:[#allocation6 + $0x6c] sm:$0xff]
        %v929 = vld [vmem:[#allocation6 + $0x74] sm:$0xf]
        %v930 = vld [vmem:[#allocation6 + $0x78] sm:$0xff]
        %v931 = vld [vmem:[#allocation6 + $0x80] sm:$0xff]
        %v932 = vld [vmem:[#allocation6 + $0x88] sm:$0xf]
        %v933 = vld [vmem:[#allocation6 + $0x8c] sm:$0xff]
        %v934 = vld [vmem:[#allocation6 + $0x94] sm:$0xff]
        %v935 = vld [vmem:[#allocation6 + $0x9c] sm:$0xf]
        %v936 = vld [vmem:[#allocation6 + $0xa0] sm:$0xff]
        %v937 = vld [vmem:[#allocation6 + $0xa8] sm:$0xff]
        %v938 = vld [vmem:[#allocation6 + $0xb0] sm:$0xf]
        %v939 = vld [vmem:[#allocation6 + $0xb4] sm:$0xff]
        %v940 = vld [vmem:[#allocation6 + $0xbc] sm:$0xff]
        %v941 = vld [vmem:[#allocation6 + $0xc4] sm:$0xf]
        %v942 = vld [vmem:[#allocation6 + $0xc8] sm:$0xff]
        %v943 = vld [vmem:[#allocation6 + $0xd0] sm:$0xff]
        %v944 = vld [vmem:[#allocation6 + $0xd8] sm:$0xf]
        %v945 = vld [vmem:[#allocation6 + $0xdc] sm:$0xff]
        %v946 = vld [vmem:[#allocation6 + $0xe4] sm:$0xff]
        %v947 = vld [vmem:[#allocation6 + $0xec] sm:$0xf]
        %v948 = vld [vmem:[#allocation6 + $0xf0] sm:$0xff]
        %v949 = vld [vmem:[#allocation6 + $0xf8] sm:$0xff]
        %v950 = vld [vmem:[#allocation6 + $0x100] sm:$0xf]
        %v951 = vld [vmem:[#allocation6 + $0x104] sm:$0xff]
        %v952 = vld [vmem:[#allocation6 + $0x10c] sm:$0xff]
        %v953 = vld [vmem:[#allocation6 + $0x114] sm:$0xf]
        %v954 = vld [vmem:[#allocation6 + $0x118] sm:$0xff]
        %v955 = vld [vmem:[#allocation6 + $0x120] sm:$0xff]
        %v956 = vld [vmem:[#allocation6 + $0x128] sm:$0xf]
        %v957 = vld [vmem:[#allocation6 + $0x12c] sm:$0xff]
        %v958 = vld [vmem:[#allocation6 + $0x134] sm:$0xff]
        %v959 = vld [vmem:[#allocation6 + $0x13c] sm:$0xf]
        %v960 = vld [vmem:[#allocation6 + $0x140] sm:$0xff]
        %v961 = vld [vmem:[#allocation6 + $0x148] sm:$0xff]
        %v962 = vld [vmem:[#allocation6 + $0x150] sm:$0xf]
        %v963 = vld [vmem:[#allocation6 + $0x154] sm:$0xff]
        %v964 = vld [vmem:[#allocation6 + $0x15c] sm:$0xff]
        %v965 = vld [vmem:[#allocation6 + $0x164] sm:$0xf]
        %v966 = vld [vmem:[#allocation6 + $0x168] sm:$0xff]
        %v967 = vld [vmem:[#allocation6 + $0x170] sm:$0xff]
        %v968 = vld [vmem:[#allocation6 + $0x178] sm:$0xf]
        %v969 = vld [vmem:[#allocation6 + $0x17c] sm:$0xff]
        %v970 = vld [vmem:[#allocation6 + $0x184] sm:$0xff]
        %v971 = vld [vmem:[#allocation6 + $0x18c] sm:$0xf]
        %v972 = vld [vmem:[#allocation6 + $0x190] sm:$0xff]
        %v973 = vld [vmem:[#allocation6 + $0x198] sm:$0xff]
        %v974 = vld [vmem:[#allocation6 + $0x1a0] sm:$0xf]
        %v975 = vld [vmem:[#allocation6 + $0x1a4] sm:$0xff]
        %v976 = vld [vmem:[#allocation6 + $0x1ac] sm:$0xff]
        %v977 = vld [vmem:[#allocation6 + $0x1b4] sm:$0xf]
        %v978 = vld [vmem:[#allocation6 + $0x1b8] sm:$0xff]
        %v979 = vld [vmem:[#allocation6 + $0x1c0] sm:$0xff]
        %v980 = vld [vmem:[#allocation6 + $0x1c8] sm:$0xf]
        %v981 = vld [vmem:[#allocation6 + $0x1cc] sm:$0xff]
        %v982 = vld [vmem:[#allocation6 + $0x1d4] sm:$0xff]
        %v983 = vld [vmem:[#allocation6 + $0x1dc] sm:$0xf]
        %v984 = vld [vmem:[#allocation6 + $0x1e0] sm:$0xff]
        %v985 = vld [vmem:[#allocation6 + $0x1e8] sm:$0xff]
        %v986 = vld [vmem:[#allocation6 + $0x1f0] sm:$0xf]
        %v987 = vld [vmem:[#allocation6 + $0x1f4] sm:$0xff]
        %v988 = vld [vmem:[#allocation6 + $0x1fc] sm:$0xff]
        %v989 = vld [vmem:[#allocation6 + $0x204] sm:$0xf]
        %v990 = vld [vmem:[#allocation6 + $0x208] sm:$0xff]
        %v991 = vld [vmem:[#allocation6 + $0x210] sm:$0xff]
        %v992 = vld [vmem:[#allocation6 + $0x218] sm:$0xf]
        %v993 = vld [vmem:[#allocation6 + $0x21c] sm:$0xff]
        %v994 = vld [vmem:[#allocation6 + $0x224] sm:$0xff]
        %v995 = vld [vmem:[#allocation6 + $0x22c] sm:$0xf]
        %v996 = vld [vmem:[#allocation6 + $0x230] sm:$0xff]
        %v997 = vld [vmem:[#allocation6 + $0x238] sm:$0xff]
        %v998 = vld [vmem:[#allocation6 + $0x240] sm:$0xf]
        %v999 = vld [vmem:[#allocation6 + $0x244] sm:$0xff]
        %v1000 = vld [vmem:[#allocation6 + $0x24c] sm:$0xff]
        %v1001 = vld [vmem:[#allocation6 + $0x254] sm:$0xf]
        %v1002 = vld [vmem:[#allocation6 + $0x258] sm:$0xff]
        %v1003 = vld [vmem:[#allocation6 + $0x260] sm:$0xff]
        %v1004 = vld [vmem:[#allocation6 + $0x268] sm:$0xf]
        %v1005 = vld [vmem:[#allocation6 + $0x26c] sm:$0xff]
        %v1006 = vld [vmem:[#allocation6 + $0x274] sm:$0xff]
        %v1007 = vld [vmem:[#allocation6 + $0x27c] sm:$0xf]
        %v1008 = vld [vmem:[#allocation6 + $0x280] sm:$0xff]
        %v1009 = vld [vmem:[#allocation6 + $0x288] sm:$0xff]
        %v1010 = vld [vmem:[#allocation6 + $0x290] sm:$0xf]
        %v1011 = vld [vmem:[#allocation6 + $0x294] sm:$0xff]
        %v1012 = vld [vmem:[#allocation6 + $0x29c] sm:$0xff]
        %v1013 = vld [vmem:[#allocation6 + $0x2a4] sm:$0xf]
        %v1014 = vld [vmem:[#allocation6 + $0x2a8] sm:$0xff]
        %v1015 = vld [vmem:[#allocation6 + $0x2b0] sm:$0xff]
        %v1016 = vld [vmem:[#allocation6 + $0x2b8] sm:$0xf]
        %v1017 = vld [vmem:[#allocation6 + $0x2bc] sm:$0xff]
        %v1018 = vld [vmem:[#allocation6 + $0x2c4] sm:$0xff]
        %v1019 = vld [vmem:[#allocation6 + $0x2cc] sm:$0xf]
        %v1020 = vld [vmem:[#allocation6 + $0x2d0] sm:$0xff]
        %v1021 = vld [vmem:[#allocation6 + $0x2d8] sm:$0xff]
        %v1022 = vld [vmem:[#allocation6 + $0x2e0] sm:$0xf]
        %v1023 = vld [vmem:[#allocation6 + $0x2e4] sm:$0xff]
        %v1024 = vld [vmem:[#allocation6 + $0x2ec] sm:$0xff]
        %v1025 = vld [vmem:[#allocation6 + $0x2f4] sm:$0xf]
        %v1026 = vld [vmem:[#allocation6 + $0x2f8] sm:$0xff]
        %v1027 = vld [vmem:[#allocation6 + $0x300] sm:$0xff]
        %v1028 = vld [vmem:[#allocation6 + $0x308] sm:$0xf]
        %v1029 = vld [vmem:[#allocation6 + $0x30c] sm:$0xff]
        %v1030 = vld [vmem:[#allocation6 + $0x314] sm:$0xff]
        %v1031 = vld [vmem:[#allocation6 + $0x31c] sm:$0xf]
        %v1032 = vld [vmem:[#allocation6 + $0x320] sm:$0xff]
        %v1033 = vld [vmem:[#allocation6 + $0x328] sm:$0xff]
        %v1034 = vld [vmem:[#allocation6 + $0x330] sm:$0xf]
        %v1035 = vld [vmem:[#allocation6 + $0x334] sm:$0xff]
        %v1036 = vld [vmem:[#allocation6 + $0x33c] sm:$0xff]
        %v1037 = vld [vmem:[#allocation6 + $0x344] sm:$0xf]
        %v1038 = vld [vmem:[#allocation6 + $0x348] sm:$0xff]
        %v1039 = vld [vmem:[#allocation6 + $0x350] sm:$0xff]
        %v1040 = vld [vmem:[#allocation6 + $0x358] sm:$0xf]
        %v1041 = vld [vmem:[#allocation6 + $0x35c] sm:$0xff]
        %v1042 = vld [vmem:[#allocation6 + $0x364] sm:$0xff]
        %v1043 = vld [vmem:[#allocation6 + $0x36c] sm:$0xf]
        %v1044 = vld [vmem:[#allocation6 + $0x370] sm:$0xff]
        %v1045 = vld [vmem:[#allocation6 + $0x378] sm:$0xff]
        %v1046 = vld [vmem:[#allocation6 + $0x380] sm:$0xf]
        %v1047 = vld [vmem:[#allocation6 + $0x384] sm:$0xff]
        %v1048 = vld [vmem:[#allocation6 + $0x38c] sm:$0xff]
        %v1049 = vld [vmem:[#allocation6 + $0x394] sm:$0xf]
        %v1050 = vld [vmem:[#allocation6 + $0x398] sm:$0xff]
        %v1051 = vld [vmem:[#allocation6 + $0x3a0] sm:$0xff]
        %v1052 = vld [vmem:[#allocation6 + $0x3a8] sm:$0xf]
        %v1053 = vld [vmem:[#allocation6 + $0x3ac] sm:$0xff]
        %v1054 = vld [vmem:[#allocation6 + $0x3b4] sm:$0xff]
        %v1055 = vld [vmem:[#allocation6 + $0x3bc] sm:$0xf]
        %v1056 = vld [vmem:[#allocation6 + $0x3c0] sm:$0xff]
        %v1057 = vld [vmem:[#allocation6 + $0x3c8] sm:$0xff]
        %v1058 = vld [vmem:[#allocation6 + $0x3d0] sm:$0xf]
        %v1059 = vld [vmem:[#allocation6 + $0x3d4] sm:$0xff]
        %v1060 = vld [vmem:[#allocation6 + $0x3dc] sm:$0xff]
        %v1061 = vld [vmem:[#allocation6 + $0x3e4] sm:$0xf]
        %v1062 = vld [vmem:[#allocation6 + $0x3e8] sm:$0xff]
        %v1063 = vld [vmem:[#allocation6 + $0x3f0] sm:$0xff]
        %v1064 = vld [vmem:[#allocation6 + $0x3f8] sm:$0xf]
        %v1065 = vld [vmem:[#allocation6 + $0x3fc] sm:$0xff]
        %v1066 = vld [vmem:[#allocation6 + $0x404] sm:$0xff]
        %v1067 = vld [vmem:[#allocation6 + $0x40c] sm:$0xf]
        %v1068 = vld [vmem:[#allocation6 + $0x410] sm:$0xff]
        %v1069 = vld [vmem:[#allocation6 + $0x418] sm:$0xff]
        %v1070 = vld [vmem:[#allocation6 + $0x420] sm:$0xf]
        %v1071 = vld [vmem:[#allocation6 + $0x424] sm:$0xff]
        %v1072 = vld [vmem:[#allocation6 + $0x42c] sm:$0xff]
        %v1073 = vld [vmem:[#allocation6 + $0x434] sm:$0xf]
        %v1074 = vld [vmem:[#allocation6 + $0x438] sm:$0xff]
        %v1075 = vld [vmem:[#allocation6 + $0x440] sm:$0xff]
        %v1076 = vld [vmem:[#allocation6 + $0x448] sm:$0xf]
        %v1077 = vld [vmem:[#allocation6 + $0x44c] sm:$0xff]
        %v1078 = vld [vmem:[#allocation6 + $0x454] sm:$0xff]
        %v1079 = vld [vmem:[#allocation6 + $0x45c] sm:$0xf]
        %v1080 = vld [vmem:[#allocation6 + $0x460] sm:$0xff]
        %v1081 = vld [vmem:[#allocation6 + $0x468] sm:$0xff]
        %v1082 = vld [vmem:[#allocation6 + $0x470] sm:$0xf]
        %v1083 = vld [vmem:[#allocation6 + $0x474] sm:$0xff]
        %v1084 = vld [vmem:[#allocation6 + $0x47c] sm:$0xff]
        %v1085 = vld [vmem:[#allocation6 + $0x484] sm:$0xf]
        %v1086 = vld [vmem:[#allocation6 + $0x488] sm:$0xff]
        %v1087 = vld [vmem:[#allocation6 + $0x490] sm:$0xff]
        %v1088 = vld [vmem:[#allocation6 + $0x498] sm:$0xf]
        %v1089 = vld [vmem:[#allocation6 + $0x49c] sm:$0xff]
        %v1090 = vld [vmem:[#allocation6 + $0x4a4] sm:$0xff]
        %v1091 = vld [vmem:[#allocation6 + $0x4ac] sm:$0xf]
        %v1092 = vld [vmem:[#allocation6 + $0x4b0] sm:$0xff]
        %v1093 = vld [vmem:[#allocation6 + $0x4b8] sm:$0xff]
        %v1094 = vld [vmem:[#allocation6 + $0x4c0] sm:$0xf]
        %v1095 = vld [vmem:[#allocation6 + $0x4c4] sm:$0xff]
        %v1096 = vld [vmem:[#allocation6 + $0x4cc] sm:$0xff]
        %v1097 = vld [vmem:[#allocation6 + $0x4d4] sm:$0xf]
        %v1098 = vld [vmem:[#allocation6 + $0x4d8] sm:$0xff]
        %v1099 = vld [vmem:[#allocation6 + $0x4e0] sm:$0xff]
        %v1100 = vld [vmem:[#allocation6 + $0x4e8] sm:$0xf]
        %v1101 = vld [vmem:[#allocation6 + $0x4ec] sm:$0xff]
        %v1102 = vld [vmem:[#allocation6 + $0x4f4] sm:$0xff]
        %v1103 = vld [vmem:[#allocation6 + $0x4fc] sm:$0xf]
        %v1296 = vunpack.c.l.b16 %v912
        %v1297 = vunpack.c.h.b16 %v912
        %v1298 = vunpack.c.l.b16 %v913
        %v1299 = vunpack.c.h.b16 %v913
        %v1300 = vunpack.c.l.b16 %v914
        %v1301 = vunpack.c.l.b16 %v915
        %v1302 = vunpack.c.h.b16 %v915
        %v1303 = vunpack.c.l.b16 %v916
        %v1304 = vunpack.c.h.b16 %v916
        %v1305 = vunpack.c.l.b16 %v917
        %v1306 = vunpack.c.l.b16 %v918
        %v1307 = vunpack.c.h.b16 %v918
        %v1308 = vunpack.c.l.b16 %v919
        %v1309 = vunpack.c.h.b16 %v919
        %v1310 = vunpack.c.l.b16 %v920
        %v1311 = vunpack.c.l.b16 %v921
        %v1312 = vunpack.c.h.b16 %v921
        %v1313 = vunpack.c.l.b16 %v922
        %v1314 = vunpack.c.h.b16 %v922
        %v1315 = vunpack.c.l.b16 %v923
        %v1316 = vunpack.c.l.b16 %v924
        %v1317 = vunpack.c.h.b16 %v924
        %v1318 = vunpack.c.l.b16 %v925
        %v1319 = vunpack.c.h.b16 %v925
        %v1320 = vunpack.c.l.b16 %v926
        %v1321 = vunpack.c.l.b16 %v927
        %v1322 = vunpack.c.h.b16 %v927
        %v1323 = vunpack.c.l.b16 %v928
        %v1324 = vunpack.c.h.b16 %v928
        %v1325 = vunpack.c.l.b16 %v929
        %v1326 = vunpack.c.l.b16 %v930
        %v1327 = vunpack.c.h.b16 %v930
        %v1328 = vunpack.c.l.b16 %v931
        %v1329 = vunpack.c.h.b16 %v931
        %v1330 = vunpack.c.l.b16 %v932
        %v1331 = vunpack.c.l.b16 %v933
        %v1332 = vunpack.c.h.b16 %v933
        %v1333 = vunpack.c.l.b16 %v934
        %v1334 = vunpack.c.h.b16 %v934
        %v1335 = vunpack.c.l.b16 %v935
        %v1336 = vunpack.c.l.b16 %v936
        %v1337 = vunpack.c.h.b16 %v936
        %v1338 = vunpack.c.l.b16 %v937
        %v1339 = vunpack.c.h.b16 %v937
        %v1340 = vunpack.c.l.b16 %v938
        %v1341 = vunpack.c.l.b16 %v939
        %v1342 = vunpack.c.h.b16 %v939
        %v1343 = vunpack.c.l.b16 %v940
        %v1344 = vunpack.c.h.b16 %v940
        %v1345 = vunpack.c.l.b16 %v941
        %v1346 = vunpack.c.l.b16 %v942
        %v1347 = vunpack.c.h.b16 %v942
        %v1348 = vunpack.c.l.b16 %v943
        %v1349 = vunpack.c.h.b16 %v943
        %v1350 = vunpack.c.l.b16 %v944
        %v1351 = vunpack.c.l.b16 %v945
        %v1352 = vunpack.c.h.b16 %v945
        %v1353 = vunpack.c.l.b16 %v946
        %v1354 = vunpack.c.h.b16 %v946
        %v1355 = vunpack.c.l.b16 %v947
        %v1356 = vunpack.c.l.b16 %v948
        %v1357 = vunpack.c.h.b16 %v948
        %v1358 = vunpack.c.l.b16 %v949
        %v1359 = vunpack.c.h.b16 %v949
        %v1360 = vunpack.c.l.b16 %v950
        %v1361 = vunpack.c.l.b16 %v951
        %v1362 = vunpack.c.h.b16 %v951
        %v1363 = vunpack.c.l.b16 %v952
        %v1364 = vunpack.c.h.b16 %v952
        %v1365 = vunpack.c.l.b16 %v953
        %v1366 = vunpack.c.l.b16 %v954
        %v1367 = vunpack.c.h.b16 %v954
        %v1368 = vunpack.c.l.b16 %v955
        %v1369 = vunpack.c.h.b16 %v955
        %v1370 = vunpack.c.l.b16 %v956
        %v1371 = vunpack.c.l.b16 %v957
        %v1372 = vunpack.c.h.b16 %v957
        %v1373 = vunpack.c.l.b16 %v958
        %v1374 = vunpack.c.h.b16 %v958
        %v1375 = vunpack.c.l.b16 %v959
        %v1376 = vunpack.c.l.b16 %v960
        %v1377 = vunpack.c.h.b16 %v960
        %v1378 = vunpack.c.l.b16 %v961
        %v1379 = vunpack.c.h.b16 %v961
        %v1380 = vunpack.c.l.b16 %v962
        %v1381 = vunpack.c.l.b16 %v963
        %v1382 = vunpack.c.h.b16 %v963
        %v1383 = vunpack.c.l.b16 %v964
        %v1384 = vunpack.c.h.b16 %v964
        %v1385 = vunpack.c.l.b16 %v965
        %v1386 = vunpack.c.l.b16 %v966
        %v1387 = vunpack.c.h.b16 %v966
        %v1388 = vunpack.c.l.b16 %v967
        %v1389 = vunpack.c.h.b16 %v967
        %v1390 = vunpack.c.l.b16 %v968
        %v1391 = vunpack.c.l.b16 %v969
        %v1392 = vunpack.c.h.b16 %v969
        %v1393 = vunpack.c.l.b16 %v970
        %v1394 = vunpack.c.h.b16 %v970
        %v1395 = vunpack.c.l.b16 %v971
        %v1396 = vunpack.c.l.b16 %v972
        %v1397 = vunpack.c.h.b16 %v972
        %v1398 = vunpack.c.l.b16 %v973
        %v1399 = vunpack.c.h.b16 %v973
        %v1400 = vunpack.c.l.b16 %v974
        %v1401 = vunpack.c.l.b16 %v975
        %v1402 = vunpack.c.h.b16 %v975
        %v1403 = vunpack.c.l.b16 %v976
        %v1404 = vunpack.c.h.b16 %v976
        %v1405 = vunpack.c.l.b16 %v977
        %v1406 = vunpack.c.l.b16 %v978
        %v1407 = vunpack.c.h.b16 %v978
        %v1408 = vunpack.c.l.b16 %v979
        %v1409 = vunpack.c.h.b16 %v979
        %v1410 = vunpack.c.l.b16 %v980
        %v1411 = vunpack.c.l.b16 %v981
        %v1412 = vunpack.c.h.b16 %v981
        %v1413 = vunpack.c.l.b16 %v982
        %v1414 = vunpack.c.h.b16 %v982
        %v1415 = vunpack.c.l.b16 %v983
        %v1416 = vunpack.c.l.b16 %v984
        %v1417 = vunpack.c.h.b16 %v984
        %v1418 = vunpack.c.l.b16 %v985
        %v1419 = vunpack.c.h.b16 %v985
        %v1420 = vunpack.c.l.b16 %v986
        %v1421 = vunpack.c.l.b16 %v987
        %v1422 = vunpack.c.h.b16 %v987
        %v1423 = vunpack.c.l.b16 %v988
        %v1424 = vunpack.c.h.b16 %v988
        %v1425 = vunpack.c.l.b16 %v989
        %v1426 = vunpack.c.l.b16 %v990
        %v1427 = vunpack.c.h.b16 %v990
        %v1428 = vunpack.c.l.b16 %v991
        %v1429 = vunpack.c.h.b16 %v991
        %v1430 = vunpack.c.l.b16 %v992
        %v1431 = vunpack.c.l.b16 %v993
        %v1432 = vunpack.c.h.b16 %v993
        %v1433 = vunpack.c.l.b16 %v994
        %v1434 = vunpack.c.h.b16 %v994
        %v1435 = vunpack.c.l.b16 %v995
        %v1436 = vunpack.c.l.b16 %v996
        %v1437 = vunpack.c.h.b16 %v996
        %v1438 = vunpack.c.l.b16 %v997
        %v1439 = vunpack.c.h.b16 %v997
        %v1440 = vunpack.c.l.b16 %v998
        %v1441 = vunpack.c.l.b16 %v999
        %v1442 = vunpack.c.h.b16 %v999
        %v1443 = vunpack.c.l.b16 %v1000
        %v1444 = vunpack.c.h.b16 %v1000
        %v1445 = vunpack.c.l.b16 %v1001
        %v1446 = vunpack.c.l.b16 %v1002
        %v1447 = vunpack.c.h.b16 %v1002
        %v1448 = vunpack.c.l.b16 %v1003
        %v1449 = vunpack.c.h.b16 %v1003
        %v1450 = vunpack.c.l.b16 %v1004
        %v1451 = vunpack.c.l.b16 %v1005
        %v1452 = vunpack.c.h.b16 %v1005
        %v1453 = vunpack.c.l.b16 %v1006
        %v1454 = vunpack.c.h.b16 %v1006
        %v1455 = vunpack.c.l.b16 %v1007
        %v1456 = vunpack.c.l.b16 %v1008
        %v1457 = vunpack.c.h.b16 %v1008
        %v1458 = vunpack.c.l.b16 %v1009
        %v1459 = vunpack.c.h.b16 %v1009
        %v1460 = vunpack.c.l.b16 %v1010
        %v1461 = vunpack.c.l.b16 %v1011
        %v1462 = vunpack.c.h.b16 %v1011
        %v1463 = vunpack.c.l.b16 %v1012
        %v1464 = vunpack.c.h.b16 %v1012
        %v1465 = vunpack.c.l.b16 %v1013
        %v1466 = vunpack.c.l.b16 %v1014
        %v1467 = vunpack.c.h.b16 %v1014
        %v1468 = vunpack.c.l.b16 %v1015
        %v1469 = vunpack.c.h.b16 %v1015
        %v1470 = vunpack.c.l.b16 %v1016
        %v1471 = vunpack.c.l.b16 %v1017
        %v1472 = vunpack.c.h.b16 %v1017
        %v1473 = vunpack.c.l.b16 %v1018
        %v1474 = vunpack.c.h.b16 %v1018
        %v1475 = vunpack.c.l.b16 %v1019
        %v1476 = vunpack.c.l.b16 %v1020
        %v1477 = vunpack.c.h.b16 %v1020
        %v1478 = vunpack.c.l.b16 %v1021
        %v1479 = vunpack.c.h.b16 %v1021
        %v1480 = vunpack.c.l.b16 %v1022
        %v1481 = vunpack.c.l.b16 %v1023
        %v1482 = vunpack.c.h.b16 %v1023
        %v1483 = vunpack.c.l.b16 %v1024
        %v1484 = vunpack.c.h.b16 %v1024
        %v1485 = vunpack.c.l.b16 %v1025
        %v1486 = vunpack.c.l.b16 %v1026
        %v1487 = vunpack.c.h.b16 %v1026
        %v1488 = vunpack.c.l.b16 %v1027
        %v1489 = vunpack.c.h.b16 %v1027
        %v1490 = vunpack.c.l.b16 %v1028
        %v1491 = vunpack.c.l.b16 %v1029
        %v1492 = vunpack.c.h.b16 %v1029
        %v1493 = vunpack.c.l.b16 %v1030
        %v1494 = vunpack.c.h.b16 %v1030
        %v1495 = vunpack.c.l.b16 %v1031
        %v1496 = vunpack.c.l.b16 %v1032
        %v1497 = vunpack.c.h.b16 %v1032
        %v1498 = vunpack.c.l.b16 %v1033
        %v1499 = vunpack.c.h.b16 %v1033
        %v1500 = vunpack.c.l.b16 %v1034
        %v1501 = vunpack.c.l.b16 %v1035
        %v1502 = vunpack.c.h.b16 %v1035
        %v1503 = vunpack.c.l.b16 %v1036
        %v1504 = vunpack.c.h.b16 %v1036
        %v1505 = vunpack.c.l.b16 %v1037
        %v1506 = vunpack.c.l.b16 %v1038
        %v1507 = vunpack.c.h.b16 %v1038
        %v1508 = vunpack.c.l.b16 %v1039
        %v1509 = vunpack.c.h.b16 %v1039
        %v1510 = vunpack.c.l.b16 %v1040
        %v1511 = vunpack.c.l.b16 %v1041
        %v1512 = vunpack.c.h.b16 %v1041
        %v1513 = vunpack.c.l.b16 %v1042
        %v1514 = vunpack.c.h.b16 %v1042
        %v1515 = vunpack.c.l.b16 %v1043
        %v1516 = vunpack.c.l.b16 %v1044
        %v1517 = vunpack.c.h.b16 %v1044
        %v1518 = vunpack.c.l.b16 %v1045
        %v1519 = vunpack.c.h.b16 %v1045
        %v1520 = vunpack.c.l.b16 %v1046
        %v1521 = vunpack.c.l.b16 %v1047
        %v1522 = vunpack.c.h.b16 %v1047
        %v1523 = vunpack.c.l.b16 %v1048
        %v1524 = vunpack.c.h.b16 %v1048
        %v1525 = vunpack.c.l.b16 %v1049
        %v1526 = vunpack.c.l.b16 %v1050
        %v1527 = vunpack.c.h.b16 %v1050
        %v1528 = vunpack.c.l.b16 %v1051
        %v1529 = vunpack.c.h.b16 %v1051
        %v1530 = vunpack.c.l.b16 %v1052
        %v1531 = vunpack.c.l.b16 %v1053
        %v1532 = vunpack.c.h.b16 %v1053
        %v1533 = vunpack.c.l.b16 %v1054
        %v1534 = vunpack.c.h.b16 %v1054
        %v1535 = vunpack.c.l.b16 %v1055
        %v1536 = vunpack.c.l.b16 %v1056
        %v1537 = vunpack.c.h.b16 %v1056
        %v1538 = vunpack.c.l.b16 %v1057
        %v1539 = vunpack.c.h.b16 %v1057
        %v1540 = vunpack.c.l.b16 %v1058
        %v1541 = vunpack.c.l.b16 %v1059
        %v1542 = vunpack.c.h.b16 %v1059
        %v1543 = vunpack.c.l.b16 %v1060
        %v1544 = vunpack.c.h.b16 %v1060
        %v1545 = vunpack.c.l.b16 %v1061
        %v1546 = vunpack.c.l.b16 %v1062
        %v1547 = vunpack.c.h.b16 %v1062
        %v1548 = vunpack.c.l.b16 %v1063
        %v1549 = vunpack.c.h.b16 %v1063
        %v1550 = vunpack.c.l.b16 %v1064
        %v1551 = vunpack.c.l.b16 %v1065
        %v1552 = vunpack.c.h.b16 %v1065
        %v1553 = vunpack.c.l.b16 %v1066
        %v1554 = vunpack.c.h.b16 %v1066
        %v1555 = vunpack.c.l.b16 %v1067
        %v1556 = vunpack.c.l.b16 %v1068
        %v1557 = vunpack.c.h.b16 %v1068
        %v1558 = vunpack.c.l.b16 %v1069
        %v1559 = vunpack.c.h.b16 %v1069
        %v1560 = vunpack.c.l.b16 %v1070
        %v1561 = vunpack.c.l.b16 %v1071
        %v1562 = vunpack.c.h.b16 %v1071
        %v1563 = vunpack.c.l.b16 %v1072
        %v1564 = vunpack.c.h.b16 %v1072
        %v1565 = vunpack.c.l.b16 %v1073
        %v1566 = vunpack.c.l.b16 %v1074
        %v1567 = vunpack.c.h.b16 %v1074
        %v1568 = vunpack.c.l.b16 %v1075
        %v1569 = vunpack.c.h.b16 %v1075
        %v1570 = vunpack.c.l.b16 %v1076
        %v1571 = vunpack.c.l.b16 %v1077
        %v1572 = vunpack.c.h.b16 %v1077
        %v1573 = vunpack.c.l.b16 %v1078
        %v1574 = vunpack.c.h.b16 %v1078
        %v1575 = vunpack.c.l.b16 %v1079
        %v1576 = vunpack.c.l.b16 %v1080
        %v1577 = vunpack.c.h.b16 %v1080
        %v1578 = vunpack.c.l.b16 %v1081
        %v1579 = vunpack.c.h.b16 %v1081
        %v1580 = vunpack.c.l.b16 %v1082
        %v1581 = vunpack.c.l.b16 %v1083
        %v1582 = vunpack.c.h.b16 %v1083
        %v1583 = vunpack.c.l.b16 %v1084
        %v1584 = vunpack.c.h.b16 %v1084
        %v1585 = vunpack.c.l.b16 %v1085
        %v1586 = vunpack.c.l.b16 %v1086
        %v1587 = vunpack.c.h.b16 %v1086
        %v1588 = vunpack.c.l.b16 %v1087
        %v1589 = vunpack.c.h.b16 %v1087
        %v1590 = vunpack.c.l.b16 %v1088
        %v1591 = vunpack.c.l.b16 %v1089
        %v1592 = vunpack.c.h.b16 %v1089
        %v1593 = vunpack.c.l.b16 %v1090
        %v1594 = vunpack.c.h.b16 %v1090
        %v1595 = vunpack.c.l.b16 %v1091
        %v1596 = vunpack.c.l.b16 %v1092
        %v1597 = vunpack.c.h.b16 %v1092
        %v1598 = vunpack.c.l.b16 %v1093
        %v1599 = vunpack.c.h.b16 %v1093
        %v1600 = vunpack.c.l.b16 %v1094
        %v1601 = vunpack.c.l.b16 %v1095
        %v1602 = vunpack.c.h.b16 %v1095
        %v1603 = vunpack.c.l.b16 %v1096
        %v1604 = vunpack.c.h.b16 %v1096
        %v1605 = vunpack.c.l.b16 %v1097
        %v1606 = vunpack.c.l.b16 %v1098
        %v1607 = vunpack.c.h.b16 %v1098
        %v1608 = vunpack.c.l.b16 %v1099
        %v1609 = vunpack.c.h.b16 %v1099
        %v1610 = vunpack.c.l.b16 %v1100
        %v1611 = vunpack.c.l.b16 %v1101
        %v1612 = vunpack.c.h.b16 %v1101
        %v1613 = vunpack.c.l.b16 %v1102
        %v1614 = vunpack.c.h.b16 %v1102
        %v1615 = vunpack.c.l.b16 %v1103
        %v1616 = vpack.c.b16 %v1301, %v1296
        %v1617 = vpack.c.b16 %v1302, %v1297
        %v1618 = vpack.c.b16 %v1303, %v1298
        %v1619 = vpack.c.b16 %v1304, %v1299
        %v1620 = vpack.c.b16 %v1305, %v1300
        %v1621 = vpack.c.b16 %v1311, %v1306
        %v1622 = vpack.c.b16 %v1312, %v1307
        %v1623 = vpack.c.b16 %v1313, %v1308
        %v1624 = vpack.c.b16 %v1314, %v1309
        %v1625 = vpack.c.b16 %v1315, %v1310
        %v1626 = vpack.c.b16 %v1321, %v1316
        %v1627 = vpack.c.b16 %v1322, %v1317
        %v1628 = vpack.c.b16 %v1323, %v1318
        %v1629 = vpack.c.b16 %v1324, %v1319
        %v1630 = vpack.c.b16 %v1325, %v1320
        %v1631 = vpack.c.b16 %v1331, %v1326
        %v1632 = vpack.c.b16 %v1332, %v1327
        %v1633 = vpack.c.b16 %v1333, %v1328
        %v1634 = vpack.c.b16 %v1334, %v1329
        %v1635 = vpack.c.b16 %v1335, %v1330
        %v1636 = vpack.c.b16 %v1341, %v1336
        %v1637 = vpack.c.b16 %v1342, %v1337
        %v1638 = vpack.c.b16 %v1343, %v1338
        %v1639 = vpack.c.b16 %v1344, %v1339
        %v1640 = vpack.c.b16 %v1345, %v1340
        %v1641 = vpack.c.b16 %v1351, %v1346
        %v1642 = vpack.c.b16 %v1352, %v1347
        %v1643 = vpack.c.b16 %v1353, %v1348
        %v1644 = vpack.c.b16 %v1354, %v1349
        %v1645 = vpack.c.b16 %v1355, %v1350
        %v1646 = vpack.c.b16 %v1361, %v1356
        %v1647 = vpack.c.b16 %v1362, %v1357
        %v1648 = vpack.c.b16 %v1363, %v1358
        %v1649 = vpack.c.b16 %v1364, %v1359
        %v1650 = vpack.c.b16 %v1365, %v1360
        %v1651 = vpack.c.b16 %v1371, %v1366
        %v1652 = vpack.c.b16 %v1372, %v1367
        %v1653 = vpack.c.b16 %v1373, %v1368
        %v1654 = vpack.c.b16 %v1374, %v1369
        %v1655 = vpack.c.b16 %v1375, %v1370
        %v1656 = vpack.c.b16 %v1381, %v1376
        %v1657 = vpack.c.b16 %v1382, %v1377
        %v1658 = vpack.c.b16 %v1383, %v1378
        %v1659 = vpack.c.b16 %v1384, %v1379
        %v1660 = vpack.c.b16 %v1385, %v1380
        %v1661 = vpack.c.b16 %v1391, %v1386
        %v1662 = vpack.c.b16 %v1392, %v1387
        %v1663 = vpack.c.b16 %v1393, %v1388
        %v1664 = vpack.c.b16 %v1394, %v1389
        %v1665 = vpack.c.b16 %v1395, %v1390
        %v1666 = vpack.c.b16 %v1401, %v1396
        %v1667 = vpack.c.b16 %v1402, %v1397
        %v1668 = vpack.c.b16 %v1403, %v1398
        %v1669 = vpack.c.b16 %v1404, %v1399
        %v1670 = vpack.c.b16 %v1405, %v1400
        %v1671 = vpack.c.b16 %v1411, %v1406
        %v1672 = vpack.c.b16 %v1412, %v1407
        %v1673 = vpack.c.b16 %v1413, %v1408
        %v1674 = vpack.c.b16 %v1414, %v1409
        %v1675 = vpack.c.b16 %v1415, %v1410
        %v1676 = vpack.c.b16 %v1421, %v1416
        %v1677 = vpack.c.b16 %v1422, %v1417
        %v1678 = vpack.c.b16 %v1423, %v1418
        %v1679 = vpack.c.b16 %v1424, %v1419
        %v1680 = vpack.c.b16 %v1425, %v1420
        %v1681 = vpack.c.b16 %v1431, %v1426
        %v1682 = vpack.c.b16 %v1432, %v1427
        %v1683 = vpack.c.b16 %v1433, %v1428
        %v1684 = vpack.c.b16 %v1434, %v1429
        %v1685 = vpack.c.b16 %v1435, %v1430
        %v1686 = vpack.c.b16 %v1441, %v1436
        %v1687 = vpack.c.b16 %v1442, %v1437
        %v1688 = vpack.c.b16 %v1443, %v1438
        %v1689 = vpack.c.b16 %v1444, %v1439
        %v1690 = vpack.c.b16 %v1445, %v1440
        %v1691 = vpack.c.b16 %v1451, %v1446
        %v1692 = vpack.c.b16 %v1452, %v1447
        %v1693 = vpack.c.b16 %v1453, %v1448
        %v1694 = vpack.c.b16 %v1454, %v1449
        %v1695 = vpack.c.b16 %v1455, %v1450
        %v1696 = vpack.c.b16 %v1461, %v1456
        %v1697 = vpack.c.b16 %v1462, %v1457
        %v1698 = vpack.c.b16 %v1463, %v1458
        %v1699 = vpack.c.b16 %v1464, %v1459
        %v1700 = vpack.c.b16 %v1465, %v1460
        %v1701 = vpack.c.b16 %v1471, %v1466
        %v1702 = vpack.c.b16 %v1472, %v1467
        %v1703 = vpack.c.b16 %v1473, %v1468
        %v1704 = vpack.c.b16 %v1474, %v1469
        %v1705 = vpack.c.b16 %v1475, %v1470
        %v1706 = vpack.c.b16 %v1481, %v1476
        %v1707 = vpack.c.b16 %v1482, %v1477
        %v1708 = vpack.c.b16 %v1483, %v1478
        %v1709 = vpack.c.b16 %v1484, %v1479
        %v1710 = vpack.c.b16 %v1485, %v1480
        %v1711 = vpack.c.b16 %v1491, %v1486
        %v1712 = vpack.c.b16 %v1492, %v1487
        %v1713 = vpack.c.b16 %v1493, %v1488
        %v1714 = vpack.c.b16 %v1494, %v1489
        %v1715 = vpack.c.b16 %v1495, %v1490
        %v1716 = vpack.c.b16 %v1501, %v1496
        %v1717 = vpack.c.b16 %v1502, %v1497
        %v1718 = vpack.c.b16 %v1503, %v1498
        %v1719 = vpack.c.b16 %v1504, %v1499
        %v1720 = vpack.c.b16 %v1505, %v1500
        %v1721 = vpack.c.b16 %v1511, %v1506
        %v1722 = vpack.c.b16 %v1512, %v1507
        %v1723 = vpack.c.b16 %v1513, %v1508
        %v1724 = vpack.c.b16 %v1514, %v1509
        %v1725 = vpack.c.b16 %v1515, %v1510
        %v1726 = vpack.c.b16 %v1521, %v1516
        %v1727 = vpack.c.b16 %v1522, %v1517
        %v1728 = vpack.c.b16 %v1523, %v1518
        %v1729 = vpack.c.b16 %v1524, %v1519
        %v1730 = vpack.c.b16 %v1525, %v1520
        %v1731 = vpack.c.b16 %v1531, %v1526
        %v1732 = vpack.c.b16 %v1532, %v1527
        %v1733 = vpack.c.b16 %v1533, %v1528
        %v1734 = vpack.c.b16 %v1534, %v1529
        %v1735 = vpack.c.b16 %v1535, %v1530
        %v1736 = vpack.c.b16 %v1541, %v1536
        %v1737 = vpack.c.b16 %v1542, %v1537
        %v1738 = vpack.c.b16 %v1543, %v1538
        %v1739 = vpack.c.b16 %v1544, %v1539
        %v1740 = vpack.c.b16 %v1545, %v1540
        %v1741 = vpack.c.b16 %v1551, %v1546
        %v1742 = vpack.c.b16 %v1552, %v1547
        %v1743 = vpack.c.b16 %v1553, %v1548
        %v1744 = vpack.c.b16 %v1554, %v1549
        %v1745 = vpack.c.b16 %v1555, %v1550
        %v1746 = vpack.c.b16 %v1561, %v1556
        %v1747 = vpack.c.b16 %v1562, %v1557
        %v1748 = vpack.c.b16 %v1563, %v1558
        %v1749 = vpack.c.b16 %v1564, %v1559
        %v1750 = vpack.c.b16 %v1565, %v1560
        %v1751 = vpack.c.b16 %v1571, %v1566
        %v1752 = vpack.c.b16 %v1572, %v1567
        %v1753 = vpack.c.b16 %v1573, %v1568
        %v1754 = vpack.c.b16 %v1574, %v1569
        %v1755 = vpack.c.b16 %v1575, %v1570
        %v1756 = vpack.c.b16 %v1581, %v1576
        %v1757 = vpack.c.b16 %v1582, %v1577
        %v1758 = vpack.c.b16 %v1583, %v1578
        %v1759 = vpack.c.b16 %v1584, %v1579
        %v1760 = vpack.c.b16 %v1585, %v1580
        %v1761 = vpack.c.b16 %v1591, %v1586
        %v1762 = vpack.c.b16 %v1592, %v1587
        %v1763 = vpack.c.b16 %v1593, %v1588
        %v1764 = vpack.c.b16 %v1594, %v1589
        %v1765 = vpack.c.b16 %v1595, %v1590
        %v1766 = vpack.c.b16 %v1601, %v1596
        %v1767 = vpack.c.b16 %v1602, %v1597
        %v1768 = vpack.c.b16 %v1603, %v1598
        %v1769 = vpack.c.b16 %v1604, %v1599
        %v1770 = vpack.c.b16 %v1605, %v1600
        %v1771 = vpack.c.b16 %v1611, %v1606
        %v1772 = vpack.c.b16 %v1612, %v1607
        %v1773 = vpack.c.b16 %v1613, %v1608
        %v1774 = vpack.c.b16 %v1614, %v1609
        %v1775 = vpack.c.b16 %v1615, %v1610
        %1936 = vmatprep.subr.bf16.mxu0 %v1652
        %1937 = vmatpush1.bf16.msra.mxu0 %v1651
        %1938 = vmatprep.subr.bf16.mxu0 %v1647
        %1939 = vmatpush1.bf16.msra.mxu0 %v1646
        %1940 = vmatprep.subr.bf16.mxu0 %v1642
        %1941 = vmatpush1.bf16.msra.mxu0 %v1641
        %1942 = vmatprep.subr.bf16.mxu0 %v1637
        %1943 = vmatpush1.bf16.msra.mxu0 %v1636
        %1944 = vmatprep.subr.bf16.mxu0 %v1632
        %1945 = vmatpush1.bf16.msra.mxu0 %v1631
        %1946 = vmatprep.subr.bf16.mxu0 %v1627
        %1947 = vmatpush1.bf16.msra.mxu0 %v1626
        %1948 = vmatprep.subr.bf16.mxu0 %v1622
        %1949 = vmatpush1.bf16.msra.mxu0 %v1621
        %1950 = vmatprep.subr.bf16.mxu0 %v1617
        %1951 = vmatpush1.bf16.msra.mxu0 %v1616
        %1952 = vmatprep.subr.bf16.mxu0 %v1692
        %1953 = vmatpush2.bf16.msra.mxu0 %v1691
        %1954 = vmatprep.subr.bf16.mxu0 %v1687
        %1955 = vmatpush2.bf16.msra.mxu0 %v1686
        %1956 = vmatprep.subr.bf16.mxu0 %v1682
        %1957 = vmatpush2.bf16.msra.mxu0 %v1681
        %1958 = vmatprep.subr.bf16.mxu0 %v1677
        %1959 = vmatpush2.bf16.msra.mxu0 %v1676
        %1960 = vmatprep.subr.bf16.mxu0 %v1672
        %1961 = vmatpush2.bf16.msra.mxu0 %v1671
        %1962 = vmatprep.subr.bf16.mxu0 %v1667
        %1963 = vmatpush2.bf16.msra.mxu0 %v1666
        %1964 = vmatprep.subr.bf16.mxu0 %v1662
        %1965 = vmatpush2.bf16.msra.mxu0 %v1661
        %1966 = vmatprep.subr.bf16.mxu0 %v1657
        %1967 = vmatpush2.bf16.msra.mxu0 %v1656
        %1968 = vmatprep.mubr.bf16.mxu0 %v885
        %1969 = vmatmul.mubr.bf16.gmra.mxu0 %v884
        %v1970 = vpop.f32.mrf.mxu0
        %v1971 = vadd.f32 0.0, %v1970
        %v1972 = vpop.f32.mrf.mxu0
        %v1973 = vadd.f32 0.0, %v1972
        %v1974 = vpop.f32.mrf.mxu0
        %v1975 = vadd.f32 0.0, %v1974
        %v1976 = vpop.f32.mrf.mxu0
        %v1977 = vadd.f32 0.0, %v1976
        %1978 = vmatprep.mubr.bf16.mxu0 %v889
        %1979 = vmatmul.mubr.bf16.gmra.mxu0 %v888
        %v1980 = vpop.f32.mrf.mxu0
        %v1981 = vadd.f32 0.0, %v1980
        %v1982 = vpop.f32.mrf.mxu0
        %v1983 = vadd.f32 0.0, %v1982
        %v1984 = vpop.f32.mrf.mxu0
        %v1985 = vadd.f32 0.0, %v1984
        %v1986 = vpop.f32.mrf.mxu0
        %v1987 = vadd.f32 0.0, %v1986
        %1988 = vdwg.mxu0
        %1989 = vmatprep.subr.bf16.mxu0 %v1732
        %1990 = vmatpush1.bf16.msra.mxu0 %v1731
        %1991 = vmatprep.subr.bf16.mxu0 %v1727
        %1992 = vmatpush1.bf16.msra.mxu0 %v1726
        %1993 = vmatprep.subr.bf16.mxu0 %v1722
        %1994 = vmatpush1.bf16.msra.mxu0 %v1721
        %1995 = vmatprep.subr.bf16.mxu0 %v1717
        %1996 = vmatpush1.bf16.msra.mxu0 %v1716
        %1997 = vmatprep.subr.bf16.mxu0 %v1712
        %1998 = vmatpush1.bf16.msra.mxu0 %v1711
        %1999 = vmatprep.subr.bf16.mxu0 %v1707
        %2000 = vmatpush1.bf16.msra.mxu0 %v1706
        %2001 = vmatprep.subr.bf16.mxu0 %v1702
        %2002 = vmatpush1.bf16.msra.mxu0 %v1701
        %2003 = vmatprep.subr.bf16.mxu0 %v1697
        %2004 = vmatpush1.bf16.msra.mxu0 %v1696
        %2005 = vmatprep.subr.bf16.mxu0 %v1772
        %2006 = vmatpush2.bf16.msra.mxu0 %v1771
        %2007 = vmatprep.subr.bf16.mxu0 %v1767
        %2008 = vmatpush2.bf16.msra.mxu0 %v1766
        %2009 = vmatprep.subr.bf16.mxu0 %v1762
        %2010 = vmatpush2.bf16.msra.mxu0 %v1761
        %2011 = vmatprep.subr.bf16.mxu0 %v1757
        %2012 = vmatpush2.bf16.msra.mxu0 %v1756
        %2013 = vmatprep.subr.bf16.mxu0 %v1752
        %2014 = vmatpush2.bf16.msra.mxu0 %v1751
        %2015 = vmatprep.subr.bf16.mxu0 %v1747
        %2016 = vmatpush2.bf16.msra.mxu0 %v1746
        %2017 = vmatprep.subr.bf16.mxu0 %v1742
        %2018 = vmatpush2.bf16.msra.mxu0 %v1741
        %2019 = vmatprep.subr.bf16.mxu0 %v1737
        %2020 = vmatpush2.bf16.msra.mxu0 %v1736
        %2021 = vmatprep.mubr.bf16.mxu0 %v887
        %2022 = vmatmul.mubr.bf16.gmra.mxu0 %v886
        %v2023 = vpop.f32.mrf.mxu0
        %v2024 = vadd.f32 %v1971, %v2023
        %v2025 = vpop.f32.mrf.mxu0
        %v2026 = vadd.f32 %v1973, %v2025
        %v2027 = vpop.f32.mrf.mxu0
        %v2028 = vadd.f32 %v1975, %v2027
        %v2029 = vpop.f32.mrf.mxu0
        %v2030 = vadd.f32 %v1977, %v2029
        %2031 = vmatprep.mubr.bf16.mxu0 %v891
        %2032 = vmatmul.mubr.bf16.gmra.mxu0 %v890
        %v2033 = vpop.f32.mrf.mxu0
        %v2034 = vadd.f32 %v1981, %v2033
        %v2035 = vpop.f32.mrf.mxu0
        %v2036 = vadd.f32 %v1983, %v2035
        %v2037 = vpop.f32.mrf.mxu0
        %v2038 = vadd.f32 %v1985, %v2037
        %v2039 = vpop.f32.mrf.mxu0
        %v2040 = vadd.f32 %v1987, %v2039
        %2041 = vdwg.mxu0
        %2042 = vmatprep.subr.bf16.mxu0 %v1654
        %2043 = vmatpush1.bf16.msra.mxu0 %v1653
        %2044 = vmatprep.subr.bf16.mxu0 %v1649
        %2045 = vmatpush1.bf16.msra.mxu0 %v1648
        %2046 = vmatprep.subr.bf16.mxu0 %v1644
        %2047 = vmatpush1.bf16.msra.mxu0 %v1643
        %2048 = vmatprep.subr.bf16.mxu0 %v1639
        %2049 = vmatpush1.bf16.msra.mxu0 %v1638
        %2050 = vmatprep.subr.bf16.mxu0 %v1634
        %2051 = vmatpush1.bf16.msra.mxu0 %v1633
        %2052 = vmatprep.subr.bf16.mxu0 %v1629
        %2053 = vmatpush1.bf16.msra.mxu0 %v1628
        %2054 = vmatprep.subr.bf16.mxu0 %v1624
        %2055 = vmatpush1.bf16.msra.mxu0 %v1623
        %2056 = vmatprep.subr.bf16.mxu0 %v1619
        %2057 = vmatpush1.bf16.msra.mxu0 %v1618
        %2058 = vmatprep.subr.bf16.mxu0 %v1694
        %2059 = vmatpush2.bf16.msra.mxu0 %v1693
        %2060 = vmatprep.subr.bf16.mxu0 %v1689
        %2061 = vmatpush2.bf16.msra.mxu0 %v1688
        %2062 = vmatprep.subr.bf16.mxu0 %v1684
        %2063 = vmatpush2.bf16.msra.mxu0 %v1683
        %2064 = vmatprep.subr.bf16.mxu0 %v1679
        %2065 = vmatpush2.bf16.msra.mxu0 %v1678
        %2066 = vmatprep.subr.bf16.mxu0 %v1674
        %2067 = vmatpush2.bf16.msra.mxu0 %v1673
        %2068 = vmatprep.subr.bf16.mxu0 %v1669
        %2069 = vmatpush2.bf16.msra.mxu0 %v1668
        %2070 = vmatprep.subr.bf16.mxu0 %v1664
        %2071 = vmatpush2.bf16.msra.mxu0 %v1663
        %2072 = vmatprep.subr.bf16.mxu0 %v1659
        %2073 = vmatpush2.bf16.msra.mxu0 %v1658
        %2074 = vmatprep.mubr.bf16.mxu0 %v885
        %2075 = vmatmul.mubr.bf16.gmra.mxu0 %v884
        %v2076 = vpop.f32.mrf.mxu0
        %v2077 = vadd.f32 0.0, %v2076
        %v2078 = vpop.f32.mrf.mxu0
        %v2079 = vadd.f32 0.0, %v2078
        %v2080 = vpop.f32.mrf.mxu0
        %v2081 = vadd.f32 0.0, %v2080
        %v2082 = vpop.f32.mrf.mxu0
        %v2083 = vadd.f32 0.0, %v2082
        %2084 = vmatprep.mubr.bf16.mxu0 %v889
        %2085 = vmatmul.mubr.bf16.gmra.mxu0 %v888
        %v2086 = vpop.f32.mrf.mxu0
        %v2087 = vadd.f32 0.0, %v2086
        %v2088 = vpop.f32.mrf.mxu0
        %v2089 = vadd.f32 0.0, %v2088
        %v2090 = vpop.f32.mrf.mxu0
        %v2091 = vadd.f32 0.0, %v2090
        %v2092 = vpop.f32.mrf.mxu0
        %v2093 = vadd.f32 0.0, %v2092
        %2094 = vdwg.mxu0
        %2095 = vmatprep.subr.bf16.mxu0 %v1734
        %2096 = vmatpush1.bf16.msra.mxu0 %v1733
        %2097 = vmatprep.subr.bf16.mxu0 %v1729
        %2098 = vmatpush1.bf16.msra.mxu0 %v1728
        %2099 = vmatprep.subr.bf16.mxu0 %v1724
        %2100 = vmatpush1.bf16.msra.mxu0 %v1723
        %2101 = vmatprep.subr.bf16.mxu0 %v1719
        %2102 = vmatpush1.bf16.msra.mxu0 %v1718
        %2103 = vmatprep.subr.bf16.mxu0 %v1714
        %2104 = vmatpush1.bf16.msra.mxu0 %v1713
        %2105 = vmatprep.subr.bf16.mxu0 %v1709
        %2106 = vmatpush1.bf16.msra.mxu0 %v1708
        %2107 = vmatprep.subr.bf16.mxu0 %v1704
        %2108 = vmatpush1.bf16.msra.mxu0 %v1703
        %2109 = vmatprep.subr.bf16.mxu0 %v1699
        %2110 = vmatpush1.bf16.msra.mxu0 %v1698
        %2111 = vmatprep.subr.bf16.mxu0 %v1774
        %2112 = vmatpush2.bf16.msra.mxu0 %v1773
        %2113 = vmatprep.subr.bf16.mxu0 %v1769
        %2114 = vmatpush2.bf16.msra.mxu0 %v1768
        %2115 = vmatprep.subr.bf16.mxu0 %v1764
        %2116 = vmatpush2.bf16.msra.mxu0 %v1763
        %2117 = vmatprep.subr.bf16.mxu0 %v1759
        %2118 = vmatpush2.bf16.msra.mxu0 %v1758
        %2119 = vmatprep.subr.bf16.mxu0 %v1754
        %2120 = vmatpush2.bf16.msra.mxu0 %v1753
        %2121 = vmatprep.subr.bf16.mxu0 %v1749
        %2122 = vmatpush2.bf16.msra.mxu0 %v1748
        %2123 = vmatprep.subr.bf16.mxu0 %v1744
        %2124 = vmatpush2.bf16.msra.mxu0 %v1743
        %2125 = vmatprep.subr.bf16.mxu0 %v1739
        %2126 = vmatpush2.bf16.msra.mxu0 %v1738
        %2127 = vmatprep.mubr.bf16.mxu0 %v887
        %2128 = vmatmul.mubr.bf16.gmra.mxu0 %v886
        %v2129 = vpop.f32.mrf.mxu0
        %v2130 = vadd.f32 %v2077, %v2129
        %v2131 = vpop.f32.mrf.mxu0
        %v2132 = vadd.f32 %v2079, %v2131
        %v2133 = vpop.f32.mrf.mxu0
        %v2134 = vadd.f32 %v2081, %v2133
        %v2135 = vpop.f32.mrf.mxu0
        %v2136 = vadd.f32 %v2083, %v2135
        %2137 = vmatprep.mubr.bf16.mxu0 %v891
        %2138 = vmatmul.mubr.bf16.gmra.mxu0 %v890
        %v2139 = vpop.f32.mrf.mxu0
        %v2140 = vadd.f32 %v2087, %v2139
        %v2141 = vpop.f32.mrf.mxu0
        %v2142 = vadd.f32 %v2089, %v2141
        %v2143 = vpop.f32.mrf.mxu0
        %v2144 = vadd.f32 %v2091, %v2143
        %v2145 = vpop.f32.mrf.mxu0
        %v2146 = vadd.f32 %v2093, %v2145
        %2147 = vdwg.mxu0
        %2148 = vmatprep.subr.bf16.mxu0 0
        %2149 = vmatpush1.bf16.msra.mxu0 %v1655
        %2150 = vmatprep.subr.bf16.mxu0 0
        %2151 = vmatpush1.bf16.msra.mxu0 %v1650
        %2152 = vmatprep.subr.bf16.mxu0 0
        %2153 = vmatpush1.bf16.msra.mxu0 %v1645
        %2154 = vmatprep.subr.bf16.mxu0 0
        %2155 = vmatpush1.bf16.msra.mxu0 %v1640
        %2156 = vmatprep.subr.bf16.mxu0 0
        %2157 = vmatpush1.bf16.msra.mxu0 %v1635
        %2158 = vmatprep.subr.bf16.mxu0 0
        %2159 = vmatpush1.bf16.msra.mxu0 %v1630
        %2160 = vmatprep.subr.bf16.mxu0 0
        %2161 = vmatpush1.bf16.msra.mxu0 %v1625
        %2162 = vmatprep.subr.bf16.mxu0 0
        %2163 = vmatpush1.bf16.msra.mxu0 %v1620
        %2164 = vmatprep.subr.bf16.mxu0 0
        %2165 = vmatpush2.bf16.msra.mxu0 %v1695
        %2166 = vmatprep.subr.bf16.mxu0 0
        %2167 = vmatpush2.bf16.msra.mxu0 %v1690
        %2168 = vmatprep.subr.bf16.mxu0 0
        %2169 = vmatpush2.bf16.msra.mxu0 %v1685
        %2170 = vmatprep.subr.bf16.mxu0 0
        %2171 = vmatpush2.bf16.msra.mxu0 %v1680
        %2172 = vmatprep.subr.bf16.mxu0 0
        %2173 = vmatpush2.bf16.msra.mxu0 %v1675
        %2174 = vmatprep.subr.bf16.mxu0 0
        %2175 = vmatpush2.bf16.msra.mxu0 %v1670
        %2176 = vmatprep.subr.bf16.mxu0 0
        %2177 = vmatpush2.bf16.msra.mxu0 %v1665
        %2178 = vmatprep.subr.bf16.mxu0 0
        %2179 = vmatpush2.bf16.msra.mxu0 %v1660
        %2180 = vmatprep.mubr.bf16.mxu0 %v885
        %2181 = vmatmul.mubr.bf16.gmra.mxu0 %v884
        %v2182 = vpop.f32.mrf.mxu0
        %v2183 = vadd.f32 0.0, %v2182
        %v2184 = vpop.f32.mrf.mxu0
        %v2185 = vpop.f32.mrf.mxu0
        %v2186 = vadd.f32 0.0, %v2185
        %v2187 = vpop.f32.mrf.mxu0
        %2188 = vmatprep.mubr.bf16.mxu0 %v889
        %2189 = vmatmul.mubr.bf16.gmra.mxu0 %v888
        %v2190 = vpop.f32.mrf.mxu0
        %v2191 = vadd.f32 0.0, %v2190
        %v2192 = vpop.f32.mrf.mxu0
        %v2193 = vpop.f32.mrf.mxu0
        %v2194 = vadd.f32 0.0, %v2193
        %v2195 = vpop.f32.mrf.mxu0
        %2196 = vdwg.mxu0
        %2197 = vmatprep.subr.bf16.mxu0 0
        %2198 = vmatpush1.bf16.msra.mxu0 %v1735
        %2199 = vmatprep.subr.bf16.mxu0 0
        %2200 = vmatpush1.bf16.msra.mxu0 %v1730
        %2201 = vmatprep.subr.bf16.mxu0 0
        %2202 = vmatpush1.bf16.msra.mxu0 %v1725
        %2203 = vmatprep.subr.bf16.mxu0 0
        %2204 = vmatpush1.bf16.msra.mxu0 %v1720
        %2205 = vmatprep.subr.bf16.mxu0 0
        %2206 = vmatpush1.bf16.msra.mxu0 %v1715
        %2207 = vmatprep.subr.bf16.mxu0 0
        %2208 = vmatpush1.bf16.msra.mxu0 %v1710
        %2209 = vmatprep.subr.bf16.mxu0 0
        %2210 = vmatpush1.bf16.msra.mxu0 %v1705
        %2211 = vmatprep.subr.bf16.mxu0 0
        %2212 = vmatpush1.bf16.msra.mxu0 %v1700
        %2213 = vmatprep.subr.bf16.mxu0 0
        %2214 = vmatpush2.bf16.msra.mxu0 %v1775
        %2215 = vmatprep.subr.bf16.mxu0 0
        %2216 = vmatpush2.bf16.msra.mxu0 %v1770
        %2217 = vmatprep.subr.bf16.mxu0 0
        %2218 = vmatpush2.bf16.msra.mxu0 %v1765
        %2219 = vmatprep.subr.bf16.mxu0 0
        %2220 = vmatpush2.bf16.msra.mxu0 %v1760
        %2221 = vmatprep.subr.bf16.mxu0 0
        %2222 = vmatpush2.bf16.msra.mxu0 %v1755
        %2223 = vmatprep.subr.bf16.mxu0 0
        %2224 = vmatpush2.bf16.msra.mxu0 %v1750
        %2225 = vmatprep.subr.bf16.mxu0 0
        %2226 = vmatpush2.bf16.msra.mxu0 %v1745
        %2227 = vmatprep.subr.bf16.mxu0 0
        %2228 = vmatpush2.bf16.msra.mxu0 %v1740
        %2229 = vmatprep.mubr.bf16.mxu0 %v887
        %2230 = vmatmul.mubr.bf16.gmra.mxu0 %v886
        %v2231 = vpop.f32.mrf.mxu0
        %v2232 = vadd.f32 %v2183, %v2231
        %v2233 = vpop.f32.mrf.mxu0
        %v2234 = vpop.f32.mrf.mxu0
        %v2235 = vadd.f32 %v2186, %v2234
        %v2236 = vpop.f32.mrf.mxu0
        %2237 = vmatprep.mubr.bf16.mxu0 %v891
        %2238 = vmatmul.mubr.bf16.gmra.mxu0 %v890
        %v2239 = vpop.f32.mrf.mxu0
        %v2240 = vadd.f32 %v2191, %v2239
        %v2241 = vpop.f32.mrf.mxu0
        %v2242 = vpop.f32.mrf.mxu0
        %v2243 = vadd.f32 %v2194, %v2242
        %v2244 = vpop.f32.mrf.mxu0
        %2245 = vdwg.mxu0
        %v2246 = vadd.f32 %v892, %v2024
        %v2247 = vadd.f32 %v893, %v2026
        %v2248 = vadd.f32 %v894, %v2130
        %v2249 = vadd.f32 %v895, %v2132
        %v2250 = vadd.f32 %v896, %v2232
        %v2251 = vadd.f32 %v897, %v2028
        %v2252 = vadd.f32 %v898, %v2030
        %v2253 = vadd.f32 %v899, %v2134
        %v2254 = vadd.f32 %v900, %v2136
        %v2255 = vadd.f32 %v901, %v2235
        %v2256 = vadd.f32 %v902, %v2034
        %v2257 = vadd.f32 %v903, %v2036
        %v2258 = vadd.f32 %v904, %v2140
        %v2259 = vadd.f32 %v905, %v2142
        %v2260 = vadd.f32 %v906, %v2240
        %v2261 = vadd.f32 %v907, %v2038
        %v2262 = vadd.f32 %v908, %v2040
        %v2263 = vadd.f32 %v909, %v2144
        %v2264 = vadd.f32 %v910, %v2146
        %v2265 = vadd.f32 %v911, %v2243
        %2266 = vst [vmem:[#allocation2] sm:$0xff] %v2246
        %2267 = vst [vmem:[#allocation2 + $0x8] sm:$0xff] %v2247
        %2268 = vst [vmem:[#allocation2 + $0x10] sm:$0xff] %v2248
        %2269 = vst [vmem:[#allocation2 + $0x18] sm:$0xff] %v2249
        %2270 = vst [vmem:[#allocation2 + $0x20] sm:$0xff] %v2250
        %2271 = vst [vmem:[#allocation2 + $0x28] sm:$0xff] %v2251
        %2272 = vst [vmem:[#allocation2 + $0x30] sm:$0xff] %v2252
        %2273 = vst [vmem:[#allocation2 + $0x38] sm:$0xff] %v2253
        %2274 = vst [vmem:[#allocation2 + $0x40] sm:$0xff] %v2254
        %2275 = vst [vmem:[#allocation2 + $0x48] sm:$0xff] %v2255
        %2276 = vst [vmem:[#allocation2 + $0x50] sm:$0xff] %v2256
        %2277 = vst [vmem:[#allocation2 + $0x58] sm:$0xff] %v2257
        %2278 = vst [vmem:[#allocation2 + $0x60] sm:$0xff] %v2258
        %2279 = vst [vmem:[#allocation2 + $0x68] sm:$0xff] %v2259
        %2280 = vst [vmem:[#allocation2 + $0x70] sm:$0xff] %v2260
        %2281 = vst [vmem:[#allocation2 + $0x78] sm:$0xff] %v2261
        %2282 = vst [vmem:[#allocation2 + $0x80] sm:$0xff] %v2262
        %2283 = vst [vmem:[#allocation2 + $0x88] sm:$0xff] %v2263
        %2284 = vst [vmem:[#allocation2 + $0x90] sm:$0xff] %v2264
        %2285 = vst [vmem:[#allocation2 + $0x98] sm:$0xff] %v2265
        // Predicated region
        $region69: #{cvae_forward.2} parent=51 // pred_check
          %p2286 = pneg %p501
        $region70: #{cvae_forward.2} parent=51 // pred_check_branch
          %2288 = sbr.rel (%p2286) target = $region72
        $region71: #{cvae_forward.2} parent=51 // pred_region
          %v2289 = vld [vmem:[#allocation3] sm:$0xff]
          %v2290 = vld [vmem:[#allocation3 + $0x8] sm:$0xff]
          %v2291 = vld [vmem:[#allocation3 + $0x10] sm:$0xff]
          %v2292 = vld [vmem:[#allocation3 + $0x18] sm:$0xff]
          %v2293 = vmax.f32 %v2289, 1e-24
          %v2294 = vmax.f32 %v2290, 1e-24
          %v2295 = vmax.f32 %v2291, 1e-24
          %v2296 = vmax.f32 %v2292, 1e-24
          %v2297 = vrsqrt.pop %v2293
          %v2298 = vrsqrt.pop %v2294
          %v2299 = vrsqrt.pop %v2295
          %v2300 = vrsqrt.pop %v2296
          %v2301 = vld [vmem:[#allocation2] sm:$0xff]
          %v2302 = vld [vmem:[#allocation2 + $0x8] sm:$0xff]
          %v2303 = vld [vmem:[#allocation2 + $0x10] sm:$0xff]
          %v2304 = vld [vmem:[#allocation2 + $0x18] sm:$0xff]
          %v2305 = vld [vmem:[#allocation2 + $0x20] sm:$0xff]
          %v2306 = vld [vmem:[#allocation2 + $0x28] sm:$0xff]
          %v2307 = vld [vmem:[#allocation2 + $0x30] sm:$0xff]
          %v2308 = vld [vmem:[#allocation2 + $0x38] sm:$0xff]
          %v2309 = vld [vmem:[#allocation2 + $0x40] sm:$0xff]
          %v2310 = vld [vmem:[#allocation2 + $0x48] sm:$0xff]
          %v2311 = vld [vmem:[#allocation2 + $0x50] sm:$0xff]
          %v2312 = vld [vmem:[#allocation2 + $0x58] sm:$0xff]
          %v2313 = vld [vmem:[#allocation2 + $0x60] sm:$0xff]
          %v2314 = vld [vmem:[#allocation2 + $0x68] sm:$0xff]
          %v2315 = vld [vmem:[#allocation2 + $0x70] sm:$0xff]
          %v2316 = vld [vmem:[#allocation2 + $0x78] sm:$0xff]
          %v2317 = vld [vmem:[#allocation2 + $0x80] sm:$0xff]
          %v2318 = vld [vmem:[#allocation2 + $0x88] sm:$0xff]
          %v2319 = vld [vmem:[#allocation2 + $0x90] sm:$0xff]
          %v2320 = vld [vmem:[#allocation2 + $0x98] sm:$0xff]
          %2322 = vset.pattern.permute.xlu0 0
          %2323 = vperm.xlu0 %2322, %v2297
          %v2324 = vpop.permute.xlu0 %2323
          %2327 = vset.pattern.permute.xlu0 0
          %2328 = vperm.xlu0 %2327, %v2298
          %v2329 = vpop.permute.xlu0 %2328
          %2332 = vset.pattern.permute.xlu0 0
          %2333 = vperm.xlu0 %2332, %v2299
          %v2334 = vpop.permute.xlu0 %2333
          %2337 = vset.pattern.permute.xlu0 0
          %2338 = vperm.xlu0 %2337, %v2300
          %v2339 = vpop.permute.xlu0 %2338
          %v2341 = vmul.f32 %v2301, %v2324
          %v2342 = vmul.f32 %v2302, %v2324
          %v2343 = vmul.f32 %v2303, %v2324
          %v2344 = vmul.f32 %v2304, %v2324
          %v2345 = vmul.f32 %v2305, %v2324
          %v2346 = vmul.f32 %v2306, %v2329
          %v2347 = vmul.f32 %v2307, %v2329
          %v2348 = vmul.f32 %v2308, %v2329
          %v2349 = vmul.f32 %v2309, %v2329
          %v2350 = vmul.f32 %v2310, %v2329
          %v2351 = vmul.f32 %v2311, %v2334
          %v2352 = vmul.f32 %v2312, %v2334
          %v2353 = vmul.f32 %v2313, %v2334
          %v2354 = vmul.f32 %v2314, %v2334
          %v2355 = vmul.f32 %v2315, %v2334
          %v2356 = vmul.f32 %v2316, %v2339
          %v2357 = vmul.f32 %v2317, %v2339
          %v2358 = vmul.f32 %v2318, %v2339
          %v2359 = vmul.f32 %v2319, %v2339
          %v2360 = vmul.f32 %v2320, %v2339
          %v2361 = vld [vmem:[%s4] sm:$0x1f]
          %v2363 = vlaneseq
          %v2364 = vshrl.u32 %v2363, 7
          %v2365 = vsub.s32 0, %v2364
          %v2366 = vrot.slane %v2361, %v2365
          %v2367 = vlaneseq
          %v2368 = vshrl.u32 %v2367, 7
          %v2369 = vsub.s32 1, %v2368
          %v2370 = vrot.slane %v2361, %v2369
          %v2371 = vlaneseq
          %v2372 = vshrl.u32 %v2371, 7
          %v2373 = vsub.s32 2, %v2372
          %v2374 = vrot.slane %v2361, %v2373
          %v2375 = vlaneseq
          %v2376 = vshrl.u32 %v2375, 7
          %v2377 = vsub.s32 3, %v2376
          %v2378 = vrot.slane %v2361, %v2377
          %v2379 = vlaneseq
          %v2380 = vshrl.u32 %v2379, 7
          %v2381 = vsub.s32 4, %v2380
          %v2382 = vrot.slane %v2361, %v2381
          %v2388 = vadd.f32 %v2341, %v2366
          %v2389 = vadd.f32 %v2342, %v2370
          %v2390 = vadd.f32 %v2343, %v2374
          %v2391 = vadd.f32 %v2344, %v2378
          %v2392 = vadd.f32 %v2345, %v2382
          %v2393 = vadd.f32 %v2346, %v2366
          %v2394 = vadd.f32 %v2347, %v2370
          %v2395 = vadd.f32 %v2348, %v2374
          %v2396 = vadd.f32 %v2349, %v2378
          %v2397 = vadd.f32 %v2350, %v2382
          %v2398 = vadd.f32 %v2351, %v2366
          %v2399 = vadd.f32 %v2352, %v2370
          %v2400 = vadd.f32 %v2353, %v2374
          %v2401 = vadd.f32 %v2354, %v2378
          %v2402 = vadd.f32 %v2355, %v2382
          %v2403 = vadd.f32 %v2356, %v2366
          %v2404 = vadd.f32 %v2357, %v2370
          %v2405 = vadd.f32 %v2358, %v2374
          %v2406 = vadd.f32 %v2359, %v2378
          %v2407 = vadd.f32 %v2360, %v2382
          %v2408 = vtanh.pop %v2388
          %v2409 = vtanh.pop %v2389
          %v2410 = vtanh.pop %v2390
          %v2411 = vtanh.pop %v2391
          %v2412 = vtanh.pop %v2392
          %v2413 = vtanh.pop %v2393
          %v2414 = vtanh.pop %v2394
          %v2415 = vtanh.pop %v2395
          %v2416 = vtanh.pop %v2396
          %v2417 = vtanh.pop %v2397
          %v2418 = vtanh.pop %v2398
          %v2419 = vtanh.pop %v2399
          %v2420 = vtanh.pop %v2400
          %v2421 = vtanh.pop %v2401
          %v2422 = vtanh.pop %v2402
          %v2423 = vtanh.pop %v2403
          %v2424 = vtanh.pop %v2404
          %v2425 = vtanh.pop %v2405
          %v2426 = vtanh.pop %v2406
          %v2427 = vtanh.pop %v2407
          %v2428 = vpack.c.bf16 %v2413, %v2408
          %v2429 = vpack.c.bf16 %v2414, %v2409
          %v2430 = vpack.c.bf16 %v2415, %v2410
          %v2431 = vpack.c.bf16 %v2416, %v2411
          %v2432 = vpack.c.bf16 %v2417, %v2412
          %v2433 = vpack.c.bf16 %v2423, %v2418
          %v2434 = vpack.c.bf16 %v2424, %v2419
          %v2435 = vpack.c.bf16 %v2425, %v2420
          %v2436 = vpack.c.bf16 %v2426, %v2421
          %v2437 = vpack.c.bf16 %v2427, %v2422
          %v2438 = vld [vmem:[#allocation9] sm:$0xff]
          %v2439 = vld [vmem:[#allocation9 + $0x8] sm:$0xff]
          %v2440 = vld [vmem:[#allocation9 + $0x10] sm:$0xff]
          %v2441 = vld [vmem:[#allocation9 + $0x18] sm:$0xff]
          %v2442 = vld [vmem:[#allocation9 + $0x20] sm:$0xff]
          %v2443 = vld [vmem:[#allocation9 + $0x28] sm:$0xff]
          %v2444 = vld [vmem:[#allocation9 + $0x30] sm:$0xff]
          %v2445 = vld [vmem:[#allocation9 + $0x38] sm:$0xff]
          %v2446 = vld [vmem:[#allocation9 + $0x40] sm:$0xff]
          %v2447 = vld [vmem:[#allocation9 + $0x48] sm:$0xff]
          %v2448 = vld [vmem:[#allocation9 + $0x50] sm:$0xff]
          %v2449 = vld [vmem:[#allocation9 + $0x58] sm:$0xff]
          %v2450 = vld [vmem:[#allocation9 + $0x60] sm:$0xff]
          %v2451 = vld [vmem:[#allocation9 + $0x68] sm:$0xff]
          %v2452 = vld [vmem:[#allocation9 + $0x70] sm:$0xff]
          %v2453 = vld [vmem:[#allocation9 + $0x78] sm:$0xff]
          %v2454 = vld [vmem:[#allocation9 + $0x80] sm:$0xff]
          %v2455 = vld [vmem:[#allocation9 + $0x88] sm:$0xff]
          %v2456 = vld [vmem:[#allocation9 + $0x90] sm:$0xff]
          %v2457 = vld [vmem:[#allocation9 + $0x98] sm:$0xff]
          %v2458 = vld [vmem:[#allocation9 + $0xa0] sm:$0xff]
          %v2459 = vld [vmem:[#allocation9 + $0xa8] sm:$0xff]
          %v2460 = vld [vmem:[#allocation9 + $0xb0] sm:$0xff]
          %v2461 = vld [vmem:[#allocation9 + $0xb8] sm:$0xff]
          %v2462 = vld [vmem:[#allocation9 + $0xc0] sm:$0xff]
          %v2463 = vld [vmem:[#allocation9 + $0xc8] sm:$0xff]
          %v2464 = vld [vmem:[#allocation9 + $0xd0] sm:$0xff]
          %v2465 = vld [vmem:[#allocation9 + $0xd8] sm:$0xff]
          %v2466 = vld [vmem:[#allocation9 + $0xe0] sm:$0xff]
          %v2467 = vld [vmem:[#allocation9 + $0xe8] sm:$0xff]
          %v2468 = vld [vmem:[#allocation9 + $0xf0] sm:$0xff]
          %v2469 = vld [vmem:[#allocation9 + $0xf8] sm:$0xff]
          %v2470 = vld [vmem:[#allocation9 + $0x100] sm:$0xff]
          %v2471 = vld [vmem:[#allocation9 + $0x108] sm:$0xff]
          %v2472 = vld [vmem:[#allocation9 + $0x110] sm:$0xff]
          %v2473 = vld [vmem:[#allocation9 + $0x118] sm:$0xff]
          %v2474 = vld [vmem:[#allocation9 + $0x120] sm:$0xff]
          %v2475 = vld [vmem:[#allocation9 + $0x128] sm:$0xff]
          %v2476 = vld [vmem:[#allocation9 + $0x130] sm:$0xff]
          %v2477 = vld [vmem:[#allocation9 + $0x138] sm:$0xff]
          %v2478 = vld [vmem:[#allocation9 + $0x140] sm:$0xff]
          %v2479 = vld [vmem:[#allocation9 + $0x148] sm:$0xff]
          %v2480 = vld [vmem:[#allocation9 + $0x150] sm:$0xff]
          %v2481 = vld [vmem:[#allocation9 + $0x158] sm:$0xff]
          %v2482 = vld [vmem:[#allocation9 + $0x160] sm:$0xff]
          %v2483 = vld [vmem:[#allocation9 + $0x168] sm:$0xff]
          %v2484 = vld [vmem:[#allocation9 + $0x170] sm:$0xff]
          %v2485 = vld [vmem:[#allocation9 + $0x178] sm:$0xff]
          %v2486 = vld [vmem:[#allocation9 + $0x180] sm:$0xff]
          %v2487 = vld [vmem:[#allocation9 + $0x188] sm:$0xff]
          %v2488 = vld [vmem:[#allocation9 + $0x190] sm:$0xff]
          %v2489 = vld [vmem:[#allocation9 + $0x198] sm:$0xff]
          %v2490 = vld [vmem:[#allocation9 + $0x1a0] sm:$0xff]
          %v2491 = vld [vmem:[#allocation9 + $0x1a8] sm:$0xff]
          %v2492 = vld [vmem:[#allocation9 + $0x1b0] sm:$0xff]
          %v2493 = vld [vmem:[#allocation9 + $0x1b8] sm:$0xff]
          %v2494 = vld [vmem:[#allocation9 + $0x1c0] sm:$0xff]
          %v2495 = vld [vmem:[#allocation9 + $0x1c8] sm:$0xff]
          %v2496 = vld [vmem:[#allocation9 + $0x1d0] sm:$0xff]
          %v2497 = vld [vmem:[#allocation9 + $0x1d8] sm:$0xff]
          %v2498 = vld [vmem:[#allocation9 + $0x1e0] sm:$0xff]
          %v2499 = vld [vmem:[#allocation9 + $0x1e8] sm:$0xff]
          %v2500 = vld [vmem:[#allocation9 + $0x1f0] sm:$0xff]
          %v2501 = vld [vmem:[#allocation9 + $0x1f8] sm:$0xff]
          %v2502 = vld [vmem:[#allocation9 + $0x200] sm:$0xff]
          %v2503 = vld [vmem:[#allocation9 + $0x208] sm:$0xff]
          %v2504 = vld [vmem:[#allocation9 + $0x210] sm:$0xff]
          %v2505 = vld [vmem:[#allocation9 + $0x218] sm:$0xff]
          %v2506 = vld [vmem:[#allocation9 + $0x220] sm:$0xff]
          %v2507 = vld [vmem:[#allocation9 + $0x228] sm:$0xff]
          %v2508 = vld [vmem:[#allocation9 + $0x230] sm:$0xff]
          %v2509 = vld [vmem:[#allocation9 + $0x238] sm:$0xff]
          %v2510 = vld [vmem:[#allocation9 + $0x240] sm:$0xff]
          %v2511 = vld [vmem:[#allocation9 + $0x248] sm:$0xff]
          %v2512 = vld [vmem:[#allocation9 + $0x250] sm:$0xff]
          %v2513 = vld [vmem:[#allocation9 + $0x258] sm:$0xff]
          %v2514 = vld [vmem:[#allocation9 + $0x260] sm:$0xff]
          %v2515 = vld [vmem:[#allocation9 + $0x268] sm:$0xff]
          %v2516 = vld [vmem:[#allocation9 + $0x270] sm:$0xff]
          %v2517 = vld [vmem:[#allocation9 + $0x278] sm:$0xff]
          %v2518 = vld [vmem:[#allocation9 + $0x280] sm:$0xff]
          %v2519 = vld [vmem:[#allocation9 + $0x288] sm:$0xff]
          %v2520 = vld [vmem:[#allocation9 + $0x290] sm:$0xff]
          %v2521 = vld [vmem:[#allocation9 + $0x298] sm:$0xff]
          %v2522 = vld [vmem:[#allocation9 + $0x2a0] sm:$0xff]
          %v2523 = vld [vmem:[#allocation9 + $0x2a8] sm:$0xff]
          %v2524 = vld [vmem:[#allocation9 + $0x2b0] sm:$0xff]
          %v2525 = vld [vmem:[#allocation9 + $0x2b8] sm:$0xff]
          %v2526 = vld [vmem:[#allocation9 + $0x2c0] sm:$0xff]
          %v2527 = vld [vmem:[#allocation9 + $0x2c8] sm:$0xff]
          %v2528 = vld [vmem:[#allocation9 + $0x2d0] sm:$0xff]
          %v2529 = vld [vmem:[#allocation9 + $0x2d8] sm:$0xff]
          %v2530 = vld [vmem:[#allocation9 + $0x2e0] sm:$0xff]
          %v2531 = vld [vmem:[#allocation9 + $0x2e8] sm:$0xff]
          %v2532 = vld [vmem:[#allocation9 + $0x2f0] sm:$0xff]
          %v2533 = vld [vmem:[#allocation9 + $0x2f8] sm:$0xff]
          %v2534 = vld [vmem:[#allocation9 + $0x300] sm:$0xff]
          %v2535 = vld [vmem:[#allocation9 + $0x308] sm:$0xff]
          %v2536 = vld [vmem:[#allocation9 + $0x310] sm:$0xff]
          %v2537 = vld [vmem:[#allocation9 + $0x318] sm:$0xff]
          %v2538 = vld [vmem:[#allocation9 + $0x320] sm:$0xff]
          %v2539 = vld [vmem:[#allocation9 + $0x328] sm:$0xff]
          %v2540 = vld [vmem:[#allocation9 + $0x330] sm:$0xff]
          %v2541 = vld [vmem:[#allocation9 + $0x338] sm:$0xff]
          %v2542 = vld [vmem:[#allocation9 + $0x340] sm:$0xff]
          %v2543 = vld [vmem:[#allocation9 + $0x348] sm:$0xff]
          %v2544 = vld [vmem:[#allocation9 + $0x350] sm:$0xff]
          %v2545 = vld [vmem:[#allocation9 + $0x358] sm:$0xff]
          %v2546 = vld [vmem:[#allocation9 + $0x360] sm:$0xff]
          %v2547 = vld [vmem:[#allocation9 + $0x368] sm:$0xff]
          %v2548 = vld [vmem:[#allocation9 + $0x370] sm:$0xff]
          %v2549 = vld [vmem:[#allocation9 + $0x378] sm:$0xff]
          %v2550 = vld [vmem:[#allocation9 + $0x380] sm:$0xff]
          %v2551 = vld [vmem:[#allocation9 + $0x388] sm:$0xff]
          %v2552 = vld [vmem:[#allocation9 + $0x390] sm:$0xff]
          %v2553 = vld [vmem:[#allocation9 + $0x398] sm:$0xff]
          %v2554 = vld [vmem:[#allocation9 + $0x3a0] sm:$0xff]
          %v2555 = vld [vmem:[#allocation9 + $0x3a8] sm:$0xff]
          %v2556 = vld [vmem:[#allocation9 + $0x3b0] sm:$0xff]
          %v2557 = vld [vmem:[#allocation9 + $0x3b8] sm:$0xff]
          %v2558 = vld [vmem:[#allocation9 + $0x3c0] sm:$0xff]
          %v2559 = vld [vmem:[#allocation9 + $0x3c8] sm:$0xff]
          %v2560 = vld [vmem:[#allocation9 + $0x3d0] sm:$0xff]
          %v2561 = vld [vmem:[#allocation9 + $0x3d8] sm:$0xff]
          %v2562 = vld [vmem:[#allocation9 + $0x3e0] sm:$0xff]
          %v2563 = vld [vmem:[#allocation9 + $0x3e8] sm:$0xff]
          %v2564 = vld [vmem:[#allocation9 + $0x3f0] sm:$0xff]
          %v2565 = vld [vmem:[#allocation9 + $0x3f8] sm:$0xff]
          %v2566 = vld [vmem:[#allocation9 + $0x400] sm:$0xff]
          %v2567 = vld [vmem:[#allocation9 + $0x408] sm:$0xff]
          %v2568 = vld [vmem:[#allocation9 + $0x410] sm:$0xff]
          %v2569 = vld [vmem:[#allocation9 + $0x418] sm:$0xff]
          %v2570 = vld [vmem:[#allocation9 + $0x420] sm:$0xff]
          %v2571 = vld [vmem:[#allocation9 + $0x428] sm:$0xff]
          %v2572 = vld [vmem:[#allocation9 + $0x430] sm:$0xff]
          %v2573 = vld [vmem:[#allocation9 + $0x438] sm:$0xff]
          %v2574 = vld [vmem:[#allocation9 + $0x440] sm:$0xff]
          %v2575 = vld [vmem:[#allocation9 + $0x448] sm:$0xff]
          %v2576 = vld [vmem:[#allocation9 + $0x450] sm:$0xff]
          %v2577 = vld [vmem:[#allocation9 + $0x458] sm:$0xff]
          %v2578 = vld [vmem:[#allocation9 + $0x460] sm:$0xff]
          %v2579 = vld [vmem:[#allocation9 + $0x468] sm:$0xff]
          %v2580 = vld [vmem:[#allocation9 + $0x470] sm:$0xff]
          %v2581 = vld [vmem:[#allocation9 + $0x478] sm:$0xff]
          %v2582 = vld [vmem:[#allocation9 + $0x480] sm:$0xff]
          %v2583 = vld [vmem:[#allocation9 + $0x488] sm:$0xff]
          %v2584 = vld [vmem:[#allocation9 + $0x490] sm:$0xff]
          %v2585 = vld [vmem:[#allocation9 + $0x498] sm:$0xff]
          %v2586 = vld [vmem:[#allocation9 + $0x4a0] sm:$0xff]
          %v2587 = vld [vmem:[#allocation9 + $0x4a8] sm:$0xff]
          %v2588 = vld [vmem:[#allocation9 + $0x4b0] sm:$0xff]
          %v2589 = vld [vmem:[#allocation9 + $0x4b8] sm:$0xff]
          %v2590 = vld [vmem:[#allocation9 + $0x4c0] sm:$0xff]
          %v2591 = vld [vmem:[#allocation9 + $0x4c8] sm:$0xff]
          %v2592 = vld [vmem:[#allocation9 + $0x4d0] sm:$0xff]
          %v2593 = vld [vmem:[#allocation9 + $0x4d8] sm:$0xff]
          %v2594 = vld [vmem:[#allocation9 + $0x4e0] sm:$0xff]
          %v2595 = vld [vmem:[#allocation9 + $0x4e8] sm:$0xff]
          %v2596 = vld [vmem:[#allocation9 + $0x4f0] sm:$0xff]
          %v2597 = vld [vmem:[#allocation9 + $0x4f8] sm:$0xff]
          %v2598 = vld [vmem:[#allocation9 + $0x500] sm:$0xff]
          %v2599 = vld [vmem:[#allocation9 + $0x508] sm:$0xff]
          %v2600 = vld [vmem:[#allocation9 + $0x510] sm:$0xff]
          %v2601 = vld [vmem:[#allocation9 + $0x518] sm:$0xff]
          %v2602 = vld [vmem:[#allocation9 + $0x520] sm:$0xff]
          %v2603 = vld [vmem:[#allocation9 + $0x528] sm:$0xff]
          %v2604 = vld [vmem:[#allocation9 + $0x530] sm:$0xff]
          %v2605 = vld [vmem:[#allocation9 + $0x538] sm:$0xff]
          %v2606 = vld [vmem:[#allocation9 + $0x540] sm:$0xff]
          %v2607 = vld [vmem:[#allocation9 + $0x548] sm:$0xff]
          %v2608 = vld [vmem:[#allocation9 + $0x550] sm:$0xff]
          %v2609 = vld [vmem:[#allocation9 + $0x558] sm:$0xff]
          %v2610 = vld [vmem:[#allocation9 + $0x560] sm:$0xff]
          %v2611 = vld [vmem:[#allocation9 + $0x568] sm:$0xff]
          %v2612 = vld [vmem:[#allocation9 + $0x570] sm:$0xff]
          %v2613 = vld [vmem:[#allocation9 + $0x578] sm:$0xff]
          %v2614 = vld [vmem:[#allocation9 + $0x580] sm:$0xff]
          %v2615 = vld [vmem:[#allocation9 + $0x588] sm:$0xff]
          %v2616 = vld [vmem:[#allocation9 + $0x590] sm:$0xff]
          %v2617 = vld [vmem:[#allocation9 + $0x598] sm:$0xff]
          %v2618 = vld [vmem:[#allocation9 + $0x5a0] sm:$0xff]
          %v2619 = vld [vmem:[#allocation9 + $0x5a8] sm:$0xff]
          %v2620 = vld [vmem:[#allocation9 + $0x5b0] sm:$0xff]
          %v2621 = vld [vmem:[#allocation9 + $0x5b8] sm:$0xff]
          %v2622 = vld [vmem:[#allocation9 + $0x5c0] sm:$0xff]
          %v2623 = vld [vmem:[#allocation9 + $0x5c8] sm:$0xff]
          %v2624 = vld [vmem:[#allocation9 + $0x5d0] sm:$0xff]
          %v2625 = vld [vmem:[#allocation9 + $0x5d8] sm:$0xff]
          %v2626 = vld [vmem:[#allocation9 + $0x5e0] sm:$0xff]
          %v2627 = vld [vmem:[#allocation9 + $0x5e8] sm:$0xff]
          %v2628 = vld [vmem:[#allocation9 + $0x5f0] sm:$0xff]
          %v2629 = vld [vmem:[#allocation9 + $0x5f8] sm:$0xff]
          %v2630 = vld [vmem:[#allocation9 + $0x600] sm:$0xff]
          %v2631 = vld [vmem:[#allocation9 + $0x608] sm:$0xff]
          %v2632 = vld [vmem:[#allocation9 + $0x610] sm:$0xff]
          %v2633 = vld [vmem:[#allocation9 + $0x618] sm:$0xff]
          %v2634 = vld [vmem:[#allocation9 + $0x620] sm:$0xff]
          %v2635 = vld [vmem:[#allocation9 + $0x628] sm:$0xff]
          %v2636 = vld [vmem:[#allocation9 + $0x630] sm:$0xff]
          %v2637 = vld [vmem:[#allocation9 + $0x638] sm:$0xff]
          %v2638 = vld [vmem:[#allocation9 + $0x640] sm:$0xff]
          %v2639 = vld [vmem:[#allocation9 + $0x648] sm:$0xff]
          %v2640 = vld [vmem:[#allocation9 + $0x650] sm:$0xff]
          %v2641 = vld [vmem:[#allocation9 + $0x658] sm:$0xff]
          %v2642 = vld [vmem:[#allocation9 + $0x660] sm:$0xff]
          %v2643 = vld [vmem:[#allocation9 + $0x668] sm:$0xff]
          %v2644 = vld [vmem:[#allocation9 + $0x670] sm:$0xff]
          %v2645 = vld [vmem:[#allocation9 + $0x678] sm:$0xff]
          %v2646 = vld [vmem:[#allocation9 + $0x680] sm:$0xff]
          %v2647 = vld [vmem:[#allocation9 + $0x688] sm:$0xff]
          %v2648 = vld [vmem:[#allocation9 + $0x690] sm:$0xff]
          %v2649 = vld [vmem:[#allocation9 + $0x698] sm:$0xff]
          %v2650 = vld [vmem:[#allocation9 + $0x6a0] sm:$0xff]
          %v2651 = vld [vmem:[#allocation9 + $0x6a8] sm:$0xff]
          %v2652 = vld [vmem:[#allocation9 + $0x6b0] sm:$0xff]
          %v2653 = vld [vmem:[#allocation9 + $0x6b8] sm:$0xff]
          %v2654 = vld [vmem:[#allocation9 + $0x6c0] sm:$0xff]
          %v2655 = vld [vmem:[#allocation9 + $0x6c8] sm:$0xff]
          %v2656 = vld [vmem:[#allocation9 + $0x6d0] sm:$0xff]
          %v2657 = vld [vmem:[#allocation9 + $0x6d8] sm:$0xff]
          %v2658 = vld [vmem:[#allocation9 + $0x6e0] sm:$0xff]
          %v2659 = vld [vmem:[#allocation9 + $0x6e8] sm:$0xff]
          %v2660 = vld [vmem:[#allocation9 + $0x6f0] sm:$0xff]
          %v2661 = vld [vmem:[#allocation9 + $0x6f8] sm:$0xff]
          %v2662 = vld [vmem:[#allocation9 + $0x700] sm:$0xff]
          %v2663 = vld [vmem:[#allocation9 + $0x708] sm:$0xff]
          %v2664 = vld [vmem:[#allocation9 + $0x710] sm:$0xff]
          %v2665 = vld [vmem:[#allocation9 + $0x718] sm:$0xff]
          %v2666 = vld [vmem:[#allocation9 + $0x720] sm:$0xff]
          %v2667 = vld [vmem:[#allocation9 + $0x728] sm:$0xff]
          %v2668 = vld [vmem:[#allocation9 + $0x730] sm:$0xff]
          %v2669 = vld [vmem:[#allocation9 + $0x738] sm:$0xff]
          %v2670 = vld [vmem:[#allocation9 + $0x740] sm:$0xff]
          %v2671 = vld [vmem:[#allocation9 + $0x748] sm:$0xff]
          %v2672 = vld [vmem:[#allocation9 + $0x750] sm:$0xff]
          %v2673 = vld [vmem:[#allocation9 + $0x758] sm:$0xff]
          %v2674 = vld [vmem:[#allocation9 + $0x760] sm:$0xff]
          %v2675 = vld [vmem:[#allocation9 + $0x768] sm:$0xff]
          %v2676 = vld [vmem:[#allocation9 + $0x770] sm:$0xff]
          %v2677 = vld [vmem:[#allocation9 + $0x778] sm:$0xff]
          %v2678 = vld [vmem:[%s6] sm:$0x3f]
          %v2680 = vlaneseq
          %v2681 = vshrl.u32 %v2680, 7
          %v2682 = vsub.s32 0, %v2681
          %v2683 = vrot.slane %v2678, %v2682
          %v2684 = vlaneseq
          %v2685 = vshrl.u32 %v2684, 7
          %v2686 = vsub.s32 1, %v2685
          %v2687 = vrot.slane %v2678, %v2686
          %v2688 = vlaneseq
          %v2689 = vshrl.u32 %v2688, 7
          %v2690 = vsub.s32 2, %v2689
          %v2691 = vrot.slane %v2678, %v2690
          %v2692 = vlaneseq
          %v2693 = vshrl.u32 %v2692, 7
          %v2694 = vsub.s32 3, %v2693
          %v2695 = vrot.slane %v2678, %v2694
          %v2696 = vlaneseq
          %v2697 = vshrl.u32 %v2696, 7
          %v2698 = vsub.s32 4, %v2697
          %v2699 = vrot.slane %v2678, %v2698
          %v2700 = vlaneseq
          %v2701 = vshrl.u32 %v2700, 7
          %v2702 = vsub.s32 5, %v2701
          %v2703 = vrot.slane %v2678, %v2702
          %v2950 = vunpack.c.l.b16 %v2438
          %v2951 = vunpack.c.h.b16 %v2438
          %v2952 = vunpack.c.l.b16 %v2439
          %v2953 = vunpack.c.h.b16 %v2439
          %v2954 = vunpack.c.l.b16 %v2440
          %v2955 = vunpack.c.h.b16 %v2440
          %v2956 = vunpack.c.l.b16 %v2441
          %v2957 = vunpack.c.h.b16 %v2441
          %v2958 = vunpack.c.l.b16 %v2442
          %v2959 = vunpack.c.h.b16 %v2442
          %v2960 = vunpack.c.l.b16 %v2443
          %v2961 = vunpack.c.h.b16 %v2443
          %v2962 = vunpack.c.l.b16 %v2444
          %v2963 = vunpack.c.h.b16 %v2444
          %v2964 = vunpack.c.l.b16 %v2445
          %v2965 = vunpack.c.h.b16 %v2445
          %v2966 = vunpack.c.l.b16 %v2446
          %v2967 = vunpack.c.h.b16 %v2446
          %v2968 = vunpack.c.l.b16 %v2447
          %v2969 = vunpack.c.h.b16 %v2447
          %v2970 = vunpack.c.l.b16 %v2448
          %v2971 = vunpack.c.h.b16 %v2448
          %v2972 = vunpack.c.l.b16 %v2449
          %v2973 = vunpack.c.h.b16 %v2449
          %v2974 = vunpack.c.l.b16 %v2450
          %v2975 = vunpack.c.h.b16 %v2450
          %v2976 = vunpack.c.l.b16 %v2451
          %v2977 = vunpack.c.h.b16 %v2451
          %v2978 = vunpack.c.l.b16 %v2452
          %v2979 = vunpack.c.h.b16 %v2452
          %v2980 = vunpack.c.l.b16 %v2453
          %v2981 = vunpack.c.h.b16 %v2453
          %v2982 = vunpack.c.l.b16 %v2454
          %v2983 = vunpack.c.h.b16 %v2454
          %v2984 = vunpack.c.l.b16 %v2455
          %v2985 = vunpack.c.h.b16 %v2455
          %v2986 = vunpack.c.l.b16 %v2456
          %v2987 = vunpack.c.h.b16 %v2456
          %v2988 = vunpack.c.l.b16 %v2457
          %v2989 = vunpack.c.h.b16 %v2457
          %v2990 = vunpack.c.l.b16 %v2458
          %v2991 = vunpack.c.h.b16 %v2458
          %v2992 = vunpack.c.l.b16 %v2459
          %v2993 = vunpack.c.h.b16 %v2459
          %v2994 = vunpack.c.l.b16 %v2460
          %v2995 = vunpack.c.h.b16 %v2460
          %v2996 = vunpack.c.l.b16 %v2461
          %v2997 = vunpack.c.h.b16 %v2461
          %v2998 = vunpack.c.l.b16 %v2462
          %v2999 = vunpack.c.h.b16 %v2462
          %v3000 = vunpack.c.l.b16 %v2463
          %v3001 = vunpack.c.h.b16 %v2463
          %v3002 = vunpack.c.l.b16 %v2464
          %v3003 = vunpack.c.h.b16 %v2464
          %v3004 = vunpack.c.l.b16 %v2465
          %v3005 = vunpack.c.h.b16 %v2465
          %v3006 = vunpack.c.l.b16 %v2466
          %v3007 = vunpack.c.h.b16 %v2466
          %v3008 = vunpack.c.l.b16 %v2467
          %v3009 = vunpack.c.h.b16 %v2467
          %v3010 = vunpack.c.l.b16 %v2468
          %v3011 = vunpack.c.h.b16 %v2468
          %v3012 = vunpack.c.l.b16 %v2469
          %v3013 = vunpack.c.h.b16 %v2469
          %v3014 = vunpack.c.l.b16 %v2470
          %v3015 = vunpack.c.h.b16 %v2470
          %v3016 = vunpack.c.l.b16 %v2471
          %v3017 = vunpack.c.h.b16 %v2471
          %v3018 = vunpack.c.l.b16 %v2472
          %v3019 = vunpack.c.h.b16 %v2472
          %v3020 = vunpack.c.l.b16 %v2473
          %v3021 = vunpack.c.h.b16 %v2473
          %v3022 = vunpack.c.l.b16 %v2474
          %v3023 = vunpack.c.h.b16 %v2474
          %v3024 = vunpack.c.l.b16 %v2475
          %v3025 = vunpack.c.h.b16 %v2475
          %v3026 = vunpack.c.l.b16 %v2476
          %v3027 = vunpack.c.h.b16 %v2476
          %v3028 = vunpack.c.l.b16 %v2477
          %v3029 = vunpack.c.h.b16 %v2477
          %v3030 = vunpack.c.l.b16 %v2478
          %v3031 = vunpack.c.h.b16 %v2478
          %v3032 = vunpack.c.l.b16 %v2479
          %v3033 = vunpack.c.h.b16 %v2479
          %v3034 = vunpack.c.l.b16 %v2480
          %v3035 = vunpack.c.h.b16 %v2480
          %v3036 = vunpack.c.l.b16 %v2481
          %v3037 = vunpack.c.h.b16 %v2481
          %v3038 = vunpack.c.l.b16 %v2482
          %v3039 = vunpack.c.h.b16 %v2482
          %v3040 = vunpack.c.l.b16 %v2483
          %v3041 = vunpack.c.h.b16 %v2483
          %v3042 = vunpack.c.l.b16 %v2484
          %v3043 = vunpack.c.h.b16 %v2484
          %v3044 = vunpack.c.l.b16 %v2485
          %v3045 = vunpack.c.h.b16 %v2485
          %v3046 = vunpack.c.l.b16 %v2486
          %v3047 = vunpack.c.h.b16 %v2486
          %v3048 = vunpack.c.l.b16 %v2487
          %v3049 = vunpack.c.h.b16 %v2487
          %v3050 = vunpack.c.l.b16 %v2488
          %v3051 = vunpack.c.h.b16 %v2488
          %v3052 = vunpack.c.l.b16 %v2489
          %v3053 = vunpack.c.h.b16 %v2489
          %v3054 = vunpack.c.l.b16 %v2490
          %v3055 = vunpack.c.h.b16 %v2490
          %v3056 = vunpack.c.l.b16 %v2491
          %v3057 = vunpack.c.h.b16 %v2491
          %v3058 = vunpack.c.l.b16 %v2492
          %v3059 = vunpack.c.h.b16 %v2492
          %v3060 = vunpack.c.l.b16 %v2493
          %v3061 = vunpack.c.h.b16 %v2493
          %v3062 = vunpack.c.l.b16 %v2494
          %v3063 = vunpack.c.h.b16 %v2494
          %v3064 = vunpack.c.l.b16 %v2495
          %v3065 = vunpack.c.h.b16 %v2495
          %v3066 = vunpack.c.l.b16 %v2496
          %v3067 = vunpack.c.h.b16 %v2496
          %v3068 = vunpack.c.l.b16 %v2497
          %v3069 = vunpack.c.h.b16 %v2497
          %v3070 = vunpack.c.l.b16 %v2498
          %v3071 = vunpack.c.h.b16 %v2498
          %v3072 = vunpack.c.l.b16 %v2499
          %v3073 = vunpack.c.h.b16 %v2499
          %v3074 = vunpack.c.l.b16 %v2500
          %v3075 = vunpack.c.h.b16 %v2500
          %v3076 = vunpack.c.l.b16 %v2501
          %v3077 = vunpack.c.h.b16 %v2501
          %v3078 = vunpack.c.l.b16 %v2502
          %v3079 = vunpack.c.h.b16 %v2502
          %v3080 = vunpack.c.l.b16 %v2503
          %v3081 = vunpack.c.h.b16 %v2503
          %v3082 = vunpack.c.l.b16 %v2504
          %v3083 = vunpack.c.h.b16 %v2504
          %v3084 = vunpack.c.l.b16 %v2505
          %v3085 = vunpack.c.h.b16 %v2505
          %v3086 = vunpack.c.l.b16 %v2506
          %v3087 = vunpack.c.h.b16 %v2506
          %v3088 = vunpack.c.l.b16 %v2507
          %v3089 = vunpack.c.h.b16 %v2507
          %v3090 = vunpack.c.l.b16 %v2508
          %v3091 = vunpack.c.h.b16 %v2508
          %v3092 = vunpack.c.l.b16 %v2509
          %v3093 = vunpack.c.h.b16 %v2509
          %v3094 = vunpack.c.l.b16 %v2510
          %v3095 = vunpack.c.h.b16 %v2510
          %v3096 = vunpack.c.l.b16 %v2511
          %v3097 = vunpack.c.h.b16 %v2511
          %v3098 = vunpack.c.l.b16 %v2512
          %v3099 = vunpack.c.h.b16 %v2512
          %v3100 = vunpack.c.l.b16 %v2513
          %v3101 = vunpack.c.h.b16 %v2513
          %v3102 = vunpack.c.l.b16 %v2514
          %v3103 = vunpack.c.h.b16 %v2514
          %v3104 = vunpack.c.l.b16 %v2515
          %v3105 = vunpack.c.h.b16 %v2515
          %v3106 = vunpack.c.l.b16 %v2516
          %v3107 = vunpack.c.h.b16 %v2516
          %v3108 = vunpack.c.l.b16 %v2517
          %v3109 = vunpack.c.h.b16 %v2517
          %v3110 = vunpack.c.l.b16 %v2518
          %v3111 = vunpack.c.h.b16 %v2518
          %v3112 = vunpack.c.l.b16 %v2519
          %v3113 = vunpack.c.h.b16 %v2519
          %v3114 = vunpack.c.l.b16 %v2520
          %v3115 = vunpack.c.h.b16 %v2520
          %v3116 = vunpack.c.l.b16 %v2521
          %v3117 = vunpack.c.h.b16 %v2521
          %v3118 = vunpack.c.l.b16 %v2522
          %v3119 = vunpack.c.h.b16 %v2522
          %v3120 = vunpack.c.l.b16 %v2523
          %v3121 = vunpack.c.h.b16 %v2523
          %v3122 = vunpack.c.l.b16 %v2524
          %v3123 = vunpack.c.h.b16 %v2524
          %v3124 = vunpack.c.l.b16 %v2525
          %v3125 = vunpack.c.h.b16 %v2525
          %v3126 = vunpack.c.l.b16 %v2526
          %v3127 = vunpack.c.h.b16 %v2526
          %v3128 = vunpack.c.l.b16 %v2527
          %v3129 = vunpack.c.h.b16 %v2527
          %v3130 = vunpack.c.l.b16 %v2528
          %v3131 = vunpack.c.h.b16 %v2528
          %v3132 = vunpack.c.l.b16 %v2529
          %v3133 = vunpack.c.h.b16 %v2529
          %v3134 = vunpack.c.l.b16 %v2530
          %v3135 = vunpack.c.h.b16 %v2530
          %v3136 = vunpack.c.l.b16 %v2531
          %v3137 = vunpack.c.h.b16 %v2531
          %v3138 = vunpack.c.l.b16 %v2532
          %v3139 = vunpack.c.h.b16 %v2532
          %v3140 = vunpack.c.l.b16 %v2533
          %v3141 = vunpack.c.h.b16 %v2533
          %v3142 = vunpack.c.l.b16 %v2534
          %v3143 = vunpack.c.h.b16 %v2534
          %v3144 = vunpack.c.l.b16 %v2535
          %v3145 = vunpack.c.h.b16 %v2535
          %v3146 = vunpack.c.l.b16 %v2536
          %v3147 = vunpack.c.h.b16 %v2536
          %v3148 = vunpack.c.l.b16 %v2537
          %v3149 = vunpack.c.h.b16 %v2537
          %v3150 = vunpack.c.l.b16 %v2538
          %v3151 = vunpack.c.h.b16 %v2538
          %v3152 = vunpack.c.l.b16 %v2539
          %v3153 = vunpack.c.h.b16 %v2539
          %v3154 = vunpack.c.l.b16 %v2540
          %v3155 = vunpack.c.h.b16 %v2540
          %v3156 = vunpack.c.l.b16 %v2541
          %v3157 = vunpack.c.h.b16 %v2541
          %v3158 = vunpack.c.l.b16 %v2542
          %v3159 = vunpack.c.h.b16 %v2542
          %v3160 = vunpack.c.l.b16 %v2543
          %v3161 = vunpack.c.h.b16 %v2543
          %v3162 = vunpack.c.l.b16 %v2544
          %v3163 = vunpack.c.h.b16 %v2544
          %v3164 = vunpack.c.l.b16 %v2545
          %v3165 = vunpack.c.h.b16 %v2545
          %v3166 = vunpack.c.l.b16 %v2546
          %v3167 = vunpack.c.h.b16 %v2546
          %v3168 = vunpack.c.l.b16 %v2547
          %v3169 = vunpack.c.h.b16 %v2547
          %v3170 = vunpack.c.l.b16 %v2548
          %v3171 = vunpack.c.h.b16 %v2548
          %v3172 = vunpack.c.l.b16 %v2549
          %v3173 = vunpack.c.h.b16 %v2549
          %v3174 = vunpack.c.l.b16 %v2550
          %v3175 = vunpack.c.h.b16 %v2550
          %v3176 = vunpack.c.l.b16 %v2551
          %v3177 = vunpack.c.h.b16 %v2551
          %v3178 = vunpack.c.l.b16 %v2552
          %v3179 = vunpack.c.h.b16 %v2552
          %v3180 = vunpack.c.l.b16 %v2553
          %v3181 = vunpack.c.h.b16 %v2553
          %v3182 = vunpack.c.l.b16 %v2554
          %v3183 = vunpack.c.h.b16 %v2554
          %v3184 = vunpack.c.l.b16 %v2555
          %v3185 = vunpack.c.h.b16 %v2555
          %v3186 = vunpack.c.l.b16 %v2556
          %v3187 = vunpack.c.h.b16 %v2556
          %v3188 = vunpack.c.l.b16 %v2557
          %v3189 = vunpack.c.h.b16 %v2557
          %v3190 = vunpack.c.l.b16 %v2558
          %v3191 = vunpack.c.h.b16 %v2558
          %v3192 = vunpack.c.l.b16 %v2559
          %v3193 = vunpack.c.h.b16 %v2559
          %v3194 = vunpack.c.l.b16 %v2560
          %v3195 = vunpack.c.h.b16 %v2560
          %v3196 = vunpack.c.l.b16 %v2561
          %v3197 = vunpack.c.h.b16 %v2561
          %v3198 = vunpack.c.l.b16 %v2562
          %v3199 = vunpack.c.h.b16 %v2562
          %v3200 = vunpack.c.l.b16 %v2563
          %v3201 = vunpack.c.h.b16 %v2563
          %v3202 = vunpack.c.l.b16 %v2564
          %v3203 = vunpack.c.h.b16 %v2564
          %v3204 = vunpack.c.l.b16 %v2565
          %v3205 = vunpack.c.h.b16 %v2565
          %v3206 = vunpack.c.l.b16 %v2566
          %v3207 = vunpack.c.h.b16 %v2566
          %v3208 = vunpack.c.l.b16 %v2567
          %v3209 = vunpack.c.h.b16 %v2567
          %v3210 = vunpack.c.l.b16 %v2568
          %v3211 = vunpack.c.h.b16 %v2568
          %v3212 = vunpack.c.l.b16 %v2569
          %v3213 = vunpack.c.h.b16 %v2569
          %v3214 = vunpack.c.l.b16 %v2570
          %v3215 = vunpack.c.h.b16 %v2570
          %v3216 = vunpack.c.l.b16 %v2571
          %v3217 = vunpack.c.h.b16 %v2571
          %v3218 = vunpack.c.l.b16 %v2572
          %v3219 = vunpack.c.h.b16 %v2572
          %v3220 = vunpack.c.l.b16 %v2573
          %v3221 = vunpack.c.h.b16 %v2573
          %v3222 = vunpack.c.l.b16 %v2574
          %v3223 = vunpack.c.h.b16 %v2574
          %v3224 = vunpack.c.l.b16 %v2575
          %v3225 = vunpack.c.h.b16 %v2575
          %v3226 = vunpack.c.l.b16 %v2576
          %v3227 = vunpack.c.h.b16 %v2576
          %v3228 = vunpack.c.l.b16 %v2577
          %v3229 = vunpack.c.h.b16 %v2577
          %v3230 = vunpack.c.l.b16 %v2578
          %v3231 = vunpack.c.h.b16 %v2578
          %v3232 = vunpack.c.l.b16 %v2579
          %v3233 = vunpack.c.h.b16 %v2579
          %v3234 = vunpack.c.l.b16 %v2580
          %v3235 = vunpack.c.h.b16 %v2580
          %v3236 = vunpack.c.l.b16 %v2581
          %v3237 = vunpack.c.h.b16 %v2581
          %v3238 = vunpack.c.l.b16 %v2582
          %v3239 = vunpack.c.h.b16 %v2582
          %v3240 = vunpack.c.l.b16 %v2583
          %v3241 = vunpack.c.h.b16 %v2583
          %v3242 = vunpack.c.l.b16 %v2584
          %v3243 = vunpack.c.h.b16 %v2584
          %v3244 = vunpack.c.l.b16 %v2585
          %v3245 = vunpack.c.h.b16 %v2585
          %v3246 = vunpack.c.l.b16 %v2586
          %v3247 = vunpack.c.h.b16 %v2586
          %v3248 = vunpack.c.l.b16 %v2587
          %v3249 = vunpack.c.h.b16 %v2587
          %v3250 = vunpack.c.l.b16 %v2588
          %v3251 = vunpack.c.h.b16 %v2588
          %v3252 = vunpack.c.l.b16 %v2589
          %v3253 = vunpack.c.h.b16 %v2589
          %v3254 = vunpack.c.l.b16 %v2590
          %v3255 = vunpack.c.h.b16 %v2590
          %v3256 = vunpack.c.l.b16 %v2591
          %v3257 = vunpack.c.h.b16 %v2591
          %v3258 = vunpack.c.l.b16 %v2592
          %v3259 = vunpack.c.h.b16 %v2592
          %v3260 = vunpack.c.l.b16 %v2593
          %v3261 = vunpack.c.h.b16 %v2593
          %v3262 = vunpack.c.l.b16 %v2594
          %v3263 = vunpack.c.h.b16 %v2594
          %v3264 = vunpack.c.l.b16 %v2595
          %v3265 = vunpack.c.h.b16 %v2595
          %v3266 = vunpack.c.l.b16 %v2596
          %v3267 = vunpack.c.h.b16 %v2596
          %v3268 = vunpack.c.l.b16 %v2597
          %v3269 = vunpack.c.h.b16 %v2597
          %v3270 = vunpack.c.l.b16 %v2598
          %v3271 = vunpack.c.h.b16 %v2598
          %v3272 = vunpack.c.l.b16 %v2599
          %v3273 = vunpack.c.h.b16 %v2599
          %v3274 = vunpack.c.l.b16 %v2600
          %v3275 = vunpack.c.h.b16 %v2600
          %v3276 = vunpack.c.l.b16 %v2601
          %v3277 = vunpack.c.h.b16 %v2601
          %v3278 = vunpack.c.l.b16 %v2602
          %v3279 = vunpack.c.h.b16 %v2602
          %v3280 = vunpack.c.l.b16 %v2603
          %v3281 = vunpack.c.h.b16 %v2603
          %v3282 = vunpack.c.l.b16 %v2604
          %v3283 = vunpack.c.h.b16 %v2604
          %v3284 = vunpack.c.l.b16 %v2605
          %v3285 = vunpack.c.h.b16 %v2605
          %v3286 = vunpack.c.l.b16 %v2606
          %v3287 = vunpack.c.h.b16 %v2606
          %v3288 = vunpack.c.l.b16 %v2607
          %v3289 = vunpack.c.h.b16 %v2607
          %v3290 = vunpack.c.l.b16 %v2608
          %v3291 = vunpack.c.h.b16 %v2608
          %v3292 = vunpack.c.l.b16 %v2609
          %v3293 = vunpack.c.h.b16 %v2609
          %v3294 = vunpack.c.l.b16 %v2610
          %v3295 = vunpack.c.h.b16 %v2610
          %v3296 = vunpack.c.l.b16 %v2611
          %v3297 = vunpack.c.h.b16 %v2611
          %v3298 = vunpack.c.l.b16 %v2612
          %v3299 = vunpack.c.h.b16 %v2612
          %v3300 = vunpack.c.l.b16 %v2613
          %v3301 = vunpack.c.h.b16 %v2613
          %v3302 = vunpack.c.l.b16 %v2614
          %v3303 = vunpack.c.h.b16 %v2614
          %v3304 = vunpack.c.l.b16 %v2615
          %v3305 = vunpack.c.h.b16 %v2615
          %v3306 = vunpack.c.l.b16 %v2616
          %v3307 = vunpack.c.h.b16 %v2616
          %v3308 = vunpack.c.l.b16 %v2617
          %v3309 = vunpack.c.h.b16 %v2617
          %v3310 = vunpack.c.l.b16 %v2618
          %v3311 = vunpack.c.h.b16 %v2618
          %v3312 = vunpack.c.l.b16 %v2619
          %v3313 = vunpack.c.h.b16 %v2619
          %v3314 = vunpack.c.l.b16 %v2620
          %v3315 = vunpack.c.h.b16 %v2620
          %v3316 = vunpack.c.l.b16 %v2621
          %v3317 = vunpack.c.h.b16 %v2621
          %v3318 = vunpack.c.l.b16 %v2622
          %v3319 = vunpack.c.h.b16 %v2622
          %v3320 = vunpack.c.l.b16 %v2623
          %v3321 = vunpack.c.h.b16 %v2623
          %v3322 = vunpack.c.l.b16 %v2624
          %v3323 = vunpack.c.h.b16 %v2624
          %v3324 = vunpack.c.l.b16 %v2625
          %v3325 = vunpack.c.h.b16 %v2625
          %v3326 = vunpack.c.l.b16 %v2626
          %v3327 = vunpack.c.h.b16 %v2626
          %v3328 = vunpack.c.l.b16 %v2627
          %v3329 = vunpack.c.h.b16 %v2627
          %v3330 = vunpack.c.l.b16 %v2628
          %v3331 = vunpack.c.h.b16 %v2628
          %v3332 = vunpack.c.l.b16 %v2629
          %v3333 = vunpack.c.h.b16 %v2629
          %v3334 = vunpack.c.l.b16 %v2630
          %v3335 = vunpack.c.h.b16 %v2630
          %v3336 = vunpack.c.l.b16 %v2631
          %v3337 = vunpack.c.h.b16 %v2631
          %v3338 = vunpack.c.l.b16 %v2632
          %v3339 = vunpack.c.h.b16 %v2632
          %v3340 = vunpack.c.l.b16 %v2633
          %v3341 = vunpack.c.h.b16 %v2633
          %v3342 = vunpack.c.l.b16 %v2634
          %v3343 = vunpack.c.h.b16 %v2634
          %v3344 = vunpack.c.l.b16 %v2635
          %v3345 = vunpack.c.h.b16 %v2635
          %v3346 = vunpack.c.l.b16 %v2636
          %v3347 = vunpack.c.h.b16 %v2636
          %v3348 = vunpack.c.l.b16 %v2637
          %v3349 = vunpack.c.h.b16 %v2637
          %v3350 = vunpack.c.l.b16 %v2638
          %v3351 = vunpack.c.h.b16 %v2638
          %v3352 = vunpack.c.l.b16 %v2639
          %v3353 = vunpack.c.h.b16 %v2639
          %v3354 = vunpack.c.l.b16 %v2640
          %v3355 = vunpack.c.h.b16 %v2640
          %v3356 = vunpack.c.l.b16 %v2641
          %v3357 = vunpack.c.h.b16 %v2641
          %v3358 = vunpack.c.l.b16 %v2642
          %v3359 = vunpack.c.h.b16 %v2642
          %v3360 = vunpack.c.l.b16 %v2643
          %v3361 = vunpack.c.h.b16 %v2643
          %v3362 = vunpack.c.l.b16 %v2644
          %v3363 = vunpack.c.h.b16 %v2644
          %v3364 = vunpack.c.l.b16 %v2645
          %v3365 = vunpack.c.h.b16 %v2645
          %v3366 = vunpack.c.l.b16 %v2646
          %v3367 = vunpack.c.h.b16 %v2646
          %v3368 = vunpack.c.l.b16 %v2647
          %v3369 = vunpack.c.h.b16 %v2647
          %v3370 = vunpack.c.l.b16 %v2648
          %v3371 = vunpack.c.h.b16 %v2648
          %v3372 = vunpack.c.l.b16 %v2649
          %v3373 = vunpack.c.h.b16 %v2649
          %v3374 = vunpack.c.l.b16 %v2650
          %v3375 = vunpack.c.h.b16 %v2650
          %v3376 = vunpack.c.l.b16 %v2651
          %v3377 = vunpack.c.h.b16 %v2651
          %v3378 = vunpack.c.l.b16 %v2652
          %v3379 = vunpack.c.h.b16 %v2652
          %v3380 = vunpack.c.l.b16 %v2653
          %v3381 = vunpack.c.h.b16 %v2653
          %v3382 = vunpack.c.l.b16 %v2654
          %v3383 = vunpack.c.h.b16 %v2654
          %v3384 = vunpack.c.l.b16 %v2655
          %v3385 = vunpack.c.h.b16 %v2655
          %v3386 = vunpack.c.l.b16 %v2656
          %v3387 = vunpack.c.h.b16 %v2656
          %v3388 = vunpack.c.l.b16 %v2657
          %v3389 = vunpack.c.h.b16 %v2657
          %v3390 = vunpack.c.l.b16 %v2658
          %v3391 = vunpack.c.h.b16 %v2658
          %v3392 = vunpack.c.l.b16 %v2659
          %v3393 = vunpack.c.h.b16 %v2659
          %v3394 = vunpack.c.l.b16 %v2660
          %v3395 = vunpack.c.h.b16 %v2660
          %v3396 = vunpack.c.l.b16 %v2661
          %v3397 = vunpack.c.h.b16 %v2661
          %v3398 = vunpack.c.l.b16 %v2662
          %v3399 = vunpack.c.h.b16 %v2662
          %v3400 = vunpack.c.l.b16 %v2663
          %v3401 = vunpack.c.h.b16 %v2663
          %v3402 = vunpack.c.l.b16 %v2664
          %v3403 = vunpack.c.h.b16 %v2664
          %v3404 = vunpack.c.l.b16 %v2665
          %v3405 = vunpack.c.h.b16 %v2665
          %v3406 = vunpack.c.l.b16 %v2666
          %v3407 = vunpack.c.h.b16 %v2666
          %v3408 = vunpack.c.l.b16 %v2667
          %v3409 = vunpack.c.h.b16 %v2667
          %v3410 = vunpack.c.l.b16 %v2668
          %v3411 = vunpack.c.h.b16 %v2668
          %v3412 = vunpack.c.l.b16 %v2669
          %v3413 = vunpack.c.h.b16 %v2669
          %v3414 = vunpack.c.l.b16 %v2670
          %v3415 = vunpack.c.h.b16 %v2670
          %v3416 = vunpack.c.l.b16 %v2671
          %v3417 = vunpack.c.h.b16 %v2671
          %v3418 = vunpack.c.l.b16 %v2672
          %v3419 = vunpack.c.h.b16 %v2672
          %v3420 = vunpack.c.l.b16 %v2673
          %v3421 = vunpack.c.h.b16 %v2673
          %v3422 = vunpack.c.l.b16 %v2674
          %v3423 = vunpack.c.h.b16 %v2674
          %v3424 = vunpack.c.l.b16 %v2675
          %v3425 = vunpack.c.h.b16 %v2675
          %v3426 = vunpack.c.l.b16 %v2676
          %v3427 = vunpack.c.h.b16 %v2676
          %v3428 = vunpack.c.l.b16 %v2677
          %v3429 = vunpack.c.h.b16 %v2677
          %v3430 = vpack.c.b16 %v2956, %v2950
          %v3431 = vpack.c.b16 %v2957, %v2951
          %v3432 = vpack.c.b16 %v2958, %v2952
          %v3433 = vpack.c.b16 %v2959, %v2953
          %v3434 = vpack.c.b16 %v2960, %v2954
          %v3435 = vpack.c.b16 %v2961, %v2955
          %v3436 = vpack.c.b16 %v2968, %v2962
          %v3437 = vpack.c.b16 %v2969, %v2963
          %v3438 = vpack.c.b16 %v2970, %v2964
          %v3439 = vpack.c.b16 %v2971, %v2965
          %v3440 = vpack.c.b16 %v2972, %v2966
          %v3441 = vpack.c.b16 %v2973, %v2967
          %v3442 = vpack.c.b16 %v2980, %v2974
          %v3443 = vpack.c.b16 %v2981, %v2975
          %v3444 = vpack.c.b16 %v2982, %v2976
          %v3445 = vpack.c.b16 %v2983, %v2977
          %v3446 = vpack.c.b16 %v2984, %v2978
          %v3447 = vpack.c.b16 %v2985, %v2979
          %v3448 = vpack.c.b16 %v2992, %v2986
          %v3449 = vpack.c.b16 %v2993, %v2987
          %v3450 = vpack.c.b16 %v2994, %v2988
          %v3451 = vpack.c.b16 %v2995, %v2989
          %v3452 = vpack.c.b16 %v2996, %v2990
          %v3453 = vpack.c.b16 %v2997, %v2991
          %v3454 = vpack.c.b16 %v3004, %v2998
          %v3455 = vpack.c.b16 %v3005, %v2999
          %v3456 = vpack.c.b16 %v3006, %v3000
          %v3457 = vpack.c.b16 %v3007, %v3001
          %v3458 = vpack.c.b16 %v3008, %v3002
          %v3459 = vpack.c.b16 %v3009, %v3003
          %v3460 = vpack.c.b16 %v3016, %v3010
          %v3461 = vpack.c.b16 %v3017, %v3011
          %v3462 = vpack.c.b16 %v3018, %v3012
          %v3463 = vpack.c.b16 %v3019, %v3013
          %v3464 = vpack.c.b16 %v3020, %v3014
          %v3465 = vpack.c.b16 %v3021, %v3015
          %v3466 = vpack.c.b16 %v3028, %v3022
          %v3467 = vpack.c.b16 %v3029, %v3023
          %v3468 = vpack.c.b16 %v3030, %v3024
          %v3469 = vpack.c.b16 %v3031, %v3025
          %v3470 = vpack.c.b16 %v3032, %v3026
          %v3471 = vpack.c.b16 %v3033, %v3027
          %v3472 = vpack.c.b16 %v3040, %v3034
          %v3473 = vpack.c.b16 %v3041, %v3035
          %v3474 = vpack.c.b16 %v3042, %v3036
          %v3475 = vpack.c.b16 %v3043, %v3037
          %v3476 = vpack.c.b16 %v3044, %v3038
          %v3477 = vpack.c.b16 %v3045, %v3039
          %v3478 = vpack.c.b16 %v3052, %v3046
          %v3479 = vpack.c.b16 %v3053, %v3047
          %v3480 = vpack.c.b16 %v3054, %v3048
          %v3481 = vpack.c.b16 %v3055, %v3049
          %v3482 = vpack.c.b16 %v3056, %v3050
          %v3483 = vpack.c.b16 %v3057, %v3051
          %v3484 = vpack.c.b16 %v3064, %v3058
          %v3485 = vpack.c.b16 %v3065, %v3059
          %v3486 = vpack.c.b16 %v3066, %v3060
          %v3487 = vpack.c.b16 %v3067, %v3061
          %v3488 = vpack.c.b16 %v3068, %v3062
          %v3489 = vpack.c.b16 %v3069, %v3063
          %v3490 = vpack.c.b16 %v3076, %v3070
          %v3491 = vpack.c.b16 %v3077, %v3071
          %v3492 = vpack.c.b16 %v3078, %v3072
          %v3493 = vpack.c.b16 %v3079, %v3073
          %v3494 = vpack.c.b16 %v3080, %v3074
          %v3495 = vpack.c.b16 %v3081, %v3075
          %v3496 = vpack.c.b16 %v3088, %v3082
          %v3497 = vpack.c.b16 %v3089, %v3083
          %v3498 = vpack.c.b16 %v3090, %v3084
          %v3499 = vpack.c.b16 %v3091, %v3085
          %v3500 = vpack.c.b16 %v3092, %v3086
          %v3501 = vpack.c.b16 %v3093, %v3087
          %v3502 = vpack.c.b16 %v3100, %v3094
          %v3503 = vpack.c.b16 %v3101, %v3095
          %v3504 = vpack.c.b16 %v3102, %v3096
          %v3505 = vpack.c.b16 %v3103, %v3097
          %v3506 = vpack.c.b16 %v3104, %v3098
          %v3507 = vpack.c.b16 %v3105, %v3099
          %v3508 = vpack.c.b16 %v3112, %v3106
          %v3509 = vpack.c.b16 %v3113, %v3107
          %v3510 = vpack.c.b16 %v3114, %v3108
          %v3511 = vpack.c.b16 %v3115, %v3109
          %v3512 = vpack.c.b16 %v3116, %v3110
          %v3513 = vpack.c.b16 %v3117, %v3111
          %v3514 = vpack.c.b16 %v3124, %v3118
          %v3515 = vpack.c.b16 %v3125, %v3119
          %v3516 = vpack.c.b16 %v3126, %v3120
          %v3517 = vpack.c.b16 %v3127, %v3121
          %v3518 = vpack.c.b16 %v3128, %v3122
          %v3519 = vpack.c.b16 %v3129, %v3123
          %v3520 = vpack.c.b16 %v3136, %v3130
          %v3521 = vpack.c.b16 %v3137, %v3131
          %v3522 = vpack.c.b16 %v3138, %v3132
          %v3523 = vpack.c.b16 %v3139, %v3133
          %v3524 = vpack.c.b16 %v3140, %v3134
          %v3525 = vpack.c.b16 %v3141, %v3135
          %v3526 = vpack.c.b16 %v3148, %v3142
          %v3527 = vpack.c.b16 %v3149, %v3143
          %v3528 = vpack.c.b16 %v3150, %v3144
          %v3529 = vpack.c.b16 %v3151, %v3145
          %v3530 = vpack.c.b16 %v3152, %v3146
          %v3531 = vpack.c.b16 %v3153, %v3147
          %v3532 = vpack.c.b16 %v3160, %v3154
          %v3533 = vpack.c.b16 %v3161, %v3155
          %v3534 = vpack.c.b16 %v3162, %v3156
          %v3535 = vpack.c.b16 %v3163, %v3157
          %v3536 = vpack.c.b16 %v3164, %v3158
          %v3537 = vpack.c.b16 %v3165, %v3159
          %v3538 = vpack.c.b16 %v3172, %v3166
          %v3539 = vpack.c.b16 %v3173, %v3167
          %v3540 = vpack.c.b16 %v3174, %v3168
          %v3541 = vpack.c.b16 %v3175, %v3169
          %v3542 = vpack.c.b16 %v3176, %v3170
          %v3543 = vpack.c.b16 %v3177, %v3171
          %v3544 = vpack.c.b16 %v3184, %v3178
          %v3545 = vpack.c.b16 %v3185, %v3179
          %v3546 = vpack.c.b16 %v3186, %v3180
          %v3547 = vpack.c.b16 %v3187, %v3181
          %v3548 = vpack.c.b16 %v3188, %v3182
          %v3549 = vpack.c.b16 %v3189, %v3183
          %v3550 = vpack.c.b16 %v3196, %v3190
          %v3551 = vpack.c.b16 %v3197, %v3191
          %v3552 = vpack.c.b16 %v3198, %v3192
          %v3553 = vpack.c.b16 %v3199, %v3193
          %v3554 = vpack.c.b16 %v3200, %v3194
          %v3555 = vpack.c.b16 %v3201, %v3195
          %v3556 = vpack.c.b16 %v3208, %v3202
          %v3557 = vpack.c.b16 %v3209, %v3203
          %v3558 = vpack.c.b16 %v3210, %v3204
          %v3559 = vpack.c.b16 %v3211, %v3205
          %v3560 = vpack.c.b16 %v3212, %v3206
          %v3561 = vpack.c.b16 %v3213, %v3207
          %v3562 = vpack.c.b16 %v3220, %v3214
          %v3563 = vpack.c.b16 %v3221, %v3215
          %v3564 = vpack.c.b16 %v3222, %v3216
          %v3565 = vpack.c.b16 %v3223, %v3217
          %v3566 = vpack.c.b16 %v3224, %v3218
          %v3567 = vpack.c.b16 %v3225, %v3219
          %v3568 = vpack.c.b16 %v3232, %v3226
          %v3569 = vpack.c.b16 %v3233, %v3227
          %v3570 = vpack.c.b16 %v3234, %v3228
          %v3571 = vpack.c.b16 %v3235, %v3229
          %v3572 = vpack.c.b16 %v3236, %v3230
          %v3573 = vpack.c.b16 %v3237, %v3231
          %v3574 = vpack.c.b16 %v3244, %v3238
          %v3575 = vpack.c.b16 %v3245, %v3239
          %v3576 = vpack.c.b16 %v3246, %v3240
          %v3577 = vpack.c.b16 %v3247, %v3241
          %v3578 = vpack.c.b16 %v3248, %v3242
          %v3579 = vpack.c.b16 %v3249, %v3243
          %v3580 = vpack.c.b16 %v3256, %v3250
          %v3581 = vpack.c.b16 %v3257, %v3251
          %v3582 = vpack.c.b16 %v3258, %v3252
          %v3583 = vpack.c.b16 %v3259, %v3253
          %v3584 = vpack.c.b16 %v3260, %v3254
          %v3585 = vpack.c.b16 %v3261, %v3255
          %v3586 = vpack.c.b16 %v3268, %v3262
          %v3587 = vpack.c.b16 %v3269, %v3263
          %v3588 = vpack.c.b16 %v3270, %v3264
          %v3589 = vpack.c.b16 %v3271, %v3265
          %v3590 = vpack.c.b16 %v3272, %v3266
          %v3591 = vpack.c.b16 %v3273, %v3267
          %v3592 = vpack.c.b16 %v3280, %v3274
          %v3593 = vpack.c.b16 %v3281, %v3275
          %v3594 = vpack.c.b16 %v3282, %v3276
          %v3595 = vpack.c.b16 %v3283, %v3277
          %v3596 = vpack.c.b16 %v3284, %v3278
          %v3597 = vpack.c.b16 %v3285, %v3279
          %v3598 = vpack.c.b16 %v3292, %v3286
          %v3599 = vpack.c.b16 %v3293, %v3287
          %v3600 = vpack.c.b16 %v3294, %v3288
          %v3601 = vpack.c.b16 %v3295, %v3289
          %v3602 = vpack.c.b16 %v3296, %v3290
          %v3603 = vpack.c.b16 %v3297, %v3291
          %v3604 = vpack.c.b16 %v3304, %v3298
          %v3605 = vpack.c.b16 %v3305, %v3299
          %v3606 = vpack.c.b16 %v3306, %v3300
          %v3607 = vpack.c.b16 %v3307, %v3301
          %v3608 = vpack.c.b16 %v3308, %v3302
          %v3609 = vpack.c.b16 %v3309, %v3303
          %v3610 = vpack.c.b16 %v3316, %v3310
          %v3611 = vpack.c.b16 %v3317, %v3311
          %v3612 = vpack.c.b16 %v3318, %v3312
          %v3613 = vpack.c.b16 %v3319, %v3313
          %v3614 = vpack.c.b16 %v3320, %v3314
          %v3615 = vpack.c.b16 %v3321, %v3315
          %v3616 = vpack.c.b16 %v3328, %v3322
          %v3617 = vpack.c.b16 %v3329, %v3323
          %v3618 = vpack.c.b16 %v3330, %v3324
          %v3619 = vpack.c.b16 %v3331, %v3325
          %v3620 = vpack.c.b16 %v3332, %v3326
          %v3621 = vpack.c.b16 %v3333, %v3327
          %v3622 = vpack.c.b16 %v3340, %v3334
          %v3623 = vpack.c.b16 %v3341, %v3335
          %v3624 = vpack.c.b16 %v3342, %v3336
          %v3625 = vpack.c.b16 %v3343, %v3337
          %v3626 = vpack.c.b16 %v3344, %v3338
          %v3627 = vpack.c.b16 %v3345, %v3339
          %v3628 = vpack.c.b16 %v3352, %v3346
          %v3629 = vpack.c.b16 %v3353, %v3347
          %v3630 = vpack.c.b16 %v3354, %v3348
          %v3631 = vpack.c.b16 %v3355, %v3349
          %v3632 = vpack.c.b16 %v3356, %v3350
          %v3633 = vpack.c.b16 %v3357, %v3351
          %v3634 = vpack.c.b16 %v3364, %v3358
          %v3635 = vpack.c.b16 %v3365, %v3359
          %v3636 = vpack.c.b16 %v3366, %v3360
          %v3637 = vpack.c.b16 %v3367, %v3361
          %v3638 = vpack.c.b16 %v3368, %v3362
          %v3639 = vpack.c.b16 %v3369, %v3363
          %v3640 = vpack.c.b16 %v3376, %v3370
          %v3641 = vpack.c.b16 %v3377, %v3371
          %v3642 = vpack.c.b16 %v3378, %v3372
          %v3643 = vpack.c.b16 %v3379, %v3373
          %v3644 = vpack.c.b16 %v3380, %v3374
          %v3645 = vpack.c.b16 %v3381, %v3375
          %v3646 = vpack.c.b16 %v3388, %v3382
          %v3647 = vpack.c.b16 %v3389, %v3383
          %v3648 = vpack.c.b16 %v3390, %v3384
          %v3649 = vpack.c.b16 %v3391, %v3385
          %v3650 = vpack.c.b16 %v3392, %v3386
          %v3651 = vpack.c.b16 %v3393, %v3387
          %v3652 = vpack.c.b16 %v3400, %v3394
          %v3653 = vpack.c.b16 %v3401, %v3395
          %v3654 = vpack.c.b16 %v3402, %v3396
          %v3655 = vpack.c.b16 %v3403, %v3397
          %v3656 = vpack.c.b16 %v3404, %v3398
          %v3657 = vpack.c.b16 %v3405, %v3399
          %v3658 = vpack.c.b16 %v3412, %v3406
          %v3659 = vpack.c.b16 %v3413, %v3407
          %v3660 = vpack.c.b16 %v3414, %v3408
          %v3661 = vpack.c.b16 %v3415, %v3409
          %v3662 = vpack.c.b16 %v3416, %v3410
          %v3663 = vpack.c.b16 %v3417, %v3411
          %v3664 = vpack.c.b16 %v3424, %v3418
          %v3665 = vpack.c.b16 %v3425, %v3419
          %v3666 = vpack.c.b16 %v3426, %v3420
          %v3667 = vpack.c.b16 %v3427, %v3421
          %v3668 = vpack.c.b16 %v3428, %v3422
          %v3669 = vpack.c.b16 %v3429, %v3423
          %3910 = vmatprep.subr.bf16.mxu0 %v3473
          %3911 = vmatpush1.bf16.msra.mxu0 %v3472
          %3912 = vmatprep.subr.bf16.mxu0 %v3467
          %3913 = vmatpush1.bf16.msra.mxu0 %v3466
          %3914 = vmatprep.subr.bf16.mxu0 %v3461
          %3915 = vmatpush1.bf16.msra.mxu0 %v3460
          %3916 = vmatprep.subr.bf16.mxu0 %v3455
          %3917 = vmatpush1.bf16.msra.mxu0 %v3454
          %3918 = vmatprep.subr.bf16.mxu0 %v3449
          %3919 = vmatpush1.bf16.msra.mxu0 %v3448
          %3920 = vmatprep.subr.bf16.mxu0 %v3443
          %3921 = vmatpush1.bf16.msra.mxu0 %v3442
          %3922 = vmatprep.subr.bf16.mxu0 %v3437
          %3923 = vmatpush1.bf16.msra.mxu0 %v3436
          %3924 = vmatprep.subr.bf16.mxu0 %v3431
          %3925 = vmatpush1.bf16.msra.mxu0 %v3430
          %3926 = vmatprep.subr.bf16.mxu0 %v3521
          %3927 = vmatpush2.bf16.msra.mxu0 %v3520
          %3928 = vmatprep.subr.bf16.mxu0 %v3515
          %3929 = vmatpush2.bf16.msra.mxu0 %v3514
          %3930 = vmatprep.subr.bf16.mxu0 %v3509
          %3931 = vmatpush2.bf16.msra.mxu0 %v3508
          %3932 = vmatprep.subr.bf16.mxu0 %v3503
          %3933 = vmatpush2.bf16.msra.mxu0 %v3502
          %3934 = vmatprep.subr.bf16.mxu0 %v3497
          %3935 = vmatpush2.bf16.msra.mxu0 %v3496
          %3936 = vmatprep.subr.bf16.mxu0 %v3491
          %3937 = vmatpush2.bf16.msra.mxu0 %v3490
          %3938 = vmatprep.subr.bf16.mxu0 %v3485
          %3939 = vmatpush2.bf16.msra.mxu0 %v3484
          %3940 = vmatprep.subr.bf16.mxu0 %v3479
          %3941 = vmatpush2.bf16.msra.mxu0 %v3478
          %3942 = vmatprep.mubr.bf16.mxu0 %v2429
          %3943 = vmatmul.mubr.bf16.gmra.mxu0 %v2428
          %v3944 = vpop.f32.mrf.mxu0
          %v3945 = vadd.f32 %v2683, %v3944
          %v3946 = vpop.f32.mrf.mxu0
          %v3947 = vadd.f32 %v2687, %v3946
          %v3948 = vpop.f32.mrf.mxu0
          %v3949 = vadd.f32 %v2683, %v3948
          %v3950 = vpop.f32.mrf.mxu0
          %v3951 = vadd.f32 %v2687, %v3950
          %3952 = vmatprep.mubr.bf16.mxu0 %v2434
          %3953 = vmatmul.mubr.bf16.gmra.mxu0 %v2433
          %v3954 = vpop.f32.mrf.mxu0
          %v3955 = vadd.f32 %v2683, %v3954
          %v3956 = vpop.f32.mrf.mxu0
          %v3957 = vadd.f32 %v2687, %v3956
          %v3958 = vpop.f32.mrf.mxu0
          %v3959 = vadd.f32 %v2683, %v3958
          %v3960 = vpop.f32.mrf.mxu0
          %v3961 = vadd.f32 %v2687, %v3960
          %3962 = vdwg.mxu0
          %3963 = vmatprep.subr.bf16.mxu0 %v3569
          %3964 = vmatpush1.bf16.msra.mxu0 %v3568
          %3965 = vmatprep.subr.bf16.mxu0 %v3563
          %3966 = vmatpush1.bf16.msra.mxu0 %v3562
          %3967 = vmatprep.subr.bf16.mxu0 %v3557
          %3968 = vmatpush1.bf16.msra.mxu0 %v3556
          %3969 = vmatprep.subr.bf16.mxu0 %v3551
          %3970 = vmatpush1.bf16.msra.mxu0 %v3550
          %3971 = vmatprep.subr.bf16.mxu0 %v3545
          %3972 = vmatpush1.bf16.msra.mxu0 %v3544
          %3973 = vmatprep.subr.bf16.mxu0 %v3539
          %3974 = vmatpush1.bf16.msra.mxu0 %v3538
          %3975 = vmatprep.subr.bf16.mxu0 %v3533
          %3976 = vmatpush1.bf16.msra.mxu0 %v3532
          %3977 = vmatprep.subr.bf16.mxu0 %v3527
          %3978 = vmatpush1.bf16.msra.mxu0 %v3526
          %3979 = vmatprep.subr.bf16.mxu0 %v3617
          %3980 = vmatpush2.bf16.msra.mxu0 %v3616
          %3981 = vmatprep.subr.bf16.mxu0 %v3611
          %3982 = vmatpush2.bf16.msra.mxu0 %v3610
          %3983 = vmatprep.subr.bf16.mxu0 %v3605
          %3984 = vmatpush2.bf16.msra.mxu0 %v3604
          %3985 = vmatprep.subr.bf16.mxu0 %v3599
          %3986 = vmatpush2.bf16.msra.mxu0 %v3598
          %3987 = vmatprep.subr.bf16.mxu0 %v3593
          %3988 = vmatpush2.bf16.msra.mxu0 %v3592
          %3989 = vmatprep.subr.bf16.mxu0 %v3587
          %3990 = vmatpush2.bf16.msra.mxu0 %v3586
          %3991 = vmatprep.subr.bf16.mxu0 %v3581
          %3992 = vmatpush2.bf16.msra.mxu0 %v3580
          %3993 = vmatprep.subr.bf16.mxu0 %v3575
          %3994 = vmatpush2.bf16.msra.mxu0 %v3574
          %3995 = vmatprep.mubr.bf16.mxu0 %v2431
          %3996 = vmatmul.mubr.bf16.gmra.mxu0 %v2430
          %v3997 = vpop.f32.mrf.mxu0
          %v3998 = vadd.f32 %v3945, %v3997
          %v3999 = vpop.f32.mrf.mxu0
          %v4000 = vadd.f32 %v3947, %v3999
          %v4001 = vpop.f32.mrf.mxu0
          %v4002 = vadd.f32 %v3949, %v4001
          %v4003 = vpop.f32.mrf.mxu0
          %v4004 = vadd.f32 %v3951, %v4003
          %4005 = vmatprep.mubr.bf16.mxu0 %v2436
          %4006 = vmatmul.mubr.bf16.gmra.mxu0 %v2435
          %v4007 = vpop.f32.mrf.mxu0
          %v4008 = vadd.f32 %v3955, %v4007
          %v4009 = vpop.f32.mrf.mxu0
          %v4010 = vadd.f32 %v3957, %v4009
          %v4011 = vpop.f32.mrf.mxu0
          %v4012 = vadd.f32 %v3959, %v4011
          %v4013 = vpop.f32.mrf.mxu0
          %v4014 = vadd.f32 %v3961, %v4013
          %4015 = vdwg.mxu0
          %4016 = vmatprep.subr.bf16.mxu0 %v3665
          %4017 = vmatpush1.bf16.msra.mxu0 %v3664
          %4018 = vmatprep.subr.bf16.mxu0 %v3659
          %4019 = vmatpush1.bf16.msra.mxu0 %v3658
          %4020 = vmatprep.subr.bf16.mxu0 %v3653
          %4021 = vmatpush1.bf16.msra.mxu0 %v3652
          %4022 = vmatprep.subr.bf16.mxu0 %v3647
          %4023 = vmatpush1.bf16.msra.mxu0 %v3646
          %4024 = vmatprep.subr.bf16.mxu0 %v3641
          %4025 = vmatpush1.bf16.msra.mxu0 %v3640
          %4026 = vmatprep.subr.bf16.mxu0 %v3635
          %4027 = vmatpush1.bf16.msra.mxu0 %v3634
          %4028 = vmatprep.subr.bf16.mxu0 %v3629
          %4029 = vmatpush1.bf16.msra.mxu0 %v3628
          %4030 = vmatprep.subr.bf16.mxu0 %v3623
          %4031 = vmatpush1.bf16.msra.mxu0 %v3622
          %4032 = vmatprep.subr.bf16.mxu0 0
          %4033 = vmatpush2.bf16.msra.mxu0 0
          %4034 = vmatprep.subr.bf16.mxu0 0
          %4035 = vmatpush2.bf16.msra.mxu0 0
          %4036 = vmatprep.subr.bf16.mxu0 0
          %4037 = vmatpush2.bf16.msra.mxu0 0
          %4038 = vmatprep.subr.bf16.mxu0 0
          %4039 = vmatpush2.bf16.msra.mxu0 0
          %4040 = vmatprep.subr.bf16.mxu0 0
          %4041 = vmatpush2.bf16.msra.mxu0 0
          %4042 = vmatprep.subr.bf16.mxu0 0
          %4043 = vmatpush2.bf16.msra.mxu0 0
          %4044 = vmatprep.subr.bf16.mxu0 0
          %4045 = vmatpush2.bf16.msra.mxu0 0
          %4046 = vmatprep.subr.bf16.mxu0 0
          %4047 = vmatpush2.bf16.msra.mxu0 0
          %4048 = vmatprep.mubr.bf16.mxu0 0
          %4049 = vmatmul.mubr.bf16.gmra.mxu0 %v2432
          %v4050 = vpop.f32.mrf.mxu0
          %v4051 = vadd.f32 %v3998, %v4050
          %v4052 = vpop.f32.mrf.mxu0
          %v4053 = vadd.f32 %v4000, %v4052
          %v4054 = vpop.f32.mrf.mxu0
          %v4055 = vadd.f32 %v4002, %v4054
          %v4056 = vpop.f32.mrf.mxu0
          %v4057 = vadd.f32 %v4004, %v4056
          %4058 = vmatprep.mubr.bf16.mxu0 0
          %4059 = vmatmul.mubr.bf16.gmra.mxu0 %v2437
          %v4060 = vpop.f32.mrf.mxu0
          %v4061 = vadd.f32 %v4008, %v4060
          %v4062 = vpop.f32.mrf.mxu0
          %v4063 = vadd.f32 %v4010, %v4062
          %v4064 = vpop.f32.mrf.mxu0
          %v4065 = vadd.f32 %v4012, %v4064
          %v4066 = vpop.f32.mrf.mxu0
          %v4067 = vadd.f32 %v4014, %v4066
          %4068 = vdwg.mxu0
          %4069 = vmatprep.subr.bf16.mxu0 %v3475
          %4070 = vmatpush1.bf16.msra.mxu0 %v3474
          %4071 = vmatprep.subr.bf16.mxu0 %v3469
          %4072 = vmatpush1.bf16.msra.mxu0 %v3468
          %4073 = vmatprep.subr.bf16.mxu0 %v3463
          %4074 = vmatpush1.bf16.msra.mxu0 %v3462
          %4075 = vmatprep.subr.bf16.mxu0 %v3457
          %4076 = vmatpush1.bf16.msra.mxu0 %v3456
          %4077 = vmatprep.subr.bf16.mxu0 %v3451
          %4078 = vmatpush1.bf16.msra.mxu0 %v3450
          %4079 = vmatprep.subr.bf16.mxu0 %v3445
          %4080 = vmatpush1.bf16.msra.mxu0 %v3444
          %4081 = vmatprep.subr.bf16.mxu0 %v3439
          %4082 = vmatpush1.bf16.msra.mxu0 %v3438
          %4083 = vmatprep.subr.bf16.mxu0 %v3433
          %4084 = vmatpush1.bf16.msra.mxu0 %v3432
          %4085 = vmatprep.subr.bf16.mxu0 %v3523
          %4086 = vmatpush2.bf16.msra.mxu0 %v3522
          %4087 = vmatprep.subr.bf16.mxu0 %v3517
          %4088 = vmatpush2.bf16.msra.mxu0 %v3516
          %4089 = vmatprep.subr.bf16.mxu0 %v3511
          %4090 = vmatpush2.bf16.msra.mxu0 %v3510
          %4091 = vmatprep.subr.bf16.mxu0 %v3505
          %4092 = vmatpush2.bf16.msra.mxu0 %v3504
          %4093 = vmatprep.subr.bf16.mxu0 %v3499
          %4094 = vmatpush2.bf16.msra.mxu0 %v3498
          %4095 = vmatprep.subr.bf16.mxu0 %v3493
          %4096 = vmatpush2.bf16.msra.mxu0 %v3492
          %4097 = vmatprep.subr.bf16.mxu0 %v3487
          %4098 = vmatpush2.bf16.msra.mxu0 %v3486
          %4099 = vmatprep.subr.bf16.mxu0 %v3481
          %4100 = vmatpush2.bf16.msra.mxu0 %v3480
          %4101 = vmatprep.mubr.bf16.mxu0 %v2429
          %4102 = vmatmul.mubr.bf16.gmra.mxu0 %v2428
          %v4103 = vpop.f32.mrf.mxu0
          %v4104 = vadd.f32 %v2691, %v4103
          %v4105 = vpop.f32.mrf.mxu0
          %v4106 = vadd.f32 %v2695, %v4105
          %v4107 = vpop.f32.mrf.mxu0
          %v4108 = vadd.f32 %v2691, %v4107
          %v4109 = vpop.f32.mrf.mxu0
          %v4110 = vadd.f32 %v2695, %v4109
          %4111 = vmatprep.mubr.bf16.mxu0 %v2434
          %4112 = vmatmul.mubr.bf16.gmra.mxu0 %v2433
          %v4113 = vpop.f32.mrf.mxu0
          %v4114 = vadd.f32 %v2691, %v4113
          %v4115 = vpop.f32.mrf.mxu0
          %v4116 = vadd.f32 %v2695, %v4115
          %v4117 = vpop.f32.mrf.mxu0
          %v4118 = vadd.f32 %v2691, %v4117
          %v4119 = vpop.f32.mrf.mxu0
          %v4120 = vadd.f32 %v2695, %v4119
          %4121 = vdwg.mxu0
          %4122 = vmatprep.subr.bf16.mxu0 %v3571
          %4123 = vmatpush1.bf16.msra.mxu0 %v3570
          %4124 = vmatprep.subr.bf16.mxu0 %v3565
          %4125 = vmatpush1.bf16.msra.mxu0 %v3564
          %4126 = vmatprep.subr.bf16.mxu0 %v3559
          %4127 = vmatpush1.bf16.msra.mxu0 %v3558
          %4128 = vmatprep.subr.bf16.mxu0 %v3553
          %4129 = vmatpush1.bf16.msra.mxu0 %v3552
          %4130 = vmatprep.subr.bf16.mxu0 %v3547
          %4131 = vmatpush1.bf16.msra.mxu0 %v3546
          %4132 = vmatprep.subr.bf16.mxu0 %v3541
          %4133 = vmatpush1.bf16.msra.mxu0 %v3540
          %4134 = vmatprep.subr.bf16.mxu0 %v3535
          %4135 = vmatpush1.bf16.msra.mxu0 %v3534
          %4136 = vmatprep.subr.bf16.mxu0 %v3529
          %4137 = vmatpush1.bf16.msra.mxu0 %v3528
          %4138 = vmatprep.subr.bf16.mxu0 %v3619
          %4139 = vmatpush2.bf16.msra.mxu0 %v3618
          %4140 = vmatprep.subr.bf16.mxu0 %v3613
          %4141 = vmatpush2.bf16.msra.mxu0 %v3612
          %4142 = vmatprep.subr.bf16.mxu0 %v3607
          %4143 = vmatpush2.bf16.msra.mxu0 %v3606
          %4144 = vmatprep.subr.bf16.mxu0 %v3601
          %4145 = vmatpush2.bf16.msra.mxu0 %v3600
          %4146 = vmatprep.subr.bf16.mxu0 %v3595
          %4147 = vmatpush2.bf16.msra.mxu0 %v3594
          %4148 = vmatprep.subr.bf16.mxu0 %v3589
          %4149 = vmatpush2.bf16.msra.mxu0 %v3588
          %4150 = vmatprep.subr.bf16.mxu0 %v3583
          %4151 = vmatpush2.bf16.msra.mxu0 %v3582
          %4152 = vmatprep.subr.bf16.mxu0 %v3577
          %4153 = vmatpush2.bf16.msra.mxu0 %v3576
          %4154 = vmatprep.mubr.bf16.mxu0 %v2431
          %4155 = vmatmul.mubr.bf16.gmra.mxu0 %v2430
          %v4156 = vpop.f32.mrf.mxu0
          %v4157 = vadd.f32 %v4104, %v4156
          %v4158 = vpop.f32.mrf.mxu0
          %v4159 = vadd.f32 %v4106, %v4158
          %v4160 = vpop.f32.mrf.mxu0
          %v4161 = vadd.f32 %v4108, %v4160
          %v4162 = vpop.f32.mrf.mxu0
          %v4163 = vadd.f32 %v4110, %v4162
          %4164 = vmatprep.mubr.bf16.mxu0 %v2436
          %4165 = vmatmul.mubr.bf16.gmra.mxu0 %v2435
          %v4166 = vpop.f32.mrf.mxu0
          %v4167 = vadd.f32 %v4114, %v4166
          %v4168 = vpop.f32.mrf.mxu0
          %v4169 = vadd.f32 %v4116, %v4168
          %v4170 = vpop.f32.mrf.mxu0
          %v4171 = vadd.f32 %v4118, %v4170
          %v4172 = vpop.f32.mrf.mxu0
          %v4173 = vadd.f32 %v4120, %v4172
          %4174 = vdwg.mxu0
          %4175 = vmatprep.subr.bf16.mxu0 %v3667
          %4176 = vmatpush1.bf16.msra.mxu0 %v3666
          %4177 = vmatprep.subr.bf16.mxu0 %v3661
          %4178 = vmatpush1.bf16.msra.mxu0 %v3660
          %4179 = vmatprep.subr.bf16.mxu0 %v3655
          %4180 = vmatpush1.bf16.msra.mxu0 %v3654
          %4181 = vmatprep.subr.bf16.mxu0 %v3649
          %4182 = vmatpush1.bf16.msra.mxu0 %v3648
          %4183 = vmatprep.subr.bf16.mxu0 %v3643
          %4184 = vmatpush1.bf16.msra.mxu0 %v3642
          %4185 = vmatprep.subr.bf16.mxu0 %v3637
          %4186 = vmatpush1.bf16.msra.mxu0 %v3636
          %4187 = vmatprep.subr.bf16.mxu0 %v3631
          %4188 = vmatpush1.bf16.msra.mxu0 %v3630
          %4189 = vmatprep.subr.bf16.mxu0 %v3625
          %4190 = vmatpush1.bf16.msra.mxu0 %v3624
          %4191 = vmatprep.subr.bf16.mxu0 0
          %4192 = vmatpush2.bf16.msra.mxu0 0
          %4193 = vmatprep.subr.bf16.mxu0 0
          %4194 = vmatpush2.bf16.msra.mxu0 0
          %4195 = vmatprep.subr.bf16.mxu0 0
          %4196 = vmatpush2.bf16.msra.mxu0 0
          %4197 = vmatprep.subr.bf16.mxu0 0
          %4198 = vmatpush2.bf16.msra.mxu0 0
          %4199 = vmatprep.subr.bf16.mxu0 0
          %4200 = vmatpush2.bf16.msra.mxu0 0
          %4201 = vmatprep.subr.bf16.mxu0 0
          %4202 = vmatpush2.bf16.msra.mxu0 0
          %4203 = vmatprep.subr.bf16.mxu0 0
          %4204 = vmatpush2.bf16.msra.mxu0 0
          %4205 = vmatprep.subr.bf16.mxu0 0
          %4206 = vmatpush2.bf16.msra.mxu0 0
          %4207 = vmatprep.mubr.bf16.mxu0 0
          %4208 = vmatmul.mubr.bf16.gmra.mxu0 %v2432
          %v4209 = vpop.f32.mrf.mxu0
          %v4210 = vadd.f32 %v4157, %v4209
          %v4211 = vpop.f32.mrf.mxu0
          %v4212 = vadd.f32 %v4159, %v4211
          %v4213 = vpop.f32.mrf.mxu0
          %v4214 = vadd.f32 %v4161, %v4213
          %v4215 = vpop.f32.mrf.mxu0
          %v4216 = vadd.f32 %v4163, %v4215
          %4217 = vmatprep.mubr.bf16.mxu0 0
          %4218 = vmatmul.mubr.bf16.gmra.mxu0 %v2437
          %v4219 = vpop.f32.mrf.mxu0
          %v4220 = vadd.f32 %v4167, %v4219
          %v4221 = vpop.f32.mrf.mxu0
          %v4222 = vadd.f32 %v4169, %v4221
          %v4223 = vpop.f32.mrf.mxu0
          %v4224 = vadd.f32 %v4171, %v4223
          %v4225 = vpop.f32.mrf.mxu0
          %v4226 = vadd.f32 %v4173, %v4225
          %4227 = vdwg.mxu0
          %4228 = vmatprep.subr.bf16.mxu0 %v3477
          %4229 = vmatpush1.bf16.msra.mxu0 %v3476
          %4230 = vmatprep.subr.bf16.mxu0 %v3471
          %4231 = vmatpush1.bf16.msra.mxu0 %v3470
          %4232 = vmatprep.subr.bf16.mxu0 %v3465
          %4233 = vmatpush1.bf16.msra.mxu0 %v3464
          %4234 = vmatprep.subr.bf16.mxu0 %v3459
          %4235 = vmatpush1.bf16.msra.mxu0 %v3458
          %4236 = vmatprep.subr.bf16.mxu0 %v3453
          %4237 = vmatpush1.bf16.msra.mxu0 %v3452
          %4238 = vmatprep.subr.bf16.mxu0 %v3447
          %4239 = vmatpush1.bf16.msra.mxu0 %v3446
          %4240 = vmatprep.subr.bf16.mxu0 %v3441
          %4241 = vmatpush1.bf16.msra.mxu0 %v3440
          %4242 = vmatprep.subr.bf16.mxu0 %v3435
          %4243 = vmatpush1.bf16.msra.mxu0 %v3434
          %4244 = vmatprep.subr.bf16.mxu0 %v3525
          %4245 = vmatpush2.bf16.msra.mxu0 %v3524
          %4246 = vmatprep.subr.bf16.mxu0 %v3519
          %4247 = vmatpush2.bf16.msra.mxu0 %v3518
          %4248 = vmatprep.subr.bf16.mxu0 %v3513
          %4249 = vmatpush2.bf16.msra.mxu0 %v3512
          %4250 = vmatprep.subr.bf16.mxu0 %v3507
          %4251 = vmatpush2.bf16.msra.mxu0 %v3506
          %4252 = vmatprep.subr.bf16.mxu0 %v3501
          %4253 = vmatpush2.bf16.msra.mxu0 %v3500
          %4254 = vmatprep.subr.bf16.mxu0 %v3495
          %4255 = vmatpush2.bf16.msra.mxu0 %v3494
          %4256 = vmatprep.subr.bf16.mxu0 %v3489
          %4257 = vmatpush2.bf16.msra.mxu0 %v3488
          %4258 = vmatprep.subr.bf16.mxu0 %v3483
          %4259 = vmatpush2.bf16.msra.mxu0 %v3482
          %4260 = vmatprep.mubr.bf16.mxu0 %v2429
          %4261 = vmatmul.mubr.bf16.gmra.mxu0 %v2428
          %v4262 = vpop.f32.mrf.mxu0
          %v4263 = vadd.f32 %v2699, %v4262
          %v4264 = vpop.f32.mrf.mxu0
          %v4265 = vadd.f32 %v2703, %v4264
          %v4266 = vpop.f32.mrf.mxu0
          %v4267 = vadd.f32 %v2699, %v4266
          %v4268 = vpop.f32.mrf.mxu0
          %v4269 = vadd.f32 %v2703, %v4268
          %4270 = vmatprep.mubr.bf16.mxu0 %v2434
          %4271 = vmatmul.mubr.bf16.gmra.mxu0 %v2433
          %v4272 = vpop.f32.mrf.mxu0
          %v4273 = vadd.f32 %v2699, %v4272
          %v4274 = vpop.f32.mrf.mxu0
          %v4275 = vadd.f32 %v2703, %v4274
          %v4276 = vpop.f32.mrf.mxu0
          %v4277 = vadd.f32 %v2699, %v4276
          %v4278 = vpop.f32.mrf.mxu0
          %v4279 = vadd.f32 %v2703, %v4278
          %4280 = vdwg.mxu0
          %4281 = vmatprep.subr.bf16.mxu0 %v3573
          %4282 = vmatpush1.bf16.msra.mxu0 %v3572
          %4283 = vmatprep.subr.bf16.mxu0 %v3567
          %4284 = vmatpush1.bf16.msra.mxu0 %v3566
          %4285 = vmatprep.subr.bf16.mxu0 %v3561
          %4286 = vmatpush1.bf16.msra.mxu0 %v3560
          %4287 = vmatprep.subr.bf16.mxu0 %v3555
          %4288 = vmatpush1.bf16.msra.mxu0 %v3554
          %4289 = vmatprep.subr.bf16.mxu0 %v3549
          %4290 = vmatpush1.bf16.msra.mxu0 %v3548
          %4291 = vmatprep.subr.bf16.mxu0 %v3543
          %4292 = vmatpush1.bf16.msra.mxu0 %v3542
          %4293 = vmatprep.subr.bf16.mxu0 %v3537
          %4294 = vmatpush1.bf16.msra.mxu0 %v3536
          %4295 = vmatprep.subr.bf16.mxu0 %v3531
          %4296 = vmatpush1.bf16.msra.mxu0 %v3530
          %4297 = vmatprep.subr.bf16.mxu0 %v3621
          %4298 = vmatpush2.bf16.msra.mxu0 %v3620
          %4299 = vmatprep.subr.bf16.mxu0 %v3615
          %4300 = vmatpush2.bf16.msra.mxu0 %v3614
          %4301 = vmatprep.subr.bf16.mxu0 %v3609
          %4302 = vmatpush2.bf16.msra.mxu0 %v3608
          %4303 = vmatprep.subr.bf16.mxu0 %v3603
          %4304 = vmatpush2.bf16.msra.mxu0 %v3602
          %4305 = vmatprep.subr.bf16.mxu0 %v3597
          %4306 = vmatpush2.bf16.msra.mxu0 %v3596
          %4307 = vmatprep.subr.bf16.mxu0 %v3591
          %4308 = vmatpush2.bf16.msra.mxu0 %v3590
          %4309 = vmatprep.subr.bf16.mxu0 %v3585
          %4310 = vmatpush2.bf16.msra.mxu0 %v3584
          %4311 = vmatprep.subr.bf16.mxu0 %v3579
          %4312 = vmatpush2.bf16.msra.mxu0 %v3578
          %4313 = vmatprep.mubr.bf16.mxu0 %v2431
          %4314 = vmatmul.mubr.bf16.gmra.mxu0 %v2430
          %v4315 = vpop.f32.mrf.mxu0
          %v4316 = vadd.f32 %v4263, %v4315
          %v4317 = vpop.f32.mrf.mxu0
          %v4318 = vadd.f32 %v4265, %v4317
          %v4319 = vpop.f32.mrf.mxu0
          %v4320 = vadd.f32 %v4267, %v4319
          %v4321 = vpop.f32.mrf.mxu0
          %v4322 = vadd.f32 %v4269, %v4321
          %4323 = vmatprep.mubr.bf16.mxu0 %v2436
          %4324 = vmatmul.mubr.bf16.gmra.mxu0 %v2435
          %v4325 = vpop.f32.mrf.mxu0
          %v4326 = vadd.f32 %v4273, %v4325
          %v4327 = vpop.f32.mrf.mxu0
          %v4328 = vadd.f32 %v4275, %v4327
          %v4329 = vpop.f32.mrf.mxu0
          %v4330 = vadd.f32 %v4277, %v4329
          %v4331 = vpop.f32.mrf.mxu0
          %v4332 = vadd.f32 %v4279, %v4331
          %4333 = vdwg.mxu0
          %4334 = vmatprep.subr.bf16.mxu0 %v3669
          %4335 = vmatpush1.bf16.msra.mxu0 %v3668
          %4336 = vmatprep.subr.bf16.mxu0 %v3663
          %4337 = vmatpush1.bf16.msra.mxu0 %v3662
          %4338 = vmatprep.subr.bf16.mxu0 %v3657
          %4339 = vmatpush1.bf16.msra.mxu0 %v3656
          %4340 = vmatprep.subr.bf16.mxu0 %v3651
          %4341 = vmatpush1.bf16.msra.mxu0 %v3650
          %4342 = vmatprep.subr.bf16.mxu0 %v3645
          %4343 = vmatpush1.bf16.msra.mxu0 %v3644
          %4344 = vmatprep.subr.bf16.mxu0 %v3639
          %4345 = vmatpush1.bf16.msra.mxu0 %v3638
          %4346 = vmatprep.subr.bf16.mxu0 %v3633
          %4347 = vmatpush1.bf16.msra.mxu0 %v3632
          %4348 = vmatprep.subr.bf16.mxu0 %v3627
          %4349 = vmatpush1.bf16.msra.mxu0 %v3626
          %4350 = vmatprep.subr.bf16.mxu0 0
          %4351 = vmatpush2.bf16.msra.mxu0 0
          %4352 = vmatprep.subr.bf16.mxu0 0
          %4353 = vmatpush2.bf16.msra.mxu0 0
          %4354 = vmatprep.subr.bf16.mxu0 0
          %4355 = vmatpush2.bf16.msra.mxu0 0
          %4356 = vmatprep.subr.bf16.mxu0 0
          %4357 = vmatpush2.bf16.msra.mxu0 0
          %4358 = vmatprep.subr.bf16.mxu0 0
          %4359 = vmatpush2.bf16.msra.mxu0 0
          %4360 = vmatprep.subr.bf16.mxu0 0
          %4361 = vmatpush2.bf16.msra.mxu0 0
          %4362 = vmatprep.subr.bf16.mxu0 0
          %4363 = vmatpush2.bf16.msra.mxu0 0
          %4364 = vmatprep.subr.bf16.mxu0 0
          %4365 = vmatpush2.bf16.msra.mxu0 0
          %4366 = vmatprep.mubr.bf16.mxu0 0
          %4367 = vmatmul.mubr.bf16.gmra.mxu0 %v2432
          %v4368 = vpop.f32.mrf.mxu0
          %v4369 = vadd.f32 %v4316, %v4368
          %v4370 = vpop.f32.mrf.mxu0
          %v4371 = vadd.f32 %v4318, %v4370
          %v4372 = vpop.f32.mrf.mxu0
          %v4373 = vadd.f32 %v4320, %v4372
          %v4374 = vpop.f32.mrf.mxu0
          %v4375 = vadd.f32 %v4322, %v4374
          %4376 = vmatprep.mubr.bf16.mxu0 0
          %4377 = vmatmul.mubr.bf16.gmra.mxu0 %v2437
          %v4378 = vpop.f32.mrf.mxu0
          %v4379 = vadd.f32 %v4326, %v4378
          %v4380 = vpop.f32.mrf.mxu0
          %v4381 = vadd.f32 %v4328, %v4380
          %v4382 = vpop.f32.mrf.mxu0
          %v4383 = vadd.f32 %v4330, %v4382
          %v4384 = vpop.f32.mrf.mxu0
          %v4385 = vadd.f32 %v4332, %v4384
          %4386 = vdwg.mxu0
          %v4387 = vld [vmem:[%s488] sm:$0xff]
          %v4388 = vld [vmem:[%s488 + $0x8] sm:$0xff]
          %v4389 = vld [vmem:[%s488 + $0x10] sm:$0xff]
          %v4390 = vld [vmem:[%s488 + $0x18] sm:$0xff]
          %v4391 = vld [vmem:[%s488 + $0x20] sm:$0xff]
          %v4392 = vld [vmem:[%s488 + $0x28] sm:$0xff]
          %v4393 = vld [vmem:[%s488 + $0x30] sm:$0xff]
          %v4394 = vld [vmem:[%s488 + $0x38] sm:$0xff]
          %v4395 = vld [vmem:[%s488 + $0x40] sm:$0xff]
          %v4396 = vld [vmem:[%s488 + $0x48] sm:$0xff]
          %v4397 = vld [vmem:[%s488 + $0x50] sm:$0xff]
          %v4398 = vld [vmem:[%s488 + $0x58] sm:$0xff]
          %v4399 = vmul.f32 %v4212, 0.5
          %v4400 = vmul.f32 %v4369, 0.5
          %v4401 = vmul.f32 %v4371, 0.5
          %v4402 = vmul.f32 %v4216, 0.5
          %v4403 = vmul.f32 %v4373, 0.5
          %v4404 = vmul.f32 %v4375, 0.5
          %v4405 = vmul.f32 %v4222, 0.5
          %v4406 = vmul.f32 %v4379, 0.5
          %v4407 = vmul.f32 %v4381, 0.5
          %v4408 = vmul.f32 %v4226, 0.5
          %v4409 = vmul.f32 %v4383, 0.5
          %v4410 = vmul.f32 %v4385, 0.5
          %v4411 = vmul.f32 %v4399, 1.442695
          %v4412 = vpow.pop %v4411
          %v4413 = vmul.f32 %v4400, 1.442695
          %v4414 = vpow.pop %v4413
          %v4415 = vmul.f32 %v4401, 1.442695
          %v4416 = vpow.pop %v4415
          %v4417 = vmul.f32 %v4402, 1.442695
          %v4418 = vpow.pop %v4417
          %v4419 = vmul.f32 %v4403, 1.442695
          %v4420 = vpow.pop %v4419
          %v4421 = vmul.f32 %v4404, 1.442695
          %v4422 = vpow.pop %v4421
          %v4423 = vmul.f32 %v4405, 1.442695
          %v4424 = vpow.pop %v4423
          %v4425 = vmul.f32 %v4406, 1.442695
          %v4426 = vpow.pop %v4425
          %v4427 = vmul.f32 %v4407, 1.442695
          %v4428 = vpow.pop %v4427
          %v4429 = vmul.f32 %v4408, 1.442695
          %v4430 = vpow.pop %v4429
          %v4431 = vmul.f32 %v4409, 1.442695
          %v4432 = vpow.pop %v4431
          %v4433 = vmul.f32 %v4410, 1.442695
          %v4434 = vpow.pop %v4433
          %v4435 = vmul.f32 %v4387, %v4412
          %v4436 = vmul.f32 %v4388, %v4414
          %v4437 = vmul.f32 %v4389, %v4416
          %v4438 = vmul.f32 %v4390, %v4418
          %v4439 = vmul.f32 %v4391, %v4420
          %v4440 = vmul.f32 %v4392, %v4422
          %v4441 = vmul.f32 %v4393, %v4424
          %v4442 = vmul.f32 %v4394, %v4426
          %v4443 = vmul.f32 %v4395, %v4428
          %v4444 = vmul.f32 %v4396, %v4430
          %v4445 = vmul.f32 %v4397, %v4432
          %v4446 = vmul.f32 %v4398, %v4434
          %v4447 = vadd.f32 %v4051, %v4435
          %v4448 = vadd.f32 %v4053, %v4436
          %v4449 = vadd.f32 %v4210, %v4437
          %v4450 = vadd.f32 %v4055, %v4438
          %v4451 = vadd.f32 %v4057, %v4439
          %v4452 = vadd.f32 %v4214, %v4440
          %v4453 = vadd.f32 %v4061, %v4441
          %v4454 = vadd.f32 %v4063, %v4442
          %v4455 = vadd.f32 %v4220, %v4443
          %v4456 = vadd.f32 %v4065, %v4444
          %v4457 = vadd.f32 %v4067, %v4445
          %v4458 = vadd.f32 %v4224, %v4446
          %v4459 = vpack.c.bf16 %v4450, %v4447
          %v4460 = vpack.c.bf16 %v4451, %v4448
          %v4461 = vpack.c.bf16 %v4452, %v4449
          %v4462 = vpack.c.bf16 %v4456, %v4453
          %v4463 = vpack.c.bf16 %v4457, %v4454
          %v4464 = vpack.c.bf16 %v4458, %v4455
          %v4465 = vld [vmem:[#allocation11] sm:$0xff]
          %v4466 = vld [vmem:[#allocation11 + $0x8] sm:$0xff]
          %v4467 = vld [vmem:[#allocation11 + $0x10] sm:$0xf]
          %v4468 = vld [vmem:[#allocation11 + $0x14] sm:$0xff]
          %v4469 = vld [vmem:[#allocation11 + $0x1c] sm:$0xff]
          %v4470 = vld [vmem:[#allocation11 + $0x24] sm:$0xf]
          %v4471 = vld [vmem:[#allocation11 + $0x28] sm:$0xff]
          %v4472 = vld [vmem:[#allocation11 + $0x30] sm:$0xff]
          %v4473 = vld [vmem:[#allocation11 + $0x38] sm:$0xf]
          %v4474 = vld [vmem:[#allocation11 + $0x3c] sm:$0xff]
          %v4475 = vld [vmem:[#allocation11 + $0x44] sm:$0xff]
          %v4476 = vld [vmem:[#allocation11 + $0x4c] sm:$0xf]
          %v4477 = vld [vmem:[#allocation11 + $0x50] sm:$0xff]
          %v4478 = vld [vmem:[#allocation11 + $0x58] sm:$0xff]
          %v4479 = vld [vmem:[#allocation11 + $0x60] sm:$0xf]
          %v4480 = vld [vmem:[#allocation11 + $0x64] sm:$0xff]
          %v4481 = vld [vmem:[#allocation11 + $0x6c] sm:$0xff]
          %v4482 = vld [vmem:[#allocation11 + $0x74] sm:$0xf]
          %v4483 = vld [vmem:[#allocation11 + $0x78] sm:$0xff]
          %v4484 = vld [vmem:[#allocation11 + $0x80] sm:$0xff]
          %v4485 = vld [vmem:[#allocation11 + $0x88] sm:$0xf]
          %v4486 = vld [vmem:[#allocation11 + $0x8c] sm:$0xff]
          %v4487 = vld [vmem:[#allocation11 + $0x94] sm:$0xff]
          %v4488 = vld [vmem:[#allocation11 + $0x9c] sm:$0xf]
          %v4489 = vld [vmem:[#allocation11 + $0xa0] sm:$0xff]
          %v4490 = vld [vmem:[#allocation11 + $0xa8] sm:$0xff]
          %v4491 = vld [vmem:[#allocation11 + $0xb0] sm:$0xf]
          %v4492 = vld [vmem:[#allocation11 + $0xb4] sm:$0xff]
          %v4493 = vld [vmem:[#allocation11 + $0xbc] sm:$0xff]
          %v4494 = vld [vmem:[#allocation11 + $0xc4] sm:$0xf]
          %v4495 = vld [vmem:[#allocation11 + $0xc8] sm:$0xff]
          %v4496 = vld [vmem:[#allocation11 + $0xd0] sm:$0xff]
          %v4497 = vld [vmem:[#allocation11 + $0xd8] sm:$0xf]
          %v4498 = vld [vmem:[#allocation11 + $0xdc] sm:$0xff]
          %v4499 = vld [vmem:[#allocation11 + $0xe4] sm:$0xff]
          %v4500 = vld [vmem:[#allocation11 + $0xec] sm:$0xf]
          %v4501 = vld [vmem:[#allocation11 + $0xf0] sm:$0xff]
          %v4502 = vld [vmem:[#allocation11 + $0xf8] sm:$0xff]
          %v4503 = vld [vmem:[#allocation11 + $0x100] sm:$0xf]
          %v4504 = vld [vmem:[#allocation11 + $0x104] sm:$0xff]
          %v4505 = vld [vmem:[#allocation11 + $0x10c] sm:$0xff]
          %v4506 = vld [vmem:[#allocation11 + $0x114] sm:$0xf]
          %v4507 = vld [vmem:[#allocation11 + $0x118] sm:$0xff]
          %v4508 = vld [vmem:[#allocation11 + $0x120] sm:$0xff]
          %v4509 = vld [vmem:[#allocation11 + $0x128] sm:$0xf]
          %v4510 = vld [vmem:[#allocation11 + $0x12c] sm:$0xff]
          %v4511 = vld [vmem:[#allocation11 + $0x134] sm:$0xff]
          %v4512 = vld [vmem:[#allocation11 + $0x13c] sm:$0xf]
          %v4513 = vld [vmem:[#allocation11 + $0x140] sm:$0xff]
          %v4514 = vld [vmem:[#allocation11 + $0x148] sm:$0xff]
          %v4515 = vld [vmem:[#allocation11 + $0x150] sm:$0xf]
          %v4516 = vld [vmem:[#allocation11 + $0x154] sm:$0xff]
          %v4517 = vld [vmem:[#allocation11 + $0x15c] sm:$0xff]
          %v4518 = vld [vmem:[#allocation11 + $0x164] sm:$0xf]
          %v4519 = vld [vmem:[#allocation11 + $0x168] sm:$0xff]
          %v4520 = vld [vmem:[#allocation11 + $0x170] sm:$0xff]
          %v4521 = vld [vmem:[#allocation11 + $0x178] sm:$0xf]
          %v4522 = vld [vmem:[#allocation11 + $0x17c] sm:$0xff]
          %v4523 = vld [vmem:[#allocation11 + $0x184] sm:$0xff]
          %v4524 = vld [vmem:[#allocation11 + $0x18c] sm:$0xf]
          %v4525 = vld [vmem:[#allocation11 + $0x190] sm:$0xff]
          %v4526 = vld [vmem:[#allocation11 + $0x198] sm:$0xff]
          %v4527 = vld [vmem:[#allocation11 + $0x1a0] sm:$0xf]
          %v4528 = vld [vmem:[#allocation11 + $0x1a4] sm:$0xff]
          %v4529 = vld [vmem:[#allocation11 + $0x1ac] sm:$0xff]
          %v4530 = vld [vmem:[#allocation11 + $0x1b4] sm:$0xf]
          %v4531 = vld [vmem:[#allocation11 + $0x1b8] sm:$0xff]
          %v4532 = vld [vmem:[#allocation11 + $0x1c0] sm:$0xff]
          %v4533 = vld [vmem:[#allocation11 + $0x1c8] sm:$0xf]
          %v4534 = vld [vmem:[#allocation11 + $0x1cc] sm:$0xff]
          %v4535 = vld [vmem:[#allocation11 + $0x1d4] sm:$0xff]
          %v4536 = vld [vmem:[#allocation11 + $0x1dc] sm:$0xf]
          %v4537 = vld [vmem:[#allocation11 + $0x1e0] sm:$0xff]
          %v4538 = vld [vmem:[#allocation11 + $0x1e8] sm:$0xff]
          %v4539 = vld [vmem:[#allocation11 + $0x1f0] sm:$0xf]
          %v4540 = vld [vmem:[#allocation11 + $0x1f4] sm:$0xff]
          %v4541 = vld [vmem:[#allocation11 + $0x1fc] sm:$0xff]
          %v4542 = vld [vmem:[#allocation11 + $0x204] sm:$0xf]
          %v4543 = vld [vmem:[#allocation11 + $0x208] sm:$0xff]
          %v4544 = vld [vmem:[#allocation11 + $0x210] sm:$0xff]
          %v4545 = vld [vmem:[#allocation11 + $0x218] sm:$0xf]
          %v4546 = vld [vmem:[#allocation11 + $0x21c] sm:$0xff]
          %v4547 = vld [vmem:[#allocation11 + $0x224] sm:$0xff]
          %v4548 = vld [vmem:[#allocation11 + $0x22c] sm:$0xf]
          %v4549 = vld [vmem:[#allocation11 + $0x230] sm:$0xff]
          %v4550 = vld [vmem:[#allocation11 + $0x238] sm:$0xff]
          %v4551 = vld [vmem:[#allocation11 + $0x240] sm:$0xf]
          %v4552 = vld [vmem:[#allocation11 + $0x244] sm:$0xff]
          %v4553 = vld [vmem:[#allocation11 + $0x24c] sm:$0xff]
          %v4554 = vld [vmem:[#allocation11 + $0x254] sm:$0xf]
          %v4555 = vld [vmem:[#allocation11 + $0x258] sm:$0xff]
          %v4556 = vld [vmem:[#allocation11 + $0x260] sm:$0xff]
          %v4557 = vld [vmem:[#allocation11 + $0x268] sm:$0xf]
          %v4558 = vld [vmem:[#allocation11 + $0x26c] sm:$0xff]
          %v4559 = vld [vmem:[#allocation11 + $0x274] sm:$0xff]
          %v4560 = vld [vmem:[#allocation11 + $0x27c] sm:$0xf]
          %v4561 = vld [vmem:[#allocation11 + $0x280] sm:$0xff]
          %v4562 = vld [vmem:[#allocation11 + $0x288] sm:$0xff]
          %v4563 = vld [vmem:[#allocation11 + $0x290] sm:$0xf]
          %v4564 = vld [vmem:[#allocation11 + $0x294] sm:$0xff]
          %v4565 = vld [vmem:[#allocation11 + $0x29c] sm:$0xff]
          %v4566 = vld [vmem:[#allocation11 + $0x2a4] sm:$0xf]
          %v4567 = vld [vmem:[#allocation11 + $0x2a8] sm:$0xff]
          %v4568 = vld [vmem:[#allocation11 + $0x2b0] sm:$0xff]
          %v4569 = vld [vmem:[#allocation11 + $0x2b8] sm:$0xf]
          %v4570 = vld [vmem:[#allocation11 + $0x2bc] sm:$0xff]
          %v4571 = vld [vmem:[#allocation11 + $0x2c4] sm:$0xff]
          %v4572 = vld [vmem:[#allocation11 + $0x2cc] sm:$0xf]
          %v4573 = vld [vmem:[#allocation11 + $0x2d0] sm:$0xff]
          %v4574 = vld [vmem:[#allocation11 + $0x2d8] sm:$0xff]
          %v4575 = vld [vmem:[#allocation11 + $0x2e0] sm:$0xf]
          %v4576 = vld [vmem:[#allocation11 + $0x2e4] sm:$0xff]
          %v4577 = vld [vmem:[#allocation11 + $0x2ec] sm:$0xff]
          %v4578 = vld [vmem:[#allocation11 + $0x2f4] sm:$0xf]
          %v4579 = vld [vmem:[#allocation11 + $0x2f8] sm:$0xff]
          %v4580 = vld [vmem:[#allocation11 + $0x300] sm:$0xff]
          %v4581 = vld [vmem:[#allocation11 + $0x308] sm:$0xf]
          %v4582 = vld [vmem:[#allocation11 + $0x30c] sm:$0xff]
          %v4583 = vld [vmem:[#allocation11 + $0x314] sm:$0xff]
          %v4584 = vld [vmem:[#allocation11 + $0x31c] sm:$0xf]
          %v4585 = vld [vmem:[#allocation11 + $0x320] sm:$0xff]
          %v4586 = vld [vmem:[#allocation11 + $0x328] sm:$0xff]
          %v4587 = vld [vmem:[#allocation11 + $0x330] sm:$0xf]
          %v4588 = vld [vmem:[#allocation11 + $0x334] sm:$0xff]
          %v4589 = vld [vmem:[#allocation11 + $0x33c] sm:$0xff]
          %v4590 = vld [vmem:[#allocation11 + $0x344] sm:$0xf]
          %v4591 = vld [vmem:[#allocation11 + $0x348] sm:$0xff]
          %v4592 = vld [vmem:[#allocation11 + $0x350] sm:$0xff]
          %v4593 = vld [vmem:[#allocation11 + $0x358] sm:$0xf]
          %v4594 = vld [vmem:[#allocation11 + $0x35c] sm:$0xff]
          %v4595 = vld [vmem:[#allocation11 + $0x364] sm:$0xff]
          %v4596 = vld [vmem:[#allocation11 + $0x36c] sm:$0xf]
          %v4597 = vld [vmem:[#allocation11 + $0x370] sm:$0xff]
          %v4598 = vld [vmem:[#allocation11 + $0x378] sm:$0xff]
          %v4599 = vld [vmem:[#allocation11 + $0x380] sm:$0xf]
          %v4600 = vld [vmem:[#allocation11 + $0x384] sm:$0xff]
          %v4601 = vld [vmem:[#allocation11 + $0x38c] sm:$0xff]
          %v4602 = vld [vmem:[#allocation11 + $0x394] sm:$0xf]
          %v4603 = vld [vmem:[#allocation11 + $0x398] sm:$0xff]
          %v4604 = vld [vmem:[#allocation11 + $0x3a0] sm:$0xff]
          %v4605 = vld [vmem:[#allocation11 + $0x3a8] sm:$0xf]
          %v4606 = vld [vmem:[#allocation11 + $0x3ac] sm:$0xff]
          %v4607 = vld [vmem:[#allocation11 + $0x3b4] sm:$0xff]
          %v4608 = vld [vmem:[#allocation11 + $0x3bc] sm:$0xf]
          %v4609 = vld [vmem:[%s8] sm:$0x1f]
          %v4611 = vlaneseq
          %v4612 = vshrl.u32 %v4611, 7
          %v4613 = vsub.s32 0, %v4612
          %v4614 = vrot.slane %v4609, %v4613
          %v4615 = vlaneseq
          %v4616 = vshrl.u32 %v4615, 7
          %v4617 = vsub.s32 1, %v4616
          %v4618 = vrot.slane %v4609, %v4617
          %v4619 = vlaneseq
          %v4620 = vshrl.u32 %v4619, 7
          %v4621 = vsub.s32 2, %v4620
          %v4622 = vrot.slane %v4609, %v4621
          %v4623 = vlaneseq
          %v4624 = vshrl.u32 %v4623, 7
          %v4625 = vsub.s32 3, %v4624
          %v4626 = vrot.slane %v4609, %v4625
          %v4627 = vlaneseq
          %v4628 = vshrl.u32 %v4627, 7
          %v4629 = vsub.s32 4, %v4628
          %v4630 = vrot.slane %v4609, %v4629
          %v4780 = vunpack.c.l.b16 %v4465
          %v4781 = vunpack.c.h.b16 %v4465
          %v4782 = vunpack.c.l.b16 %v4466
          %v4783 = vunpack.c.h.b16 %v4466
          %v4784 = vunpack.c.l.b16 %v4467
          %v4785 = vunpack.c.l.b16 %v4468
          %v4786 = vunpack.c.h.b16 %v4468
          %v4787 = vunpack.c.l.b16 %v4469
          %v4788 = vunpack.c.h.b16 %v4469
          %v4789 = vunpack.c.l.b16 %v4470
          %v4790 = vunpack.c.l.b16 %v4471
          %v4791 = vunpack.c.h.b16 %v4471
          %v4792 = vunpack.c.l.b16 %v4472
          %v4793 = vunpack.c.h.b16 %v4472
          %v4794 = vunpack.c.l.b16 %v4473
          %v4795 = vunpack.c.l.b16 %v4474
          %v4796 = vunpack.c.h.b16 %v4474
          %v4797 = vunpack.c.l.b16 %v4475
          %v4798 = vunpack.c.h.b16 %v4475
          %v4799 = vunpack.c.l.b16 %v4476
          %v4800 = vunpack.c.l.b16 %v4477
          %v4801 = vunpack.c.h.b16 %v4477
          %v4802 = vunpack.c.l.b16 %v4478
          %v4803 = vunpack.c.h.b16 %v4478
          %v4804 = vunpack.c.l.b16 %v4479
          %v4805 = vunpack.c.l.b16 %v4480
          %v4806 = vunpack.c.h.b16 %v4480
          %v4807 = vunpack.c.l.b16 %v4481
          %v4808 = vunpack.c.h.b16 %v4481
          %v4809 = vunpack.c.l.b16 %v4482
          %v4810 = vunpack.c.l.b16 %v4483
          %v4811 = vunpack.c.h.b16 %v4483
          %v4812 = vunpack.c.l.b16 %v4484
          %v4813 = vunpack.c.h.b16 %v4484
          %v4814 = vunpack.c.l.b16 %v4485
          %v4815 = vunpack.c.l.b16 %v4486
          %v4816 = vunpack.c.h.b16 %v4486
          %v4817 = vunpack.c.l.b16 %v4487
          %v4818 = vunpack.c.h.b16 %v4487
          %v4819 = vunpack.c.l.b16 %v4488
          %v4820 = vunpack.c.l.b16 %v4489
          %v4821 = vunpack.c.h.b16 %v4489
          %v4822 = vunpack.c.l.b16 %v4490
          %v4823 = vunpack.c.h.b16 %v4490
          %v4824 = vunpack.c.l.b16 %v4491
          %v4825 = vunpack.c.l.b16 %v4492
          %v4826 = vunpack.c.h.b16 %v4492
          %v4827 = vunpack.c.l.b16 %v4493
          %v4828 = vunpack.c.h.b16 %v4493
          %v4829 = vunpack.c.l.b16 %v4494
          %v4830 = vunpack.c.l.b16 %v4495
          %v4831 = vunpack.c.h.b16 %v4495
          %v4832 = vunpack.c.l.b16 %v4496
          %v4833 = vunpack.c.h.b16 %v4496
          %v4834 = vunpack.c.l.b16 %v4497
          %v4835 = vunpack.c.l.b16 %v4498
          %v4836 = vunpack.c.h.b16 %v4498
          %v4837 = vunpack.c.l.b16 %v4499
          %v4838 = vunpack.c.h.b16 %v4499
          %v4839 = vunpack.c.l.b16 %v4500
          %v4840 = vunpack.c.l.b16 %v4501
          %v4841 = vunpack.c.h.b16 %v4501
          %v4842 = vunpack.c.l.b16 %v4502
          %v4843 = vunpack.c.h.b16 %v4502
          %v4844 = vunpack.c.l.b16 %v4503
          %v4845 = vunpack.c.l.b16 %v4504
          %v4846 = vunpack.c.h.b16 %v4504
          %v4847 = vunpack.c.l.b16 %v4505
          %v4848 = vunpack.c.h.b16 %v4505
          %v4849 = vunpack.c.l.b16 %v4506
          %v4850 = vunpack.c.l.b16 %v4507
          %v4851 = vunpack.c.h.b16 %v4507
          %v4852 = vunpack.c.l.b16 %v4508
          %v4853 = vunpack.c.h.b16 %v4508
          %v4854 = vunpack.c.l.b16 %v4509
          %v4855 = vunpack.c.l.b16 %v4510
          %v4856 = vunpack.c.h.b16 %v4510
          %v4857 = vunpack.c.l.b16 %v4511
          %v4858 = vunpack.c.h.b16 %v4511
          %v4859 = vunpack.c.l.b16 %v4512
          %v4860 = vunpack.c.l.b16 %v4513
          %v4861 = vunpack.c.h.b16 %v4513
          %v4862 = vunpack.c.l.b16 %v4514
          %v4863 = vunpack.c.h.b16 %v4514
          %v4864 = vunpack.c.l.b16 %v4515
          %v4865 = vunpack.c.l.b16 %v4516
          %v4866 = vunpack.c.h.b16 %v4516
          %v4867 = vunpack.c.l.b16 %v4517
          %v4868 = vunpack.c.h.b16 %v4517
          %v4869 = vunpack.c.l.b16 %v4518
          %v4870 = vunpack.c.l.b16 %v4519
          %v4871 = vunpack.c.h.b16 %v4519
          %v4872 = vunpack.c.l.b16 %v4520
          %v4873 = vunpack.c.h.b16 %v4520
          %v4874 = vunpack.c.l.b16 %v4521
          %v4875 = vunpack.c.l.b16 %v4522
          %v4876 = vunpack.c.h.b16 %v4522
          %v4877 = vunpack.c.l.b16 %v4523
          %v4878 = vunpack.c.h.b16 %v4523
          %v4879 = vunpack.c.l.b16 %v4524
          %v4880 = vunpack.c.l.b16 %v4525
          %v4881 = vunpack.c.h.b16 %v4525
          %v4882 = vunpack.c.l.b16 %v4526
          %v4883 = vunpack.c.h.b16 %v4526
          %v4884 = vunpack.c.l.b16 %v4527
          %v4885 = vunpack.c.l.b16 %v4528
          %v4886 = vunpack.c.h.b16 %v4528
          %v4887 = vunpack.c.l.b16 %v4529
          %v4888 = vunpack.c.h.b16 %v4529
          %v4889 = vunpack.c.l.b16 %v4530
          %v4890 = vunpack.c.l.b16 %v4531
          %v4891 = vunpack.c.h.b16 %v4531
          %v4892 = vunpack.c.l.b16 %v4532
          %v4893 = vunpack.c.h.b16 %v4532
          %v4894 = vunpack.c.l.b16 %v4533
          %v4895 = vunpack.c.l.b16 %v4534
          %v4896 = vunpack.c.h.b16 %v4534
          %v4897 = vunpack.c.l.b16 %v4535
          %v4898 = vunpack.c.h.b16 %v4535
          %v4899 = vunpack.c.l.b16 %v4536
          %v4900 = vunpack.c.l.b16 %v4537
          %v4901 = vunpack.c.h.b16 %v4537
          %v4902 = vunpack.c.l.b16 %v4538
          %v4903 = vunpack.c.h.b16 %v4538
          %v4904 = vunpack.c.l.b16 %v4539
          %v4905 = vunpack.c.l.b16 %v4540
          %v4906 = vunpack.c.h.b16 %v4540
          %v4907 = vunpack.c.l.b16 %v4541
          %v4908 = vunpack.c.h.b16 %v4541
          %v4909 = vunpack.c.l.b16 %v4542
          %v4910 = vunpack.c.l.b16 %v4543
          %v4911 = vunpack.c.h.b16 %v4543
          %v4912 = vunpack.c.l.b16 %v4544
          %v4913 = vunpack.c.h.b16 %v4544
          %v4914 = vunpack.c.l.b16 %v4545
          %v4915 = vunpack.c.l.b16 %v4546
          %v4916 = vunpack.c.h.b16 %v4546
          %v4917 = vunpack.c.l.b16 %v4547
          %v4918 = vunpack.c.h.b16 %v4547
          %v4919 = vunpack.c.l.b16 %v4548
          %v4920 = vunpack.c.l.b16 %v4549
          %v4921 = vunpack.c.h.b16 %v4549
          %v4922 = vunpack.c.l.b16 %v4550
          %v4923 = vunpack.c.h.b16 %v4550
          %v4924 = vunpack.c.l.b16 %v4551
          %v4925 = vunpack.c.l.b16 %v4552
          %v4926 = vunpack.c.h.b16 %v4552
          %v4927 = vunpack.c.l.b16 %v4553
          %v4928 = vunpack.c.h.b16 %v4553
          %v4929 = vunpack.c.l.b16 %v4554
          %v4930 = vunpack.c.l.b16 %v4555
          %v4931 = vunpack.c.h.b16 %v4555
          %v4932 = vunpack.c.l.b16 %v4556
          %v4933 = vunpack.c.h.b16 %v4556
          %v4934 = vunpack.c.l.b16 %v4557
          %v4935 = vunpack.c.l.b16 %v4558
          %v4936 = vunpack.c.h.b16 %v4558
          %v4937 = vunpack.c.l.b16 %v4559
          %v4938 = vunpack.c.h.b16 %v4559
          %v4939 = vunpack.c.l.b16 %v4560
          %v4940 = vunpack.c.l.b16 %v4561
          %v4941 = vunpack.c.h.b16 %v4561
          %v4942 = vunpack.c.l.b16 %v4562
          %v4943 = vunpack.c.h.b16 %v4562
          %v4944 = vunpack.c.l.b16 %v4563
          %v4945 = vunpack.c.l.b16 %v4564
          %v4946 = vunpack.c.h.b16 %v4564
          %v4947 = vunpack.c.l.b16 %v4565
          %v4948 = vunpack.c.h.b16 %v4565
          %v4949 = vunpack.c.l.b16 %v4566
          %v4950 = vunpack.c.l.b16 %v4567
          %v4951 = vunpack.c.h.b16 %v4567
          %v4952 = vunpack.c.l.b16 %v4568
          %v4953 = vunpack.c.h.b16 %v4568
          %v4954 = vunpack.c.l.b16 %v4569
          %v4955 = vunpack.c.l.b16 %v4570
          %v4956 = vunpack.c.h.b16 %v4570
          %v4957 = vunpack.c.l.b16 %v4571
          %v4958 = vunpack.c.h.b16 %v4571
          %v4959 = vunpack.c.l.b16 %v4572
          %v4960 = vunpack.c.l.b16 %v4573
          %v4961 = vunpack.c.h.b16 %v4573
          %v4962 = vunpack.c.l.b16 %v4574
          %v4963 = vunpack.c.h.b16 %v4574
          %v4964 = vunpack.c.l.b16 %v4575
          %v4965 = vunpack.c.l.b16 %v4576
          %v4966 = vunpack.c.h.b16 %v4576
          %v4967 = vunpack.c.l.b16 %v4577
          %v4968 = vunpack.c.h.b16 %v4577
          %v4969 = vunpack.c.l.b16 %v4578
          %v4970 = vunpack.c.l.b16 %v4579
          %v4971 = vunpack.c.h.b16 %v4579
          %v4972 = vunpack.c.l.b16 %v4580
          %v4973 = vunpack.c.h.b16 %v4580
          %v4974 = vunpack.c.l.b16 %v4581
          %v4975 = vunpack.c.l.b16 %v4582
          %v4976 = vunpack.c.h.b16 %v4582
          %v4977 = vunpack.c.l.b16 %v4583
          %v4978 = vunpack.c.h.b16 %v4583
          %v4979 = vunpack.c.l.b16 %v4584
          %v4980 = vunpack.c.l.b16 %v4585
          %v4981 = vunpack.c.h.b16 %v4585
          %v4982 = vunpack.c.l.b16 %v4586
          %v4983 = vunpack.c.h.b16 %v4586
          %v4984 = vunpack.c.l.b16 %v4587
          %v4985 = vunpack.c.l.b16 %v4588
          %v4986 = vunpack.c.h.b16 %v4588
          %v4987 = vunpack.c.l.b16 %v4589
          %v4988 = vunpack.c.h.b16 %v4589
          %v4989 = vunpack.c.l.b16 %v4590
          %v4990 = vunpack.c.l.b16 %v4591
          %v4991 = vunpack.c.h.b16 %v4591
          %v4992 = vunpack.c.l.b16 %v4592
          %v4993 = vunpack.c.h.b16 %v4592
          %v4994 = vunpack.c.l.b16 %v4593
          %v4995 = vunpack.c.l.b16 %v4594
          %v4996 = vunpack.c.h.b16 %v4594
          %v4997 = vunpack.c.l.b16 %v4595
          %v4998 = vunpack.c.h.b16 %v4595
          %v4999 = vunpack.c.l.b16 %v4596
          %v5000 = vunpack.c.l.b16 %v4597
          %v5001 = vunpack.c.h.b16 %v4597
          %v5002 = vunpack.c.l.b16 %v4598
          %v5003 = vunpack.c.h.b16 %v4598
          %v5004 = vunpack.c.l.b16 %v4599
          %v5005 = vunpack.c.l.b16 %v4600
          %v5006 = vunpack.c.h.b16 %v4600
          %v5007 = vunpack.c.l.b16 %v4601
          %v5008 = vunpack.c.h.b16 %v4601
          %v5009 = vunpack.c.l.b16 %v4602
          %v5010 = vunpack.c.l.b16 %v4603
          %v5011 = vunpack.c.h.b16 %v4603
          %v5012 = vunpack.c.l.b16 %v4604
          %v5013 = vunpack.c.h.b16 %v4604
          %v5014 = vunpack.c.l.b16 %v4605
          %v5015 = vunpack.c.l.b16 %v4606
          %v5016 = vunpack.c.h.b16 %v4606
          %v5017 = vunpack.c.l.b16 %v4607
          %v5018 = vunpack.c.h.b16 %v4607
          %v5019 = vunpack.c.l.b16 %v4608
          %v5020 = vpack.c.b16 %v4785, %v4780
          %v5021 = vpack.c.b16 %v4786, %v4781
          %v5022 = vpack.c.b16 %v4787, %v4782
          %v5023 = vpack.c.b16 %v4788, %v4783
          %v5024 = vpack.c.b16 %v4789, %v4784
          %v5025 = vpack.c.b16 %v4795, %v4790
          %v5026 = vpack.c.b16 %v4796, %v4791
          %v5027 = vpack.c.b16 %v4797, %v4792
          %v5028 = vpack.c.b16 %v4798, %v4793
          %v5029 = vpack.c.b16 %v4799, %v4794
          %v5030 = vpack.c.b16 %v4805, %v4800
          %v5031 = vpack.c.b16 %v4806, %v4801
          %v5032 = vpack.c.b16 %v4807, %v4802
          %v5033 = vpack.c.b16 %v4808, %v4803
          %v5034 = vpack.c.b16 %v4809, %v4804
          %v5035 = vpack.c.b16 %v4815, %v4810
          %v5036 = vpack.c.b16 %v4816, %v4811
          %v5037 = vpack.c.b16 %v4817, %v4812
          %v5038 = vpack.c.b16 %v4818, %v4813
          %v5039 = vpack.c.b16 %v4819, %v4814
          %v5040 = vpack.c.b16 %v4825, %v4820
          %v5041 = vpack.c.b16 %v4826, %v4821
          %v5042 = vpack.c.b16 %v4827, %v4822
          %v5043 = vpack.c.b16 %v4828, %v4823
          %v5044 = vpack.c.b16 %v4829, %v4824
          %v5045 = vpack.c.b16 %v4835, %v4830
          %v5046 = vpack.c.b16 %v4836, %v4831
          %v5047 = vpack.c.b16 %v4837, %v4832
          %v5048 = vpack.c.b16 %v4838, %v4833
          %v5049 = vpack.c.b16 %v4839, %v4834
          %v5050 = vpack.c.b16 %v4845, %v4840
          %v5051 = vpack.c.b16 %v4846, %v4841
          %v5052 = vpack.c.b16 %v4847, %v4842
          %v5053 = vpack.c.b16 %v4848, %v4843
          %v5054 = vpack.c.b16 %v4849, %v4844
          %v5055 = vpack.c.b16 %v4855, %v4850
          %v5056 = vpack.c.b16 %v4856, %v4851
          %v5057 = vpack.c.b16 %v4857, %v4852
          %v5058 = vpack.c.b16 %v4858, %v4853
          %v5059 = vpack.c.b16 %v4859, %v4854
          %v5060 = vpack.c.b16 %v4865, %v4860
          %v5061 = vpack.c.b16 %v4866, %v4861
          %v5062 = vpack.c.b16 %v4867, %v4862
          %v5063 = vpack.c.b16 %v4868, %v4863
          %v5064 = vpack.c.b16 %v4869, %v4864
          %v5065 = vpack.c.b16 %v4875, %v4870
          %v5066 = vpack.c.b16 %v4876, %v4871
          %v5067 = vpack.c.b16 %v4877, %v4872
          %v5068 = vpack.c.b16 %v4878, %v4873
          %v5069 = vpack.c.b16 %v4879, %v4874
          %v5070 = vpack.c.b16 %v4885, %v4880
          %v5071 = vpack.c.b16 %v4886, %v4881
          %v5072 = vpack.c.b16 %v4887, %v4882
          %v5073 = vpack.c.b16 %v4888, %v4883
          %v5074 = vpack.c.b16 %v4889, %v4884
          %v5075 = vpack.c.b16 %v4895, %v4890
          %v5076 = vpack.c.b16 %v4896, %v4891
          %v5077 = vpack.c.b16 %v4897, %v4892
          %v5078 = vpack.c.b16 %v4898, %v4893
          %v5079 = vpack.c.b16 %v4899, %v4894
          %v5080 = vpack.c.b16 %v4905, %v4900
          %v5081 = vpack.c.b16 %v4906, %v4901
          %v5082 = vpack.c.b16 %v4907, %v4902
          %v5083 = vpack.c.b16 %v4908, %v4903
          %v5084 = vpack.c.b16 %v4909, %v4904
          %v5085 = vpack.c.b16 %v4915, %v4910
          %v5086 = vpack.c.b16 %v4916, %v4911
          %v5087 = vpack.c.b16 %v4917, %v4912
          %v5088 = vpack.c.b16 %v4918, %v4913
          %v5089 = vpack.c.b16 %v4919, %v4914
          %v5090 = vpack.c.b16 %v4925, %v4920
          %v5091 = vpack.c.b16 %v4926, %v4921
          %v5092 = vpack.c.b16 %v4927, %v4922
          %v5093 = vpack.c.b16 %v4928, %v4923
          %v5094 = vpack.c.b16 %v4929, %v4924
          %v5095 = vpack.c.b16 %v4935, %v4930
          %v5096 = vpack.c.b16 %v4936, %v4931
          %v5097 = vpack.c.b16 %v4937, %v4932
          %v5098 = vpack.c.b16 %v4938, %v4933
          %v5099 = vpack.c.b16 %v4939, %v4934
          %v5100 = vpack.c.b16 %v4945, %v4940
          %v5101 = vpack.c.b16 %v4946, %v4941
          %v5102 = vpack.c.b16 %v4947, %v4942
          %v5103 = vpack.c.b16 %v4948, %v4943
          %v5104 = vpack.c.b16 %v4949, %v4944
          %v5105 = vpack.c.b16 %v4955, %v4950
          %v5106 = vpack.c.b16 %v4956, %v4951
          %v5107 = vpack.c.b16 %v4957, %v4952
          %v5108 = vpack.c.b16 %v4958, %v4953
          %v5109 = vpack.c.b16 %v4959, %v4954
          %v5110 = vpack.c.b16 %v4965, %v4960
          %v5111 = vpack.c.b16 %v4966, %v4961
          %v5112 = vpack.c.b16 %v4967, %v4962
          %v5113 = vpack.c.b16 %v4968, %v4963
          %v5114 = vpack.c.b16 %v4969, %v4964
          %v5115 = vpack.c.b16 %v4975, %v4970
          %v5116 = vpack.c.b16 %v4976, %v4971
          %v5117 = vpack.c.b16 %v4977, %v4972
          %v5118 = vpack.c.b16 %v4978, %v4973
          %v5119 = vpack.c.b16 %v4979, %v4974
          %v5120 = vpack.c.b16 %v4985, %v4980
          %v5121 = vpack.c.b16 %v4986, %v4981
          %v5122 = vpack.c.b16 %v4987, %v4982
          %v5123 = vpack.c.b16 %v4988, %v4983
          %v5124 = vpack.c.b16 %v4989, %v4984
          %v5125 = vpack.c.b16 %v4995, %v4990
          %v5126 = vpack.c.b16 %v4996, %v4991
          %v5127 = vpack.c.b16 %v4997, %v4992
          %v5128 = vpack.c.b16 %v4998, %v4993
          %v5129 = vpack.c.b16 %v4999, %v4994
          %v5130 = vpack.c.b16 %v5005, %v5000
          %v5131 = vpack.c.b16 %v5006, %v5001
          %v5132 = vpack.c.b16 %v5007, %v5002
          %v5133 = vpack.c.b16 %v5008, %v5003
          %v5134 = vpack.c.b16 %v5009, %v5004
          %v5135 = vpack.c.b16 %v5015, %v5010
          %v5136 = vpack.c.b16 %v5016, %v5011
          %v5137 = vpack.c.b16 %v5017, %v5012
          %v5138 = vpack.c.b16 %v5018, %v5013
          %v5139 = vpack.c.b16 %v5019, %v5014
          %5260 = vmatprep.subr.bf16.mxu0 %v5056
          %5261 = vmatpush1.bf16.msra.mxu0 %v5055
          %5262 = vmatprep.subr.bf16.mxu0 %v5051
          %5263 = vmatpush1.bf16.msra.mxu0 %v5050
          %5264 = vmatprep.subr.bf16.mxu0 %v5046
          %5265 = vmatpush1.bf16.msra.mxu0 %v5045
          %5266 = vmatprep.subr.bf16.mxu0 %v5041
          %5267 = vmatpush1.bf16.msra.mxu0 %v5040
          %5268 = vmatprep.subr.bf16.mxu0 %v5036
          %5269 = vmatpush1.bf16.msra.mxu0 %v5035
          %5270 = vmatprep.subr.bf16.mxu0 %v5031
          %5271 = vmatpush1.bf16.msra.mxu0 %v5030
          %5272 = vmatprep.subr.bf16.mxu0 %v5026
          %5273 = vmatpush1.bf16.msra.mxu0 %v5025
          %5274 = vmatprep.subr.bf16.mxu0 %v5021
          %5275 = vmatpush1.bf16.msra.mxu0 %v5020
          %5276 = vmatprep.subr.bf16.mxu0 %v5096
          %5277 = vmatpush2.bf16.msra.mxu0 %v5095
          %5278 = vmatprep.subr.bf16.mxu0 %v5091
          %5279 = vmatpush2.bf16.msra.mxu0 %v5090
          %5280 = vmatprep.subr.bf16.mxu0 %v5086
          %5281 = vmatpush2.bf16.msra.mxu0 %v5085
          %5282 = vmatprep.subr.bf16.mxu0 %v5081
          %5283 = vmatpush2.bf16.msra.mxu0 %v5080
          %5284 = vmatprep.subr.bf16.mxu0 %v5076
          %5285 = vmatpush2.bf16.msra.mxu0 %v5075
          %5286 = vmatprep.subr.bf16.mxu0 %v5071
          %5287 = vmatpush2.bf16.msra.mxu0 %v5070
          %5288 = vmatprep.subr.bf16.mxu0 %v5066
          %5289 = vmatpush2.bf16.msra.mxu0 %v5065
          %5290 = vmatprep.subr.bf16.mxu0 %v5061
          %5291 = vmatpush2.bf16.msra.mxu0 %v5060
          %5292 = vmatprep.mubr.bf16.mxu0 %v4460
          %5293 = vmatmul.mubr.bf16.gmra.mxu0 %v4459
          %v5294 = vpop.f32.mrf.mxu0
          %v5295 = vadd.f32 %v4614, %v5294
          %v5296 = vpop.f32.mrf.mxu0
          %v5297 = vadd.f32 %v4618, %v5296
          %v5298 = vpop.f32.mrf.mxu0
          %v5299 = vadd.f32 %v4614, %v5298
          %v5300 = vpop.f32.mrf.mxu0
          %v5301 = vadd.f32 %v4618, %v5300
          %5302 = vmatprep.mubr.bf16.mxu0 %v4463
          %5303 = vmatmul.mubr.bf16.gmra.mxu0 %v4462
          %v5304 = vpop.f32.mrf.mxu0
          %v5305 = vadd.f32 %v4614, %v5304
          %v5306 = vpop.f32.mrf.mxu0
          %v5307 = vadd.f32 %v4618, %v5306
          %v5308 = vpop.f32.mrf.mxu0
          %v5309 = vadd.f32 %v4614, %v5308
          %v5310 = vpop.f32.mrf.mxu0
          %v5311 = vadd.f32 %v4618, %v5310
          %5312 = vdwg.mxu0
          %5313 = vmatprep.subr.bf16.mxu0 %v5136
          %5314 = vmatpush1.bf16.msra.mxu0 %v5135
          %5315 = vmatprep.subr.bf16.mxu0 %v5131
          %5316 = vmatpush1.bf16.msra.mxu0 %v5130
          %5317 = vmatprep.subr.bf16.mxu0 %v5126
          %5318 = vmatpush1.bf16.msra.mxu0 %v5125
          %5319 = vmatprep.subr.bf16.mxu0 %v5121
          %5320 = vmatpush1.bf16.msra.mxu0 %v5120
          %5321 = vmatprep.subr.bf16.mxu0 %v5116
          %5322 = vmatpush1.bf16.msra.mxu0 %v5115
          %5323 = vmatprep.subr.bf16.mxu0 %v5111
          %5324 = vmatpush1.bf16.msra.mxu0 %v5110
          %5325 = vmatprep.subr.bf16.mxu0 %v5106
          %5326 = vmatpush1.bf16.msra.mxu0 %v5105
          %5327 = vmatprep.subr.bf16.mxu0 %v5101
          %5328 = vmatpush1.bf16.msra.mxu0 %v5100
          %5329 = vmatprep.subr.bf16.mxu0 0
          %5330 = vmatpush2.bf16.msra.mxu0 0
          %5331 = vmatprep.subr.bf16.mxu0 0
          %5332 = vmatpush2.bf16.msra.mxu0 0
          %5333 = vmatprep.subr.bf16.mxu0 0
          %5334 = vmatpush2.bf16.msra.mxu0 0
          %5335 = vmatprep.subr.bf16.mxu0 0
          %5336 = vmatpush2.bf16.msra.mxu0 0
          %5337 = vmatprep.subr.bf16.mxu0 0
          %5338 = vmatpush2.bf16.msra.mxu0 0
          %5339 = vmatprep.subr.bf16.mxu0 0
          %5340 = vmatpush2.bf16.msra.mxu0 0
          %5341 = vmatprep.subr.bf16.mxu0 0
          %5342 = vmatpush2.bf16.msra.mxu0 0
          %5343 = vmatprep.subr.bf16.mxu0 0
          %5344 = vmatpush2.bf16.msra.mxu0 0
          %5345 = vmatprep.mubr.bf16.mxu0 0
          %5346 = vmatmul.mubr.bf16.gmra.mxu0 %v4461
          %v5347 = vpop.f32.mrf.mxu0
          %v5348 = vadd.f32 %v5295, %v5347
          %v5349 = vpop.f32.mrf.mxu0
          %v5350 = vadd.f32 %v5297, %v5349
          %v5351 = vpop.f32.mrf.mxu0
          %v5352 = vadd.f32 %v5299, %v5351
          %v5353 = vpop.f32.mrf.mxu0
          %v5354 = vadd.f32 %v5301, %v5353
          %5355 = vmatprep.mubr.bf16.mxu0 0
          %5356 = vmatmul.mubr.bf16.gmra.mxu0 %v4464
          %v5357 = vpop.f32.mrf.mxu0
          %v5358 = vadd.f32 %v5305, %v5357
          %v5359 = vpop.f32.mrf.mxu0
          %v5360 = vadd.f32 %v5307, %v5359
          %v5361 = vpop.f32.mrf.mxu0
          %v5362 = vadd.f32 %v5309, %v5361
          %v5363 = vpop.f32.mrf.mxu0
          %v5364 = vadd.f32 %v5311, %v5363
          %5365 = vdwg.mxu0
          %5366 = vmatprep.subr.bf16.mxu0 %v5058
          %5367 = vmatpush1.bf16.msra.mxu0 %v5057
          %5368 = vmatprep.subr.bf16.mxu0 %v5053
          %5369 = vmatpush1.bf16.msra.mxu0 %v5052
          %5370 = vmatprep.subr.bf16.mxu0 %v5048
          %5371 = vmatpush1.bf16.msra.mxu0 %v5047
          %5372 = vmatprep.subr.bf16.mxu0 %v5043
          %5373 = vmatpush1.bf16.msra.mxu0 %v5042
          %5374 = vmatprep.subr.bf16.mxu0 %v5038
          %5375 = vmatpush1.bf16.msra.mxu0 %v5037
          %5376 = vmatprep.subr.bf16.mxu0 %v5033
          %5377 = vmatpush1.bf16.msra.mxu0 %v5032
          %5378 = vmatprep.subr.bf16.mxu0 %v5028
          %5379 = vmatpush1.bf16.msra.mxu0 %v5027
          %5380 = vmatprep.subr.bf16.mxu0 %v5023
          %5381 = vmatpush1.bf16.msra.mxu0 %v5022
          %5382 = vmatprep.subr.bf16.mxu0 %v5098
          %5383 = vmatpush2.bf16.msra.mxu0 %v5097
          %5384 = vmatprep.subr.bf16.mxu0 %v5093
          %5385 = vmatpush2.bf16.msra.mxu0 %v5092
          %5386 = vmatprep.subr.bf16.mxu0 %v5088
          %5387 = vmatpush2.bf16.msra.mxu0 %v5087
          %5388 = vmatprep.subr.bf16.mxu0 %v5083
          %5389 = vmatpush2.bf16.msra.mxu0 %v5082
          %5390 = vmatprep.subr.bf16.mxu0 %v5078
          %5391 = vmatpush2.bf16.msra.mxu0 %v5077
          %5392 = vmatprep.subr.bf16.mxu0 %v5073
          %5393 = vmatpush2.bf16.msra.mxu0 %v5072
          %5394 = vmatprep.subr.bf16.mxu0 %v5068
          %5395 = vmatpush2.bf16.msra.mxu0 %v5067
          %5396 = vmatprep.subr.bf16.mxu0 %v5063
          %5397 = vmatpush2.bf16.msra.mxu0 %v5062
          %5398 = vmatprep.mubr.bf16.mxu0 %v4460
          %5399 = vmatmul.mubr.bf16.gmra.mxu0 %v4459
          %v5400 = vpop.f32.mrf.mxu0
          %v5401 = vadd.f32 %v4622, %v5400
          %v5402 = vpop.f32.mrf.mxu0
          %v5403 = vadd.f32 %v4626, %v5402
          %v5404 = vpop.f32.mrf.mxu0
          %v5405 = vadd.f32 %v4622, %v5404
          %v5406 = vpop.f32.mrf.mxu0
          %v5407 = vadd.f32 %v4626, %v5406
          %5408 = vmatprep.mubr.bf16.mxu0 %v4463
          %5409 = vmatmul.mubr.bf16.gmra.mxu0 %v4462
          %v5410 = vpop.f32.mrf.mxu0
          %v5411 = vadd.f32 %v4622, %v5410
          %v5412 = vpop.f32.mrf.mxu0
          %v5413 = vadd.f32 %v4626, %v5412
          %v5414 = vpop.f32.mrf.mxu0
          %v5415 = vadd.f32 %v4622, %v5414
          %v5416 = vpop.f32.mrf.mxu0
          %v5417 = vadd.f32 %v4626, %v5416
          %5418 = vdwg.mxu0
          %5419 = vmatprep.subr.bf16.mxu0 %v5138
          %5420 = vmatpush1.bf16.msra.mxu0 %v5137
          %5421 = vmatprep.subr.bf16.mxu0 %v5133
          %5422 = vmatpush1.bf16.msra.mxu0 %v5132
          %5423 = vmatprep.subr.bf16.mxu0 %v5128
          %5424 = vmatpush1.bf16.msra.mxu0 %v5127
          %5425 = vmatprep.subr.bf16.mxu0 %v5123
          %5426 = vmatpush1.bf16.msra.mxu0 %v5122
          %5427 = vmatprep.subr.bf16.mxu0 %v5118
          %5428 = vmatpush1.bf16.msra.mxu0 %v5117
          %5429 = vmatprep.subr.bf16.mxu0 %v5113
          %5430 = vmatpush1.bf16.msra.mxu0 %v5112
          %5431 = vmatprep.subr.bf16.mxu0 %v5108
          %5432 = vmatpush1.bf16.msra.mxu0 %v5107
          %5433 = vmatprep.subr.bf16.mxu0 %v5103
          %5434 = vmatpush1.bf16.msra.mxu0 %v5102
          %5435 = vmatprep.subr.bf16.mxu0 0
          %5436 = vmatpush2.bf16.msra.mxu0 0
          %5437 = vmatprep.subr.bf16.mxu0 0
          %5438 = vmatpush2.bf16.msra.mxu0 0
          %5439 = vmatprep.subr.bf16.mxu0 0
          %5440 = vmatpush2.bf16.msra.mxu0 0
          %5441 = vmatprep.subr.bf16.mxu0 0
          %5442 = vmatpush2.bf16.msra.mxu0 0
          %5443 = vmatprep.subr.bf16.mxu0 0
          %5444 = vmatpush2.bf16.msra.mxu0 0
          %5445 = vmatprep.subr.bf16.mxu0 0
          %5446 = vmatpush2.bf16.msra.mxu0 0
          %5447 = vmatprep.subr.bf16.mxu0 0
          %5448 = vmatpush2.bf16.msra.mxu0 0
          %5449 = vmatprep.subr.bf16.mxu0 0
          %5450 = vmatpush2.bf16.msra.mxu0 0
          %5451 = vmatprep.mubr.bf16.mxu0 0
          %5452 = vmatmul.mubr.bf16.gmra.mxu0 %v4461
          %v5453 = vpop.f32.mrf.mxu0
          %v5454 = vadd.f32 %v5401, %v5453
          %v5455 = vpop.f32.mrf.mxu0
          %v5456 = vadd.f32 %v5403, %v5455
          %v5457 = vpop.f32.mrf.mxu0
          %v5458 = vadd.f32 %v5405, %v5457
          %v5459 = vpop.f32.mrf.mxu0
          %v5460 = vadd.f32 %v5407, %v5459
          %5461 = vmatprep.mubr.bf16.mxu0 0
          %5462 = vmatmul.mubr.bf16.gmra.mxu0 %v4464
          %v5463 = vpop.f32.mrf.mxu0
          %v5464 = vadd.f32 %v5411, %v5463
          %v5465 = vpop.f32.mrf.mxu0
          %v5466 = vadd.f32 %v5413, %v5465
          %v5467 = vpop.f32.mrf.mxu0
          %v5468 = vadd.f32 %v5415, %v5467
          %v5469 = vpop.f32.mrf.mxu0
          %v5470 = vadd.f32 %v5417, %v5469
          %5471 = vdwg.mxu0
          %5472 = vmatprep.subr.bf16.mxu0 0
          %5473 = vmatpush1.bf16.msra.mxu0 %v5059
          %5474 = vmatprep.subr.bf16.mxu0 0
          %5475 = vmatpush1.bf16.msra.mxu0 %v5054
          %5476 = vmatprep.subr.bf16.mxu0 0
          %5477 = vmatpush1.bf16.msra.mxu0 %v5049
          %5478 = vmatprep.subr.bf16.mxu0 0
          %5479 = vmatpush1.bf16.msra.mxu0 %v5044
          %5480 = vmatprep.subr.bf16.mxu0 0
          %5481 = vmatpush1.bf16.msra.mxu0 %v5039
          %5482 = vmatprep.subr.bf16.mxu0 0
          %5483 = vmatpush1.bf16.msra.mxu0 %v5034
          %5484 = vmatprep.subr.bf16.mxu0 0
          %5485 = vmatpush1.bf16.msra.mxu0 %v5029
          %5486 = vmatprep.subr.bf16.mxu0 0
          %5487 = vmatpush1.bf16.msra.mxu0 %v5024
          %5488 = vmatprep.subr.bf16.mxu0 0
          %5489 = vmatpush2.bf16.msra.mxu0 %v5099
          %5490 = vmatprep.subr.bf16.mxu0 0
          %5491 = vmatpush2.bf16.msra.mxu0 %v5094
          %5492 = vmatprep.subr.bf16.mxu0 0
          %5493 = vmatpush2.bf16.msra.mxu0 %v5089
          %5494 = vmatprep.subr.bf16.mxu0 0
          %5495 = vmatpush2.bf16.msra.mxu0 %v5084
          %5496 = vmatprep.subr.bf16.mxu0 0
          %5497 = vmatpush2.bf16.msra.mxu0 %v5079
          %5498 = vmatprep.subr.bf16.mxu0 0
          %5499 = vmatpush2.bf16.msra.mxu0 %v5074
          %5500 = vmatprep.subr.bf16.mxu0 0
          %5501 = vmatpush2.bf16.msra.mxu0 %v5069
          %5502 = vmatprep.subr.bf16.mxu0 0
          %5503 = vmatpush2.bf16.msra.mxu0 %v5064
          %5504 = vmatprep.mubr.bf16.mxu0 %v4460
          %5505 = vmatmul.mubr.bf16.gmra.mxu0 %v4459
          %v5506 = vpop.f32.mrf.mxu0
          %v5507 = vadd.f32 %v4630, %v5506
          %v5508 = vpop.f32.mrf.mxu0
          %v5509 = vpop.f32.mrf.mxu0
          %v5510 = vadd.f32 %v4630, %v5509
          %v5511 = vpop.f32.mrf.mxu0
          %5512 = vmatprep.mubr.bf16.mxu0 %v4463
          %5513 = vmatmul.mubr.bf16.gmra.mxu0 %v4462
          %v5514 = vpop.f32.mrf.mxu0
          %v5515 = vadd.f32 %v4630, %v5514
          %v5516 = vpop.f32.mrf.mxu0
          %v5517 = vpop.f32.mrf.mxu0
          %v5518 = vadd.f32 %v4630, %v5517
          %v5519 = vpop.f32.mrf.mxu0
          %5520 = vdwg.mxu0
          %5521 = vmatprep.subr.bf16.mxu0 0
          %5522 = vmatpush1.bf16.msra.mxu0 %v5139
          %5523 = vmatprep.subr.bf16.mxu0 0
          %5524 = vmatpush1.bf16.msra.mxu0 %v5134
          %5525 = vmatprep.subr.bf16.mxu0 0
          %5526 = vmatpush1.bf16.msra.mxu0 %v5129
          %5527 = vmatprep.subr.bf16.mxu0 0
          %5528 = vmatpush1.bf16.msra.mxu0 %v5124
          %5529 = vmatprep.subr.bf16.mxu0 0
          %5530 = vmatpush1.bf16.msra.mxu0 %v5119
          %5531 = vmatprep.subr.bf16.mxu0 0
          %5532 = vmatpush1.bf16.msra.mxu0 %v5114
          %5533 = vmatprep.subr.bf16.mxu0 0
          %5534 = vmatpush1.bf16.msra.mxu0 %v5109
          %5535 = vmatprep.subr.bf16.mxu0 0
          %5536 = vmatpush1.bf16.msra.mxu0 %v5104
          %5537 = vmatprep.subr.bf16.mxu0 0
          %5538 = vmatpush2.bf16.msra.mxu0 0
          %5539 = vmatprep.subr.bf16.mxu0 0
          %5540 = vmatpush2.bf16.msra.mxu0 0
          %5541 = vmatprep.subr.bf16.mxu0 0
          %5542 = vmatpush2.bf16.msra.mxu0 0
          %5543 = vmatprep.subr.bf16.mxu0 0
          %5544 = vmatpush2.bf16.msra.mxu0 0
          %5545 = vmatprep.subr.bf16.mxu0 0
          %5546 = vmatpush2.bf16.msra.mxu0 0
          %5547 = vmatprep.subr.bf16.mxu0 0
          %5548 = vmatpush2.bf16.msra.mxu0 0
          %5549 = vmatprep.subr.bf16.mxu0 0
          %5550 = vmatpush2.bf16.msra.mxu0 0
          %5551 = vmatprep.subr.bf16.mxu0 0
          %5552 = vmatpush2.bf16.msra.mxu0 0
          %5553 = vmatprep.mubr.bf16.mxu0 0
          %5554 = vmatmul.mubr.bf16.gmra.mxu0 %v4461
          %v5555 = vpop.f32.mrf.mxu0
          %v5556 = vadd.f32 %v5507, %v5555
          %v5557 = vpop.f32.mrf.mxu0
          %v5558 = vpop.f32.mrf.mxu0
          %v5559 = vadd.f32 %v5510, %v5558
          %v5560 = vpop.f32.mrf.mxu0
          %5561 = vmatprep.mubr.bf16.mxu0 0
          %5562 = vmatmul.mubr.bf16.gmra.mxu0 %v4464
          %v5563 = vpop.f32.mrf.mxu0
          %v5564 = vadd.f32 %v5515, %v5563
          %v5565 = vpop.f32.mrf.mxu0
          %v5566 = vpop.f32.mrf.mxu0
          %v5567 = vadd.f32 %v5518, %v5566
          %v5568 = vpop.f32.mrf.mxu0
          %5569 = vdwg.mxu0
          %v5570 = vtanh.pop %v5348
          %v5571 = vtanh.pop %v5350
          %v5572 = vtanh.pop %v5454
          %v5573 = vtanh.pop %v5456
          %v5574 = vtanh.pop %v5556
          %v5575 = vtanh.pop %v5352
          %v5576 = vtanh.pop %v5354
          %v5577 = vtanh.pop %v5458
          %v5578 = vtanh.pop %v5460
          %v5579 = vtanh.pop %v5559
          %v5580 = vtanh.pop %v5358
          %v5581 = vtanh.pop %v5360
          %v5582 = vtanh.pop %v5464
          %v5583 = vtanh.pop %v5466
          %v5584 = vtanh.pop %v5564
          %v5585 = vtanh.pop %v5362
          %v5586 = vtanh.pop %v5364
          %v5587 = vtanh.pop %v5468
          %v5588 = vtanh.pop %v5470
          %v5589 = vtanh.pop %v5567
          %v5590 = vpack.c.bf16 %v5575, %v5570
          %v5591 = vpack.c.bf16 %v5576, %v5571
          %v5592 = vpack.c.bf16 %v5577, %v5572
          %v5593 = vpack.c.bf16 %v5578, %v5573
          %v5594 = vpack.c.bf16 %v5579, %v5574
          %v5595 = vpack.c.bf16 %v5585, %v5580
          %v5596 = vpack.c.bf16 %v5586, %v5581
          %v5597 = vpack.c.bf16 %v5587, %v5582
          %v5598 = vpack.c.bf16 %v5588, %v5583
          %v5599 = vpack.c.bf16 %v5589, %v5584
          %v5610 = vunpack.c.l.b16 %v5590
          %v5611 = vunpack.c.l.b16 %v5591
          %v5612 = vunpack.c.l.b16 %v5592
          %v5613 = vunpack.c.l.b16 %v5593
          %v5614 = vunpack.c.l.b16 %v5594
          %v5615 = vunpack.c.h.b16 %v5590
          %v5616 = vunpack.c.h.b16 %v5591
          %v5617 = vunpack.c.h.b16 %v5592
          %v5618 = vunpack.c.h.b16 %v5593
          %v5619 = vunpack.c.h.b16 %v5594
          %v5620 = vunpack.c.l.b16 %v5595
          %v5621 = vunpack.c.l.b16 %v5596
          %v5622 = vunpack.c.l.b16 %v5597
          %v5623 = vunpack.c.l.b16 %v5598
          %v5624 = vunpack.c.l.b16 %v5599
          %v5625 = vunpack.c.h.b16 %v5595
          %v5626 = vunpack.c.h.b16 %v5596
          %v5627 = vunpack.c.h.b16 %v5597
          %v5628 = vunpack.c.h.b16 %v5598
          %v5629 = vunpack.c.h.b16 %v5599
          %v5630 = vpack.c.b16 %v5611, %v5610
          %v5631 = vpack.c.b16 %v5613, %v5612
          %v5632 = vpack.c.b16 %v5614, %v5614
          %v5633 = vpack.c.b16 %v5616, %v5615
          %v5634 = vpack.c.b16 %v5618, %v5617
          %v5635 = vpack.c.b16 %v5619, %v5619
          %v5636 = vpack.c.b16 %v5621, %v5620
          %v5637 = vpack.c.b16 %v5623, %v5622
          %v5638 = vpack.c.b16 %v5624, %v5624
          %v5639 = vpack.c.b16 %v5626, %v5625
          %v5640 = vpack.c.b16 %v5628, %v5627
          %v5641 = vpack.c.b16 %v5629, %v5629
          %5654 = vst [vmem:[%s496] sm:$0xff] %v5630
          %5655 = vst [vmem:[%s496 + $0x8] sm:$0xff] %v5631
          %5656 = vst [vmem:[%s496 + $0x10] sm:$0xf] %v5632
          %5657 = vst [vmem:[%s496 + $0x14] sm:$0xff] %v5633
          %5658 = vst [vmem:[%s496 + $0x1c] sm:$0xff] %v5634
          %5659 = vst [vmem:[%s496 + $0x24] sm:$0xf] %v5635
          %5660 = vst [vmem:[%s496 + $0x28] sm:$0xff] %v5636
          %5661 = vst [vmem:[%s496 + $0x30] sm:$0xff] %v5637
          %5662 = vst [vmem:[%s496 + $0x38] sm:$0xf] %v5638
          %5663 = vst [vmem:[%s496 + $0x3c] sm:$0xff] %v5639
          %5664 = vst [vmem:[%s496 + $0x44] sm:$0xff] %v5640
          %5665 = vst [vmem:[%s496 + $0x4c] sm:$0xf] %v5641
          %5666 = vst [vmem:[%s463] sm:$0xff] %v4051
          %5667 = vst [vmem:[%s463 + $0x8] sm:$0xff] %v4053
          %5668 = vst [vmem:[%s463 + $0x10] sm:$0xff] %v4210
          %5669 = vst [vmem:[%s463 + $0x18] sm:$0xff] %v4055
          %5670 = vst [vmem:[%s463 + $0x20] sm:$0xff] %v4057
          %5671 = vst [vmem:[%s463 + $0x28] sm:$0xff] %v4214
          %5672 = vst [vmem:[%s463 + $0x30] sm:$0xff] %v4061
          %5673 = vst [vmem:[%s463 + $0x38] sm:$0xff] %v4063
          %5674 = vst [vmem:[%s463 + $0x40] sm:$0xff] %v4220
          %5675 = vst [vmem:[%s463 + $0x48] sm:$0xff] %v4065
          %5676 = vst [vmem:[%s463 + $0x50] sm:$0xff] %v4067
          %5677 = vst [vmem:[%s463 + $0x58] sm:$0xff] %v4224
          %5678 = vst [vmem:[%s470] sm:$0xff] %v4212
          %5679 = vst [vmem:[%s470 + $0x8] sm:$0xff] %v4369
          %5680 = vst [vmem:[%s470 + $0x10] sm:$0xff] %v4371
          %5681 = vst [vmem:[%s470 + $0x18] sm:$0xff] %v4216
          %5682 = vst [vmem:[%s470 + $0x20] sm:$0xff] %v4373
          %5683 = vst [vmem:[%s470 + $0x28] sm:$0xff] %v4375
          %5684 = vst [vmem:[%s470 + $0x30] sm:$0xff] %v4222
          %5685 = vst [vmem:[%s470 + $0x38] sm:$0xff] %v4379
          %5686 = vst [vmem:[%s470 + $0x40] sm:$0xff] %v4381
          %5687 = vst [vmem:[%s470 + $0x48] sm:$0xff] %v4226
          %5688 = vst [vmem:[%s470 + $0x50] sm:$0xff] %v4383
          %5689 = vst [vmem:[%s470 + $0x58] sm:$0xff] %v4385
        $region72: #{cvae_forward.2} parent=51 // pred_fallthru
          _
        %s5690 = smul.u32 4, %s36
        %p5691 = scmp.lt.s32.totalorder %s5690, 7
        %s5692 = scalar_select %p5691, %s5690, 7
        %s5693 = smul.addr %s5692, 5
        %s5694 = smul.addr %s5693, 4
        %s5695 = scalar_lea.vmem %s9, %s5694
        %s5696 = sand.u32 %s263, 1
        %s5697 = scalar_lea.sflag [#allocation8], %s5696
        %s5698 = sand.u32 %s263, 1
        %s5699 = smul.addr %s5698, 96
        %s5700 = scalar_lea.vmem [#allocation12], %s5699
        %s5701 = sand.u32 %s289, 1
        %s5702 = scalar_lea.sflag [#allocation14], %s5701
        %s5703 = sand.u32 %s289, 1
        %s5704 = smul.addr %s5703, 96
        %s5705 = scalar_lea.vmem [#allocation13], %s5704
        // Predicated region
        $region73: #{cvae_forward.2} parent=51 // pred_check
          %p5706 = pneg %p247
        $region74: #{cvae_forward.2} parent=51 // pred_check_branch
          %5708 = sbr.rel (%p5706) target = $region76
        $region75: #{cvae_forward.2} parent=51 // pred_region
          %s5709 = smul.u32 4, %s36
        $region76: #{cvae_forward.2} parent=51 // pred_fallthru
          _
        // Predicated region
        $region77: #{cvae_forward.2} parent=51 // pred_check
          %p5710 = pneg %p273
        $region78: #{cvae_forward.2} parent=51 // pred_check_branch
          %5712 = sbr.rel (%p5710) target = $region80
        $region79: #{cvae_forward.2} parent=51 // pred_region
          %s5713 = smul.u32 4, %s36
          %s5715 = ssub.s32 1536, 1536
          %5716 = vsyncadd %s5697, %s5715
          %s5717 = smul.addr %s5713, 3
          %s5718 = smul.addr %s5717, 128
          %s5719 = scalar_lea.hbm %s10, %s5718
          %s5720 = sshll.u32 %s5700, 4
          %s5721 = int_to_ptr.vmem [resolvable:$true] %s5720
          %5726 = dma.vmem_to_hbm [thread:$0]  %s5721, 1536, %s5719, %s5697, 384, 384, 24
        $region80: #{cvae_forward.2} parent=51 // pred_fallthru
          _
        // Predicated region
        $region81: #{cvae_forward.2} parent=51 // pred_check
          %p5727 = pneg %p299
        $region82: #{cvae_forward.2} parent=51 // pred_check_branch
          %5729 = sbr.rel (%p5727) target = $region84
        $region83: #{cvae_forward.2} parent=51 // pred_region
          %s5730 = smul.u32 4, %s36
          %s5732 = ssub.s32 1536, 1536
          %5733 = vsyncadd %s5702, %s5732
          %s5734 = smul.addr %s5730, 3
          %s5735 = smul.addr %s5734, 128
          %s5736 = scalar_lea.hbm %s11, %s5735
          %s5737 = sshll.u32 %s5705, 4
          %s5738 = int_to_ptr.vmem [resolvable:$true] %s5737
          %5743 = dma.vmem_to_hbm [thread:$0]  %s5738, 1536, %s5736, %s5702, 384, 384, 24
        $region84: #{cvae_forward.2} parent=51 // pred_fallthru
          _
      $region52: #{cvae_forward.2} parent=5 // pred_fallthru
        _
      %p5744 = scmp.le.s32.totalorder 2, %s27
      // Predicated region
      $region85: #{cvae_forward.2} parent=5 // pred_check
        %p5745 = pneg %p5744
      $region86: #{cvae_forward.2} parent=5 // pred_check_branch
        %5747 = sbr.rel (%p5745) target = $region88
      $region87: #{cvae_forward.2} parent=5 // pred_region
        %s5748 = ssub.s32 %s27, 2
        // Predicated region
        $region89: #{cvae_forward.2} parent=87 // pred_check
          %p5749 = pneg %p253
        $region90: #{cvae_forward.2} parent=87 // pred_check_branch
          %5751 = sbr.rel (%p5749) target = $region92
        $region91: #{cvae_forward.2} parent=87 // pred_region
          %s5752 = smul.u32 4, %s38
          %p5753 = scmp.lt.s32.totalorder %s5752, 7
          %s5754 = scalar_select %p5753, %s5752, 7
          %s5755 = smul.addr %s5754, 5
          %s5756 = smul.addr %s5755, 4
          %s5757 = scalar_lea.vmem %s9, %s5756
        $region92: #{cvae_forward.2} parent=87 // pred_fallthru
          _
        // Predicated region
        $region93: #{cvae_forward.2} parent=87 // pred_check
          %p5758 = pneg %p279
        $region94: #{cvae_forward.2} parent=87 // pred_check_branch
          %5760 = sbr.rel (%p5758) target = $region96
        $region95: #{cvae_forward.2} parent=87 // pred_region
          %s5761 = sand.u32 %s264, 1
          %s5762 = scalar_lea.sflag [#allocation8], %s5761
          %s5763 = sand.u32 %s264, 1
          %s5764 = smul.addr %s5763, 96
          %s5765 = scalar_lea.vmem [#allocation12], %s5764
          %5766 = dma.done %s5762, 1536
        $region96: #{cvae_forward.2} parent=87 // pred_fallthru
          _
        // Predicated region
        $region97: #{cvae_forward.2} parent=87 // pred_check
          %p5767 = pneg %p305
        $region98: #{cvae_forward.2} parent=87 // pred_check_branch
          %5769 = sbr.rel (%p5767) target = $region100
        $region99: #{cvae_forward.2} parent=87 // pred_region
          %s5770 = sand.u32 %s290, 1
          %s5771 = scalar_lea.sflag [#allocation14], %s5770
          %s5772 = sand.u32 %s290, 1
          %s5773 = smul.addr %s5772, 96
          %s5774 = scalar_lea.vmem [#allocation13], %s5773
          %5775 = dma.done %s5771, 1536
        $region100: #{cvae_forward.2} parent=87 // pred_fallthru
          _
      $region88: #{cvae_forward.2} parent=5 // pred_fallthru
        _
    $region6: #{cvae_forward.2} parent=1 // loop_footer
      %s31 = sadd.s32 1, %s27
    $region7: #{cvae_forward.2} parent=1 // loop_footer_branch
      %26 = sbr.rel target = $region3
    $region8: #{cvae_forward.2} parent=1 // loop_exit
      _
    %5776 = vsyncpa [#allocation7], 1
    %s5777 = scalar_lea.sflag [#allocation7], 1
    %5778 = vsyncpa %s5777, 1
    %5779 = vsyncpa [#allocation10], 1
    %5780 = vsyncpa [#allocation8], 1
    %s5781 = scalar_lea.sflag [#allocation8], 1
    %5782 = vsyncpa %s5781, 1
    %5783 = vsyncpa [#allocation14], 1
    %s5784 = scalar_lea.sflag [#allocation14], 1
    %5785 = vsyncpa %s5784, 1

</llo_original>
